<compile_context>
chip_gen: v5e
topology: v5e:2x2
jax: 0.10.0
libtpu: 0.0.40
codegen_flags: <defaults>
</compile_context>

<pallas_src>
import math
import functools

import jax
import jax.numpy as jnp
from jax.experimental import pallas as pl
from jax.experimental.pallas import tpu as pltpu


# ---------------------------------------------------------------------------
# In-kernel helpers (pure functions on VMEM-resident arrays)
# ---------------------------------------------------------------------------

def _layernorm(x, g, b):
    # x: (M, E) f32; g/b: (1, E) f32.  eps = 1e-5 (nn.LayerNorm default).
    mean = jnp.mean(x, axis=-1, keepdims=True)
    xc = x - mean
    var = jnp.mean(xc * xc, axis=-1, keepdims=True)
    return xc * jax.lax.rsqrt(var + 1e-5) * g + b


def _softmax(s):
    s = s - jnp.max(s, axis=-1, keepdims=True)
    p = jnp.exp(s)
    return p * pl.reciprocal(jnp.sum(p, axis=-1, keepdims=True), approx=True)


def _mha(q, k, v, w_out, b_out, mask_rows, nhead, n_batch, lq, lk):
    """Multi-head attention for the whole (flattened) batch.

    q: (N*Lq, E) f32 (Q already pre-scaled by 1/sqrt(d_head) via the weights),
    k/v: (N*Lk, E) f32, w_out: (E, E) bf16, b_out: (1, E) f32,
    mask_rows: per-batch additive masks broadcastable to (Lq, Lk), or None.
    Head outputs are concatenated and pushed through ONE out-proj matmul.
    """
    E = q.shape[-1]
    dh = E // nhead
    batch_outs = []
    for n in range(n_batch):                      # static unroll (N small)
        qn = q[n * lq:(n + 1) * lq]
        kn = k[n * lk:(n + 1) * lk]
        vn = v[n * lk:(n + 1) * lk]
        head_outs = []
        for h in range(nhead):                    # static unroll (nhead small)
            sl = slice(h * dh, (h + 1) * dh)
            s = jax.lax.dot_general(qn[:, sl], kn[:, sl],
                                    (((1,), (1,)), ((), ())),
                                    preferred_element_type=jnp.float32)
            if mask_rows is not None:
                s = s + mask_rows[n]
            p = _softmax(s)
            head_outs.append(jnp.dot(p, vn[:, sl],
                                     preferred_element_type=jnp.float32))
        batch_outs.append(jnp.concatenate(head_outs, axis=-1))   # (Lq, E)
    cat = jnp.concatenate(batch_outs, axis=0)                    # (N*Lq, E)
    return (jnp.dot(cat.astype(jnp.bfloat16), w_out,
                    preferred_element_type=jnp.float32) + b_out)


def _ff(x, w1, b1, w2, b2):
    # FF1 + ReLU + FF2 fused; the (N*L, dff) intermediate never leaves VMEM.
    h = jnp.maximum(jnp.dot(x.astype(jnp.bfloat16), w1,
                            preferred_element_type=jnp.float32) + b1, 0.0)
    return jnp.dot(h.astype(jnp.bfloat16), w2,
                   preferred_element_type=jnp.float32) + b2


# ---------------------------------------------------------------------------
# Fused stack kernels (one pallas_call for the whole encoder / decoder stack)
# ---------------------------------------------------------------------------

def _encoder_stack_kernel(x_ref, kpm_ref,
                          wqkv, bqkv, wo, bo, ln1g, ln1b,
                          w1, b1, w2, b2, ln2g, ln2b,
                          o_ref, *, nhead, n_batch):
    l = pl.program_id(0)

    # Layer 0: seed the VMEM-resident carry (the revisited output block).
    @pl.when(l == 0)
    def _():
        o_ref[...] = x_ref[...]

    x = o_ref[...]                                 # (N*S, E) f32
    E = x.shape[-1]
    seq = x.shape[0] // n_batch

    # Fused QKV projection (Q columns already carry the 1/sqrt(d_head) scale).
    qkv = jnp.dot(x.astype(jnp.bfloat16), wqkv[0],
                  preferred_element_type=jnp.float32) + bqkv[0]
    q, k, v = qkv[:, :E], qkv[:, E:2 * E], qkv[:, 2 * E:]

    kpm = kpm_ref[...]                             # (N, S) additive f32
    mask_rows = [kpm[n:n + 1, :] for n in range(n_batch)]
    attn = _mha(q, k, v, wo[0], bo[0], mask_rows, nhead, n_batch, seq, seq)
    x1 = _layernorm(x + attn, ln1g[0], ln1b[0])

    ff = _ff(x1, w1[0], b1[0], w2[0], b2[0])
    o_ref[...] = _layernorm(x1 + ff, ln2g[0], ln2b[0])


def _decoder_stack_kernel(x_ref, mem_ref, smask_ref,
                          s_wqkv, s_bqkv, s_wo, s_bo, ln1g, ln1b,
                          c_wq, c_bq, c_wkv, c_bkv, c_wo, c_bo, ln2g, ln2b,
                          w1, b1, w2, b2, ln3g, ln3b,
                          wproj, bproj,
                          o_ref, act_ref, *, nhead, n_batch):
    l = pl.program_id(0)
    nl = pl.num_programs(0)

    @pl.when(l == 0)
    def _():
        act_ref[...] = x_ref[...]

    x = act_ref[...]                               # (N*T, E) f32
    mem = mem_ref[...]                             # (N*S, E) f32
    E = x.shape[-1]
    t = x.shape[0] // n_batch
    s = mem.shape[0] // n_batch
    smask = smask_ref[...]                         # (N, T, T) additive f32

    # --- masked self-attention (causal + tgt key padding, built in wrapper) ---
    qkv = jnp.dot(x.astype(jnp.bfloat16), s_wqkv[0],
                  preferred_element_type=jnp.float32) + s_bqkv[0]
    q, k, v = qkv[:, :E], qkv[:, E:2 * E], qkv[:, 2 * E:]
    sa = _mha(q, k, v, s_wo[0], s_bo[0],
              [smask[n] for n in range(n_batch)], nhead, n_batch, t, t)
    x1 = _layernorm(x + sa, ln1g[0], ln1b[0])

    # --- cross-attention over encoder memory (no mask: reference passes none) ---
    qc = jnp.dot(x1.astype(jnp.bfloat16), c_wq[0],
                 preferred_element_type=jnp.float32) + c_bq[0]
    kvc = jnp.dot(mem.astype(jnp.bfloat16), c_wkv[0],
                  preferred_element_type=jnp.float32) + c_bkv[0]
    kc, vc = kvc[:, :E], kvc[:, E:]
    ca = _mha(qc, kc, vc, c_wo[0], c_bo[0], None, nhead, n_batch, t, s)
    x2 = _layernorm(x1 + ca, ln2g[0], ln2b[0])

    # --- fused feed-forward ---
    ff = _ff(x2, w1[0], b1[0], w2[0], b2[0])
    x3 = _layernorm(x2 + ff, ln3g[0], ln3b[0])
    act_ref[...] = x3

    # Final vocab projection folded into the last decoder step
    # (output columns padded to 128 lanes -> lane-dense store).
    @pl.when(l == nl - 1)
    def _():
        o_ref[...] = (jnp.dot(x3.astype(jnp.bfloat16), wproj[...],
                              preferred_element_type=jnp.float32) + bproj[...])


# ---------------------------------------------------------------------------
# pallas_call wrappers
# ---------------------------------------------------------------------------

def _shared_spec(a):
    zeros = (0,) * a.ndim
    return pl.BlockSpec(a.shape, lambda l: zeros)


def _stack_spec(a):
    rest = (0,) * (a.ndim - 1)
    return pl.BlockSpec((1,) + tuple(a.shape[1:]), lambda l: (l,) + rest)


def encoder_stack(x, kpm, w, nhead, n_batch):
    """x: (N*S, E) f32; kpm: (N, S) additive f32; w: stacked per-layer weights."""
    num_layers = w["w_qkv"].shape[0]
    weights = [w["w_qkv"], w["b_qkv"], w["w_out"], w["b_out"],
               w["ln1_g"], w["ln1_b"],
               w["w_ff1"], w["b_ff1"], w["w_ff2"], w["b_ff2"],
               w["ln2_g"], w["ln2_b"]]
    in_specs = ([_shared_spec(x), _shared_spec(kpm)]
                + [_stack_spec(a) for a in weights])
    return pl.pallas_call(
        functools.partial(_encoder_stack_kernel, nhead=nhead, n_batch=n_batch),
        out_shape=jax.ShapeDtypeStruct(x.shape, jnp.float32),
        grid=(num_layers,),
        in_specs=in_specs,
        out_specs=pl.BlockSpec(x.shape, lambda l: (0, 0)),
        compiler_params=pltpu.CompilerParams(dimension_semantics=("arbitrary",)),
    )(x, kpm, *weights)


def decoder_stack(x, mem, self_mask, w, w_proj, b_proj, nhead, n_batch):
    """x: (N*T, E); mem: (N*S, E); self_mask: (N, T, T) additive f32.
    Returns padded logits (N*T, V_PAD)."""
    num_layers = w["sa_w_qkv"].shape[0]
    nt, E = x.shape
    v_pad = w_proj.shape[1]
    weights = [w["sa_w_qkv"], w["sa_b_qkv"], w["sa_w_out"], w["sa_b_out"],
               w["ln1_g"], w["ln1_b"],
               w["ca_w_q"], w["ca_b_q"], w["ca_w_kv"], w["ca_b_kv"],
               w["ca_w_out"], w["ca_b_out"], w["ln2_g"], w["ln2_b"],
               w["w_ff1"], w["b_ff1"], w["w_ff2"], w["b_ff2"],
               w["ln3_g"], w["ln3_b"]]
    in_specs = ([_shared_spec(x), _shared_spec(mem), _shared_spec(self_mask)]
                + [_stack_spec(a) for a in weights]
                + [_shared_spec(w_proj), _shared_spec(b_proj)])
    return pl.pallas_call(
        functools.partial(_decoder_stack_kernel, nhead=nhead, n_batch=n_batch),
        out_shape=jax.ShapeDtypeStruct((nt, v_pad), jnp.float32),
        grid=(num_layers,),
        in_specs=in_specs,
        out_specs=pl.BlockSpec((nt, v_pad), lambda l: (0, 0)),
        scratch_shapes=[pltpu.VMEM((nt, E), jnp.float32)],
        compiler_params=pltpu.CompilerParams(dimension_semantics=("arbitrary",)),
    )(x, mem, self_mask, *weights, w_proj, b_proj)


# ---------------------------------------------------------------------------
# Model glue (plain JAX): embedding gather, masks, two pallas_calls
# ---------------------------------------------------------------------------

def positional_encoding_table(max_len, d_model):
    position = jnp.arange(max_len, dtype=jnp.float32)[:, None]
    div_term = jnp.exp(jnp.arange(0, d_model, 2, dtype=jnp.float32)
                       * (-math.log(10000.0) / d_model))
    pe = jnp.zeros((max_len, d_model), jnp.float32)
    pe = pe.at[:, 0::2].set(jnp.sin(position * div_term))
    pe = pe.at[:, 1::2].set(jnp.cos(position * div_term))
    return pe                                      # (max_len, d_model)


def transformer_forward(params, src, tgt, *, d_model, nhead,
                        src_pad, tgt_pad, tgt_vocab):
    S, N = src.shape
    T, _ = tgt.shape
    scale = math.sqrt(d_model)
    pe = params["pe"]

    # tiny additive masks (no (N*H, Lq, Lk) HBM tensor)
    src_kpm = jnp.where(src.T == src_pad, -1e9, 0.0).astype(jnp.float32)      # (N, S)
    tgt_kpm = jnp.where(tgt.T == tgt_pad, -1e9, 0.0).astype(jnp.float32)      # (N, T)
    causal = jnp.where(jnp.arange(T)[None, :] > jnp.arange(T)[:, None],
                       -1e9, 0.0).astype(jnp.float32)                          # (T, T)
    dec_self_mask = causal[None, :, :] + tgt_kpm[:, None, :]                   # (N, T, T)

    # embeddings + positional encoding, batch-major and flattened to (N*L, E)
    # (dropout = identity in eval mode)
    src_x = (jnp.take(params["src_emb"], src.T, axis=0) * scale
             + pe[:S][None]).reshape(N * S, d_model)
    tgt_x = (jnp.take(params["tgt_emb"], tgt.T, axis=0) * scale
             + pe[:T][None]).reshape(N * T, d_model)

    mem = encoder_stack(src_x, src_kpm, params["enc"], nhead, N)
    logits = decoder_stack(tgt_x, mem, dec_self_mask, params["dec"],
                           params["w_proj"], params["b_proj"], nhead, N)

    # (N*T, V_PAD) -> (T, N, V)
    return logits.reshape(N, T, -1)[:, :, :tgt_vocab].transpose(1, 0, 2)


# ---------------------------------------------------------------------------
# Deterministic parameter init (shapes mirror the PyTorch module's __init__).
# Matmul weights are pre-transposed to (in, out), pre-cast to bf16, and the
# 1/sqrt(d_head) attention scale is folded into the Q projection columns.
# Per-layer weights are stacked along a leading layer axis for the fused
# stack kernels.  Biases / LayerNorm params stay f32.
# ---------------------------------------------------------------------------

def init_params(key, d_model, nhead, num_enc, num_dec, src_vocab, tgt_vocab,
                dff=2048, max_len=5000, v_pad=128):
    E = d_model
    q_scale = 1.0 / math.sqrt(E // nhead)
    keys = iter(jax.random.split(key, 1024))

    def dense(shape, scale=0.02):
        return jax.random.normal(next(keys), shape, jnp.float32) * scale

    def wt(shape, scale=0.02):
        # torch layout (out, in) -> pre-transposed (in, out)
        return jnp.transpose(dense(shape, scale))

    def ln():
        return jnp.ones((1, E), jnp.float32), jnp.zeros((1, E), jnp.float32)

    def ff():
        return dict(w_ff1=wt((dff, E)).astype(jnp.bfloat16),
                    b_ff1=jnp.zeros((1, dff), jnp.float32),
                    w_ff2=wt((E, dff)).astype(jnp.bfloat16),
                    b_ff2=jnp.zeros((1, E), jnp.float32))

    def enc_layer():
        w_qkv = wt((3 * E, E))
        w_qkv = w_qkv.at[:, :E].multiply(q_scale)      # fold softmax scale into Q
        g1, b1 = ln(); g2, b2 = ln()
        return dict(w_qkv=w_qkv.astype(jnp.bfloat16),
                    b_qkv=jnp.zeros((1, 3 * E), jnp.float32),   # (Q bias would also be scaled)
                    w_out=wt((E, E)).astype(jnp.bfloat16),
                    b_out=jnp.zeros((1, E), jnp.float32),
                    ln1_g=g1, ln1_b=b1, ln2_g=g2, ln2_b=b2, **ff())

    def dec_layer():
        sa_w_qkv = wt((3 * E, E))
        sa_w_qkv = sa_w_qkv.at[:, :E].multiply(q_scale)
        ca_in = dense((3 * E, E))                      # cross-attn in_proj, torch layout
        g1, b1 = ln(); g2, b2 = ln(); g3, b3 = ln()
        return dict(sa_w_qkv=sa_w_qkv.astype(jnp.bfloat16),
                    sa_b_qkv=jnp.zeros((1, 3 * E), jnp.float32),
                    sa_w_out=wt((E, E)).astype(jnp.bfloat16),
                    sa_b_out=jnp.zeros((1, E), jnp.float32),
                    ln1_g=g1, ln1_b=b1,
                    ca_w_q=(jnp.transpose(ca_in[:E]) * q_scale).astype(jnp.bfloat16),
                    ca_b_q=jnp.zeros((1, E), jnp.float32),
                    ca_w_kv=jnp.transpose(ca_in[E:]).astype(jnp.bfloat16),
                    ca_b_kv=jnp.zeros((1, 2 * E), jnp.float32),
                    ca_w_out=wt((E, E)).astype(jnp.bfloat16),
                    ca_b_out=jnp.zeros((1, E), jnp.float32),
                    ln2_g=g2, ln2_b=b2, ln3_g=g3, ln3_b=b3, **ff())

    def stack(layer_dicts):
        return {k: jnp.stack([d[k] for d in layer_dicts], axis=0)
                for k in layer_dicts[0]}

    # final projection padded to v_pad output lanes (lane-dense store)
    w_proj = jnp.zeros((E, v_pad), jnp.float32).at[:, :tgt_vocab].set(wt((tgt_vocab, E)))
    b_proj = jnp.zeros((1, v_pad), jnp.float32)

    return dict(
        src_emb=dense((src_vocab, E), scale=1.0),      # nn.Embedding ~ N(0, 1)
        tgt_emb=dense((tgt_vocab, E), scale=1.0),
        pe=positional_encoding_table(max_len, E),
        enc=stack([enc_layer() for _ in range(num_enc)]),
        dec=stack([dec_layer() for _ in range(num_dec)]),
        w_proj=w_proj.astype(jnp.bfloat16),
        b_proj=b_proj,
    )


# ---------------------------------------------------------------------------

if __name__ == "__main__":
    D_MODEL, NHEAD = 32, 4
    NUM_ENC, NUM_DEC = 2, 2
    SRC_VOCAB, TGT_VOCAB = 13, 11
    SRC_PAD, TGT_PAD = 0, 0
    S, T, N = 8, 8, 2
    DFF = 2048           # PyTorch TransformerEncoder/DecoderLayer default

    key = jax.random.PRNGKey(0)
    pkey, skey, tkey = jax.random.split(key, 3)

    params = init_params(pkey, D_MODEL, NHEAD, NUM_ENC, NUM_DEC,
                         SRC_VOCAB, TGT_VOCAB, dff=DFF, max_len=5000)

    src = jax.random.randint(skey, (S, N), 1, SRC_VOCAB, dtype=jnp.int32)
    tgt = jax.random.randint(tkey, (T, N), 1, TGT_VOCAB, dtype=jnp.int32)
    # a couple of padding tokens to exercise the key-padding masks
    src = src.at[-1, 0].set(SRC_PAD)
    tgt = tgt.at[-1, 1].set(TGT_PAD)

    fwd = jax.jit(functools.partial(transformer_forward,
                                    d_model=D_MODEL, nhead=NHEAD,
                                    src_pad=SRC_PAD, tgt_pad=TGT_PAD,
                                    tgt_vocab=TGT_VOCAB))
    out = fwd(params, src, tgt)
    jax.block_until_ready(out)
    assert out.shape == (T, N, TGT_VOCAB)
    assert bool(jnp.all(jnp.isfinite(out)))
    print("KERNEL_OK")
</pallas_src>

<mosaic_0001>
module attributes {stable_mosaic.version = 11 : i64} {
  func.func @_encoder_stack_kernel(%arg0: i32, %arg1: memref<16x32xf32, #tpu.memory_space<vmem>>, %arg2: memref<2x8xf32, #tpu.memory_space<vmem>>, %arg3: memref<1x32x96xbf16, #tpu.memory_space<vmem>>, %arg4: memref<1x1x96xf32, #tpu.memory_space<vmem>>, %arg5: memref<1x32x32xbf16, #tpu.memory_space<vmem>>, %arg6: memref<1x1x32xf32, #tpu.memory_space<vmem>>, %arg7: memref<1x1x32xf32, #tpu.memory_space<vmem>>, %arg8: memref<1x1x32xf32, #tpu.memory_space<vmem>>, %arg9: memref<1x32x2048xbf16, #tpu.memory_space<vmem>>, %arg10: memref<1x1x2048xf32, #tpu.memory_space<vmem>>, %arg11: memref<1x2048x32xbf16, #tpu.memory_space<vmem>>, %arg12: memref<1x1x32xf32, #tpu.memory_space<vmem>>, %arg13: memref<1x1x32xf32, #tpu.memory_space<vmem>>, %arg14: memref<1x1x32xf32, #tpu.memory_space<vmem>>, %arg15: memref<16x32xf32, #tpu.memory_space<vmem>>) attributes {dimension_semantics = [#tpu.dimension_semantics<arbitrary>], iteration_bounds = array<i64: 2>, scalar_prefetch = 0 : i64, scratch_operands = 0 : i64, tpu.core_type = #tpu.core_type<tc>, window_params = [{pipeline_mode = #tpu.pipeline_mode<synchronous>, transform_indices = @transform_0, window_bounds = array<i64: 16, 32>}, {pipeline_mode = #tpu.pipeline_mode<synchronous>, transform_indices = @transform_1, window_bounds = array<i64: 2, 8>}, {transform_indices = @transform_2, window_bounds = array<i64: 1, 32, 96>}, {transform_indices = @transform_3, window_bounds = array<i64: 1, 1, 96>}, {transform_indices = @transform_4, window_bounds = array<i64: 1, 32, 32>}, {transform_indices = @transform_5, window_bounds = array<i64: 1, 1, 32>}, {transform_indices = @transform_6, window_bounds = array<i64: 1, 1, 32>}, {transform_indices = @transform_7, window_bounds = array<i64: 1, 1, 32>}, {transform_indices = @transform_8, window_bounds = array<i64: 1, 32, 2048>}, {transform_indices = @transform_9, window_bounds = array<i64: 1, 1, 2048>}, {transform_indices = @transform_10, window_bounds = array<i64: 1, 2048, 32>}, {transform_indices = @transform_11, window_bounds = array<i64: 1, 1, 32>}, {transform_indices = @transform_12, window_bounds = array<i64: 1, 1, 32>}, {transform_indices = @transform_13, window_bounds = array<i64: 1, 1, 32>}, {pipeline_mode = #tpu.pipeline_mode<synchronous>, transform_indices = @transform_14, window_bounds = array<i64: 16, 32>}]} {
    %c0_i32 = arith.constant 0 : i32
    %0 = arith.cmpi eq, %arg0, %c0_i32 : i32
    %1 = arith.extui %0 : i1 to i32
    %c0_i32_0 = arith.constant 0 : i32
    %2 = arith.cmpi ne, %1, %c0_i32_0 : i32
    scf.if %2 {
      %c0_88 = arith.constant 0 : index
      %c0_89 = arith.constant 0 : index
      %240 = vector.load %arg1[%c0_88, %c0_89] : memref<16x32xf32, #tpu.memory_space<vmem>>, vector<16x32xf32>
      %c0_90 = arith.constant 0 : index
      %c0_91 = arith.constant 0 : index
      %241 = vector.load %arg15[%c0_90, %c0_91] : memref<16x32xf32, #tpu.memory_space<vmem>>, vector<16x32xf32>
      tpu.vector_store %arg15[%c0_90, %c0_91], %240 {strides = array<i32>} : memref<16x32xf32, #tpu.memory_space<vmem>>, vector<16x32xf32>,
    } else {
    }
    %c0 = arith.constant 0 : index
    %c0_1 = arith.constant 0 : index
    %3 = vector.load %arg15[%c0, %c0_1] : memref<16x32xf32, #tpu.memory_space<vmem>>, vector<16x32xf32>
    %4 = arith.truncf %3 : vector<16x32xf32> to vector<16x32xbf16>
    %c0_2 = arith.constant 0 : index
    %c0_3 = arith.constant 0 : index
    %c0_4 = arith.constant 0 : index
    %5 = vector.load %arg3[%c0_2, %c0_3, %c0_4] : memref<1x32x96xbf16, #tpu.memory_space<vmem>>, vector<1x32x96xbf16>
    %6 = vector.shape_cast %5 : vector<1x32x96xbf16> to vector<32x96xbf16>
    %cst = arith.constant dense<0.000000e+00> : vector<16x96xf32>
    %7 = tpu.matmul %4, %6, %cst {dimension_numbers = #tpu.dot_dimension_numbers<[1], [0], [0], [1], [0, 0, 1, 1], [], []>} : vector<16x32xbf16>, vector<32x96xbf16>, vector<16x96xf32> -> vector<16x96xf32>
    %c0_5 = arith.constant 0 : index
    %c0_6 = arith.constant 0 : index
    %c0_7 = arith.constant 0 : index
    %8 = vector.load %arg4[%c0_5, %c0_6, %c0_7] : memref<1x1x96xf32, #tpu.memory_space<vmem>>, vector<1x1x96xf32>
    %9 = vector.shape_cast %8 : vector<1x1x96xf32> to vector<1x96xf32>
    %10 = vector.broadcast %9 : vector<1x96xf32> to vector<16x96xf32>
    %11 = arith.addf %7, %10 : vector<16x96xf32>
    %12 = vector.extract_strided_slice %11 {offsets = [0, 0], sizes = [16, 32], strides = [1, 1]} : vector<16x96xf32> to vector<16x32xf32>
    %13 = vector.extract_strided_slice %11 {offsets = [0, 32], sizes = [16, 32], strides = [1, 1]} : vector<16x96xf32> to vector<16x32xf32>
    %14 = vector.extract_strided_slice %11 {offsets = [0, 64], sizes = [16, 32], strides = [1, 1]} : vector<16x96xf32> to vector<16x32xf32>
    %c0_8 = arith.constant 0 : index
    %c0_9 = arith.constant 0 : index
    %15 = vector.load %arg2[%c0_8, %c0_9] : memref<2x8xf32, #tpu.memory_space<vmem>>, vector<2x8xf32>
    %16 = vector.extract_strided_slice %15 {offsets = [0, 0], sizes = [1, 8], strides = [1, 1]} : vector<2x8xf32> to vector<1x8xf32>
    %17 = vector.extract_strided_slice %15 {offsets = [1, 0], sizes = [1, 8], strides = [1, 1]} : vector<2x8xf32> to vector<1x8xf32>
    %c0_10 = arith.constant 0 : index
    %c0_11 = arith.constant 0 : index
    %c0_12 = arith.constant 0 : index
    %18 = vector.load %arg5[%c0_10, %c0_11, %c0_12] : memref<1x32x32xbf16, #tpu.memory_space<vmem>>, vector<1x32x32xbf16>
    %19 = vector.shape_cast %18 : vector<1x32x32xbf16> to vector<32x32xbf16>
    %c0_13 = arith.constant 0 : index
    %c0_14 = arith.constant 0 : index
    %c0_15 = arith.constant 0 : index
    %20 = vector.load %arg6[%c0_13, %c0_14, %c0_15] : memref<1x1x32xf32, #tpu.memory_space<vmem>>, vector<1x1x32xf32>
    %21 = vector.shape_cast %20 : vector<1x1x32xf32> to vector<1x32xf32>
    %22 = vector.extract_strided_slice %12 {offsets = [0, 0], sizes = [8, 32], strides = [1, 1]} : vector<16x32xf32> to vector<8x32xf32>
    %23 = vector.extract_strided_slice %13 {offsets = [0, 0], sizes = [8, 32], strides = [1, 1]} : vector<16x32xf32> to vector<8x32xf32>
    %24 = vector.extract_strided_slice %14 {offsets = [0, 0], sizes = [8, 32], strides = [1, 1]} : vector<16x32xf32> to vector<8x32xf32>
    %25 = vector.extract_strided_slice %22 {offsets = [0, 0], sizes = [8, 8], strides = [1, 1]} : vector<8x32xf32> to vector<8x8xf32>
    %26 = vector.extract_strided_slice %23 {offsets = [0, 0], sizes = [8, 8], strides = [1, 1]} : vector<8x32xf32> to vector<8x8xf32>
    %cst_16 = arith.constant dense<0.000000e+00> : vector<8x8xf32>
    %27 = tpu.matmul %25, %26, %cst_16 {dimension_numbers = #tpu.dot_dimension_numbers<[1], [1], [0], [0], [0, 0, 1, 0], [], []>} : vector<8x8xf32>, vector<8x8xf32>, vector<8x8xf32> -> vector<8x8xf32>
    %28 = vector.broadcast %16 : vector<1x8xf32> to vector<8x8xf32>
    %29 = arith.addf %27, %28 : vector<8x8xf32>
    %cst_17 = arith.constant dense<0xFF800000> : vector<8xf32>
    %30 = vector.multi_reduction <maximumf>, %29, %cst_17 [1] : vector<8x8xf32> to vector<8xf32>
    %31 = vector.shape_cast %30 : vector<8xf32> to vector<8x1xf32>
    %32 = vector.broadcast %31 : vector<8x1xf32> to vector<8x8xf32>
    %33 = arith.subf %29, %32 : vector<8x8xf32>
    %34 = math.exp %33 : vector<8x8xf32>
    %cst_18 = arith.constant dense<0.000000e+00> : vector<8xf32>
    %35 = vector.multi_reduction <add>, %34, %cst_18 [1] : vector<8x8xf32> to vector<8xf32>
    %36 = vector.shape_cast %35 : vector<8xf32> to vector<8x1xf32>
    %37 = tpu.reciprocal %36 {approx = true} : vector<8x1xf32> -> vector<8x1xf32>
    %38 = vector.broadcast %37 : vector<8x1xf32> to vector<8x8xf32>
    %39 = arith.mulf %34, %38 : vector<8x8xf32>
    %40 = vector.extract_strided_slice %24 {offsets = [0, 0], sizes = [8, 8], strides = [1, 1]} : vector<8x32xf32> to vector<8x8xf32>
    %cst_19 = arith.constant dense<0.000000e+00> : vector<8x8xf32>
    %41 = tpu.matmul %39, %40, %cst_19 {dimension_numbers = #tpu.dot_dimension_numbers<[1], [0], [0], [1], [0, 0, 1, 1], [], []>} : vector<8x8xf32>, vector<8x8xf32>, vector<8x8xf32> -> vector<8x8xf32>
    %42 = vector.extract_strided_slice %22 {offsets = [0, 8], sizes = [8, 8], strides = [1, 1]} : vector<8x32xf32> to vector<8x8xf32>
    %43 = vector.extract_strided_slice %23 {offsets = [0, 8], sizes = [8, 8], strides = [1, 1]} : vector<8x32xf32> to vector<8x8xf32>
    %cst_20 = arith.constant dense<0.000000e+00> : vector<8x8xf32>
    %44 = tpu.matmul %42, %43, %cst_20 {dimension_numbers = #tpu.dot_dimension_numbers<[1], [1], [0], [0], [0, 0, 1, 0], [], []>} : vector<8x8xf32>, vector<8x8xf32>, vector<8x8xf32> -> vector<8x8xf32>
    %45 = vector.broadcast %16 : vector<1x8xf32> to vector<8x8xf32>
    %46 = arith.addf %44, %45 : vector<8x8xf32>
    %cst_21 = arith.constant dense<0xFF800000> : vector<8xf32>
    %47 = vector.multi_reduction <maximumf>, %46, %cst_21 [1] : vector<8x8xf32> to vector<8xf32>
    %48 = vector.shape_cast %47 : vector<8xf32> to vector<8x1xf32>
    %49 = vector.broadcast %48 : vector<8x1xf32> to vector<8x8xf32>
    %50 = arith.subf %46, %49 : vector<8x8xf32>
    %51 = math.exp %50 : vector<8x8xf32>
    %cst_22 = arith.constant dense<0.000000e+00> : vector<8xf32>
    %52 = vector.multi_reduction <add>, %51, %cst_22 [1] : vector<8x8xf32> to vector<8xf32>
    %53 = vector.shape_cast %52 : vector<8xf32> to vector<8x1xf32>
    %54 = tpu.reciprocal %53 {approx = true} : vector<8x1xf32> -> vector<8x1xf32>
    %55 = vector.broadcast %54 : vector<8x1xf32> to vector<8x8xf32>
    %56 = arith.mulf %51, %55 : vector<8x8xf32>
    %57 = vector.extract_strided_slice %24 {offsets = [0, 8], sizes = [8, 8], strides = [1, 1]} : vector<8x32xf32> to vector<8x8xf32>
    %cst_23 = arith.constant dense<0.000000e+00> : vector<8x8xf32>
    %58 = tpu.matmul %56, %57, %cst_23 {dimension_numbers = #tpu.dot_dimension_numbers<[1], [0], [0], [1], [0, 0, 1, 1], [], []>} : vector<8x8xf32>, vector<8x8xf32>, vector<8x8xf32> -> vector<8x8xf32>
    %59 = vector.extract_strided_slice %22 {offsets = [0, 16], sizes = [8, 8], strides = [1, 1]} : vector<8x32xf32> to vector<8x8xf32>
    %60 = vector.extract_strided_slice %23 {offsets = [0, 16], sizes = [8, 8], strides = [1, 1]} : vector<8x32xf32> to vector<8x8xf32>
    %cst_24 = arith.constant dense<0.000000e+00> : vector<8x8xf32>
    %61 = tpu.matmul %59, %60, %cst_24 {dimension_numbers = #tpu.dot_dimension_numbers<[1], [1], [0], [0], [0, 0, 1, 0], [], []>} : vector<8x8xf32>, vector<8x8xf32>, vector<8x8xf32> -> vector<8x8xf32>
    %62 = vector.broadcast %16 : vector<1x8xf32> to vector<8x8xf32>
    %63 = arith.addf %61, %62 : vector<8x8xf32>
    %cst_25 = arith.constant dense<0xFF800000> : vector<8xf32>
    %64 = vector.multi_reduction <maximumf>, %63, %cst_25 [1] : vector<8x8xf32> to vector<8xf32>
    %65 = vector.shape_cast %64 : vector<8xf32> to vector<8x1xf32>
    %66 = vector.broadcast %65 : vector<8x1xf32> to vector<8x8xf32>
    %67 = arith.subf %63, %66 : vector<8x8xf32>
    %68 = math.exp %67 : vector<8x8xf32>
    %cst_26 = arith.constant dense<0.000000e+00> : vector<8xf32>
    %69 = vector.multi_reduction <add>, %68, %cst_26 [1] : vector<8x8xf32> to vector<8xf32>
    %70 = vector.shape_cast %69 : vector<8xf32> to vector<8x1xf32>
    %71 = tpu.reciprocal %70 {approx = true} : vector<8x1xf32> -> vector<8x1xf32>
    %72 = vector.broadcast %71 : vector<8x1xf32> to vector<8x8xf32>
    %73 = arith.mulf %68, %72 : vector<8x8xf32>
    %74 = vector.extract_strided_slice %24 {offsets = [0, 16], sizes = [8, 8], strides = [1, 1]} : vector<8x32xf32> to vector<8x8xf32>
    %cst_27 = arith.constant dense<0.000000e+00> : vector<8x8xf32>
    %75 = tpu.matmul %73, %74, %cst_27 {dimension_numbers = #tpu.dot_dimension_numbers<[1], [0], [0], [1], [0, 0, 1, 1], [], []>} : vector<8x8xf32>, vector<8x8xf32>, vector<8x8xf32> -> vector<8x8xf32>
    %76 = vector.extract_strided_slice %22 {offsets = [0, 24], sizes = [8, 8], strides = [1, 1]} : vector<8x32xf32> to vector<8x8xf32>
    %77 = vector.extract_strided_slice %23 {offsets = [0, 24], sizes = [8, 8], strides = [1, 1]} : vector<8x32xf32> to vector<8x8xf32>
    %cst_28 = arith.constant dense<0.000000e+00> : vector<8x8xf32>
    %78 = tpu.matmul %76, %77, %cst_28 {dimension_numbers = #tpu.dot_dimension_numbers<[1], [1], [0], [0], [0, 0, 1, 0], [], []>} : vector<8x8xf32>, vector<8x8xf32>, vector<8x8xf32> -> vector<8x8xf32>
    %79 = vector.broadcast %16 : vector<1x8xf32> to vector<8x8xf32>
    %80 = arith.addf %78, %79 : vector<8x8xf32>
    %cst_29 = arith.constant dense<0xFF800000> : vector<8xf32>
    %81 = vector.multi_reduction <maximumf>, %80, %cst_29 [1] : vector<8x8xf32> to vector<8xf32>
    %82 = vector.shape_cast %81 : vector<8xf32> to vector<8x1xf32>
    %83 = vector.broadcast %82 : vector<8x1xf32> to vector<8x8xf32>
    %84 = arith.subf %80, %83 : vector<8x8xf32>
    %85 = math.exp %84 : vector<8x8xf32>
    %cst_30 = arith.constant dense<0.000000e+00> : vector<8xf32>
    %86 = vector.multi_reduction <add>, %85, %cst_30 [1] : vector<8x8xf32> to vector<8xf32>
    %87 = vector.shape_cast %86 : vector<8xf32> to vector<8x1xf32>
    %88 = tpu.reciprocal %87 {approx = true} : vector<8x1xf32> -> vector<8x1xf32>
    %89 = vector.broadcast %88 : vector<8x1xf32> to vector<8x8xf32>
    %90 = arith.mulf %85, %89 : vector<8x8xf32>
    %91 = vector.extract_strided_slice %24 {offsets = [0, 24], sizes = [8, 8], strides = [1, 1]} : vector<8x32xf32> to vector<8x8xf32>
    %cst_31 = arith.constant dense<0.000000e+00> : vector<8x8xf32>
    %92 = tpu.matmul %90, %91, %cst_31 {dimension_numbers = #tpu.dot_dimension_numbers<[1], [0], [0], [1], [0, 0, 1, 1], [], []>} : vector<8x8xf32>, vector<8x8xf32>, vector<8x8xf32> -> vector<8x8xf32>
    %93 = tpu.concatenate %41, %58, %75, %92 in 1 : vector<8x8xf32>, vector<8x8xf32>, vector<8x8xf32>, vector<8x8xf32> -> vector<8x32xf32>
    %94 = vector.extract_strided_slice %12 {offsets = [8, 0], sizes = [8, 32], strides = [1, 1]} : vector<16x32xf32> to vector<8x32xf32>
    %95 = vector.extract_strided_slice %13 {offsets = [8, 0], sizes = [8, 32], strides = [1, 1]} : vector<16x32xf32> to vector<8x32xf32>
    %96 = vector.extract_strided_slice %14 {offsets = [8, 0], sizes = [8, 32], strides = [1, 1]} : vector<16x32xf32> to vector<8x32xf32>
    %97 = vector.extract_strided_slice %94 {offsets = [0, 0], sizes = [8, 8], strides = [1, 1]} : vector<8x32xf32> to vector<8x8xf32>
    %98 = vector.extract_strided_slice %95 {offsets = [0, 0], sizes = [8, 8], strides = [1, 1]} : vector<8x32xf32> to vector<8x8xf32>
    %cst_32 = arith.constant dense<0.000000e+00> : vector<8x8xf32>
    %99 = tpu.matmul %97, %98, %cst_32 {dimension_numbers = #tpu.dot_dimension_numbers<[1], [1], [0], [0], [0, 0, 1, 0], [], []>} : vector<8x8xf32>, vector<8x8xf32>, vector<8x8xf32> -> vector<8x8xf32>
    %100 = vector.broadcast %17 : vector<1x8xf32> to vector<8x8xf32>
    %101 = arith.addf %99, %100 : vector<8x8xf32>
    %cst_33 = arith.constant dense<0xFF800000> : vector<8xf32>
    %102 = vector.multi_reduction <maximumf>, %101, %cst_33 [1] : vector<8x8xf32> to vector<8xf32>
    %103 = vector.shape_cast %102 : vector<8xf32> to vector<8x1xf32>
    %104 = vector.broadcast %103 : vector<8x1xf32> to vector<8x8xf32>
    %105 = arith.subf %101, %104 : vector<8x8xf32>
    %106 = math.exp %105 : vector<8x8xf32>
    %cst_34 = arith.constant dense<0.000000e+00> : vector<8xf32>
    %107 = vector.multi_reduction <add>, %106, %cst_34 [1] : vector<8x8xf32> to vector<8xf32>
    %108 = vector.shape_cast %107 : vector<8xf32> to vector<8x1xf32>
    %109 = tpu.reciprocal %108 {approx = true} : vector<8x1xf32> -> vector<8x1xf32>
    %110 = vector.broadcast %109 : vector<8x1xf32> to vector<8x8xf32>
    %111 = arith.mulf %106, %110 : vector<8x8xf32>
    %112 = vector.extract_strided_slice %96 {offsets = [0, 0], sizes = [8, 8], strides = [1, 1]} : vector<8x32xf32> to vector<8x8xf32>
    %cst_35 = arith.constant dense<0.000000e+00> : vector<8x8xf32>
    %113 = tpu.matmul %111, %112, %cst_35 {dimension_numbers = #tpu.dot_dimension_numbers<[1], [0], [0], [1], [0, 0, 1, 1], [], []>} : vector<8x8xf32>, vector<8x8xf32>, vector<8x8xf32> -> vector<8x8xf32>
    %114 = vector.extract_strided_slice %94 {offsets = [0, 8], sizes = [8, 8], strides = [1, 1]} : vector<8x32xf32> to vector<8x8xf32>
    %115 = vector.extract_strided_slice %95 {offsets = [0, 8], sizes = [8, 8], strides = [1, 1]} : vector<8x32xf32> to vector<8x8xf32>
    %cst_36 = arith.constant dense<0.000000e+00> : vector<8x8xf32>
    %116 = tpu.matmul %114, %115, %cst_36 {dimension_numbers = #tpu.dot_dimension_numbers<[1], [1], [0], [0], [0, 0, 1, 0], [], []>} : vector<8x8xf32>, vector<8x8xf32>, vector<8x8xf32> -> vector<8x8xf32>
    %117 = vector.broadcast %17 : vector<1x8xf32> to vector<8x8xf32>
    %118 = arith.addf %116, %117 : vector<8x8xf32>
    %cst_37 = arith.constant dense<0xFF800000> : vector<8xf32>
    %119 = vector.multi_reduction <maximumf>, %118, %cst_37 [1] : vector<8x8xf32> to vector<8xf32>
    %120 = vector.shape_cast %119 : vector<8xf32> to vector<8x1xf32>
    %121 = vector.broadcast %120 : vector<8x1xf32> to vector<8x8xf32>
    %122 = arith.subf %118, %121 : vector<8x8xf32>
    %123 = math.exp %122 : vector<8x8xf32>
    %cst_38 = arith.constant dense<0.000000e+00> : vector<8xf32>
    %124 = vector.multi_reduction <add>, %123, %cst_38 [1] : vector<8x8xf32> to vector<8xf32>
    %125 = vector.shape_cast %124 : vector<8xf32> to vector<8x1xf32>
    %126 = tpu.reciprocal %125 {approx = true} : vector<8x1xf32> -> vector<8x1xf32>
    %127 = vector.broadcast %126 : vector<8x1xf32> to vector<8x8xf32>
    %128 = arith.mulf %123, %127 : vector<8x8xf32>
    %129 = vector.extract_strided_slice %96 {offsets = [0, 8], sizes = [8, 8], strides = [1, 1]} : vector<8x32xf32> to vector<8x8xf32>
    %cst_39 = arith.constant dense<0.000000e+00> : vector<8x8xf32>
    %130 = tpu.matmul %128, %129, %cst_39 {dimension_numbers = #tpu.dot_dimension_numbers<[1], [0], [0], [1], [0, 0, 1, 1], [], []>} : vector<8x8xf32>, vector<8x8xf32>, vector<8x8xf32> -> vector<8x8xf32>
    %131 = vector.extract_strided_slice %94 {offsets = [0, 16], sizes = [8, 8], strides = [1, 1]} : vector<8x32xf32> to vector<8x8xf32>
    %132 = vector.extract_strided_slice %95 {offsets = [0, 16], sizes = [8, 8], strides = [1, 1]} : vector<8x32xf32> to vector<8x8xf32>
    %cst_40 = arith.constant dense<0.000000e+00> : vector<8x8xf32>
    %133 = tpu.matmul %131, %132, %cst_40 {dimension_numbers = #tpu.dot_dimension_numbers<[1], [1], [0], [0], [0, 0, 1, 0], [], []>} : vector<8x8xf32>, vector<8x8xf32>, vector<8x8xf32> -> vector<8x8xf32>
    %134 = vector.broadcast %17 : vector<1x8xf32> to vector<8x8xf32>
    %135 = arith.addf %133, %134 : vector<8x8xf32>
    %cst_41 = arith.constant dense<0xFF800000> : vector<8xf32>
    %136 = vector.multi_reduction <maximumf>, %135, %cst_41 [1] : vector<8x8xf32> to vector<8xf32>
    %137 = vector.shape_cast %136 : vector<8xf32> to vector<8x1xf32>
    %138 = vector.broadcast %137 : vector<8x1xf32> to vector<8x8xf32>
    %139 = arith.subf %135, %138 : vector<8x8xf32>
    %140 = math.exp %139 : vector<8x8xf32>
    %cst_42 = arith.constant dense<0.000000e+00> : vector<8xf32>
    %141 = vector.multi_reduction <add>, %140, %cst_42 [1] : vector<8x8xf32> to vector<8xf32>
    %142 = vector.shape_cast %141 : vector<8xf32> to vector<8x1xf32>
    %143 = tpu.reciprocal %142 {approx = true} : vector<8x1xf32> -> vector<8x1xf32>
    %144 = vector.broadcast %143 : vector<8x1xf32> to vector<8x8xf32>
    %145 = arith.mulf %140, %144 : vector<8x8xf32>
    %146 = vector.extract_strided_slice %96 {offsets = [0, 16], sizes = [8, 8], strides = [1, 1]} : vector<8x32xf32> to vector<8x8xf32>
    %cst_43 = arith.constant dense<0.000000e+00> : vector<8x8xf32>
    %147 = tpu.matmul %145, %146, %cst_43 {dimension_numbers = #tpu.dot_dimension_numbers<[1], [0], [0], [1], [0, 0, 1, 1], [], []>} : vector<8x8xf32>, vector<8x8xf32>, vector<8x8xf32> -> vector<8x8xf32>
    %148 = vector.extract_strided_slice %94 {offsets = [0, 24], sizes = [8, 8], strides = [1, 1]} : vector<8x32xf32> to vector<8x8xf32>
    %149 = vector.extract_strided_slice %95 {offsets = [0, 24], sizes = [8, 8], strides = [1, 1]} : vector<8x32xf32> to vector<8x8xf32>
    %cst_44 = arith.constant dense<0.000000e+00> : vector<8x8xf32>
    %150 = tpu.matmul %148, %149, %cst_44 {dimension_numbers = #tpu.dot_dimension_numbers<[1], [1], [0], [0], [0, 0, 1, 0], [], []>} : vector<8x8xf32>, vector<8x8xf32>, vector<8x8xf32> -> vector<8x8xf32>
    %151 = vector.broadcast %17 : vector<1x8xf32> to vector<8x8xf32>
    %152 = arith.addf %150, %151 : vector<8x8xf32>
    %cst_45 = arith.constant dense<0xFF800000> : vector<8xf32>
    %153 = vector.multi_reduction <maximumf>, %152, %cst_45 [1] : vector<8x8xf32> to vector<8xf32>
    %154 = vector.shape_cast %153 : vector<8xf32> to vector<8x1xf32>
    %155 = vector.broadcast %154 : vector<8x1xf32> to vector<8x8xf32>
    %156 = arith.subf %152, %155 : vector<8x8xf32>
    %157 = math.exp %156 : vector<8x8xf32>
    %cst_46 = arith.constant dense<0.000000e+00> : vector<8xf32>
    %158 = vector.multi_reduction <add>, %157, %cst_46 [1] : vector<8x8xf32> to vector<8xf32>
    %159 = vector.shape_cast %158 : vector<8xf32> to vector<8x1xf32>
    %160 = tpu.reciprocal %159 {approx = true} : vector<8x1xf32> -> vector<8x1xf32>
    %161 = vector.broadcast %160 : vector<8x1xf32> to vector<8x8xf32>
    %162 = arith.mulf %157, %161 : vector<8x8xf32>
    %163 = vector.extract_strided_slice %96 {offsets = [0, 24], sizes = [8, 8], strides = [1, 1]} : vector<8x32xf32> to vector<8x8xf32>
    %cst_47 = arith.constant dense<0.000000e+00> : vector<8x8xf32>
    %164 = tpu.matmul %162, %163, %cst_47 {dimension_numbers = #tpu.dot_dimension_numbers<[1], [0], [0], [1], [0, 0, 1, 1], [], []>} : vector<8x8xf32>, vector<8x8xf32>, vector<8x8xf32> -> vector<8x8xf32>
    %165 = tpu.concatenate %113, %130, %147, %164 in 1 : vector<8x8xf32>, vector<8x8xf32>, vector<8x8xf32>, vector<8x8xf32> -> vector<8x32xf32>
    %166 = tpu.concatenate %93, %165 in 0 : vector<8x32xf32>, vector<8x32xf32> -> vector<16x32xf32>
    %167 = arith.truncf %166 : vector<16x32xf32> to vector<16x32xbf16>
    %cst_48 = arith.constant dense<0.000000e+00> : vector<16x32xf32>
    %168 = tpu.matmul %167, %19, %cst_48 {dimension_numbers = #tpu.dot_dimension_numbers<[1], [0], [0], [1], [0, 0, 1, 1], [], []>} : vector<16x32xbf16>, vector<32x32xbf16>, vector<16x32xf32> -> vector<16x32xf32>
    %169 = vector.broadcast %21 : vector<1x32xf32> to vector<16x32xf32>
    %170 = arith.addf %168, %169 : vector<16x32xf32>
    %171 = arith.addf %3, %170 : vector<16x32xf32>
    %c0_49 = arith.constant 0 : index
    %c0_50 = arith.constant 0 : index
    %c0_51 = arith.constant 0 : index
    %172 = vector.load %arg7[%c0_49, %c0_50, %c0_51] : memref<1x1x32xf32, #tpu.memory_space<vmem>>, vector<1x1x32xf32>
    %173 = vector.shape_cast %172 : vector<1x1x32xf32> to vector<1x32xf32>
    %c0_52 = arith.constant 0 : index
    %c0_53 = arith.constant 0 : index
    %c0_54 = arith.constant 0 : index
    %174 = vector.load %arg8[%c0_52, %c0_53, %c0_54] : memref<1x1x32xf32, #tpu.memory_space<vmem>>, vector<1x1x32xf32>
    %175 = vector.shape_cast %174 : vector<1x1x32xf32> to vector<1x32xf32>
    %cst_55 = arith.constant dense<0.000000e+00> : vector<16xf32>
    %176 = vector.multi_reduction <add>, %171, %cst_55 [1] : vector<16x32xf32> to vector<16xf32>
    %177 = vector.shape_cast %176 : vector<16xf32> to vector<16x1xf32>
    %cst_56 = arith.constant 3.200000e+01 : f32
    %178 = vector.broadcast %cst_56 : f32 to vector<16x1xf32>
    %179 = arith.divf %177, %178 : vector<16x1xf32>
    %180 = vector.broadcast %179 : vector<16x1xf32> to vector<16x32xf32>
    %181 = arith.subf %171, %180 : vector<16x32xf32>
    %182 = arith.mulf %181, %181 : vector<16x32xf32>
    %cst_57 = arith.constant dense<0.000000e+00> : vector<16xf32>
    %183 = vector.multi_reduction <add>, %182, %cst_57 [1] : vector<16x32xf32> to vector<16xf32>
    %184 = vector.shape_cast %183 : vector<16xf32> to vector<16x1xf32>
    %cst_58 = arith.constant 3.200000e+01 : f32
    %185 = vector.broadcast %cst_58 : f32 to vector<16x1xf32>
    %186 = arith.divf %184, %185 : vector<16x1xf32>
    %cst_59 = arith.constant 9.99999974E-6 : f32
    %187 = vector.broadcast %cst_59 : f32 to vector<16x1xf32>
    %188 = arith.addf %186, %187 : vector<16x1xf32>
    %189 = math.rsqrt %188 : vector<16x1xf32>
    %190 = vector.broadcast %189 : vector<16x1xf32> to vector<16x32xf32>
    %191 = arith.mulf %181, %190 : vector<16x32xf32>
    %192 = vector.broadcast %173 : vector<1x32xf32> to vector<16x32xf32>
    %193 = arith.mulf %191, %192 : vector<16x32xf32>
    %194 = vector.broadcast %175 : vector<1x32xf32> to vector<16x32xf32>
    %195 = arith.addf %193, %194 : vector<16x32xf32>
    %c0_60 = arith.constant 0 : index
    %c0_61 = arith.constant 0 : index
    %c0_62 = arith.constant 0 : index
    %196 = vector.load %arg9[%c0_60, %c0_61, %c0_62] : memref<1x32x2048xbf16, #tpu.memory_space<vmem>>, vector<1x32x2048xbf16>
    %197 = vector.shape_cast %196 : vector<1x32x2048xbf16> to vector<32x2048xbf16>
    %c0_63 = arith.constant 0 : index
    %c0_64 = arith.constant 0 : index
    %c0_65 = arith.constant 0 : index
    %198 = vector.load %arg10[%c0_63, %c0_64, %c0_65] : memref<1x1x2048xf32, #tpu.memory_space<vmem>>, vector<1x1x2048xf32>
    %199 = vector.shape_cast %198 : vector<1x1x2048xf32> to vector<1x2048xf32>
    %c0_66 = arith.constant 0 : index
    %c0_67 = arith.constant 0 : index
    %c0_68 = arith.constant 0 : index
    %200 = vector.load %arg11[%c0_66, %c0_67, %c0_68] : memref<1x2048x32xbf16, #tpu.memory_space<vmem>>, vector<1x2048x32xbf16>
    %201 = vector.shape_cast %200 : vector<1x2048x32xbf16> to vector<2048x32xbf16>
    %c0_69 = arith.constant 0 : index
    %c0_70 = arith.constant 0 : index
    %c0_71 = arith.constant 0 : index
    %202 = vector.load %arg12[%c0_69, %c0_70, %c0_71] : memref<1x1x32xf32, #tpu.memory_space<vmem>>, vector<1x1x32xf32>
    %203 = vector.shape_cast %202 : vector<1x1x32xf32> to vector<1x32xf32>
    %204 = arith.truncf %195 : vector<16x32xf32> to vector<16x32xbf16>
    %cst_72 = arith.constant dense<0.000000e+00> : vector<16x2048xf32>
    %205 = tpu.matmul %204, %197, %cst_72 {dimension_numbers = #tpu.dot_dimension_numbers<[1], [0], [0], [1], [0, 0, 1, 1], [], []>} : vector<16x32xbf16>, vector<32x2048xbf16>, vector<16x2048xf32> -> vector<16x2048xf32>
    %206 = vector.broadcast %199 : vector<1x2048xf32> to vector<16x2048xf32>
    %207 = arith.addf %205, %206 : vector<16x2048xf32>
    %cst_73 = arith.constant 0.000000e+00 : f32
    %208 = vector.broadcast %cst_73 : f32 to vector<16x2048xf32>
    %209 = arith.maximumf %207, %208 : vector<16x2048xf32>
    %210 = arith.truncf %209 : vector<16x2048xf32> to vector<16x2048xbf16>
    %cst_74 = arith.constant dense<0.000000e+00> : vector<16x32xf32>
    %211 = tpu.matmul %210, %201, %cst_74 {dimension_numbers = #tpu.dot_dimension_numbers<[1], [0], [0], [1], [0, 0, 1, 1], [], []>} : vector<16x2048xbf16>, vector<2048x32xbf16>, vector<16x32xf32> -> vector<16x32xf32>
    %212 = vector.broadcast %203 : vector<1x32xf32> to vector<16x32xf32>
    %213 = arith.addf %211, %212 : vector<16x32xf32>
    %214 = arith.addf %195, %213 : vector<16x32xf32>
    %c0_75 = arith.constant 0 : index
    %c0_76 = arith.constant 0 : index
    %c0_77 = arith.constant 0 : index
    %215 = vector.load %arg13[%c0_75, %c0_76, %c0_77] : memref<1x1x32xf32, #tpu.memory_space<vmem>>, vector<1x1x32xf32>
    %216 = vector.shape_cast %215 : vector<1x1x32xf32> to vector<1x32xf32>
    %c0_78 = arith.constant 0 : index
    %c0_79 = arith.constant 0 : index
    %c0_80 = arith.constant 0 : index
    %217 = vector.load %arg14[%c0_78, %c0_79, %c0_80] : memref<1x1x32xf32, #tpu.memory_space<vmem>>, vector<1x1x32xf32>
    %218 = vector.shape_cast %217 : vector<1x1x32xf32> to vector<1x32xf32>
    %cst_81 = arith.constant dense<0.000000e+00> : vector<16xf32>
    %219 = vector.multi_reduction <add>, %214, %cst_81 [1] : vector<16x32xf32> to vector<16xf32>
    %220 = vector.shape_cast %219 : vector<16xf32> to vector<16x1xf32>
    %cst_82 = arith.constant 3.200000e+01 : f32
    %221 = vector.broadcast %cst_82 : f32 to vector<16x1xf32>
    %222 = arith.divf %220, %221 : vector<16x1xf32>
    %223 = vector.broadcast %222 : vector<16x1xf32> to vector<16x32xf32>
    %224 = arith.subf %214, %223 : vector<16x32xf32>
    %225 = arith.mulf %224, %224 : vector<16x32xf32>
    %cst_83 = arith.constant dense<0.000000e+00> : vector<16xf32>
    %226 = vector.multi_reduction <add>, %225, %cst_83 [1] : vector<16x32xf32> to vector<16xf32>
    %227 = vector.shape_cast %226 : vector<16xf32> to vector<16x1xf32>
    %cst_84 = arith.constant 3.200000e+01 : f32
    %228 = vector.broadcast %cst_84 : f32 to vector<16x1xf32>
    %229 = arith.divf %227, %228 : vector<16x1xf32>
    %cst_85 = arith.constant 9.99999974E-6 : f32
    %230 = vector.broadcast %cst_85 : f32 to vector<16x1xf32>
    %231 = arith.addf %229, %230 : vector<16x1xf32>
    %232 = math.rsqrt %231 : vector<16x1xf32>
    %233 = vector.broadcast %232 : vector<16x1xf32> to vector<16x32xf32>
    %234 = arith.mulf %224, %233 : vector<16x32xf32>
    %235 = vector.broadcast %216 : vector<1x32xf32> to vector<16x32xf32>
    %236 = arith.mulf %234, %235 : vector<16x32xf32>
    %237 = vector.broadcast %218 : vector<1x32xf32> to vector<16x32xf32>
    %238 = arith.addf %236, %237 : vector<16x32xf32>
    %c0_86 = arith.constant 0 : index
    %c0_87 = arith.constant 0 : index
    %239 = vector.load %arg15[%c0_86, %c0_87] : memref<16x32xf32, #tpu.memory_space<vmem>>, vector<16x32xf32>
    tpu.vector_store %arg15[%c0_86, %c0_87], %238 {strides = array<i32>} : memref<16x32xf32, #tpu.memory_space<vmem>>, vector<16x32xf32>,
    return
  }
  func.func @transform_0(%arg0: i32) -> (i32, i32) {
    %c0_i32 = arith.constant 0 : i32
    %c0_i32_0 = arith.constant 0 : i32
    %c0_i32_1 = arith.constant 0 : i32
    return %c0_i32, %c0_i32_0 : i32, i32
  }
  func.func @transform_1(%arg0: i32) -> (i32, i32) {
    %c0_i32 = arith.constant 0 : i32
    %c0_i32_0 = arith.constant 0 : i32
    %c0_i32_1 = arith.constant 0 : i32
    return %c0_i32, %c0_i32_0 : i32, i32
  }
  func.func @transform_2(%arg0: i32) -> (i32, i32, i32) {
    %c0_i32 = arith.constant 0 : i32
    %c0_i32_0 = arith.constant 0 : i32
    %c0_i32_1 = arith.constant 0 : i32
    return %arg0, %c0_i32, %c0_i32_0 : i32, i32, i32
  }
  func.func @transform_3(%arg0: i32) -> (i32, i32, i32) {
    %c0_i32 = arith.constant 0 : i32
    %c0_i32_0 = arith.constant 0 : i32
    %c0_i32_1 = arith.constant 0 : i32
    return %arg0, %c0_i32, %c0_i32_0 : i32, i32, i32
  }
  func.func @transform_4(%arg0: i32) -> (i32, i32, i32) {
    %c0_i32 = arith.constant 0 : i32
    %c0_i32_0 = arith.constant 0 : i32
    %c0_i32_1 = arith.constant 0 : i32
    return %arg0, %c0_i32, %c0_i32_0 : i32, i32, i32
  }
  func.func @transform_5(%arg0: i32) -> (i32, i32, i32) {
    %c0_i32 = arith.constant 0 : i32
    %c0_i32_0 = arith.constant 0 : i32
    %c0_i32_1 = arith.constant 0 : i32
    return %arg0, %c0_i32, %c0_i32_0 : i32, i32, i32
  }
  func.func @transform_6(%arg0: i32) -> (i32, i32, i32) {
    %c0_i32 = arith.constant 0 : i32
    %c0_i32_0 = arith.constant 0 : i32
    %c0_i32_1 = arith.constant 0 : i32
    return %arg0, %c0_i32, %c0_i32_0 : i32, i32, i32
  }
  func.func @transform_7(%arg0: i32) -> (i32, i32, i32) {
    %c0_i32 = arith.constant 0 : i32
    %c0_i32_0 = arith.constant 0 : i32
    %c0_i32_1 = arith.constant 0 : i32
    return %arg0, %c0_i32, %c0_i32_0 : i32, i32, i32
  }
  func.func @transform_8(%arg0: i32) -> (i32, i32, i32) {
    %c0_i32 = arith.constant 0 : i32
    %c0_i32_0 = arith.constant 0 : i32
    %c0_i32_1 = arith.constant 0 : i32
    return %arg0, %c0_i32, %c0_i32_0 : i32, i32, i32
  }
  func.func @transform_9(%arg0: i32) -> (i32, i32, i32) {
    %c0_i32 = arith.constant 0 : i32
    %c0_i32_0 = arith.constant 0 : i32
    %c0_i32_1 = arith.constant 0 : i32
    return %arg0, %c0_i32, %c0_i32_0 : i32, i32, i32
  }
  func.func @transform_10(%arg0: i32) -> (i32, i32, i32) {
    %c0_i32 = arith.constant 0 : i32
    %c0_i32_0 = arith.constant 0 : i32
    %c0_i32_1 = arith.constant 0 : i32
    return %arg0, %c0_i32, %c0_i32_0 : i32, i32, i32
  }
  func.func @transform_11(%arg0: i32) -> (i32, i32, i32) {
    %c0_i32 = arith.constant 0 : i32
    %c0_i32_0 = arith.constant 0 : i32
    %c0_i32_1 = arith.constant 0 : i32
    return %arg0, %c0_i32, %c0_i32_0 : i32, i32, i32
  }
  func.func @transform_12(%arg0: i32) -> (i32, i32, i32) {
    %c0_i32 = arith.constant 0 : i32
    %c0_i32_0 = arith.constant 0 : i32
    %c0_i32_1 = arith.constant 0 : i32
    return %arg0, %c0_i32, %c0_i32_0 : i32, i32, i32
  }
  func.func @transform_13(%arg0: i32) -> (i32, i32, i32) {
    %c0_i32 = arith.constant 0 : i32
    %c0_i32_0 = arith.constant 0 : i32
    %c0_i32_1 = arith.constant 0 : i32
    return %arg0, %c0_i32, %c0_i32_0 : i32, i32, i32
  }
  func.func @transform_14(%arg0: i32) -> (i32, i32) {
    %c0_i32 = arith.constant 0 : i32
    %c0_i32_0 = arith.constant 0 : i32
    %c0_i32_1 = arith.constant 0 : i32
    return %c0_i32, %c0_i32_0 : i32, i32
  }
}

module attributes {stable_mosaic.version = 11 : i64} {
  func.func @_decoder_stack_kernel(%arg0: i32, %arg1: memref<16x32xf32, #tpu.memory_space<vmem>>, %arg2: memref<16x32xf32, #tpu.memory_space<vmem>>, %arg3: memref<2x8x8xf32, #tpu.memory_space<vmem>>, %arg4: memref<1x32x96xbf16, #tpu.memory_space<vmem>>, %arg5: memref<1x1x96xf32, #tpu.memory_space<vmem>>, %arg6: memref<1x32x32xbf16, #tpu.memory_space<vmem>>, %arg7: memref<1x1x32xf32, #tpu.memory_space<vmem>>, %arg8: memref<1x1x32xf32, #tpu.memory_space<vmem>>, %arg9: memref<1x1x32xf32, #tpu.memory_space<vmem>>, %arg10: memref<1x32x32xbf16, #tpu.memory_space<vmem>>, %arg11: memref<1x1x32xf32, #tpu.memory_space<vmem>>, %arg12: memref<1x32x64xbf16, #tpu.memory_space<vmem>>, %arg13: memref<1x1x64xf32, #tpu.memory_space<vmem>>, %arg14: memref<1x32x32xbf16, #tpu.memory_space<vmem>>, %arg15: memref<1x1x32xf32, #tpu.memory_space<vmem>>, %arg16: memref<1x1x32xf32, #tpu.memory_space<vmem>>, %arg17: memref<1x1x32xf32, #tpu.memory_space<vmem>>, %arg18: memref<1x32x2048xbf16, #tpu.memory_space<vmem>>, %arg19: memref<1x1x2048xf32, #tpu.memory_space<vmem>>, %arg20: memref<1x2048x32xbf16, #tpu.memory_space<vmem>>, %arg21: memref<1x1x32xf32, #tpu.memory_space<vmem>>, %arg22: memref<1x1x32xf32, #tpu.memory_space<vmem>>, %arg23: memref<1x1x32xf32, #tpu.memory_space<vmem>>, %arg24: memref<32x128xbf16, #tpu.memory_space<vmem>>, %arg25: memref<1x128xf32, #tpu.memory_space<vmem>>, %arg26: memref<16x128xf32, #tpu.memory_space<vmem>>, %arg27: memref<16x32xf32, #tpu.memory_space<vmem>>) attributes {dimension_semantics = [#tpu.dimension_semantics<arbitrary>], iteration_bounds = array<i64: 2>, scalar_prefetch = 0 : i64, scratch_operands = 1 : i64, tpu.core_type = #tpu.core_type<tc>, window_params = [{pipeline_mode = #tpu.pipeline_mode<synchronous>, transform_indices = @transform_0, window_bounds = array<i64: 16, 32>}, {pipeline_mode = #tpu.pipeline_mode<synchronous>, transform_indices = @transform_1, window_bounds = array<i64: 16, 32>}, {pipeline_mode = #tpu.pipeline_mode<synchronous>, transform_indices = @transform_2, window_bounds = array<i64: 2, 8, 8>}, {transform_indices = @transform_3, window_bounds = array<i64: 1, 32, 96>}, {transform_indices = @transform_4, window_bounds = array<i64: 1, 1, 96>}, {transform_indices = @transform_5, window_bounds = array<i64: 1, 32, 32>}, {transform_indices = @transform_6, window_bounds = array<i64: 1, 1, 32>}, {transform_indices = @transform_7, window_bounds = array<i64: 1, 1, 32>}, {transform_indices = @transform_8, window_bounds = array<i64: 1, 1, 32>}, {transform_indices = @transform_9, window_bounds = array<i64: 1, 32, 32>}, {transform_indices = @transform_10, window_bounds = array<i64: 1, 1, 32>}, {transform_indices = @transform_11, window_bounds = array<i64: 1, 32, 64>}, {transform_indices = @transform_12, window_bounds = array<i64: 1, 1, 64>}, {transform_indices = @transform_13, window_bounds = array<i64: 1, 32, 32>}, {transform_indices = @transform_14, window_bounds = array<i64: 1, 1, 32>}, {transform_indices = @transform_15, window_bounds = array<i64: 1, 1, 32>}, {transform_indices = @transform_16, window_bounds = array<i64: 1, 1, 32>}, {transform_indices = @transform_17, window_bounds = array<i64: 1, 32, 2048>}, {transform_indices = @transform_18, window_bounds = array<i64: 1, 1, 2048>}, {transform_indices = @transform_19, window_bounds = array<i64: 1, 2048, 32>}, {transform_indices = @transform_20, window_bounds = array<i64: 1, 1, 32>}, {transform_indices = @transform_21, window_bounds = array<i64: 1, 1, 32>}, {transform_indices = @transform_22, window_bounds = array<i64: 1, 1, 32>}, {pipeline_mode = #tpu.pipeline_mode<synchronous>, transform_indices = @transform_23, window_bounds = array<i64: 32, 128>}, {pipeline_mode = #tpu.pipeline_mode<synchronous>, transform_indices = @transform_24, window_bounds = array<i64: 1, 128>}, {pipeline_mode = #tpu.pipeline_mode<synchronous>, transform_indices = @transform_25, window_bounds = array<i64: 16, 128>}]} {
    %c0_i32 = arith.constant 0 : i32
    %0 = arith.cmpi eq, %arg0, %c0_i32 : i32
    %1 = arith.extui %0 : i1 to i32
    %c0_i32_0 = arith.constant 0 : i32
    %2 = arith.cmpi ne, %1, %c0_i32_0 : i32
    scf.if %2 {
      %c0_156 = arith.constant 0 : index
      %c0_157 = arith.constant 0 : index
      %418 = vector.load %arg1[%c0_156, %c0_157] : memref<16x32xf32, #tpu.memory_space<vmem>>, vector<16x32xf32>
      %c0_158 = arith.constant 0 : index
      %c0_159 = arith.constant 0 : index
      %419 = vector.load %arg27[%c0_158, %c0_159] : memref<16x32xf32, #tpu.memory_space<vmem>>, vector<16x32xf32>
      tpu.vector_store %arg27[%c0_158, %c0_159], %418 {strides = array<i32>} : memref<16x32xf32, #tpu.memory_space<vmem>>, vector<16x32xf32>,
    } else {
    }
    %c0 = arith.constant 0 : index
    %c0_1 = arith.constant 0 : index
    %3 = vector.load %arg27[%c0, %c0_1] : memref<16x32xf32, #tpu.memory_space<vmem>>, vector<16x32xf32>
    %c0_2 = arith.constant 0 : index
    %c0_3 = arith.constant 0 : index
    %4 = vector.load %arg2[%c0_2, %c0_3] : memref<16x32xf32, #tpu.memory_space<vmem>>, vector<16x32xf32>
    %c0_4 = arith.constant 0 : index
    %c0_5 = arith.constant 0 : index
    %c0_6 = arith.constant 0 : index
    %5 = vector.load %arg3[%c0_4, %c0_5, %c0_6] : memref<2x8x8xf32, #tpu.memory_space<vmem>>, vector<2x8x8xf32>
    %6 = arith.truncf %3 : vector<16x32xf32> to vector<16x32xbf16>
    %c0_7 = arith.constant 0 : index
    %c0_8 = arith.constant 0 : index
    %c0_9 = arith.constant 0 : index
    %7 = vector.load %arg4[%c0_7, %c0_8, %c0_9] : memref<1x32x96xbf16, #tpu.memory_space<vmem>>, vector<1x32x96xbf16>
    %8 = vector.shape_cast %7 : vector<1x32x96xbf16> to vector<32x96xbf16>
    %cst = arith.constant dense<0.000000e+00> : vector<16x96xf32>
    %9 = tpu.matmul %6, %8, %cst {dimension_numbers = #tpu.dot_dimension_numbers<[1], [0], [0], [1], [0, 0, 1, 1], [], []>} : vector<16x32xbf16>, vector<32x96xbf16>, vector<16x96xf32> -> vector<16x96xf32>
    %c0_10 = arith.constant 0 : index
    %c0_11 = arith.constant 0 : index
    %c0_12 = arith.constant 0 : index
    %10 = vector.load %arg5[%c0_10, %c0_11, %c0_12] : memref<1x1x96xf32, #tpu.memory_space<vmem>>, vector<1x1x96xf32>
    %11 = vector.shape_cast %10 : vector<1x1x96xf32> to vector<1x96xf32>
    %12 = vector.broadcast %11 : vector<1x96xf32> to vector<16x96xf32>
    %13 = arith.addf %9, %12 : vector<16x96xf32>
    %14 = vector.extract_strided_slice %13 {offsets = [0, 0], sizes = [16, 32], strides = [1, 1]} : vector<16x96xf32> to vector<16x32xf32>
    %15 = vector.extract_strided_slice %13 {offsets = [0, 32], sizes = [16, 32], strides = [1, 1]} : vector<16x96xf32> to vector<16x32xf32>
    %16 = vector.extract_strided_slice %13 {offsets = [0, 64], sizes = [16, 32], strides = [1, 1]} : vector<16x96xf32> to vector<16x32xf32>
    %c0_13 = arith.constant 0 : index
    %c0_14 = arith.constant 0 : index
    %c0_15 = arith.constant 0 : index
    %17 = vector.load %arg6[%c0_13, %c0_14, %c0_15] : memref<1x32x32xbf16, #tpu.memory_space<vmem>>, vector<1x32x32xbf16>
    %18 = vector.shape_cast %17 : vector<1x32x32xbf16> to vector<32x32xbf16>
    %c0_16 = arith.constant 0 : index
    %c0_17 = arith.constant 0 : index
    %c0_18 = arith.constant 0 : index
    %19 = vector.load %arg7[%c0_16, %c0_17, %c0_18] : memref<1x1x32xf32, #tpu.memory_space<vmem>>, vector<1x1x32xf32>
    %20 = vector.shape_cast %19 : vector<1x1x32xf32> to vector<1x32xf32>
    %21 = vector.extract_strided_slice %5 {offsets = [0, 0, 0], sizes = [1, 8, 8], strides = [1, 1, 1]} : vector<2x8x8xf32> to vector<1x8x8xf32>
    %22 = vector.shape_cast %21 : vector<1x8x8xf32> to vector<8x8xf32>
    %23 = vector.extract_strided_slice %5 {offsets = [1, 0, 0], sizes = [1, 8, 8], strides = [1, 1, 1]} : vector<2x8x8xf32> to vector<1x8x8xf32>
    %24 = vector.shape_cast %23 : vector<1x8x8xf32> to vector<8x8xf32>
    %25 = vector.extract_strided_slice %14 {offsets = [0, 0], sizes = [8, 32], strides = [1, 1]} : vector<16x32xf32> to vector<8x32xf32>
    %26 = vector.extract_strided_slice %15 {offsets = [0, 0], sizes = [8, 32], strides = [1, 1]} : vector<16x32xf32> to vector<8x32xf32>
    %27 = vector.extract_strided_slice %16 {offsets = [0, 0], sizes = [8, 32], strides = [1, 1]} : vector<16x32xf32> to vector<8x32xf32>
    %28 = vector.extract_strided_slice %25 {offsets = [0, 0], sizes = [8, 8], strides = [1, 1]} : vector<8x32xf32> to vector<8x8xf32>
    %29 = vector.extract_strided_slice %26 {offsets = [0, 0], sizes = [8, 8], strides = [1, 1]} : vector<8x32xf32> to vector<8x8xf32>
    %cst_19 = arith.constant dense<0.000000e+00> : vector<8x8xf32>
    %30 = tpu.matmul %28, %29, %cst_19 {dimension_numbers = #tpu.dot_dimension_numbers<[1], [1], [0], [0], [0, 0, 1, 0], [], []>} : vector<8x8xf32>, vector<8x8xf32>, vector<8x8xf32> -> vector<8x8xf32>
    %31 = arith.addf %30, %22 : vector<8x8xf32>
    %cst_20 = arith.constant dense<0xFF800000> : vector<8xf32>
    %32 = vector.multi_reduction <maximumf>, %31, %cst_20 [1] : vector<8x8xf32> to vector<8xf32>
    %33 = vector.shape_cast %32 : vector<8xf32> to vector<8x1xf32>
    %34 = vector.broadcast %33 : vector<8x1xf32> to vector<8x8xf32>
    %35 = arith.subf %31, %34 : vector<8x8xf32>
    %36 = math.exp %35 : vector<8x8xf32>
    %cst_21 = arith.constant dense<0.000000e+00> : vector<8xf32>
    %37 = vector.multi_reduction <add>, %36, %cst_21 [1] : vector<8x8xf32> to vector<8xf32>
    %38 = vector.shape_cast %37 : vector<8xf32> to vector<8x1xf32>
    %39 = tpu.reciprocal %38 {approx = true} : vector<8x1xf32> -> vector<8x1xf32>
    %40 = vector.broadcast %39 : vector<8x1xf32> to vector<8x8xf32>
    %41 = arith.mulf %36, %40 : vector<8x8xf32>
    %42 = vector.extract_strided_slice %27 {offsets = [0, 0], sizes = [8, 8], strides = [1, 1]} : vector<8x32xf32> to vector<8x8xf32>
    %cst_22 = arith.constant dense<0.000000e+00> : vector<8x8xf32>
    %43 = tpu.matmul %41, %42, %cst_22 {dimension_numbers = #tpu.dot_dimension_numbers<[1], [0], [0], [1], [0, 0, 1, 1], [], []>} : vector<8x8xf32>, vector<8x8xf32>, vector<8x8xf32> -> vector<8x8xf32>
    %44 = vector.extract_strided_slice %25 {offsets = [0, 8], sizes = [8, 8], strides = [1, 1]} : vector<8x32xf32> to vector<8x8xf32>
    %45 = vector.extract_strided_slice %26 {offsets = [0, 8], sizes = [8, 8], strides = [1, 1]} : vector<8x32xf32> to vector<8x8xf32>
    %cst_23 = arith.constant dense<0.000000e+00> : vector<8x8xf32>
    %46 = tpu.matmul %44, %45, %cst_23 {dimension_numbers = #tpu.dot_dimension_numbers<[1], [1], [0], [0], [0, 0, 1, 0], [], []>} : vector<8x8xf32>, vector<8x8xf32>, vector<8x8xf32> -> vector<8x8xf32>
    %47 = arith.addf %46, %22 : vector<8x8xf32>
    %cst_24 = arith.constant dense<0xFF800000> : vector<8xf32>
    %48 = vector.multi_reduction <maximumf>, %47, %cst_24 [1] : vector<8x8xf32> to vector<8xf32>
    %49 = vector.shape_cast %48 : vector<8xf32> to vector<8x1xf32>
    %50 = vector.broadcast %49 : vector<8x1xf32> to vector<8x8xf32>
    %51 = arith.subf %47, %50 : vector<8x8xf32>
    %52 = math.exp %51 : vector<8x8xf32>
    %cst_25 = arith.constant dense<0.000000e+00> : vector<8xf32>
    %53 = vector.multi_reduction <add>, %52, %cst_25 [1] : vector<8x8xf32> to vector<8xf32>
    %54 = vector.shape_cast %53 : vector<8xf32> to vector<8x1xf32>
    %55 = tpu.reciprocal %54 {approx = true} : vector<8x1xf32> -> vector<8x1xf32>
    %56 = vector.broadcast %55 : vector<8x1xf32> to vector<8x8xf32>
    %57 = arith.mulf %52, %56 : vector<8x8xf32>
    %58 = vector.extract_strided_slice %27 {offsets = [0, 8], sizes = [8, 8], strides = [1, 1]} : vector<8x32xf32> to vector<8x8xf32>
    %cst_26 = arith.constant dense<0.000000e+00> : vector<8x8xf32>
    %59 = tpu.matmul %57, %58, %cst_26 {dimension_numbers = #tpu.dot_dimension_numbers<[1], [0], [0], [1], [0, 0, 1, 1], [], []>} : vector<8x8xf32>, vector<8x8xf32>, vector<8x8xf32> -> vector<8x8xf32>
    %60 = vector.extract_strided_slice %25 {offsets = [0, 16], sizes = [8, 8], strides = [1, 1]} : vector<8x32xf32> to vector<8x8xf32>
    %61 = vector.extract_strided_slice %26 {offsets = [0, 16], sizes = [8, 8], strides = [1, 1]} : vector<8x32xf32> to vector<8x8xf32>
    %cst_27 = arith.constant dense<0.000000e+00> : vector<8x8xf32>
    %62 = tpu.matmul %60, %61, %cst_27 {dimension_numbers = #tpu.dot_dimension_numbers<[1], [1], [0], [0], [0, 0, 1, 0], [], []>} : vector<8x8xf32>, vector<8x8xf32>, vector<8x8xf32> -> vector<8x8xf32>
    %63 = arith.addf %62, %22 : vector<8x8xf32>
    %cst_28 = arith.constant dense<0xFF800000> : vector<8xf32>
    %64 = vector.multi_reduction <maximumf>, %63, %cst_28 [1] : vector<8x8xf32> to vector<8xf32>
    %65 = vector.shape_cast %64 : vector<8xf32> to vector<8x1xf32>
    %66 = vector.broadcast %65 : vector<8x1xf32> to vector<8x8xf32>
    %67 = arith.subf %63, %66 : vector<8x8xf32>
    %68 = math.exp %67 : vector<8x8xf32>
    %cst_29 = arith.constant dense<0.000000e+00> : vector<8xf32>
    %69 = vector.multi_reduction <add>, %68, %cst_29 [1] : vector<8x8xf32> to vector<8xf32>
    %70 = vector.shape_cast %69 : vector<8xf32> to vector<8x1xf32>
    %71 = tpu.reciprocal %70 {approx = true} : vector<8x1xf32> -> vector<8x1xf32>
    %72 = vector.broadcast %71 : vector<8x1xf32> to vector<8x8xf32>
    %73 = arith.mulf %68, %72 : vector<8x8xf32>
    %74 = vector.extract_strided_slice %27 {offsets = [0, 16], sizes = [8, 8], strides = [1, 1]} : vector<8x32xf32> to vector<8x8xf32>
    %cst_30 = arith.constant dense<0.000000e+00> : vector<8x8xf32>
    %75 = tpu.matmul %73, %74, %cst_30 {dimension_numbers = #tpu.dot_dimension_numbers<[1], [0], [0], [1], [0, 0, 1, 1], [], []>} : vector<8x8xf32>, vector<8x8xf32>, vector<8x8xf32> -> vector<8x8xf32>
    %76 = vector.extract_strided_slice %25 {offsets = [0, 24], sizes = [8, 8], strides = [1, 1]} : vector<8x32xf32> to vector<8x8xf32>
    %77 = vector.extract_strided_slice %26 {offsets = [0, 24], sizes = [8, 8], strides = [1, 1]} : vector<8x32xf32> to vector<8x8xf32>
    %cst_31 = arith.constant dense<0.000000e+00> : vector<8x8xf32>
    %78 = tpu.matmul %76, %77, %cst_31 {dimension_numbers = #tpu.dot_dimension_numbers<[1], [1], [0], [0], [0, 0, 1, 0], [], []>} : vector<8x8xf32>, vector<8x8xf32>, vector<8x8xf32> -> vector<8x8xf32>
    %79 = arith.addf %78, %22 : vector<8x8xf32>
    %cst_32 = arith.constant dense<0xFF800000> : vector<8xf32>
    %80 = vector.multi_reduction <maximumf>, %79, %cst_32 [1] : vector<8x8xf32> to vector<8xf32>
    %81 = vector.shape_cast %80 : vector<8xf32> to vector<8x1xf32>
    %82 = vector.broadcast %81 : vector<8x1xf32> to vector<8x8xf32>
    %83 = arith.subf %79, %82 : vector<8x8xf32>
    %84 = math.exp %83 : vector<8x8xf32>
    %cst_33 = arith.constant dense<0.000000e+00> : vector<8xf32>
    %85 = vector.multi_reduction <add>, %84, %cst_33 [1] : vector<8x8xf32> to vector<8xf32>
    %86 = vector.shape_cast %85 : vector<8xf32> to vector<8x1xf32>
    %87 = tpu.reciprocal %86 {approx = true} : vector<8x1xf32> -> vector<8x1xf32>
    %88 = vector.broadcast %87 : vector<8x1xf32> to vector<8x8xf32>
    %89 = arith.mulf %84, %88 : vector<8x8xf32>
    %90 = vector.extract_strided_slice %27 {offsets = [0, 24], sizes = [8, 8], strides = [1, 1]} : vector<8x32xf32> to vector<8x8xf32>
    %cst_34 = arith.constant dense<0.000000e+00> : vector<8x8xf32>
    %91 = tpu.matmul %89, %90, %cst_34 {dimension_numbers = #tpu.dot_dimension_numbers<[1], [0], [0], [1], [0, 0, 1, 1], [], []>} : vector<8x8xf32>, vector<8x8xf32>, vector<8x8xf32> -> vector<8x8xf32>
    %92 = tpu.concatenate %43, %59, %75, %91 in 1 : vector<8x8xf32>, vector<8x8xf32>, vector<8x8xf32>, vector<8x8xf32> -> vector<8x32xf32>
    %93 = vector.extract_strided_slice %14 {offsets = [8, 0], sizes = [8, 32], strides = [1, 1]} : vector<16x32xf32> to vector<8x32xf32>
    %94 = vector.extract_strided_slice %15 {offsets = [8, 0], sizes = [8, 32], strides = [1, 1]} : vector<16x32xf32> to vector<8x32xf32>
    %95 = vector.extract_strided_slice %16 {offsets = [8, 0], sizes = [8, 32], strides = [1, 1]} : vector<16x32xf32> to vector<8x32xf32>
    %96 = vector.extract_strided_slice %93 {offsets = [0, 0], sizes = [8, 8], strides = [1, 1]} : vector<8x32xf32> to vector<8x8xf32>
    %97 = vector.extract_strided_slice %94 {offsets = [0, 0], sizes = [8, 8], strides = [1, 1]} : vector<8x32xf32> to vector<8x8xf32>
    %cst_35 = arith.constant dense<0.000000e+00> : vector<8x8xf32>
    %98 = tpu.matmul %96, %97, %cst_35 {dimension_numbers = #tpu.dot_dimension_numbers<[1], [1], [0], [0], [0, 0, 1, 0], [], []>} : vector<8x8xf32>, vector<8x8xf32>, vector<8x8xf32> -> vector<8x8xf32>
    %99 = arith.addf %98, %24 : vector<8x8xf32>
    %cst_36 = arith.constant dense<0xFF800000> : vector<8xf32>
    %100 = vector.multi_reduction <maximumf>, %99, %cst_36 [1] : vector<8x8xf32> to vector<8xf32>
    %101 = vector.shape_cast %100 : vector<8xf32> to vector<8x1xf32>
    %102 = vector.broadcast %101 : vector<8x1xf32> to vector<8x8xf32>
    %103 = arith.subf %99, %102 : vector<8x8xf32>
    %104 = math.exp %103 : vector<8x8xf32>
    %cst_37 = arith.constant dense<0.000000e+00> : vector<8xf32>
    %105 = vector.multi_reduction <add>, %104, %cst_37 [1] : vector<8x8xf32> to vector<8xf32>
    %106 = vector.shape_cast %105 : vector<8xf32> to vector<8x1xf32>
    %107 = tpu.reciprocal %106 {approx = true} : vector<8x1xf32> -> vector<8x1xf32>
    %108 = vector.broadcast %107 : vector<8x1xf32> to vector<8x8xf32>
    %109 = arith.mulf %104, %108 : vector<8x8xf32>
    %110 = vector.extract_strided_slice %95 {offsets = [0, 0], sizes = [8, 8], strides = [1, 1]} : vector<8x32xf32> to vector<8x8xf32>
    %cst_38 = arith.constant dense<0.000000e+00> : vector<8x8xf32>
    %111 = tpu.matmul %109, %110, %cst_38 {dimension_numbers = #tpu.dot_dimension_numbers<[1], [0], [0], [1], [0, 0, 1, 1], [], []>} : vector<8x8xf32>, vector<8x8xf32>, vector<8x8xf32> -> vector<8x8xf32>
    %112 = vector.extract_strided_slice %93 {offsets = [0, 8], sizes = [8, 8], strides = [1, 1]} : vector<8x32xf32> to vector<8x8xf32>
    %113 = vector.extract_strided_slice %94 {offsets = [0, 8], sizes = [8, 8], strides = [1, 1]} : vector<8x32xf32> to vector<8x8xf32>
    %cst_39 = arith.constant dense<0.000000e+00> : vector<8x8xf32>
    %114 = tpu.matmul %112, %113, %cst_39 {dimension_numbers = #tpu.dot_dimension_numbers<[1], [1], [0], [0], [0, 0, 1, 0], [], []>} : vector<8x8xf32>, vector<8x8xf32>, vector<8x8xf32> -> vector<8x8xf32>
    %115 = arith.addf %114, %24 : vector<8x8xf32>
    %cst_40 = arith.constant dense<0xFF800000> : vector<8xf32>
    %116 = vector.multi_reduction <maximumf>, %115, %cst_40 [1] : vector<8x8xf32> to vector<8xf32>
    %117 = vector.shape_cast %116 : vector<8xf32> to vector<8x1xf32>
    %118 = vector.broadcast %117 : vector<8x1xf32> to vector<8x8xf32>
    %119 = arith.subf %115, %118 : vector<8x8xf32>
    %120 = math.exp %119 : vector<8x8xf32>
    %cst_41 = arith.constant dense<0.000000e+00> : vector<8xf32>
    %121 = vector.multi_reduction <add>, %120, %cst_41 [1] : vector<8x8xf32> to vector<8xf32>
    %122 = vector.shape_cast %121 : vector<8xf32> to vector<8x1xf32>
    %123 = tpu.reciprocal %122 {approx = true} : vector<8x1xf32> -> vector<8x1xf32>
    %124 = vector.broadcast %123 : vector<8x1xf32> to vector<8x8xf32>
    %125 = arith.mulf %120, %124 : vector<8x8xf32>
    %126 = vector.extract_strided_slice %95 {offsets = [0, 8], sizes = [8, 8], strides = [1, 1]} : vector<8x32xf32> to vector<8x8xf32>
    %cst_42 = arith.constant dense<0.000000e+00> : vector<8x8xf32>
    %127 = tpu.matmul %125, %126, %cst_42 {dimension_numbers = #tpu.dot_dimension_numbers<[1], [0], [0], [1], [0, 0, 1, 1], [], []>} : vector<8x8xf32>, vector<8x8xf32>, vector<8x8xf32> -> vector<8x8xf32>
    %128 = vector.extract_strided_slice %93 {offsets = [0, 16], sizes = [8, 8], strides = [1, 1]} : vector<8x32xf32> to vector<8x8xf32>
    %129 = vector.extract_strided_slice %94 {offsets = [0, 16], sizes = [8, 8], strides = [1, 1]} : vector<8x32xf32> to vector<8x8xf32>
    %cst_43 = arith.constant dense<0.000000e+00> : vector<8x8xf32>
    %130 = tpu.matmul %128, %129, %cst_43 {dimension_numbers = #tpu.dot_dimension_numbers<[1], [1], [0], [0], [0, 0, 1, 0], [], []>} : vector<8x8xf32>, vector<8x8xf32>, vector<8x8xf32> -> vector<8x8xf32>
    %131 = arith.addf %130, %24 : vector<8x8xf32>
    %cst_44 = arith.constant dense<0xFF800000> : vector<8xf32>
    %132 = vector.multi_reduction <maximumf>, %131, %cst_44 [1] : vector<8x8xf32> to vector<8xf32>
    %133 = vector.shape_cast %132 : vector<8xf32> to vector<8x1xf32>
    %134 = vector.broadcast %133 : vector<8x1xf32> to vector<8x8xf32>
    %135 = arith.subf %131, %134 : vector<8x8xf32>
    %136 = math.exp %135 : vector<8x8xf32>
    %cst_45 = arith.constant dense<0.000000e+00> : vector<8xf32>
    %137 = vector.multi_reduction <add>, %136, %cst_45 [1] : vector<8x8xf32> to vector<8xf32>
    %138 = vector.shape_cast %137 : vector<8xf32> to vector<8x1xf32>
    %139 = tpu.reciprocal %138 {approx = true} : vector<8x1xf32> -> vector<8x1xf32>
    %140 = vector.broadcast %139 : vector<8x1xf32> to vector<8x8xf32>
    %141 = arith.mulf %136, %140 : vector<8x8xf32>
    %142 = vector.extract_strided_slice %95 {offsets = [0, 16], sizes = [8, 8], strides = [1, 1]} : vector<8x32xf32> to vector<8x8xf32>
    %cst_46 = arith.constant dense<0.000000e+00> : vector<8x8xf32>
    %143 = tpu.matmul %141, %142, %cst_46 {dimension_numbers = #tpu.dot_dimension_numbers<[1], [0], [0], [1], [0, 0, 1, 1], [], []>} : vector<8x8xf32>, vector<8x8xf32>, vector<8x8xf32> -> vector<8x8xf32>
    %144 = vector.extract_strided_slice %93 {offsets = [0, 24], sizes = [8, 8], strides = [1, 1]} : vector<8x32xf32> to vector<8x8xf32>
    %145 = vector.extract_strided_slice %94 {offsets = [0, 24], sizes = [8, 8], strides = [1, 1]} : vector<8x32xf32> to vector<8x8xf32>
    %cst_47 = arith.constant dense<0.000000e+00> : vector<8x8xf32>
    %146 = tpu.matmul %144, %145, %cst_47 {dimension_numbers = #tpu.dot_dimension_numbers<[1], [1], [0], [0], [0, 0, 1, 0], [], []>} : vector<8x8xf32>, vector<8x8xf32>, vector<8x8xf32> -> vector<8x8xf32>
    %147 = arith.addf %146, %24 : vector<8x8xf32>
    %cst_48 = arith.constant dense<0xFF800000> : vector<8xf32>
    %148 = vector.multi_reduction <maximumf>, %147, %cst_48 [1] : vector<8x8xf32> to vector<8xf32>
    %149 = vector.shape_cast %148 : vector<8xf32> to vector<8x1xf32>
    %150 = vector.broadcast %149 : vector<8x1xf32> to vector<8x8xf32>
    %151 = arith.subf %147, %150 : vector<8x8xf32>
    %152 = math.exp %151 : vector<8x8xf32>
    %cst_49 = arith.constant dense<0.000000e+00> : vector<8xf32>
    %153 = vector.multi_reduction <add>, %152, %cst_49 [1] : vector<8x8xf32> to vector<8xf32>
    %154 = vector.shape_cast %153 : vector<8xf32> to vector<8x1xf32>
    %155 = tpu.reciprocal %154 {approx = true} : vector<8x1xf32> -> vector<8x1xf32>
    %156 = vector.broadcast %155 : vector<8x1xf32> to vector<8x8xf32>
    %157 = arith.mulf %152, %156 : vector<8x8xf32>
    %158 = vector.extract_strided_slice %95 {offsets = [0, 24], sizes = [8, 8], strides = [1, 1]} : vector<8x32xf32> to vector<8x8xf32>
    %cst_50 = arith.constant dense<0.000000e+00> : vector<8x8xf32>
    %159 = tpu.matmul %157, %158, %cst_50 {dimension_numbers = #tpu.dot_dimension_numbers<[1], [0], [0], [1], [0, 0, 1, 1], [], []>} : vector<8x8xf32>, vector<8x8xf32>, vector<8x8xf32> -> vector<8x8xf32>
    %160 = tpu.concatenate %111, %127, %143, %159 in 1 : vector<8x8xf32>, vector<8x8xf32>, vector<8x8xf32>, vector<8x8xf32> -> vector<8x32xf32>
    %161 = tpu.concatenate %92, %160 in 0 : vector<8x32xf32>, vector<8x32xf32> -> vector<16x32xf32>
    %162 = arith.truncf %161 : vector<16x32xf32> to vector<16x32xbf16>
    %cst_51 = arith.constant dense<0.000000e+00> : vector<16x32xf32>
    %163 = tpu.matmul %162, %18, %cst_51 {dimension_numbers = #tpu.dot_dimension_numbers<[1], [0], [0], [1], [0, 0, 1, 1], [], []>} : vector<16x32xbf16>, vector<32x32xbf16>, vector<16x32xf32> -> vector<16x32xf32>
    %164 = vector.broadcast %20 : vector<1x32xf32> to vector<16x32xf32>
    %165 = arith.addf %163, %164 : vector<16x32xf32>
    %166 = arith.addf %3, %165 : vector<16x32xf32>
    %c0_52 = arith.constant 0 : index
    %c0_53 = arith.constant 0 : index
    %c0_54 = arith.constant 0 : index
    %167 = vector.load %arg8[%c0_52, %c0_53, %c0_54] : memref<1x1x32xf32, #tpu.memory_space<vmem>>, vector<1x1x32xf32>
    %168 = vector.shape_cast %167 : vector<1x1x32xf32> to vector<1x32xf32>
    %c0_55 = arith.constant 0 : index
    %c0_56 = arith.constant 0 : index
    %c0_57 = arith.constant 0 : index
    %169 = vector.load %arg9[%c0_55, %c0_56, %c0_57] : memref<1x1x32xf32, #tpu.memory_space<vmem>>, vector<1x1x32xf32>
    %170 = vector.shape_cast %169 : vector<1x1x32xf32> to vector<1x32xf32>
    %cst_58 = arith.constant dense<0.000000e+00> : vector<16xf32>
    %171 = vector.multi_reduction <add>, %166, %cst_58 [1] : vector<16x32xf32> to vector<16xf32>
    %172 = vector.shape_cast %171 : vector<16xf32> to vector<16x1xf32>
    %cst_59 = arith.constant 3.200000e+01 : f32
    %173 = vector.broadcast %cst_59 : f32 to vector<16x1xf32>
    %174 = arith.divf %172, %173 : vector<16x1xf32>
    %175 = vector.broadcast %174 : vector<16x1xf32> to vector<16x32xf32>
    %176 = arith.subf %166, %175 : vector<16x32xf32>
    %177 = arith.mulf %176, %176 : vector<16x32xf32>
    %cst_60 = arith.constant dense<0.000000e+00> : vector<16xf32>
    %178 = vector.multi_reduction <add>, %177, %cst_60 [1] : vector<16x32xf32> to vector<16xf32>
    %179 = vector.shape_cast %178 : vector<16xf32> to vector<16x1xf32>
    %cst_61 = arith.constant 3.200000e+01 : f32
    %180 = vector.broadcast %cst_61 : f32 to vector<16x1xf32>
    %181 = arith.divf %179, %180 : vector<16x1xf32>
    %cst_62 = arith.constant 9.99999974E-6 : f32
    %182 = vector.broadcast %cst_62 : f32 to vector<16x1xf32>
    %183 = arith.addf %181, %182 : vector<16x1xf32>
    %184 = math.rsqrt %183 : vector<16x1xf32>
    %185 = vector.broadcast %184 : vector<16x1xf32> to vector<16x32xf32>
    %186 = arith.mulf %176, %185 : vector<16x32xf32>
    %187 = vector.broadcast %168 : vector<1x32xf32> to vector<16x32xf32>
    %188 = arith.mulf %186, %187 : vector<16x32xf32>
    %189 = vector.broadcast %170 : vector<1x32xf32> to vector<16x32xf32>
    %190 = arith.addf %188, %189 : vector<16x32xf32>
    %191 = arith.truncf %190 : vector<16x32xf32> to vector<16x32xbf16>
    %c0_63 = arith.constant 0 : index
    %c0_64 = arith.constant 0 : index
    %c0_65 = arith.constant 0 : index
    %192 = vector.load %arg10[%c0_63, %c0_64, %c0_65] : memref<1x32x32xbf16, #tpu.memory_space<vmem>>, vector<1x32x32xbf16>
    %193 = vector.shape_cast %192 : vector<1x32x32xbf16> to vector<32x32xbf16>
    %cst_66 = arith.constant dense<0.000000e+00> : vector<16x32xf32>
    %194 = tpu.matmul %191, %193, %cst_66 {dimension_numbers = #tpu.dot_dimension_numbers<[1], [0], [0], [1], [0, 0, 1, 1], [], []>} : vector<16x32xbf16>, vector<32x32xbf16>, vector<16x32xf32> -> vector<16x32xf32>
    %c0_67 = arith.constant 0 : index
    %c0_68 = arith.constant 0 : index
    %c0_69 = arith.constant 0 : index
    %195 = vector.load %arg11[%c0_67, %c0_68, %c0_69] : memref<1x1x32xf32, #tpu.memory_space<vmem>>, vector<1x1x32xf32>
    %196 = vector.shape_cast %195 : vector<1x1x32xf32> to vector<1x32xf32>
    %197 = vector.broadcast %196 : vector<1x32xf32> to vector<16x32xf32>
    %198 = arith.addf %194, %197 : vector<16x32xf32>
    %199 = arith.truncf %4 : vector<16x32xf32> to vector<16x32xbf16>
    %c0_70 = arith.constant 0 : index
    %c0_71 = arith.constant 0 : index
    %c0_72 = arith.constant 0 : index
    %200 = vector.load %arg12[%c0_70, %c0_71, %c0_72] : memref<1x32x64xbf16, #tpu.memory_space<vmem>>, vector<1x32x64xbf16>
    %201 = vector.shape_cast %200 : vector<1x32x64xbf16> to vector<32x64xbf16>
    %cst_73 = arith.constant dense<0.000000e+00> : vector<16x64xf32>
    %202 = tpu.matmul %199, %201, %cst_73 {dimension_numbers = #tpu.dot_dimension_numbers<[1], [0], [0], [1], [0, 0, 1, 1], [], []>} : vector<16x32xbf16>, vector<32x64xbf16>, vector<16x64xf32> -> vector<16x64xf32>
    %c0_74 = arith.constant 0 : index
    %c0_75 = arith.constant 0 : index
    %c0_76 = arith.constant 0 : index
    %203 = vector.load %arg13[%c0_74, %c0_75, %c0_76] : memref<1x1x64xf32, #tpu.memory_space<vmem>>, vector<1x1x64xf32>
    %204 = vector.shape_cast %203 : vector<1x1x64xf32> to vector<1x64xf32>
    %205 = vector.broadcast %204 : vector<1x64xf32> to vector<16x64xf32>
    %206 = arith.addf %202, %205 : vector<16x64xf32>
    %207 = vector.extract_strided_slice %206 {offsets = [0, 0], sizes = [16, 32], strides = [1, 1]} : vector<16x64xf32> to vector<16x32xf32>
    %208 = vector.extract_strided_slice %206 {offsets = [0, 32], sizes = [16, 32], strides = [1, 1]} : vector<16x64xf32> to vector<16x32xf32>
    %c0_77 = arith.constant 0 : index
    %c0_78 = arith.constant 0 : index
    %c0_79 = arith.constant 0 : index
    %209 = vector.load %arg14[%c0_77, %c0_78, %c0_79] : memref<1x32x32xbf16, #tpu.memory_space<vmem>>, vector<1x32x32xbf16>
    %210 = vector.shape_cast %209 : vector<1x32x32xbf16> to vector<32x32xbf16>
    %c0_80 = arith.constant 0 : index
    %c0_81 = arith.constant 0 : index
    %c0_82 = arith.constant 0 : index
    %211 = vector.load %arg15[%c0_80, %c0_81, %c0_82] : memref<1x1x32xf32, #tpu.memory_space<vmem>>, vector<1x1x32xf32>
    %212 = vector.shape_cast %211 : vector<1x1x32xf32> to vector<1x32xf32>
    %213 = vector.extract_strided_slice %198 {offsets = [0, 0], sizes = [8, 32], strides = [1, 1]} : vector<16x32xf32> to vector<8x32xf32>
    %214 = vector.extract_strided_slice %207 {offsets = [0, 0], sizes = [8, 32], strides = [1, 1]} : vector<16x32xf32> to vector<8x32xf32>
    %215 = vector.extract_strided_slice %208 {offsets = [0, 0], sizes = [8, 32], strides = [1, 1]} : vector<16x32xf32> to vector<8x32xf32>
    %216 = vector.extract_strided_slice %213 {offsets = [0, 0], sizes = [8, 8], strides = [1, 1]} : vector<8x32xf32> to vector<8x8xf32>
    %217 = vector.extract_strided_slice %214 {offsets = [0, 0], sizes = [8, 8], strides = [1, 1]} : vector<8x32xf32> to vector<8x8xf32>
    %cst_83 = arith.constant dense<0.000000e+00> : vector<8x8xf32>
    %218 = tpu.matmul %216, %217, %cst_83 {dimension_numbers = #tpu.dot_dimension_numbers<[1], [1], [0], [0], [0, 0, 1, 0], [], []>} : vector<8x8xf32>, vector<8x8xf32>, vector<8x8xf32> -> vector<8x8xf32>
    %cst_84 = arith.constant dense<0xFF800000> : vector<8xf32>
    %219 = vector.multi_reduction <maximumf>, %218, %cst_84 [1] : vector<8x8xf32> to vector<8xf32>
    %220 = vector.shape_cast %219 : vector<8xf32> to vector<8x1xf32>
    %221 = vector.broadcast %220 : vector<8x1xf32> to vector<8x8xf32>
    %222 = arith.subf %218, %221 : vector<8x8xf32>
    %223 = math.exp %222 : vector<8x8xf32>
    %cst_85 = arith.constant dense<0.000000e+00> : vector<8xf32>
    %224 = vector.multi_reduction <add>, %223, %cst_85 [1] : vector<8x8xf32> to vector<8xf32>
    %225 = vector.shape_cast %224 : vector<8xf32> to vector<8x1xf32>
    %226 = tpu.reciprocal %225 {approx = true} : vector<8x1xf32> -> vector<8x1xf32>
    %227 = vector.broadcast %226 : vector<8x1xf32> to vector<8x8xf32>
    %228 = arith.mulf %223, %227 : vector<8x8xf32>
    %229 = vector.extract_strided_slice %215 {offsets = [0, 0], sizes = [8, 8], strides = [1, 1]} : vector<8x32xf32> to vector<8x8xf32>
    %cst_86 = arith.constant dense<0.000000e+00> : vector<8x8xf32>
    %230 = tpu.matmul %228, %229, %cst_86 {dimension_numbers = #tpu.dot_dimension_numbers<[1], [0], [0], [1], [0, 0, 1, 1], [], []>} : vector<8x8xf32>, vector<8x8xf32>, vector<8x8xf32> -> vector<8x8xf32>
    %231 = vector.extract_strided_slice %213 {offsets = [0, 8], sizes = [8, 8], strides = [1, 1]} : vector<8x32xf32> to vector<8x8xf32>
    %232 = vector.extract_strided_slice %214 {offsets = [0, 8], sizes = [8, 8], strides = [1, 1]} : vector<8x32xf32> to vector<8x8xf32>
    %cst_87 = arith.constant dense<0.000000e+00> : vector<8x8xf32>
    %233 = tpu.matmul %231, %232, %cst_87 {dimension_numbers = #tpu.dot_dimension_numbers<[1], [1], [0], [0], [0, 0, 1, 0], [], []>} : vector<8x8xf32>, vector<8x8xf32>, vector<8x8xf32> -> vector<8x8xf32>
    %cst_88 = arith.constant dense<0xFF800000> : vector<8xf32>
    %234 = vector.multi_reduction <maximumf>, %233, %cst_88 [1] : vector<8x8xf32> to vector<8xf32>
    %235 = vector.shape_cast %234 : vector<8xf32> to vector<8x1xf32>
    %236 = vector.broadcast %235 : vector<8x1xf32> to vector<8x8xf32>
    %237 = arith.subf %233, %236 : vector<8x8xf32>
    %238 = math.exp %237 : vector<8x8xf32>
    %cst_89 = arith.constant dense<0.000000e+00> : vector<8xf32>
    %239 = vector.multi_reduction <add>, %238, %cst_89 [1] : vector<8x8xf32> to vector<8xf32>
    %240 = vector.shape_cast %239 : vector<8xf32> to vector<8x1xf32>
    %241 = tpu.reciprocal %240 {approx = true} : vector<8x1xf32> -> vector<8x1xf32>
    %242 = vector.broadcast %241 : vector<8x1xf32> to vector<8x8xf32>
    %243 = arith.mulf %238, %242 : vector<8x8xf32>
    %244 = vector.extract_strided_slice %215 {offsets = [0, 8], sizes = [8, 8], strides = [1, 1]} : vector<8x32xf32> to vector<8x8xf32>
    %cst_90 = arith.constant dense<0.000000e+00> : vector<8x8xf32>
    %245 = tpu.matmul %243, %244, %cst_90 {dimension_numbers = #tpu.dot_dimension_numbers<[1], [0], [0], [1], [0, 0, 1, 1], [], []>} : vector<8x8xf32>, vector<8x8xf32>, vector<8x8xf32> -> vector<8x8xf32>
    %246 = vector.extract_strided_slice %213 {offsets = [0, 16], sizes = [8, 8], strides = [1, 1]} : vector<8x32xf32> to vector<8x8xf32>
    %247 = vector.extract_strided_slice %214 {offsets = [0, 16], sizes = [8, 8], strides = [1, 1]} : vector<8x32xf32> to vector<8x8xf32>
    %cst_91 = arith.constant dense<0.000000e+00> : vector<8x8xf32>
    %248 = tpu.matmul %246, %247, %cst_91 {dimension_numbers = #tpu.dot_dimension_numbers<[1], [1], [0], [0], [0, 0, 1, 0], [], []>} : vector<8x8xf32>, vector<8x8xf32>, vector<8x8xf32> -> vector<8x8xf32>
    %cst_92 = arith.constant dense<0xFF800000> : vector<8xf32>
    %249 = vector.multi_reduction <maximumf>, %248, %cst_92 [1] : vector<8x8xf32> to vector<8xf32>
    %250 = vector.shape_cast %249 : vector<8xf32> to vector<8x1xf32>
    %251 = vector.broadcast %250 : vector<8x1xf32> to vector<8x8xf32>
    %252 = arith.subf %248, %251 : vector<8x8xf32>
    %253 = math.exp %252 : vector<8x8xf32>
    %cst_93 = arith.constant dense<0.000000e+00> : vector<8xf32>
    %254 = vector.multi_reduction <add>, %253, %cst_93 [1] : vector<8x8xf32> to vector<8xf32>
    %255 = vector.shape_cast %254 : vector<8xf32> to vector<8x1xf32>
    %256 = tpu.reciprocal %255 {approx = true} : vector<8x1xf32> -> vector<8x1xf32>
    %257 = vector.broadcast %256 : vector<8x1xf32> to vector<8x8xf32>
    %258 = arith.mulf %253, %257 : vector<8x8xf32>
    %259 = vector.extract_strided_slice %215 {offsets = [0, 16], sizes = [8, 8], strides = [1, 1]} : vector<8x32xf32> to vector<8x8xf32>
    %cst_94 = arith.constant dense<0.000000e+00> : vector<8x8xf32>
    %260 = tpu.matmul %258, %259, %cst_94 {dimension_numbers = #tpu.dot_dimension_numbers<[1], [0], [0], [1], [0, 0, 1, 1], [], []>} : vector<8x8xf32>, vector<8x8xf32>, vector<8x8xf32> -> vector<8x8xf32>
    %261 = vector.extract_strided_slice %213 {offsets = [0, 24], sizes = [8, 8], strides = [1, 1]} : vector<8x32xf32> to vector<8x8xf32>
    %262 = vector.extract_strided_slice %214 {offsets = [0, 24], sizes = [8, 8], strides = [1, 1]} : vector<8x32xf32> to vector<8x8xf32>
    %cst_95 = arith.constant dense<0.000000e+00> : vector<8x8xf32>
    %263 = tpu.matmul %261, %262, %cst_95 {dimension_numbers = #tpu.dot_dimension_numbers<[1], [1], [0], [0], [0, 0, 1, 0], [], []>} : vector<8x8xf32>, vector<8x8xf32>, vector<8x8xf32> -> vector<8x8xf32>
    %cst_96 = arith.constant dense<0xFF800000> : vector<8xf32>
    %264 = vector.multi_reduction <maximumf>, %263, %cst_96 [1] : vector<8x8xf32> to vector<8xf32>
    %265 = vector.shape_cast %264 : vector<8xf32> to vector<8x1xf32>
    %266 = vector.broadcast %265 : vector<8x1xf32> to vector<8x8xf32>
    %267 = arith.subf %263, %266 : vector<8x8xf32>
    %268 = math.exp %267 : vector<8x8xf32>
    %cst_97 = arith.constant dense<0.000000e+00> : vector<8xf32>
    %269 = vector.multi_reduction <add>, %268, %cst_97 [1] : vector<8x8xf32> to vector<8xf32>
    %270 = vector.shape_cast %269 : vector<8xf32> to vector<8x1xf32>
    %271 = tpu.reciprocal %270 {approx = true} : vector<8x1xf32> -> vector<8x1xf32>
    %272 = vector.broadcast %271 : vector<8x1xf32> to vector<8x8xf32>
    %273 = arith.mulf %268, %272 : vector<8x8xf32>
    %274 = vector.extract_strided_slice %215 {offsets = [0, 24], sizes = [8, 8], strides = [1, 1]} : vector<8x32xf32> to vector<8x8xf32>
    %cst_98 = arith.constant dense<0.000000e+00> : vector<8x8xf32>
    %275 = tpu.matmul %273, %274, %cst_98 {dimension_numbers = #tpu.dot_dimension_numbers<[1], [0], [0], [1], [0, 0, 1, 1], [], []>} : vector<8x8xf32>, vector<8x8xf32>, vector<8x8xf32> -> vector<8x8xf32>
    %276 = tpu.concatenate %230, %245, %260, %275 in 1 : vector<8x8xf32>, vector<8x8xf32>, vector<8x8xf32>, vector<8x8xf32> -> vector<8x32xf32>
    %277 = vector.extract_strided_slice %198 {offsets = [8, 0], sizes = [8, 32], strides = [1, 1]} : vector<16x32xf32> to vector<8x32xf32>
    %278 = vector.extract_strided_slice %207 {offsets = [8, 0], sizes = [8, 32], strides = [1, 1]} : vector<16x32xf32> to vector<8x32xf32>
    %279 = vector.extract_strided_slice %208 {offsets = [8, 0], sizes = [8, 32], strides = [1, 1]} : vector<16x32xf32> to vector<8x32xf32>
    %280 = vector.extract_strided_slice %277 {offsets = [0, 0], sizes = [8, 8], strides = [1, 1]} : vector<8x32xf32> to vector<8x8xf32>
    %281 = vector.extract_strided_slice %278 {offsets = [0, 0], sizes = [8, 8], strides = [1, 1]} : vector<8x32xf32> to vector<8x8xf32>
    %cst_99 = arith.constant dense<0.000000e+00> : vector<8x8xf32>
    %282 = tpu.matmul %280, %281, %cst_99 {dimension_numbers = #tpu.dot_dimension_numbers<[1], [1], [0], [0], [0, 0, 1, 0], [], []>} : vector<8x8xf32>, vector<8x8xf32>, vector<8x8xf32> -> vector<8x8xf32>
    %cst_100 = arith.constant dense<0xFF800000> : vector<8xf32>
    %283 = vector.multi_reduction <maximumf>, %282, %cst_100 [1] : vector<8x8xf32> to vector<8xf32>
    %284 = vector.shape_cast %283 : vector<8xf32> to vector<8x1xf32>
    %285 = vector.broadcast %284 : vector<8x1xf32> to vector<8x8xf32>
    %286 = arith.subf %282, %285 : vector<8x8xf32>
    %287 = math.exp %286 : vector<8x8xf32>
    %cst_101 = arith.constant dense<0.000000e+00> : vector<8xf32>
    %288 = vector.multi_reduction <add>, %287, %cst_101 [1] : vector<8x8xf32> to vector<8xf32>
    %289 = vector.shape_cast %288 : vector<8xf32> to vector<8x1xf32>
    %290 = tpu.reciprocal %289 {approx = true} : vector<8x1xf32> -> vector<8x1xf32>
    %291 = vector.broadcast %290 : vector<8x1xf32> to vector<8x8xf32>
    %292 = arith.mulf %287, %291 : vector<8x8xf32>
    %293 = vector.extract_strided_slice %279 {offsets = [0, 0], sizes = [8, 8], strides = [1, 1]} : vector<8x32xf32> to vector<8x8xf32>
    %cst_102 = arith.constant dense<0.000000e+00> : vector<8x8xf32>
    %294 = tpu.matmul %292, %293, %cst_102 {dimension_numbers = #tpu.dot_dimension_numbers<[1], [0], [0], [1], [0, 0, 1, 1], [], []>} : vector<8x8xf32>, vector<8x8xf32>, vector<8x8xf32> -> vector<8x8xf32>
    %295 = vector.extract_strided_slice %277 {offsets = [0, 8], sizes = [8, 8], strides = [1, 1]} : vector<8x32xf32> to vector<8x8xf32>
    %296 = vector.extract_strided_slice %278 {offsets = [0, 8], sizes = [8, 8], strides = [1, 1]} : vector<8x32xf32> to vector<8x8xf32>
    %cst_103 = arith.constant dense<0.000000e+00> : vector<8x8xf32>
    %297 = tpu.matmul %295, %296, %cst_103 {dimension_numbers = #tpu.dot_dimension_numbers<[1], [1], [0], [0], [0, 0, 1, 0], [], []>} : vector<8x8xf32>, vector<8x8xf32>, vector<8x8xf32> -> vector<8x8xf32>
    %cst_104 = arith.constant dense<0xFF800000> : vector<8xf32>
    %298 = vector.multi_reduction <maximumf>, %297, %cst_104 [1] : vector<8x8xf32> to vector<8xf32>
    %299 = vector.shape_cast %298 : vector<8xf32> to vector<8x1xf32>
    %300 = vector.broadcast %299 : vector<8x1xf32> to vector<8x8xf32>
    %301 = arith.subf %297, %300 : vector<8x8xf32>
    %302 = math.exp %301 : vector<8x8xf32>
    %cst_105 = arith.constant dense<0.000000e+00> : vector<8xf32>
    %303 = vector.multi_reduction <add>, %302, %cst_105 [1] : vector<8x8xf32> to vector<8xf32>
    %304 = vector.shape_cast %303 : vector<8xf32> to vector<8x1xf32>
    %305 = tpu.reciprocal %304 {approx = true} : vector<8x1xf32> -> vector<8x1xf32>
    %306 = vector.broadcast %305 : vector<8x1xf32> to vector<8x8xf32>
    %307 = arith.mulf %302, %306 : vector<8x8xf32>
    %308 = vector.extract_strided_slice %279 {offsets = [0, 8], sizes = [8, 8], strides = [1, 1]} : vector<8x32xf32> to vector<8x8xf32>
    %cst_106 = arith.constant dense<0.000000e+00> : vector<8x8xf32>
    %309 = tpu.matmul %307, %308, %cst_106 {dimension_numbers = #tpu.dot_dimension_numbers<[1], [0], [0], [1], [0, 0, 1, 1], [], []>} : vector<8x8xf32>, vector<8x8xf32>, vector<8x8xf32> -> vector<8x8xf32>
    %310 = vector.extract_strided_slice %277 {offsets = [0, 16], sizes = [8, 8], strides = [1, 1]} : vector<8x32xf32> to vector<8x8xf32>
    %311 = vector.extract_strided_slice %278 {offsets = [0, 16], sizes = [8, 8], strides = [1, 1]} : vector<8x32xf32> to vector<8x8xf32>
    %cst_107 = arith.constant dense<0.000000e+00> : vector<8x8xf32>
    %312 = tpu.matmul %310, %311, %cst_107 {dimension_numbers = #tpu.dot_dimension_numbers<[1], [1], [0], [0], [0, 0, 1, 0], [], []>} : vector<8x8xf32>, vector<8x8xf32>, vector<8x8xf32> -> vector<8x8xf32>
    %cst_108 = arith.constant dense<0xFF800000> : vector<8xf32>
    %313 = vector.multi_reduction <maximumf>, %312, %cst_108 [1] : vector<8x8xf32> to vector<8xf32>
    %314 = vector.shape_cast %313 : vector<8xf32> to vector<8x1xf32>
    %315 = vector.broadcast %314 : vector<8x1xf32> to vector<8x8xf32>
    %316 = arith.subf %312, %315 : vector<8x8xf32>
    %317 = math.exp %316 : vector<8x8xf32>
    %cst_109 = arith.constant dense<0.000000e+00> : vector<8xf32>
    %318 = vector.multi_reduction <add>, %317, %cst_109 [1] : vector<8x8xf32> to vector<8xf32>
    %319 = vector.shape_cast %318 : vector<8xf32> to vector<8x1xf32>
    %320 = tpu.reciprocal %319 {approx = true} : vector<8x1xf32> -> vector<8x1xf32>
    %321 = vector.broadcast %320 : vector<8x1xf32> to vector<8x8xf32>
    %322 = arith.mulf %317, %321 : vector<8x8xf32>
    %323 = vector.extract_strided_slice %279 {offsets = [0, 16], sizes = [8, 8], strides = [1, 1]} : vector<8x32xf32> to vector<8x8xf32>
    %cst_110 = arith.constant dense<0.000000e+00> : vector<8x8xf32>
    %324 = tpu.matmul %322, %323, %cst_110 {dimension_numbers = #tpu.dot_dimension_numbers<[1], [0], [0], [1], [0, 0, 1, 1], [], []>} : vector<8x8xf32>, vector<8x8xf32>, vector<8x8xf32> -> vector<8x8xf32>
    %325 = vector.extract_strided_slice %277 {offsets = [0, 24], sizes = [8, 8], strides = [1, 1]} : vector<8x32xf32> to vector<8x8xf32>
    %326 = vector.extract_strided_slice %278 {offsets = [0, 24], sizes = [8, 8], strides = [1, 1]} : vector<8x32xf32> to vector<8x8xf32>
    %cst_111 = arith.constant dense<0.000000e+00> : vector<8x8xf32>
    %327 = tpu.matmul %325, %326, %cst_111 {dimension_numbers = #tpu.dot_dimension_numbers<[1], [1], [0], [0], [0, 0, 1, 0], [], []>} : vector<8x8xf32>, vector<8x8xf32>, vector<8x8xf32> -> vector<8x8xf32>
    %cst_112 = arith.constant dense<0xFF800000> : vector<8xf32>
    %328 = vector.multi_reduction <maximumf>, %327, %cst_112 [1] : vector<8x8xf32> to vector<8xf32>
    %329 = vector.shape_cast %328 : vector<8xf32> to vector<8x1xf32>
    %330 = vector.broadcast %329 : vector<8x1xf32> to vector<8x8xf32>
    %331 = arith.subf %327, %330 : vector<8x8xf32>
    %332 = math.exp %331 : vector<8x8xf32>
    %cst_113 = arith.constant dense<0.000000e+00> : vector<8xf32>
    %333 = vector.multi_reduction <add>, %332, %cst_113 [1] : vector<8x8xf32> to vector<8xf32>
    %334 = vector.shape_cast %333 : vector<8xf32> to vector<8x1xf32>
    %335 = tpu.reciprocal %334 {approx = true} : vector<8x1xf32> -> vector<8x1xf32>
    %336 = vector.broadcast %335 : vector<8x1xf32> to vector<8x8xf32>
    %337 = arith.mulf %332, %336 : vector<8x8xf32>
    %338 = vector.extract_strided_slice %279 {offsets = [0, 24], sizes = [8, 8], strides = [1, 1]} : vector<8x32xf32> to vector<8x8xf32>
    %cst_114 = arith.constant dense<0.000000e+00> : vector<8x8xf32>
    %339 = tpu.matmul %337, %338, %cst_114 {dimension_numbers = #tpu.dot_dimension_numbers<[1], [0], [0], [1], [0, 0, 1, 1], [], []>} : vector<8x8xf32>, vector<8x8xf32>, vector<8x8xf32> -> vector<8x8xf32>
    %340 = tpu.concatenate %294, %309, %324, %339 in 1 : vector<8x8xf32>, vector<8x8xf32>, vector<8x8xf32>, vector<8x8xf32> -> vector<8x32xf32>
    %341 = tpu.concatenate %276, %340 in 0 : vector<8x32xf32>, vector<8x32xf32> -> vector<16x32xf32>
    %342 = arith.truncf %341 : vector<16x32xf32> to vector<16x32xbf16>
    %cst_115 = arith.constant dense<0.000000e+00> : vector<16x32xf32>
    %343 = tpu.matmul %342, %210, %cst_115 {dimension_numbers = #tpu.dot_dimension_numbers<[1], [0], [0], [1], [0, 0, 1, 1], [], []>} : vector<16x32xbf16>, vector<32x32xbf16>, vector<16x32xf32> -> vector<16x32xf32>
    %344 = vector.broadcast %212 : vector<1x32xf32> to vector<16x32xf32>
    %345 = arith.addf %343, %344 : vector<16x32xf32>
    %346 = arith.addf %190, %345 : vector<16x32xf32>
    %c0_116 = arith.constant 0 : index
    %c0_117 = arith.constant 0 : index
    %c0_118 = arith.constant 0 : index
    %347 = vector.load %arg16[%c0_116, %c0_117, %c0_118] : memref<1x1x32xf32, #tpu.memory_space<vmem>>, vector<1x1x32xf32>
    %348 = vector.shape_cast %347 : vector<1x1x32xf32> to vector<1x32xf32>
    %c0_119 = arith.constant 0 : index
    %c0_120 = arith.constant 0 : index
    %c0_121 = arith.constant 0 : index
    %349 = vector.load %arg17[%c0_119, %c0_120, %c0_121] : memref<1x1x32xf32, #tpu.memory_space<vmem>>, vector<1x1x32xf32>
    %350 = vector.shape_cast %349 : vector<1x1x32xf32> to vector<1x32xf32>
    %cst_122 = arith.constant dense<0.000000e+00> : vector<16xf32>
    %351 = vector.multi_reduction <add>, %346, %cst_122 [1] : vector<16x32xf32> to vector<16xf32>
    %352 = vector.shape_cast %351 : vector<16xf32> to vector<16x1xf32>
    %cst_123 = arith.constant 3.200000e+01 : f32
    %353 = vector.broadcast %cst_123 : f32 to vector<16x1xf32>
    %354 = arith.divf %352, %353 : vector<16x1xf32>
    %355 = vector.broadcast %354 : vector<16x1xf32> to vector<16x32xf32>
    %356 = arith.subf %346, %355 : vector<16x32xf32>
    %357 = arith.mulf %356, %356 : vector<16x32xf32>
    %cst_124 = arith.constant dense<0.000000e+00> : vector<16xf32>
    %358 = vector.multi_reduction <add>, %357, %cst_124 [1] : vector<16x32xf32> to vector<16xf32>
    %359 = vector.shape_cast %358 : vector<16xf32> to vector<16x1xf32>
    %cst_125 = arith.constant 3.200000e+01 : f32
    %360 = vector.broadcast %cst_125 : f32 to vector<16x1xf32>
    %361 = arith.divf %359, %360 : vector<16x1xf32>
    %cst_126 = arith.constant 9.99999974E-6 : f32
    %362 = vector.broadcast %cst_126 : f32 to vector<16x1xf32>
    %363 = arith.addf %361, %362 : vector<16x1xf32>
    %364 = math.rsqrt %363 : vector<16x1xf32>
    %365 = vector.broadcast %364 : vector<16x1xf32> to vector<16x32xf32>
    %366 = arith.mulf %356, %365 : vector<16x32xf32>
    %367 = vector.broadcast %348 : vector<1x32xf32> to vector<16x32xf32>
    %368 = arith.mulf %366, %367 : vector<16x32xf32>
    %369 = vector.broadcast %350 : vector<1x32xf32> to vector<16x32xf32>
    %370 = arith.addf %368, %369 : vector<16x32xf32>
    %c0_127 = arith.constant 0 : index
    %c0_128 = arith.constant 0 : index
    %c0_129 = arith.constant 0 : index
    %371 = vector.load %arg18[%c0_127, %c0_128, %c0_129] : memref<1x32x2048xbf16, #tpu.memory_space<vmem>>, vector<1x32x2048xbf16>
    %372 = vector.shape_cast %371 : vector<1x32x2048xbf16> to vector<32x2048xbf16>
    %c0_130 = arith.constant 0 : index
    %c0_131 = arith.constant 0 : index
    %c0_132 = arith.constant 0 : index
    %373 = vector.load %arg19[%c0_130, %c0_131, %c0_132] : memref<1x1x2048xf32, #tpu.memory_space<vmem>>, vector<1x1x2048xf32>
    %374 = vector.shape_cast %373 : vector<1x1x2048xf32> to vector<1x2048xf32>
    %c0_133 = arith.constant 0 : index
    %c0_134 = arith.constant 0 : index
    %c0_135 = arith.constant 0 : index
    %375 = vector.load %arg20[%c0_133, %c0_134, %c0_135] : memref<1x2048x32xbf16, #tpu.memory_space<vmem>>, vector<1x2048x32xbf16>
    %376 = vector.shape_cast %375 : vector<1x2048x32xbf16> to vector<2048x32xbf16>
    %c0_136 = arith.constant 0 : index
    %c0_137 = arith.constant 0 : index
    %c0_138 = arith.constant 0 : index
    %377 = vector.load %arg21[%c0_136, %c0_137, %c0_138] : memref<1x1x32xf32, #tpu.memory_space<vmem>>, vector<1x1x32xf32>
    %378 = vector.shape_cast %377 : vector<1x1x32xf32> to vector<1x32xf32>
    %379 = arith.truncf %370 : vector<16x32xf32> to vector<16x32xbf16>
    %cst_139 = arith.constant dense<0.000000e+00> : vector<16x2048xf32>
    %380 = tpu.matmul %379, %372, %cst_139 {dimension_numbers = #tpu.dot_dimension_numbers<[1], [0], [0], [1], [0, 0, 1, 1], [], []>} : vector<16x32xbf16>, vector<32x2048xbf16>, vector<16x2048xf32> -> vector<16x2048xf32>
    %381 = vector.broadcast %374 : vector<1x2048xf32> to vector<16x2048xf32>
    %382 = arith.addf %380, %381 : vector<16x2048xf32>
    %cst_140 = arith.constant 0.000000e+00 : f32
    %383 = vector.broadcast %cst_140 : f32 to vector<16x2048xf32>
    %384 = arith.maximumf %382, %383 : vector<16x2048xf32>
    %385 = arith.truncf %384 : vector<16x2048xf32> to vector<16x2048xbf16>
    %cst_141 = arith.constant dense<0.000000e+00> : vector<16x32xf32>
    %386 = tpu.matmul %385, %376, %cst_141 {dimension_numbers = #tpu.dot_dimension_numbers<[1], [0], [0], [1], [0, 0, 1, 1], [], []>} : vector<16x2048xbf16>, vector<2048x32xbf16>, vector<16x32xf32> -> vector<16x32xf32>
    %387 = vector.broadcast %378 : vector<1x32xf32> to vector<16x32xf32>
    %388 = arith.addf %386, %387 : vector<16x32xf32>
    %389 = arith.addf %370, %388 : vector<16x32xf32>
    %c0_142 = arith.constant 0 : index
    %c0_143 = arith.constant 0 : index
    %c0_144 = arith.constant 0 : index
    %390 = vector.load %arg22[%c0_142, %c0_143, %c0_144] : memref<1x1x32xf32, #tpu.memory_space<vmem>>, vector<1x1x32xf32>
    %391 = vector.shape_cast %390 : vector<1x1x32xf32> to vector<1x32xf32>
    %c0_145 = arith.constant 0 : index
    %c0_146 = arith.constant 0 : index
    %c0_147 = arith.constant 0 : index
    %392 = vector.load %arg23[%c0_145, %c0_146, %c0_147] : memref<1x1x32xf32, #tpu.memory_space<vmem>>, vector<1x1x32xf32>
    %393 = vector.shape_cast %392 : vector<1x1x32xf32> to vector<1x32xf32>
    %cst_148 = arith.constant dense<0.000000e+00> : vector<16xf32>
    %394 = vector.multi_reduction <add>, %389, %cst_148 [1] : vector<16x32xf32> to vector<16xf32>
    %395 = vector.shape_cast %394 : vector<16xf32> to vector<16x1xf32>
    %cst_149 = arith.constant 3.200000e+01 : f32
    %396 = vector.broadcast %cst_149 : f32 to vector<16x1xf32>
    %397 = arith.divf %395, %396 : vector<16x1xf32>
    %398 = vector.broadcast %397 : vector<16x1xf32> to vector<16x32xf32>
    %399 = arith.subf %389, %398 : vector<16x32xf32>
    %400 = arith.mulf %399, %399 : vector<16x32xf32>
    %cst_150 = arith.constant dense<0.000000e+00> : vector<16xf32>
    %401 = vector.multi_reduction <add>, %400, %cst_150 [1] : vector<16x32xf32> to vector<16xf32>
    %402 = vector.shape_cast %401 : vector<16xf32> to vector<16x1xf32>
    %cst_151 = arith.constant 3.200000e+01 : f32
    %403 = vector.broadcast %cst_151 : f32 to vector<16x1xf32>
    %404 = arith.divf %402, %403 : vector<16x1xf32>
    %cst_152 = arith.constant 9.99999974E-6 : f32
    %405 = vector.broadcast %cst_152 : f32 to vector<16x1xf32>
    %406 = arith.addf %404, %405 : vector<16x1xf32>
    %407 = math.rsqrt %406 : vector<16x1xf32>
    %408 = vector.broadcast %407 : vector<16x1xf32> to vector<16x32xf32>
    %409 = arith.mulf %399, %408 : vector<16x32xf32>
    %410 = vector.broadcast %391 : vector<1x32xf32> to vector<16x32xf32>
    %411 = arith.mulf %409, %410 : vector<16x32xf32>
    %412 = vector.broadcast %393 : vector<1x32xf32> to vector<16x32xf32>
    %413 = arith.addf %411, %412 : vector<16x32xf32>
    %c0_153 = arith.constant 0 : index
    %c0_154 = arith.constant 0 : index
    %414 = vector.load %arg27[%c0_153, %c0_154] : memref<16x32xf32, #tpu.memory_space<vmem>>, vector<16x32xf32>
    tpu.vector_store %arg27[%c0_153, %c0_154], %413 {strides = array<i32>} : memref<16x32xf32, #tpu.memory_space<vmem>>, vector<16x32xf32>,
    %c1_i32 = arith.constant 1 : i32
    %415 = arith.cmpi eq, %arg0, %c1_i32 : i32
    %416 = arith.extui %415 : i1 to i32
    %c0_i32_155 = arith.constant 0 : i32
    %417 = arith.cmpi ne, %416, %c0_i32_155 : i32
    scf.if %417 {
      %418 = arith.truncf %413 : vector<16x32xf32> to vector<16x32xbf16>
      %c0_156 = arith.constant 0 : index
      %c0_157 = arith.constant 0 : index
      %419 = vector.load %arg24[%c0_156, %c0_157] : memref<32x128xbf16, #tpu.memory_space<vmem>>, vector<32x128xbf16>
      %cst_158 = arith.constant dense<0.000000e+00> : vector<16x128xf32>
      %420 = tpu.matmul %418, %419, %cst_158 {dimension_numbers = #tpu.dot_dimension_numbers<[1], [0], [0], [1], [0, 0, 1, 1], [], []>} : vector<16x32xbf16>, vector<32x128xbf16>, vector<16x128xf32> -> vector<16x128xf32>
      %c0_159 = arith.constant 0 : index
      %c0_160 = arith.constant 0 : index
      %421 = vector.load %arg25[%c0_159, %c0_160] : memref<1x128xf32, #tpu.memory_space<vmem>>, vector<1x128xf32>
      %422 = vector.broadcast %421 : vector<1x128xf32> to vector<16x128xf32>
      %423 = arith.addf %420, %422 : vector<16x128xf32>
      %c0_161 = arith.constant 0 : index
      %c0_162 = arith.constant 0 : index
      %424 = vector.load %arg26[%c0_161, %c0_162] : memref<16x128xf32, #tpu.memory_space<vmem>>, vector<16x128xf32>
      tpu.vector_store %arg26[%c0_161, %c0_162], %423 {strides = array<i32>} : memref<16x128xf32, #tpu.memory_space<vmem>>, vector<16x128xf32>,
    } else {
    }
    return
  }
  func.func @transform_0(%arg0: i32) -> (i32, i32) {
    %c0_i32 = arith.constant 0 : i32
    %c0_i32_0 = arith.constant 0 : i32
    %c0_i32_1 = arith.constant 0 : i32
    return %c0_i32, %c0_i32_0 : i32, i32
  }
  func.func @transform_1(%arg0: i32) -> (i32, i32) {
    %c0_i32 = arith.constant 0 : i32
    %c0_i32_0 = arith.constant 0 : i32
    %c0_i32_1 = arith.constant 0 : i32
    return %c0_i32, %c0_i32_0 : i32, i32
  }
  func.func @transform_2(%arg0: i32) -> (i32, i32, i32) {
    %c0_i32 = arith.constant 0 : i32
    %c0_i32_0 = arith.constant 0 : i32
    %c0_i32_1 = arith.constant 0 : i32
    %c0_i32_2 = arith.constant 0 : i32
    return %c0_i32, %c0_i32_0, %c0_i32_1 : i32, i32, i32
  }
  func.func @transform_3(%arg0: i32) -> (i32, i32, i32) {
    %c0_i32 = arith.constant 0 : i32
    %c0_i32_0 = arith.constant 0 : i32
    %c0_i32_1 = arith.constant 0 : i32
    return %arg0, %c0_i32, %c0_i32_0 : i32, i32, i32
  }
  func.func @transform_4(%arg0: i32) -> (i32, i32, i32) {
    %c0_i32 = arith.constant 0 : i32
    %c0_i32_0 = arith.constant 0 : i32
    %c0_i32_1 = arith.constant 0 : i32
    return %arg0, %c0_i32, %c0_i32_0 : i32, i32, i32
  }
  func.func @transform_5(%arg0: i32) -> (i32, i32, i32) {
    %c0_i32 = arith.constant 0 : i32
    %c0_i32_0 = arith.constant 0 : i32
    %c0_i32_1 = arith.constant 0 : i32
    return %arg0, %c0_i32, %c0_i32_0 : i32, i32, i32
  }
  func.func @transform_6(%arg0: i32) -> (i32, i32, i32) {
    %c0_i32 = arith.constant 0 : i32
    %c0_i32_0 = arith.constant 0 : i32
    %c0_i32_1 = arith.constant 0 : i32
    return %arg0, %c0_i32, %c0_i32_0 : i32, i32, i32
  }
  func.func @transform_7(%arg0: i32) -> (i32, i32, i32) {
    %c0_i32 = arith.constant 0 : i32
    %c0_i32_0 = arith.constant 0 : i32
    %c0_i32_1 = arith.constant 0 : i32
    return %arg0, %c0_i32, %c0_i32_0 : i32, i32, i32
  }
  func.func @transform_8(%arg0: i32) -> (i32, i32, i32) {
    %c0_i32 = arith.constant 0 : i32
    %c0_i32_0 = arith.constant 0 : i32
    %c0_i32_1 = arith.constant 0 : i32
    return %arg0, %c0_i32, %c0_i32_0 : i32, i32, i32
  }
  func.func @transform_9(%arg0: i32) -> (i32, i32, i32) {
    %c0_i32 = arith.constant 0 : i32
    %c0_i32_0 = arith.constant 0 : i32
    %c0_i32_1 = arith.constant 0 : i32
    return %arg0, %c0_i32, %c0_i32_0 : i32, i32, i32
  }
  func.func @transform_10(%arg0: i32) -> (i32, i32, i32) {
    %c0_i32 = arith.constant 0 : i32
    %c0_i32_0 = arith.constant 0 : i32
    %c0_i32_1 = arith.constant 0 : i32
    return %arg0, %c0_i32, %c0_i32_0 : i32, i32, i32
  }
  func.func @transform_11(%arg0: i32) -> (i32, i32, i32) {
    %c0_i32 = arith.constant 0 : i32
    %c0_i32_0 = arith.constant 0 : i32
    %c0_i32_1 = arith.constant 0 : i32
    return %arg0, %c0_i32, %c0_i32_0 : i32, i32, i32
  }
  func.func @transform_12(%arg0: i32) -> (i32, i32, i32) {
    %c0_i32 = arith.constant 0 : i32
    %c0_i32_0 = arith.constant 0 : i32
    %c0_i32_1 = arith.constant 0 : i32
    return %arg0, %c0_i32, %c0_i32_0 : i32, i32, i32
  }
  func.func @transform_13(%arg0: i32) -> (i32, i32, i32) {
    %c0_i32 = arith.constant 0 : i32
    %c0_i32_0 = arith.constant 0 : i32
    %c0_i32_1 = arith.constant 0 : i32
    return %arg0, %c0_i32, %c0_i32_0 : i32, i32, i32
  }
  func.func @transform_14(%arg0: i32) -> (i32, i32, i32) {
    %c0_i32 = arith.constant 0 : i32
    %c0_i32_0 = arith.constant 0 : i32
    %c0_i32_1 = arith.constant 0 : i32
    return %arg0, %c0_i32, %c0_i32_0 : i32, i32, i32
  }
  func.func @transform_15(%arg0: i32) -> (i32, i32, i32) {
    %c0_i32 = arith.constant 0 : i32
    %c0_i32_0 = arith.constant 0 : i32
    %c0_i32_1 = arith.constant 0 : i32
    return %arg0, %c0_i32, %c0_i32_0 : i32, i32, i32
  }
  func.func @transform_16(%arg0: i32) -> (i32, i32, i32) {
    %c0_i32 = arith.constant 0 : i32
    %c0_i32_0 = arith.constant 0 : i32
    %c0_i32_1 = arith.constant 0 : i32
    return %arg0, %c0_i32, %c0_i32_0 : i32, i32, i32
  }
  func.func @transform_17(%arg0: i32) -> (i32, i32, i32) {
    %c0_i32 = arith.constant 0 : i32
    %c0_i32_0 = arith.constant 0 : i32
    %c0_i32_1 = arith.constant 0 : i32
    return %arg0, %c0_i32, %c0_i32_0 : i32, i32, i32
  }
  func.func @transform_18(%arg0: i32) -> (i32, i32, i32) {
    %c0_i32 = arith.constant 0 : i32
    %c0_i32_0 = arith.constant 0 : i32
    %c0_i32_1 = arith.constant 0 : i32
    return %arg0, %c0_i32, %c0_i32_0 : i32, i32, i32
  }
  func.func @transform_19(%arg0: i32) -> (i32, i32, i32) {
    %c0_i32 = arith.constant 0 : i32
    %c0_i32_0 = arith.constant 0 : i32
    %c0_i32_1 = arith.constant 0 : i32
    return %arg0, %c0_i32, %c0_i32_0 : i32, i32, i32
  }
  func.func @transform_20(%arg0: i32) -> (i32, i32, i32) {
    %c0_i32 = arith.constant 0 : i32
    %c0_i32_0 = arith.constant 0 : i32
    %c0_i32_1 = arith.constant 0 : i32
    return %arg0, %c0_i32, %c0_i32_0 : i32, i32, i32
  }
  func.func @transform_21(%arg0: i32) -> (i32, i32, i32) {
    %c0_i32 = arith.constant 0 : i32
    %c0_i32_0 = arith.constant 0 : i32
    %c0_i32_1 = arith.constant 0 : i32
    return %arg0, %c0_i32, %c0_i32_0 : i32, i32, i32
  }
  func.func @transform_22(%arg0: i32) -> (i32, i32, i32) {
    %c0_i32 = arith.constant 0 : i32
    %c0_i32_0 = arith.constant 0 : i32
    %c0_i32_1 = arith.constant 0 : i32
    return %arg0, %c0_i32, %c0_i32_0 : i32, i32, i32
  }
  func.func @transform_23(%arg0: i32) -> (i32, i32) {
    %c0_i32 = arith.constant 0 : i32
    %c0_i32_0 = arith.constant 0 : i32
    %c0_i32_1 = arith.constant 0 : i32
    return %c0_i32, %c0_i32_0 : i32, i32
  }
  func.func @transform_24(%arg0: i32) -> (i32, i32) {
    %c0_i32 = arith.constant 0 : i32
    %c0_i32_0 = arith.constant 0 : i32
    %c0_i32_1 = arith.constant 0 : i32
    return %c0_i32, %c0_i32_0 : i32, i32
  }
  func.func @transform_25(%arg0: i32) -> (i32, i32) {
    %c0_i32 = arith.constant 0 : i32
    %c0_i32_0 = arith.constant 0 : i32
    %c0_i32_1 = arith.constant 0 : i32
    return %c0_i32, %c0_i32_0 : i32, i32
  }
}

</mosaic_0001>

<llo_original>
// kernel: transformer_forward.2
$region0: #{transformer_forward.2}
  #allocation0 [shape = 'u32[]', space=smem, size = 0x4, offset = 0x4, fixed_abs, tag = 'smem constant byte address 0x4 - core index']
  #allocation1 [shape = 'u32[72,128]{1,0:T(1,128)}', space=vmem, size = 0x9000, scoped, tag = 'internal scratch']
  %s0 = inlined_call_operand.vmem [shape: f32[16,32], index: 0, kind: input, shape index: {}]
  %s1 = inlined_call_operand.vmem [shape: f32[2,8], index: 1, kind: input, shape index: {}]
  %s2 = inlined_call_operand.vmem [shape: bf16[2,32,96], index: 2, kind: input, shape index: {}]
  %s3 = inlined_call_operand.vmem [shape: f32[2,1,96], index: 3, kind: input, shape index: {}]
  %s4 = inlined_call_operand.vmem [shape: bf16[2,32,32], index: 4, kind: input, shape index: {}]
  %s5 = inlined_call_operand.vmem [shape: f32[2,1,32], index: 5, kind: input, shape index: {}]
  %s6 = inlined_call_operand.vmem [shape: f32[2,1,32], index: 6, kind: input, shape index: {}]
  %s7 = inlined_call_operand.vmem [shape: f32[2,1,32], index: 7, kind: input, shape index: {}]
  %s8 = inlined_call_operand.vmem [shape: bf16[2,32,2048], index: 8, kind: input, shape index: {}]
  %s9 = inlined_call_operand.vmem [shape: f32[2,1,2048], index: 9, kind: input, shape index: {}]
  %s10 = inlined_call_operand.vmem [shape: bf16[2,2048,32], index: 10, kind: input, shape index: {}]
  %s11 = inlined_call_operand.vmem [shape: f32[2,1,32], index: 11, kind: input, shape index: {}]
  %s12 = inlined_call_operand.vmem [shape: f32[2,1,32], index: 12, kind: input, shape index: {}]
  %s13 = inlined_call_operand.vmem [shape: f32[2,1,32], index: 13, kind: input, shape index: {}]
  %s14 = inlined_call_operand.vmem [shape: f32[16,32], index: 14, kind: output, shape index: {}]
  %s15 = sld [smem:[#allocation0]]
  $region93: #{transformer_forward.2} parent=0
    _
  %s17 = ssub.s32 1, %s15
  %s18 = scalar_select 0, %s17, %s15
  loop: start=0, step=1, limit=4
  $region2: #{transformer_forward.2} parent=0 // loop_pre_header
    _
  $region3: #{transformer_forward.2} parent=0 // loop_header
    %s20 = sphi 0, %s24
    %p21 = scmp.ge.s32.totalorder %s20, 4
    %s28 = sphi 0, %s28
    %s30 = sphi 0, %s28
    %s31 = sphi 0, %s30
    %s45 = sphi 0, %s31
    %s49 = sphi 0, %s49
    %s51 = sphi 0, %s49
    %s52 = sphi 0, %s51
    %s66 = sphi 0, %s52
    %s72 = sphi 0, %s74
    %s75 = sphi 0, %s72
    %s76 = sphi 0, %s75
    %s92 = sphi 0, %s76
    %s98 = sphi 0, %s100
    %s101 = sphi 0, %s98
    %s102 = sphi 0, %s101
    %s118 = sphi 0, %s102
    %s124 = sphi 0, %s126
    %s127 = sphi 0, %s124
    %s128 = sphi 0, %s127
    %s144 = sphi 0, %s128
    %s150 = sphi 0, %s152
    %s153 = sphi 0, %s150
    %s154 = sphi 0, %s153
    %s170 = sphi 0, %s154
    %s176 = sphi 0, %s178
    %s179 = sphi 0, %s176
    %s180 = sphi 0, %s179
    %s196 = sphi 0, %s180
    %s202 = sphi 0, %s204
    %s205 = sphi 0, %s202
    %s206 = sphi 0, %s205
    %s222 = sphi 0, %s206
    %s228 = sphi 0, %s230
    %s231 = sphi 0, %s228
    %s232 = sphi 0, %s231
    %s248 = sphi 0, %s232
    %s254 = sphi 0, %s256
    %s257 = sphi 0, %s254
    %s258 = sphi 0, %s257
    %s274 = sphi 0, %s258
    %s280 = sphi 0, %s282
    %s283 = sphi 0, %s280
    %s284 = sphi 0, %s283
    %s300 = sphi 0, %s284
    %s306 = sphi 0, %s308
    %s309 = sphi 0, %s306
    %s310 = sphi 0, %s309
    %s326 = sphi 0, %s310
    %s332 = sphi 0, %s334
    %s335 = sphi 0, %s332
    %s336 = sphi 0, %s335
    %s352 = sphi 0, %s336
    %s358 = sphi 0, %s360
    %s361 = sphi 0, %s358
    %s362 = sphi 0, %s361
    %s378 = sphi 0, %s362
    %s382 = sphi 0, %s382
    %s384 = sphi 0, %s382
    %s385 = sphi 0, %s384
    %s399 = sphi 0, %s385
  $region4: #{transformer_forward.2} parent=0 // loop_header_branch
    %23 = sbr.rel (%p21) target = $region8
  $region5: #{transformer_forward.2} parent=0 // loop_body
    %s25 = ssub.s32 %s20, 1
    %s26 = ssub.s32 %s20, 2
    %s27 = sadd.s32 %s20, 1
    %s29 = sadd.s32 %s28, 1
    %p32 = scmp.eq.s32.totalorder %s20, 1
    %p33 = scmp.ne.s32.totalorder %s28, %s30
    %p34 = scmp.eq.s32.totalorder %s20, 0
    %p35 = por %p33, %p34
    %p36 = scmp.ne.s32.totalorder %s28, %s30
    %p37 = scmp.eq.s32.totalorder %s25, 1
    %p38 = por %p36, %p37
    %p39 = scmp.ne.s32.totalorder %s30, %s31
    %p40 = scmp.eq.s32.totalorder %s25, 0
    %p41 = por %p39, %p40
    %p42 = scmp.ne.s32.totalorder %s30, %s31
    %p43 = scmp.eq.s32.totalorder %s26, 1
    %p44 = por %p42, %p43
    %p46 = scmp.ne.s32.totalorder %s31, %s45
    %p47 = scmp.eq.s32.totalorder %s26, 0
    %p48 = por %p46, %p47
    %s50 = sadd.s32 %s49, 1
    %p53 = scmp.eq.s32.totalorder %s20, 1
    %p54 = scmp.ne.s32.totalorder %s49, %s51
    %p55 = scmp.eq.s32.totalorder %s20, 0
    %p56 = por %p54, %p55
    %p57 = scmp.ne.s32.totalorder %s49, %s51
    %p58 = scmp.eq.s32.totalorder %s25, 1
    %p59 = por %p57, %p58
    %p60 = scmp.ne.s32.totalorder %s51, %s52
    %p61 = scmp.eq.s32.totalorder %s25, 0
    %p62 = por %p60, %p61
    %p63 = scmp.ne.s32.totalorder %s51, %s52
    %p64 = scmp.eq.s32.totalorder %s26, 1
    %p65 = por %p63, %p64
    %p67 = scmp.ne.s32.totalorder %s52, %s66
    %p68 = scmp.eq.s32.totalorder %s26, 0
    %p69 = por %p67, %p68
    %s70 = ssub.s32 %s20, %s27
    %p71 = scmp.eq.s32.totalorder %s70, 0
    %s73 = sadd.s32 %s72, 1
    %s74 = scalar_select %p71, %s72, %s73
    %p77 = pneg %p71
    %p78 = scmp.eq.s32.totalorder %s20, 1
    %p79 = por %p77, %p78
    %p80 = scmp.ne.s32.totalorder %s72, %s75
    %p81 = scmp.eq.s32.totalorder %s20, 0
    %p82 = por %p80, %p81
    %p83 = scmp.ne.s32.totalorder %s72, %s75
    %p84 = scmp.eq.s32.totalorder %s25, 1
    %p85 = por %p83, %p84
    %p86 = scmp.ne.s32.totalorder %s75, %s76
    %p87 = scmp.eq.s32.totalorder %s25, 0
    %p88 = por %p86, %p87
    %p89 = scmp.ne.s32.totalorder %s75, %s76
    %p90 = scmp.eq.s32.totalorder %s26, 1
    %p91 = por %p89, %p90
    %p93 = scmp.ne.s32.totalorder %s76, %s92
    %p94 = scmp.eq.s32.totalorder %s26, 0
    %p95 = por %p93, %p94
    %s96 = ssub.s32 %s20, %s27
    %p97 = scmp.eq.s32.totalorder %s96, 0
    %s99 = sadd.s32 %s98, 1
    %s100 = scalar_select %p97, %s98, %s99
    %p103 = pneg %p97
    %p104 = scmp.eq.s32.totalorder %s20, 1
    %p105 = por %p103, %p104
    %p106 = scmp.ne.s32.totalorder %s98, %s101
    %p107 = scmp.eq.s32.totalorder %s20, 0
    %p108 = por %p106, %p107
    %p109 = scmp.ne.s32.totalorder %s98, %s101
    %p110 = scmp.eq.s32.totalorder %s25, 1
    %p111 = por %p109, %p110
    %p112 = scmp.ne.s32.totalorder %s101, %s102
    %p113 = scmp.eq.s32.totalorder %s25, 0
    %p114 = por %p112, %p113
    %p115 = scmp.ne.s32.totalorder %s101, %s102
    %p116 = scmp.eq.s32.totalorder %s26, 1
    %p117 = por %p115, %p116
    %p119 = scmp.ne.s32.totalorder %s102, %s118
    %p120 = scmp.eq.s32.totalorder %s26, 0
    %p121 = por %p119, %p120
    %s122 = ssub.s32 %s20, %s27
    %p123 = scmp.eq.s32.totalorder %s122, 0
    %s125 = sadd.s32 %s124, 1
    %s126 = scalar_select %p123, %s124, %s125
    %p129 = pneg %p123
    %p130 = scmp.eq.s32.totalorder %s20, 1
    %p131 = por %p129, %p130
    %p132 = scmp.ne.s32.totalorder %s124, %s127
    %p133 = scmp.eq.s32.totalorder %s20, 0
    %p134 = por %p132, %p133
    %p135 = scmp.ne.s32.totalorder %s124, %s127
    %p136 = scmp.eq.s32.totalorder %s25, 1
    %p137 = por %p135, %p136
    %p138 = scmp.ne.s32.totalorder %s127, %s128
    %p139 = scmp.eq.s32.totalorder %s25, 0
    %p140 = por %p138, %p139
    %p141 = scmp.ne.s32.totalorder %s127, %s128
    %p142 = scmp.eq.s32.totalorder %s26, 1
    %p143 = por %p141, %p142
    %p145 = scmp.ne.s32.totalorder %s128, %s144
    %p146 = scmp.eq.s32.totalorder %s26, 0
    %p147 = por %p145, %p146
    %s148 = ssub.s32 %s20, %s27
    %p149 = scmp.eq.s32.totalorder %s148, 0
    %s151 = sadd.s32 %s150, 1
    %s152 = scalar_select %p149, %s150, %s151
    %p155 = pneg %p149
    %p156 = scmp.eq.s32.totalorder %s20, 1
    %p157 = por %p155, %p156
    %p158 = scmp.ne.s32.totalorder %s150, %s153
    %p159 = scmp.eq.s32.totalorder %s20, 0
    %p160 = por %p158, %p159
    %p161 = scmp.ne.s32.totalorder %s150, %s153
    %p162 = scmp.eq.s32.totalorder %s25, 1
    %p163 = por %p161, %p162
    %p164 = scmp.ne.s32.totalorder %s153, %s154
    %p165 = scmp.eq.s32.totalorder %s25, 0
    %p166 = por %p164, %p165
    %p167 = scmp.ne.s32.totalorder %s153, %s154
    %p168 = scmp.eq.s32.totalorder %s26, 1
    %p169 = por %p167, %p168
    %p171 = scmp.ne.s32.totalorder %s154, %s170
    %p172 = scmp.eq.s32.totalorder %s26, 0
    %p173 = por %p171, %p172
    %s174 = ssub.s32 %s20, %s27
    %p175 = scmp.eq.s32.totalorder %s174, 0
    %s177 = sadd.s32 %s176, 1
    %s178 = scalar_select %p175, %s176, %s177
    %p181 = pneg %p175
    %p182 = scmp.eq.s32.totalorder %s20, 1
    %p183 = por %p181, %p182
    %p184 = scmp.ne.s32.totalorder %s176, %s179
    %p185 = scmp.eq.s32.totalorder %s20, 0
    %p186 = por %p184, %p185
    %p187 = scmp.ne.s32.totalorder %s176, %s179
    %p188 = scmp.eq.s32.totalorder %s25, 1
    %p189 = por %p187, %p188
    %p190 = scmp.ne.s32.totalorder %s179, %s180
    %p191 = scmp.eq.s32.totalorder %s25, 0
    %p192 = por %p190, %p191
    %p193 = scmp.ne.s32.totalorder %s179, %s180
    %p194 = scmp.eq.s32.totalorder %s26, 1
    %p195 = por %p193, %p194
    %p197 = scmp.ne.s32.totalorder %s180, %s196
    %p198 = scmp.eq.s32.totalorder %s26, 0
    %p199 = por %p197, %p198
    %s200 = ssub.s32 %s20, %s27
    %p201 = scmp.eq.s32.totalorder %s200, 0
    %s203 = sadd.s32 %s202, 1
    %s204 = scalar_select %p201, %s202, %s203
    %p207 = pneg %p201
    %p208 = scmp.eq.s32.totalorder %s20, 1
    %p209 = por %p207, %p208
    %p210 = scmp.ne.s32.totalorder %s202, %s205
    %p211 = scmp.eq.s32.totalorder %s20, 0
    %p212 = por %p210, %p211
    %p213 = scmp.ne.s32.totalorder %s202, %s205
    %p214 = scmp.eq.s32.totalorder %s25, 1
    %p215 = por %p213, %p214
    %p216 = scmp.ne.s32.totalorder %s205, %s206
    %p217 = scmp.eq.s32.totalorder %s25, 0
    %p218 = por %p216, %p217
    %p219 = scmp.ne.s32.totalorder %s205, %s206
    %p220 = scmp.eq.s32.totalorder %s26, 1
    %p221 = por %p219, %p220
    %p223 = scmp.ne.s32.totalorder %s206, %s222
    %p224 = scmp.eq.s32.totalorder %s26, 0
    %p225 = por %p223, %p224
    %s226 = ssub.s32 %s20, %s27
    %p227 = scmp.eq.s32.totalorder %s226, 0
    %s229 = sadd.s32 %s228, 1
    %s230 = scalar_select %p227, %s228, %s229
    %p233 = pneg %p227
    %p234 = scmp.eq.s32.totalorder %s20, 1
    %p235 = por %p233, %p234
    %p236 = scmp.ne.s32.totalorder %s228, %s231
    %p237 = scmp.eq.s32.totalorder %s20, 0
    %p238 = por %p236, %p237
    %p239 = scmp.ne.s32.totalorder %s228, %s231
    %p240 = scmp.eq.s32.totalorder %s25, 1
    %p241 = por %p239, %p240
    %p242 = scmp.ne.s32.totalorder %s231, %s232
    %p243 = scmp.eq.s32.totalorder %s25, 0
    %p244 = por %p242, %p243
    %p245 = scmp.ne.s32.totalorder %s231, %s232
    %p246 = scmp.eq.s32.totalorder %s26, 1
    %p247 = por %p245, %p246
    %p249 = scmp.ne.s32.totalorder %s232, %s248
    %p250 = scmp.eq.s32.totalorder %s26, 0
    %p251 = por %p249, %p250
    %s252 = ssub.s32 %s20, %s27
    %p253 = scmp.eq.s32.totalorder %s252, 0
    %s255 = sadd.s32 %s254, 1
    %s256 = scalar_select %p253, %s254, %s255
    %p259 = pneg %p253
    %p260 = scmp.eq.s32.totalorder %s20, 1
    %p261 = por %p259, %p260
    %p262 = scmp.ne.s32.totalorder %s254, %s257
    %p263 = scmp.eq.s32.totalorder %s20, 0
    %p264 = por %p262, %p263
    %p265 = scmp.ne.s32.totalorder %s254, %s257
    %p266 = scmp.eq.s32.totalorder %s25, 1
    %p267 = por %p265, %p266
    %p268 = scmp.ne.s32.totalorder %s257, %s258
    %p269 = scmp.eq.s32.totalorder %s25, 0
    %p270 = por %p268, %p269
    %p271 = scmp.ne.s32.totalorder %s257, %s258
    %p272 = scmp.eq.s32.totalorder %s26, 1
    %p273 = por %p271, %p272
    %p275 = scmp.ne.s32.totalorder %s258, %s274
    %p276 = scmp.eq.s32.totalorder %s26, 0
    %p277 = por %p275, %p276
    %s278 = ssub.s32 %s20, %s27
    %p279 = scmp.eq.s32.totalorder %s278, 0
    %s281 = sadd.s32 %s280, 1
    %s282 = scalar_select %p279, %s280, %s281
    %p285 = pneg %p279
    %p286 = scmp.eq.s32.totalorder %s20, 1
    %p287 = por %p285, %p286
    %p288 = scmp.ne.s32.totalorder %s280, %s283
    %p289 = scmp.eq.s32.totalorder %s20, 0
    %p290 = por %p288, %p289
    %p291 = scmp.ne.s32.totalorder %s280, %s283
    %p292 = scmp.eq.s32.totalorder %s25, 1
    %p293 = por %p291, %p292
    %p294 = scmp.ne.s32.totalorder %s283, %s284
    %p295 = scmp.eq.s32.totalorder %s25, 0
    %p296 = por %p294, %p295
    %p297 = scmp.ne.s32.totalorder %s283, %s284
    %p298 = scmp.eq.s32.totalorder %s26, 1
    %p299 = por %p297, %p298
    %p301 = scmp.ne.s32.totalorder %s284, %s300
    %p302 = scmp.eq.s32.totalorder %s26, 0
    %p303 = por %p301, %p302
    %s304 = ssub.s32 %s20, %s27
    %p305 = scmp.eq.s32.totalorder %s304, 0
    %s307 = sadd.s32 %s306, 1
    %s308 = scalar_select %p305, %s306, %s307
    %p311 = pneg %p305
    %p312 = scmp.eq.s32.totalorder %s20, 1
    %p313 = por %p311, %p312
    %p314 = scmp.ne.s32.totalorder %s306, %s309
    %p315 = scmp.eq.s32.totalorder %s20, 0
    %p316 = por %p314, %p315
    %p317 = scmp.ne.s32.totalorder %s306, %s309
    %p318 = scmp.eq.s32.totalorder %s25, 1
    %p319 = por %p317, %p318
    %p320 = scmp.ne.s32.totalorder %s309, %s310
    %p321 = scmp.eq.s32.totalorder %s25, 0
    %p322 = por %p320, %p321
    %p323 = scmp.ne.s32.totalorder %s309, %s310
    %p324 = scmp.eq.s32.totalorder %s26, 1
    %p325 = por %p323, %p324
    %p327 = scmp.ne.s32.totalorder %s310, %s326
    %p328 = scmp.eq.s32.totalorder %s26, 0
    %p329 = por %p327, %p328
    %s330 = ssub.s32 %s20, %s27
    %p331 = scmp.eq.s32.totalorder %s330, 0
    %s333 = sadd.s32 %s332, 1
    %s334 = scalar_select %p331, %s332, %s333
    %p337 = pneg %p331
    %p338 = scmp.eq.s32.totalorder %s20, 1
    %p339 = por %p337, %p338
    %p340 = scmp.ne.s32.totalorder %s332, %s335
    %p341 = scmp.eq.s32.totalorder %s20, 0
    %p342 = por %p340, %p341
    %p343 = scmp.ne.s32.totalorder %s332, %s335
    %p344 = scmp.eq.s32.totalorder %s25, 1
    %p345 = por %p343, %p344
    %p346 = scmp.ne.s32.totalorder %s335, %s336
    %p347 = scmp.eq.s32.totalorder %s25, 0
    %p348 = por %p346, %p347
    %p349 = scmp.ne.s32.totalorder %s335, %s336
    %p350 = scmp.eq.s32.totalorder %s26, 1
    %p351 = por %p349, %p350
    %p353 = scmp.ne.s32.totalorder %s336, %s352
    %p354 = scmp.eq.s32.totalorder %s26, 0
    %p355 = por %p353, %p354
    %s356 = ssub.s32 %s20, %s27
    %p357 = scmp.eq.s32.totalorder %s356, 0
    %s359 = sadd.s32 %s358, 1
    %s360 = scalar_select %p357, %s358, %s359
    %p363 = pneg %p357
    %p364 = scmp.eq.s32.totalorder %s20, 1
    %p365 = por %p363, %p364
    %p366 = scmp.ne.s32.totalorder %s358, %s361
    %p367 = scmp.eq.s32.totalorder %s20, 0
    %p368 = por %p366, %p367
    %p369 = scmp.ne.s32.totalorder %s358, %s361
    %p370 = scmp.eq.s32.totalorder %s25, 1
    %p371 = por %p369, %p370
    %p372 = scmp.ne.s32.totalorder %s361, %s362
    %p373 = scmp.eq.s32.totalorder %s25, 0
    %p374 = por %p372, %p373
    %p375 = scmp.ne.s32.totalorder %s361, %s362
    %p376 = scmp.eq.s32.totalorder %s26, 1
    %p377 = por %p375, %p376
    %p379 = scmp.ne.s32.totalorder %s362, %s378
    %p380 = scmp.eq.s32.totalorder %s26, 0
    %p381 = por %p379, %p380
    %s383 = sadd.s32 %s382, 1
    %p386 = scmp.eq.s32.totalorder %s20, 1
    %p387 = scmp.ne.s32.totalorder %s382, %s384
    %p388 = scmp.eq.s32.totalorder %s20, 0
    %p389 = por %p387, %p388
    %p390 = scmp.ne.s32.totalorder %s382, %s384
    %p391 = scmp.eq.s32.totalorder %s25, 1
    %p392 = por %p390, %p391
    %p393 = scmp.ne.s32.totalorder %s384, %s385
    %p394 = scmp.eq.s32.totalorder %s25, 0
    %p395 = por %p393, %p394
    %p396 = scmp.ne.s32.totalorder %s384, %s385
    %p397 = scmp.eq.s32.totalorder %s26, 1
    %p398 = por %p396, %p397
    %p400 = scmp.ne.s32.totalorder %s385, %s399
    %p401 = scmp.eq.s32.totalorder %s26, 0
    %p402 = por %p400, %p401
    %p403 = scmp.le.s32.totalorder 1, %s20
    %p404 = scmp.lt.s32.totalorder %s20, 3
    %p405 = pnand %p403, %p404
    %p406 = pneg %p405
    // Predicated region
    $region9: #{transformer_forward.2} parent=5 // pred_check
      _
    $region10: #{transformer_forward.2} parent=5 // pred_check_branch
      %408 = sbr.rel (%p405) target = $region12
    $region11: #{transformer_forward.2} parent=5 // pred_region
      %s409 = ssub.s32 %s20, 1
      // Predicated region
      $region13: #{transformer_forward.2} parent=11 // pred_check
        %p410 = pneg %p41
      $region14: #{transformer_forward.2} parent=11 // pred_check_branch
        %412 = sbr.rel (%p410) target = $region16
      $region15: #{transformer_forward.2} parent=11 // pred_region
        _
      $region16: #{transformer_forward.2} parent=11 // pred_fallthru
        _
      // Predicated region
      $region17: #{transformer_forward.2} parent=11 // pred_check
        %p413 = pneg %p62
      $region18: #{transformer_forward.2} parent=11 // pred_check_branch
        %415 = sbr.rel (%p413) target = $region20
      $region19: #{transformer_forward.2} parent=11 // pred_region
        _
      $region20: #{transformer_forward.2} parent=11 // pred_fallthru
        _
    $region12: #{transformer_forward.2} parent=5 // pred_fallthru
      _
    %p416 = scmp.lt.s32.totalorder %s20, 2
    // Predicated region
    $region21: #{transformer_forward.2} parent=5 // pred_check
      %p417 = pneg %p416
    $region22: #{transformer_forward.2} parent=5 // pred_check_branch
      %419 = sbr.rel (%p417) target = $region24
    $region23: #{transformer_forward.2} parent=5 // pred_region
      // Predicated region
      $region25: #{transformer_forward.2} parent=23 // pred_check
        %p420 = pneg %p82
      $region26: #{transformer_forward.2} parent=23 // pred_check_branch
        %422 = sbr.rel (%p420) target = $region28
      $region27: #{transformer_forward.2} parent=23 // pred_region
        %p423 = scmp.lt.s32.totalorder %s20, 1
        %s424 = scalar_select %p423, %s20, 1
        %s425 = smul.addr %s424, 4
        %s426 = smul.addr %s425, 4
        %s427 = scalar_lea.vmem %s2, %s426
      $region28: #{transformer_forward.2} parent=23 // pred_fallthru
        _
      // Predicated region
      $region29: #{transformer_forward.2} parent=23 // pred_check
        %p428 = pneg %p108
      $region30: #{transformer_forward.2} parent=23 // pred_check_branch
        %430 = sbr.rel (%p428) target = $region32
      $region31: #{transformer_forward.2} parent=23 // pred_region
        %p431 = scmp.lt.s32.totalorder %s20, 1
        %s432 = scalar_select %p431, %s20, 1
        %s433 = scalar_lea.vmem %s3, %s432
      $region32: #{transformer_forward.2} parent=23 // pred_fallthru
        _
      // Predicated region
      $region33: #{transformer_forward.2} parent=23 // pred_check
        %p434 = pneg %p134
      $region34: #{transformer_forward.2} parent=23 // pred_check_branch
        %436 = sbr.rel (%p434) target = $region36
      $region35: #{transformer_forward.2} parent=23 // pred_region
        %p437 = scmp.lt.s32.totalorder %s20, 1
        %s438 = scalar_select %p437, %s20, 1
        %s439 = smul.addr %s438, 4
        %s440 = smul.addr %s439, 4
        %s441 = scalar_lea.vmem %s4, %s440
      $region36: #{transformer_forward.2} parent=23 // pred_fallthru
        _
      // Predicated region
      $region37: #{transformer_forward.2} parent=23 // pred_check
        %p442 = pneg %p160
      $region38: #{transformer_forward.2} parent=23 // pred_check_branch
        %444 = sbr.rel (%p442) target = $region40
      $region39: #{transformer_forward.2} parent=23 // pred_region
        %p445 = scmp.lt.s32.totalorder %s20, 1
        %s446 = scalar_select %p445, %s20, 1
        %s447 = scalar_lea.vmem %s5, %s446
      $region40: #{transformer_forward.2} parent=23 // pred_fallthru
        _
      // Predicated region
      $region41: #{transformer_forward.2} parent=23 // pred_check
        %p448 = pneg %p186
      $region42: #{transformer_forward.2} parent=23 // pred_check_branch
        %450 = sbr.rel (%p448) target = $region44
      $region43: #{transformer_forward.2} parent=23 // pred_region
        %p451 = scmp.lt.s32.totalorder %s20, 1
        %s452 = scalar_select %p451, %s20, 1
        %s453 = scalar_lea.vmem %s6, %s452
      $region44: #{transformer_forward.2} parent=23 // pred_fallthru
        _
      // Predicated region
      $region45: #{transformer_forward.2} parent=23 // pred_check
        %p454 = pneg %p212
      $region46: #{transformer_forward.2} parent=23 // pred_check_branch
        %456 = sbr.rel (%p454) target = $region48
      $region47: #{transformer_forward.2} parent=23 // pred_region
        %p457 = scmp.lt.s32.totalorder %s20, 1
        %s458 = scalar_select %p457, %s20, 1
        %s459 = scalar_lea.vmem %s7, %s458
      $region48: #{transformer_forward.2} parent=23 // pred_fallthru
        _
      // Predicated region
      $region49: #{transformer_forward.2} parent=23 // pred_check
        %p460 = pneg %p238
      $region50: #{transformer_forward.2} parent=23 // pred_check_branch
        %462 = sbr.rel (%p460) target = $region52
      $region51: #{transformer_forward.2} parent=23 // pred_region
        %p463 = scmp.lt.s32.totalorder %s20, 1
        %s464 = scalar_select %p463, %s20, 1
        %s465 = smul.addr %s464, 64
        %s466 = smul.addr %s465, 4
        %s467 = scalar_lea.vmem %s8, %s466
      $region52: #{transformer_forward.2} parent=23 // pred_fallthru
        _
      // Predicated region
      $region53: #{transformer_forward.2} parent=23 // pred_check
        %p468 = pneg %p264
      $region54: #{transformer_forward.2} parent=23 // pred_check_branch
        %470 = sbr.rel (%p468) target = $region56
      $region55: #{transformer_forward.2} parent=23 // pred_region
        %p471 = scmp.lt.s32.totalorder %s20, 1
        %s472 = scalar_select %p471, %s20, 1
        %s473 = smul.addr %s472, 16
        %s474 = scalar_lea.vmem %s9, %s473
      $region56: #{transformer_forward.2} parent=23 // pred_fallthru
        _
      // Predicated region
      $region57: #{transformer_forward.2} parent=23 // pred_check
        %p475 = pneg %p290
      $region58: #{transformer_forward.2} parent=23 // pred_check_branch
        %477 = sbr.rel (%p475) target = $region60
      $region59: #{transformer_forward.2} parent=23 // pred_region
        %p478 = scmp.lt.s32.totalorder %s20, 1
        %s479 = scalar_select %p478, %s20, 1
        %s480 = smul.addr %s479, 256
        %s481 = smul.addr %s480, 4
        %s482 = scalar_lea.vmem %s10, %s481
      $region60: #{transformer_forward.2} parent=23 // pred_fallthru
        _
      // Predicated region
      $region61: #{transformer_forward.2} parent=23 // pred_check
        %p483 = pneg %p316
      $region62: #{transformer_forward.2} parent=23 // pred_check_branch
        %485 = sbr.rel (%p483) target = $region64
      $region63: #{transformer_forward.2} parent=23 // pred_region
        %p486 = scmp.lt.s32.totalorder %s20, 1
        %s487 = scalar_select %p486, %s20, 1
        %s488 = scalar_lea.vmem %s11, %s487
      $region64: #{transformer_forward.2} parent=23 // pred_fallthru
        _
      // Predicated region
      $region65: #{transformer_forward.2} parent=23 // pred_check
        %p489 = pneg %p342
      $region66: #{transformer_forward.2} parent=23 // pred_check_branch
        %491 = sbr.rel (%p489) target = $region68
      $region67: #{transformer_forward.2} parent=23 // pred_region
        %p492 = scmp.lt.s32.totalorder %s20, 1
        %s493 = scalar_select %p492, %s20, 1
        %s494 = scalar_lea.vmem %s12, %s493
      $region68: #{transformer_forward.2} parent=23 // pred_fallthru
        _
      // Predicated region
      $region69: #{transformer_forward.2} parent=23 // pred_check
        %p495 = pneg %p368
      $region70: #{transformer_forward.2} parent=23 // pred_check_branch
        %497 = sbr.rel (%p495) target = $region72
      $region71: #{transformer_forward.2} parent=23 // pred_region
        %p498 = scmp.lt.s32.totalorder %s20, 1
        %s499 = scalar_select %p498, %s20, 1
        %s500 = scalar_lea.vmem %s13, %s499
      $region72: #{transformer_forward.2} parent=23 // pred_fallthru
        _
    $region24: #{transformer_forward.2} parent=5 // pred_fallthru
      _
    %p501 = scmp.le.s32.totalorder 1, %s20
    %p502 = scmp.lt.s32.totalorder %s20, 3
    %p503 = pnand %p501, %p502
    %p504 = pneg %p503
    // Predicated region
    $region73: #{transformer_forward.2} parent=5 // pred_check
      _
    $region74: #{transformer_forward.2} parent=5 // pred_check_branch
      %506 = sbr.rel (%p503) target = $region76
    $region75: #{transformer_forward.2} parent=5 // pred_region
      %s507 = ssub.s32 %s20, 1
      %p508 = pneg %p41
      %p509 = pneg %p38
      %p510 = pneg %p62
      %p511 = pneg %p59
      %p512 = scmp.lt.s32.totalorder %s25, 1
      %s513 = scalar_select %p512, %s25, 1
      %s514 = smul.addr %s513, 4
      %s515 = smul.addr %s514, 4
      %s516 = scalar_lea.vmem %s2, %s515
      %p517 = pneg %p88
      %p518 = pneg %p85
      %p519 = scmp.lt.s32.totalorder %s25, 1
      %s520 = scalar_select %p519, %s25, 1
      %s521 = scalar_lea.vmem %s3, %s520
      %p522 = pneg %p114
      %p523 = pneg %p111
      %p524 = scmp.lt.s32.totalorder %s25, 1
      %s525 = scalar_select %p524, %s25, 1
      %s526 = smul.addr %s525, 4
      %s527 = smul.addr %s526, 4
      %s528 = scalar_lea.vmem %s4, %s527
      %p529 = pneg %p140
      %p530 = pneg %p137
      %p531 = scmp.lt.s32.totalorder %s25, 1
      %s532 = scalar_select %p531, %s25, 1
      %s533 = scalar_lea.vmem %s5, %s532
      %p534 = pneg %p166
      %p535 = pneg %p163
      %p536 = scmp.lt.s32.totalorder %s25, 1
      %s537 = scalar_select %p536, %s25, 1
      %s538 = scalar_lea.vmem %s6, %s537
      %p539 = pneg %p192
      %p540 = pneg %p189
      %p541 = scmp.lt.s32.totalorder %s25, 1
      %s542 = scalar_select %p541, %s25, 1
      %s543 = scalar_lea.vmem %s7, %s542
      %p544 = pneg %p218
      %p545 = pneg %p215
      %p546 = scmp.lt.s32.totalorder %s25, 1
      %s547 = scalar_select %p546, %s25, 1
      %s548 = smul.addr %s547, 64
      %s549 = smul.addr %s548, 4
      %s550 = scalar_lea.vmem %s8, %s549
      %p551 = pneg %p244
      %p552 = pneg %p241
      %p553 = scmp.lt.s32.totalorder %s25, 1
      %s554 = scalar_select %p553, %s25, 1
      %s555 = smul.addr %s554, 16
      %s556 = scalar_lea.vmem %s9, %s555
      %p557 = pneg %p270
      %p558 = pneg %p267
      %p559 = scmp.lt.s32.totalorder %s25, 1
      %s560 = scalar_select %p559, %s25, 1
      %s561 = smul.addr %s560, 256
      %s562 = smul.addr %s561, 4
      %s563 = scalar_lea.vmem %s10, %s562
      %p564 = pneg %p296
      %p565 = pneg %p293
      %p566 = scmp.lt.s32.totalorder %s25, 1
      %s567 = scalar_select %p566, %s25, 1
      %s568 = scalar_lea.vmem %s11, %s567
      %p569 = pneg %p322
      %p570 = pneg %p319
      %p571 = scmp.lt.s32.totalorder %s25, 1
      %s572 = scalar_select %p571, %s25, 1
      %s573 = scalar_lea.vmem %s12, %s572
      %p574 = pneg %p348
      %p575 = pneg %p345
      %p576 = scmp.lt.s32.totalorder %s25, 1
      %s577 = scalar_select %p576, %s25, 1
      %s578 = scalar_lea.vmem %s13, %s577
      %p579 = pneg %p374
      %p580 = pneg %p371
      %p581 = pneg %p395
      %p582 = pneg %p392
      %p583 = scmp.lt.s32.totalorder %s25, 1
      %s584 = scalar_select %p583, %s25, 1
      %s585 = smul.addr %s584, 4
      %s586 = smul.addr %s585, 4
      %s587 = scalar_lea.vmem %s2, %s586
      %p588 = scmp.lt.s32.totalorder %s25, 1
      %s589 = scalar_select %p588, %s25, 1
      %s590 = scalar_lea.vmem %s3, %s589
      %p591 = scmp.lt.s32.totalorder %s25, 1
      %s592 = scalar_select %p591, %s25, 1
      %s593 = smul.addr %s592, 4
      %s594 = smul.addr %s593, 4
      %s595 = scalar_lea.vmem %s4, %s594
      %p596 = scmp.lt.s32.totalorder %s25, 1
      %s597 = scalar_select %p596, %s25, 1
      %s598 = scalar_lea.vmem %s5, %s597
      %p599 = scmp.lt.s32.totalorder %s25, 1
      %s600 = scalar_select %p599, %s25, 1
      %s601 = scalar_lea.vmem %s6, %s600
      %p602 = scmp.lt.s32.totalorder %s25, 1
      %s603 = scalar_select %p602, %s25, 1
      %s604 = scalar_lea.vmem %s7, %s603
      %p605 = scmp.lt.s32.totalorder %s25, 1
      %s606 = scalar_select %p605, %s25, 1
      %s607 = smul.addr %s606, 64
      %s608 = smul.addr %s607, 4
      %s609 = scalar_lea.vmem %s8, %s608
      %p610 = scmp.lt.s32.totalorder %s25, 1
      %s611 = scalar_select %p610, %s25, 1
      %s612 = smul.addr %s611, 16
      %s613 = scalar_lea.vmem %s9, %s612
      %p614 = scmp.lt.s32.totalorder %s25, 1
      %s615 = scalar_select %p614, %s25, 1
      %s616 = smul.addr %s615, 256
      %s617 = smul.addr %s616, 4
      %s618 = scalar_lea.vmem %s10, %s617
      %p619 = scmp.lt.s32.totalorder %s25, 1
      %s620 = scalar_select %p619, %s25, 1
      %s621 = scalar_lea.vmem %s11, %s620
      %p622 = scmp.lt.s32.totalorder %s25, 1
      %s623 = scalar_select %p622, %s25, 1
      %s624 = scalar_lea.vmem %s12, %s623
      %p625 = scmp.lt.s32.totalorder %s25, 1
      %s626 = scalar_select %p625, %s25, 1
      %s627 = scalar_lea.vmem %s13, %s626
      %p629 = scmp.eq.s32.totalorder %s25, 0
      // Predicated region
      $region77: #{transformer_forward.2} parent=75 // pred_check
        %p630 = pneg %p629
      $region78: #{transformer_forward.2} parent=75 // pred_check_branch
        %632 = sbr.rel (%p630) target = $region80
      $region79: #{transformer_forward.2} parent=75 // pred_region
        %v633 = vld [vmem:[%s0] sm:$0xff]
        %v634 = vld [vmem:[%s0 + $0x8] sm:$0xff]
        %vm635 = vcmask 261120
        %636 = vst.msk [vmem:[%s14] sm:$0xff] %vm635, %v633
        %637 = vst.msk [vmem:[%s14 + $0x8] sm:$0xff] %vm635, %v634
      $region80: #{transformer_forward.2} parent=75 // pred_fallthru
        _
      %v638 = vld [vmem:[%s14] sm:$0xff]
      %v639 = vld [vmem:[%s14 + $0x8] sm:$0xff]
      %v640 = vpack.c.bf16 %v639, %v638
      %v641 = vld [vmem:[%s587] sm:$0xf]
      %v642 = vld [vmem:[%s587 + $0x4] sm:$0xf]
      %v643 = vld [vmem:[%s587 + $0x8] sm:$0xf]
      %v644 = vld [vmem:[%s587 + $0xc] sm:$0xf]
      %v645 = vld [vmem:[%s590] sm:$0x1]
      %v647 = vperm.slane %v645, 0
      %v653 = vunpack.c.l.b16 %v641
      %v654 = vunpack.c.l.b16 %v642
      %v655 = vunpack.c.l.b16 %v643
      %v656 = vunpack.c.l.b16 %v644
      %v657 = vpack.c.b16 %v654, %v653
      %v658 = vpack.c.b16 %v656, %v655
      %vm661 = vcmask 261120
      %v663 = vsel %vm661, %v640, 0
      %665 = vmatpush.bf16.msra.mxu0 0
      %666 = vmatpush.bf16.msra.mxu0 0
      %667 = vmatpush.bf16.msra.mxu0 0
      %668 = vmatpush.bf16.msra.mxu0 0
      %669 = vmatpush.bf16.msra.mxu0 0
      %670 = vmatpush.bf16.msra.mxu0 0
      %671 = vmatpush.bf16.msra.mxu0 %v658
      %672 = vmatpush.bf16.msra.mxu0 %v657
      %673 = vmatmul.bf16.gmra.mxu0 %v663
      %v674 = vpop.f32.mrf.mxu0
      %v675 = vadd.f32 %v647, %v674
      %v676 = vpop.f32.mrf.mxu0
      %v677 = vadd.f32 %v647, %v676
      %678 = vdwg.mxu0
      %v679 = vld [vmem:[%s1] sm:$0x3]
      %v680 = vld [vmem:[%s595] sm:$0xf]
      %v681 = vld [vmem:[%s595 + $0x4] sm:$0xf]
      %v682 = vld [vmem:[%s595 + $0x8] sm:$0xf]
      %v683 = vld [vmem:[%s595 + $0xc] sm:$0xf]
      %v684 = vld [vmem:[%s598] sm:$0x1]
      %v685 = vperm.slane %v679, 0
      %687 = vrot.lane.b32.xlu0 %v675, 96
      %v688 = vpop.permute.xlu0 %687
      %vm689 = vcmask 64512
      %v690 = vsel %vm689, %v675, 0
      %v692 = vsel %vm689, %v688, 0
      %694 = vmatpush.xpose.msra.mxu0 0.0
      %695 = vmatpush.xpose.msra.mxu0 0.0
      %696 = vmatpush.xpose.msra.mxu0 0.0
      %697 = vmatpush.xpose.msra.mxu0 0.0
      %698 = vmatpush.xpose.msra.mxu0 0.0
      %699 = vmatpush.xpose.msra.mxu0 0.0
      %700 = vmatpush.xpose.msra.mxu0 0.0
      %701 = vmatpush.xpose.msra.mxu0 0.0
      %702 = vmatpush.xpose.msra.mxu0 0.0
      %703 = vmatpush.xpose.msra.mxu0 0.0
      %704 = vmatpush.xpose.msra.mxu0 0.0
      %705 = vmatpush.xpose.msra.mxu0 0.0
      %706 = vmatpush.xpose.msra.mxu0 0.0
      %707 = vmatpush.xpose.msra.mxu0 0.0
      %708 = vmatpush.xpose.msra.mxu0 0.0
      %709 = vmatpush.xpose.msra.mxu0 %v692
      %710 = vmatmul.f32.gmra.mxu0 %v690
      %v711 = vpop.f32.mrf.mxu0
      %v712 = vadd.f32 %v685, %v711
      %713 = vdwg.mxu0
      %v714 = vsel %vm689, %v712, -inf
      %715 = vmax.xlane.f32.xlu0 %v714
      %v716 = vpop.xlane.xlu0 %715
      %v717 = vsub.f32 %v712, %v716
      %v718 = vmul.f32 %v717, 1.442695
      %v719 = vpow.pop %v718
      %v720 = vsel %vm689, %v719, 0.0
      %721 = vadd.xlane.f32.xlu0 %v720
      %v722 = vpop.xlane.xlu0 %721
      %v723 = vrcp.pop %v722
      %v724 = vmul.f32 %v719, %v723
      %725 = vrot.lane.b32.xlu0 %v675, 64
      %v726 = vpop.permute.xlu0 %725
      %v729 = vsel %vm689, %v724, 0
      %731 = vmatpush.msra.mxu0 0.0
      %732 = vmatpush.msra.mxu0 0.0
      %733 = vmatpush.msra.mxu0 0.0
      %734 = vmatpush.msra.mxu0 0.0
      %735 = vmatpush.msra.mxu0 0.0
      %736 = vmatpush.msra.mxu0 0.0
      %737 = vmatpush.msra.mxu0 0.0
      %738 = vmatpush.msra.mxu0 0.0
      %739 = vmatpush.msra.mxu0 0.0
      %740 = vmatpush.msra.mxu0 0.0
      %741 = vmatpush.msra.mxu0 0.0
      %742 = vmatpush.msra.mxu0 0.0
      %743 = vmatpush.msra.mxu0 0.0
      %744 = vmatpush.msra.mxu0 0.0
      %745 = vmatpush.msra.mxu0 0.0
      %746 = vmatpush.msra.mxu0 %v726
      %747 = vmatmul.f32.gmra.mxu0 %v729
      %v748 = vpop.f32.mrf.mxu0
      %v749 = vadd.f32 0.0, %v748
      %750 = vdwg.mxu0
      %751 = vrot.lane.b32.xlu0 %v675, 120
      %v752 = vpop.permute.xlu0 %751
      %753 = vrot.lane.b32.xlu0 %v675, 88
      %v754 = vpop.permute.xlu0 %753
      %v755 = vsel %vm689, %v752, 0
      %v757 = vsel %vm689, %v754, 0
      %759 = vmatpush.xpose.msra.mxu0 0.0
      %760 = vmatpush.xpose.msra.mxu0 0.0
      %761 = vmatpush.xpose.msra.mxu0 0.0
      %762 = vmatpush.xpose.msra.mxu0 0.0
      %763 = vmatpush.xpose.msra.mxu0 0.0
      %764 = vmatpush.xpose.msra.mxu0 0.0
      %765 = vmatpush.xpose.msra.mxu0 0.0
      %766 = vmatpush.xpose.msra.mxu0 0.0
      %767 = vmatpush.xpose.msra.mxu0 0.0
      %768 = vmatpush.xpose.msra.mxu0 0.0
      %769 = vmatpush.xpose.msra.mxu0 0.0
      %770 = vmatpush.xpose.msra.mxu0 0.0
      %771 = vmatpush.xpose.msra.mxu0 0.0
      %772 = vmatpush.xpose.msra.mxu0 0.0
      %773 = vmatpush.xpose.msra.mxu0 0.0
      %774 = vmatpush.xpose.msra.mxu0 %v757
      %775 = vmatmul.f32.gmra.mxu0 %v755
      %v776 = vpop.f32.mrf.mxu0
      %v777 = vadd.f32 %v685, %v776
      %778 = vdwg.mxu0
      %v779 = vsel %vm689, %v777, -inf
      %780 = vmax.xlane.f32.xlu0 %v779
      %v781 = vpop.xlane.xlu0 %780
      %v782 = vsub.f32 %v777, %v781
      %v783 = vmul.f32 %v782, 1.442695
      %v784 = vpow.pop %v783
      %v785 = vsel %vm689, %v784, 0.0
      %786 = vadd.xlane.f32.xlu0 %v785
      %v787 = vpop.xlane.xlu0 %786
      %v788 = vrcp.pop %v787
      %v789 = vmul.f32 %v784, %v788
      %790 = vrot.lane.b32.xlu0 %v675, 56
      %v791 = vpop.permute.xlu0 %790
      %v794 = vsel %vm689, %v789, 0
      %796 = vmatpush.msra.mxu0 0.0
      %797 = vmatpush.msra.mxu0 0.0
      %798 = vmatpush.msra.mxu0 0.0
      %799 = vmatpush.msra.mxu0 0.0
      %800 = vmatpush.msra.mxu0 0.0
      %801 = vmatpush.msra.mxu0 0.0
      %802 = vmatpush.msra.mxu0 0.0
      %803 = vmatpush.msra.mxu0 0.0
      %804 = vmatpush.msra.mxu0 0.0
      %805 = vmatpush.msra.mxu0 0.0
      %806 = vmatpush.msra.mxu0 0.0
      %807 = vmatpush.msra.mxu0 0.0
      %808 = vmatpush.msra.mxu0 0.0
      %809 = vmatpush.msra.mxu0 0.0
      %810 = vmatpush.msra.mxu0 0.0
      %811 = vmatpush.msra.mxu0 %v791
      %812 = vmatmul.f32.gmra.mxu0 %v794
      %v813 = vpop.f32.mrf.mxu0
      %v814 = vadd.f32 0.0, %v813
      %815 = vdwg.mxu0
      %816 = vrot.lane.b32.xlu0 %v675, 112
      %v817 = vpop.permute.xlu0 %816
      %818 = vrot.lane.b32.xlu0 %v675, 80
      %v819 = vpop.permute.xlu0 %818
      %v820 = vsel %vm689, %v817, 0
      %v822 = vsel %vm689, %v819, 0
      %824 = vmatpush.xpose.msra.mxu0 0.0
      %825 = vmatpush.xpose.msra.mxu0 0.0
      %826 = vmatpush.xpose.msra.mxu0 0.0
      %827 = vmatpush.xpose.msra.mxu0 0.0
      %828 = vmatpush.xpose.msra.mxu0 0.0
      %829 = vmatpush.xpose.msra.mxu0 0.0
      %830 = vmatpush.xpose.msra.mxu0 0.0
      %831 = vmatpush.xpose.msra.mxu0 0.0
      %832 = vmatpush.xpose.msra.mxu0 0.0
      %833 = vmatpush.xpose.msra.mxu0 0.0
      %834 = vmatpush.xpose.msra.mxu0 0.0
      %835 = vmatpush.xpose.msra.mxu0 0.0
      %836 = vmatpush.xpose.msra.mxu0 0.0
      %837 = vmatpush.xpose.msra.mxu0 0.0
      %838 = vmatpush.xpose.msra.mxu0 0.0
      %839 = vmatpush.xpose.msra.mxu0 %v822
      %840 = vmatmul.f32.gmra.mxu0 %v820
      %v841 = vpop.f32.mrf.mxu0
      %v842 = vadd.f32 %v685, %v841
      %843 = vdwg.mxu0
      %v844 = vsel %vm689, %v842, -inf
      %845 = vmax.xlane.f32.xlu0 %v844
      %v846 = vpop.xlane.xlu0 %845
      %v847 = vsub.f32 %v842, %v846
      %v848 = vmul.f32 %v847, 1.442695
      %v849 = vpow.pop %v848
      %v850 = vsel %vm689, %v849, 0.0
      %851 = vadd.xlane.f32.xlu0 %v850
      %v852 = vpop.xlane.xlu0 %851
      %v853 = vrcp.pop %v852
      %v854 = vmul.f32 %v849, %v853
      %855 = vrot.lane.b32.xlu0 %v675, 48
      %v856 = vpop.permute.xlu0 %855
      %v859 = vsel %vm689, %v854, 0
      %861 = vmatpush.msra.mxu0 0.0
      %862 = vmatpush.msra.mxu0 0.0
      %863 = vmatpush.msra.mxu0 0.0
      %864 = vmatpush.msra.mxu0 0.0
      %865 = vmatpush.msra.mxu0 0.0
      %866 = vmatpush.msra.mxu0 0.0
      %867 = vmatpush.msra.mxu0 0.0
      %868 = vmatpush.msra.mxu0 0.0
      %869 = vmatpush.msra.mxu0 0.0
      %870 = vmatpush.msra.mxu0 0.0
      %871 = vmatpush.msra.mxu0 0.0
      %872 = vmatpush.msra.mxu0 0.0
      %873 = vmatpush.msra.mxu0 0.0
      %874 = vmatpush.msra.mxu0 0.0
      %875 = vmatpush.msra.mxu0 0.0
      %876 = vmatpush.msra.mxu0 %v856
      %877 = vmatmul.f32.gmra.mxu0 %v859
      %v878 = vpop.f32.mrf.mxu0
      %v879 = vadd.f32 0.0, %v878
      %880 = vdwg.mxu0
      %881 = vrot.lane.b32.xlu0 %v675, 104
      %v882 = vpop.permute.xlu0 %881
      %883 = vrot.lane.b32.xlu0 %v675, 72
      %v884 = vpop.permute.xlu0 %883
      %v885 = vsel %vm689, %v882, 0
      %v887 = vsel %vm689, %v884, 0
      %889 = vmatpush.xpose.msra.mxu0 0.0
      %890 = vmatpush.xpose.msra.mxu0 0.0
      %891 = vmatpush.xpose.msra.mxu0 0.0
      %892 = vmatpush.xpose.msra.mxu0 0.0
      %893 = vmatpush.xpose.msra.mxu0 0.0
      %894 = vmatpush.xpose.msra.mxu0 0.0
      %895 = vmatpush.xpose.msra.mxu0 0.0
      %896 = vmatpush.xpose.msra.mxu0 0.0
      %897 = vmatpush.xpose.msra.mxu0 0.0
      %898 = vmatpush.xpose.msra.mxu0 0.0
      %899 = vmatpush.xpose.msra.mxu0 0.0
      %900 = vmatpush.xpose.msra.mxu0 0.0
      %901 = vmatpush.xpose.msra.mxu0 0.0
      %902 = vmatpush.xpose.msra.mxu0 0.0
      %903 = vmatpush.xpose.msra.mxu0 0.0
      %904 = vmatpush.xpose.msra.mxu0 %v887
      %905 = vmatmul.f32.gmra.mxu0 %v885
      %v906 = vpop.f32.mrf.mxu0
      %v907 = vadd.f32 %v685, %v906
      %908 = vdwg.mxu0
      %v909 = vsel %vm689, %v907, -inf
      %910 = vmax.xlane.f32.xlu0 %v909
      %v911 = vpop.xlane.xlu0 %910
      %v912 = vsub.f32 %v907, %v911
      %v913 = vmul.f32 %v912, 1.442695
      %v914 = vpow.pop %v913
      %v915 = vsel %vm689, %v914, 0.0
      %916 = vadd.xlane.f32.xlu0 %v915
      %v917 = vpop.xlane.xlu0 %916
      %v918 = vrcp.pop %v917
      %v919 = vmul.f32 %v914, %v918
      %920 = vrot.lane.b32.xlu0 %v675, 40
      %v921 = vpop.permute.xlu0 %920
      %v924 = vsel %vm689, %v919, 0
      %926 = vmatpush.msra.mxu0 0.0
      %927 = vmatpush.msra.mxu0 0.0
      %928 = vmatpush.msra.mxu0 0.0
      %929 = vmatpush.msra.mxu0 0.0
      %930 = vmatpush.msra.mxu0 0.0
      %931 = vmatpush.msra.mxu0 0.0
      %932 = vmatpush.msra.mxu0 0.0
      %933 = vmatpush.msra.mxu0 0.0
      %934 = vmatpush.msra.mxu0 0.0
      %935 = vmatpush.msra.mxu0 0.0
      %936 = vmatpush.msra.mxu0 0.0
      %937 = vmatpush.msra.mxu0 0.0
      %938 = vmatpush.msra.mxu0 0.0
      %939 = vmatpush.msra.mxu0 0.0
      %940 = vmatpush.msra.mxu0 0.0
      %941 = vmatpush.msra.mxu0 %v921
      %942 = vmatmul.f32.gmra.mxu0 %v924
      %v943 = vpop.f32.mrf.mxu0
      %v944 = vadd.f32 0.0, %v943
      %945 = vdwg.mxu0
      %947 = vrot.lane.b32.xlu0 %v814, 8
      %v948 = vpop.permute.xlu0 %947
      %951 = vrot.lane.b32.xlu0 %v879, 16
      %v952 = vpop.permute.xlu0 %951
      %955 = vrot.lane.b32.xlu0 %v944, 24
      %v956 = vpop.permute.xlu0 %955
      %v958 = vsel %vm689, %v749, %v948
      %vm959 = vcmask 130048
      %v960 = vsel %vm959, %v958, %v952
      %vm961 = vcmask 195584
      %v962 = vsel %vm961, %v960, %v956
      %v963 = vperm.slane %v679, 1
      %965 = vrot.lane.b32.xlu0 %v677, 96
      %v966 = vpop.permute.xlu0 %965
      %v967 = vsel %vm689, %v677, 0
      %v969 = vsel %vm689, %v966, 0
      %971 = vmatpush.xpose.msra.mxu0 0.0
      %972 = vmatpush.xpose.msra.mxu0 0.0
      %973 = vmatpush.xpose.msra.mxu0 0.0
      %974 = vmatpush.xpose.msra.mxu0 0.0
      %975 = vmatpush.xpose.msra.mxu0 0.0
      %976 = vmatpush.xpose.msra.mxu0 0.0
      %977 = vmatpush.xpose.msra.mxu0 0.0
      %978 = vmatpush.xpose.msra.mxu0 0.0
      %979 = vmatpush.xpose.msra.mxu0 0.0
      %980 = vmatpush.xpose.msra.mxu0 0.0
      %981 = vmatpush.xpose.msra.mxu0 0.0
      %982 = vmatpush.xpose.msra.mxu0 0.0
      %983 = vmatpush.xpose.msra.mxu0 0.0
      %984 = vmatpush.xpose.msra.mxu0 0.0
      %985 = vmatpush.xpose.msra.mxu0 0.0
      %986 = vmatpush.xpose.msra.mxu0 %v969
      %987 = vmatmul.f32.gmra.mxu0 %v967
      %v988 = vpop.f32.mrf.mxu0
      %v989 = vadd.f32 %v963, %v988
      %990 = vdwg.mxu0
      %v991 = vsel %vm689, %v989, -inf
      %992 = vmax.xlane.f32.xlu0 %v991
      %v993 = vpop.xlane.xlu0 %992
      %v994 = vsub.f32 %v989, %v993
      %v995 = vmul.f32 %v994, 1.442695
      %v996 = vpow.pop %v995
      %v997 = vsel %vm689, %v996, 0.0
      %998 = vadd.xlane.f32.xlu0 %v997
      %v999 = vpop.xlane.xlu0 %998
      %v1000 = vrcp.pop %v999
      %v1001 = vmul.f32 %v996, %v1000
      %1002 = vrot.lane.b32.xlu0 %v677, 64
      %v1003 = vpop.permute.xlu0 %1002
      %v1006 = vsel %vm689, %v1001, 0
      %1008 = vmatpush.msra.mxu0 0.0
      %1009 = vmatpush.msra.mxu0 0.0
      %1010 = vmatpush.msra.mxu0 0.0
      %1011 = vmatpush.msra.mxu0 0.0
      %1012 = vmatpush.msra.mxu0 0.0
      %1013 = vmatpush.msra.mxu0 0.0
      %1014 = vmatpush.msra.mxu0 0.0
      %1015 = vmatpush.msra.mxu0 0.0
      %1016 = vmatpush.msra.mxu0 0.0
      %1017 = vmatpush.msra.mxu0 0.0
      %1018 = vmatpush.msra.mxu0 0.0
      %1019 = vmatpush.msra.mxu0 0.0
      %1020 = vmatpush.msra.mxu0 0.0
      %1021 = vmatpush.msra.mxu0 0.0
      %1022 = vmatpush.msra.mxu0 0.0
      %1023 = vmatpush.msra.mxu0 %v1003
      %1024 = vmatmul.f32.gmra.mxu0 %v1006
      %v1025 = vpop.f32.mrf.mxu0
      %v1026 = vadd.f32 0.0, %v1025
      %1027 = vdwg.mxu0
      %1028 = vrot.lane.b32.xlu0 %v677, 120
      %v1029 = vpop.permute.xlu0 %1028
      %1030 = vrot.lane.b32.xlu0 %v677, 88
      %v1031 = vpop.permute.xlu0 %1030
      %v1032 = vsel %vm689, %v1029, 0
      %v1034 = vsel %vm689, %v1031, 0
      %1036 = vmatpush.xpose.msra.mxu0 0.0
      %1037 = vmatpush.xpose.msra.mxu0 0.0
      %1038 = vmatpush.xpose.msra.mxu0 0.0
      %1039 = vmatpush.xpose.msra.mxu0 0.0
      %1040 = vmatpush.xpose.msra.mxu0 0.0
      %1041 = vmatpush.xpose.msra.mxu0 0.0
      %1042 = vmatpush.xpose.msra.mxu0 0.0
      %1043 = vmatpush.xpose.msra.mxu0 0.0
      %1044 = vmatpush.xpose.msra.mxu0 0.0
      %1045 = vmatpush.xpose.msra.mxu0 0.0
      %1046 = vmatpush.xpose.msra.mxu0 0.0
      %1047 = vmatpush.xpose.msra.mxu0 0.0
      %1048 = vmatpush.xpose.msra.mxu0 0.0
      %1049 = vmatpush.xpose.msra.mxu0 0.0
      %1050 = vmatpush.xpose.msra.mxu0 0.0
      %1051 = vmatpush.xpose.msra.mxu0 %v1034
      %1052 = vmatmul.f32.gmra.mxu0 %v1032
      %v1053 = vpop.f32.mrf.mxu0
      %v1054 = vadd.f32 %v963, %v1053
      %1055 = vdwg.mxu0
      %v1056 = vsel %vm689, %v1054, -inf
      %1057 = vmax.xlane.f32.xlu0 %v1056
      %v1058 = vpop.xlane.xlu0 %1057
      %v1059 = vsub.f32 %v1054, %v1058
      %v1060 = vmul.f32 %v1059, 1.442695
      %v1061 = vpow.pop %v1060
      %v1062 = vsel %vm689, %v1061, 0.0
      %1063 = vadd.xlane.f32.xlu0 %v1062
      %v1064 = vpop.xlane.xlu0 %1063
      %v1065 = vrcp.pop %v1064
      %v1066 = vmul.f32 %v1061, %v1065
      %1067 = vrot.lane.b32.xlu0 %v677, 56
      %v1068 = vpop.permute.xlu0 %1067
      %v1071 = vsel %vm689, %v1066, 0
      %1073 = vmatpush.msra.mxu0 0.0
      %1074 = vmatpush.msra.mxu0 0.0
      %1075 = vmatpush.msra.mxu0 0.0
      %1076 = vmatpush.msra.mxu0 0.0
      %1077 = vmatpush.msra.mxu0 0.0
      %1078 = vmatpush.msra.mxu0 0.0
      %1079 = vmatpush.msra.mxu0 0.0
      %1080 = vmatpush.msra.mxu0 0.0
      %1081 = vmatpush.msra.mxu0 0.0
      %1082 = vmatpush.msra.mxu0 0.0
      %1083 = vmatpush.msra.mxu0 0.0
      %1084 = vmatpush.msra.mxu0 0.0
      %1085 = vmatpush.msra.mxu0 0.0
      %1086 = vmatpush.msra.mxu0 0.0
      %1087 = vmatpush.msra.mxu0 0.0
      %1088 = vmatpush.msra.mxu0 %v1068
      %1089 = vmatmul.f32.gmra.mxu0 %v1071
      %v1090 = vpop.f32.mrf.mxu0
      %v1091 = vadd.f32 0.0, %v1090
      %1092 = vdwg.mxu0
      %1093 = vrot.lane.b32.xlu0 %v677, 112
      %v1094 = vpop.permute.xlu0 %1093
      %1095 = vrot.lane.b32.xlu0 %v677, 80
      %v1096 = vpop.permute.xlu0 %1095
      %v1097 = vsel %vm689, %v1094, 0
      %v1099 = vsel %vm689, %v1096, 0
      %1101 = vmatpush.xpose.msra.mxu0 0.0
      %1102 = vmatpush.xpose.msra.mxu0 0.0
      %1103 = vmatpush.xpose.msra.mxu0 0.0
      %1104 = vmatpush.xpose.msra.mxu0 0.0
      %1105 = vmatpush.xpose.msra.mxu0 0.0
      %1106 = vmatpush.xpose.msra.mxu0 0.0
      %1107 = vmatpush.xpose.msra.mxu0 0.0
      %1108 = vmatpush.xpose.msra.mxu0 0.0
      %1109 = vmatpush.xpose.msra.mxu0 0.0
      %1110 = vmatpush.xpose.msra.mxu0 0.0
      %1111 = vmatpush.xpose.msra.mxu0 0.0
      %1112 = vmatpush.xpose.msra.mxu0 0.0
      %1113 = vmatpush.xpose.msra.mxu0 0.0
      %1114 = vmatpush.xpose.msra.mxu0 0.0
      %1115 = vmatpush.xpose.msra.mxu0 0.0
      %1116 = vmatpush.xpose.msra.mxu0 %v1099
      %1117 = vmatmul.f32.gmra.mxu0 %v1097
      %v1118 = vpop.f32.mrf.mxu0
      %v1119 = vadd.f32 %v963, %v1118
      %1120 = vdwg.mxu0
      %v1121 = vsel %vm689, %v1119, -inf
      %1122 = vmax.xlane.f32.xlu0 %v1121
      %v1123 = vpop.xlane.xlu0 %1122
      %v1124 = vsub.f32 %v1119, %v1123
      %v1125 = vmul.f32 %v1124, 1.442695
      %v1126 = vpow.pop %v1125
      %v1127 = vsel %vm689, %v1126, 0.0
      %1128 = vadd.xlane.f32.xlu0 %v1127
      %v1129 = vpop.xlane.xlu0 %1128
      %v1130 = vrcp.pop %v1129
      %v1131 = vmul.f32 %v1126, %v1130
      %1132 = vrot.lane.b32.xlu0 %v677, 48
      %v1133 = vpop.permute.xlu0 %1132
      %v1136 = vsel %vm689, %v1131, 0
      %1138 = vmatpush.msra.mxu0 0.0
      %1139 = vmatpush.msra.mxu0 0.0
      %1140 = vmatpush.msra.mxu0 0.0
      %1141 = vmatpush.msra.mxu0 0.0
      %1142 = vmatpush.msra.mxu0 0.0
      %1143 = vmatpush.msra.mxu0 0.0
      %1144 = vmatpush.msra.mxu0 0.0
      %1145 = vmatpush.msra.mxu0 0.0
      %1146 = vmatpush.msra.mxu0 0.0
      %1147 = vmatpush.msra.mxu0 0.0
      %1148 = vmatpush.msra.mxu0 0.0
      %1149 = vmatpush.msra.mxu0 0.0
      %1150 = vmatpush.msra.mxu0 0.0
      %1151 = vmatpush.msra.mxu0 0.0
      %1152 = vmatpush.msra.mxu0 0.0
      %1153 = vmatpush.msra.mxu0 %v1133
      %1154 = vmatmul.f32.gmra.mxu0 %v1136
      %v1155 = vpop.f32.mrf.mxu0
      %v1156 = vadd.f32 0.0, %v1155
      %1157 = vdwg.mxu0
      %1158 = vrot.lane.b32.xlu0 %v677, 104
      %v1159 = vpop.permute.xlu0 %1158
      %1160 = vrot.lane.b32.xlu0 %v677, 72
      %v1161 = vpop.permute.xlu0 %1160
      %v1162 = vsel %vm689, %v1159, 0
      %v1164 = vsel %vm689, %v1161, 0
      %1166 = vmatpush.xpose.msra.mxu0 0.0
      %1167 = vmatpush.xpose.msra.mxu0 0.0
      %1168 = vmatpush.xpose.msra.mxu0 0.0
      %1169 = vmatpush.xpose.msra.mxu0 0.0
      %1170 = vmatpush.xpose.msra.mxu0 0.0
      %1171 = vmatpush.xpose.msra.mxu0 0.0
      %1172 = vmatpush.xpose.msra.mxu0 0.0
      %1173 = vmatpush.xpose.msra.mxu0 0.0
      %1174 = vmatpush.xpose.msra.mxu0 0.0
      %1175 = vmatpush.xpose.msra.mxu0 0.0
      %1176 = vmatpush.xpose.msra.mxu0 0.0
      %1177 = vmatpush.xpose.msra.mxu0 0.0
      %1178 = vmatpush.xpose.msra.mxu0 0.0
      %1179 = vmatpush.xpose.msra.mxu0 0.0
      %1180 = vmatpush.xpose.msra.mxu0 0.0
      %1181 = vmatpush.xpose.msra.mxu0 %v1164
      %1182 = vmatmul.f32.gmra.mxu0 %v1162
      %v1183 = vpop.f32.mrf.mxu0
      %v1184 = vadd.f32 %v963, %v1183
      %1185 = vdwg.mxu0
      %v1186 = vsel %vm689, %v1184, -inf
      %1187 = vmax.xlane.f32.xlu0 %v1186
      %v1188 = vpop.xlane.xlu0 %1187
      %v1189 = vsub.f32 %v1184, %v1188
      %v1190 = vmul.f32 %v1189, 1.442695
      %v1191 = vpow.pop %v1190
      %v1192 = vsel %vm689, %v1191, 0.0
      %1193 = vadd.xlane.f32.xlu0 %v1192
      %v1194 = vpop.xlane.xlu0 %1193
      %v1195 = vrcp.pop %v1194
      %v1196 = vmul.f32 %v1191, %v1195
      %1197 = vrot.lane.b32.xlu0 %v677, 40
      %v1198 = vpop.permute.xlu0 %1197
      %v1201 = vsel %vm689, %v1196, 0
      %1203 = vmatpush.msra.mxu0 0.0
      %1204 = vmatpush.msra.mxu0 0.0
      %1205 = vmatpush.msra.mxu0 0.0
      %1206 = vmatpush.msra.mxu0 0.0
      %1207 = vmatpush.msra.mxu0 0.0
      %1208 = vmatpush.msra.mxu0 0.0
      %1209 = vmatpush.msra.mxu0 0.0
      %1210 = vmatpush.msra.mxu0 0.0
      %1211 = vmatpush.msra.mxu0 0.0
      %1212 = vmatpush.msra.mxu0 0.0
      %1213 = vmatpush.msra.mxu0 0.0
      %1214 = vmatpush.msra.mxu0 0.0
      %1215 = vmatpush.msra.mxu0 0.0
      %1216 = vmatpush.msra.mxu0 0.0
      %1217 = vmatpush.msra.mxu0 0.0
      %1218 = vmatpush.msra.mxu0 %v1198
      %1219 = vmatmul.f32.gmra.mxu0 %v1201
      %v1220 = vpop.f32.mrf.mxu0
      %v1221 = vadd.f32 0.0, %v1220
      %1222 = vdwg.mxu0
      %1224 = vrot.lane.b32.xlu0 %v1091, 8
      %v1225 = vpop.permute.xlu0 %1224
      %1228 = vrot.lane.b32.xlu0 %v1156, 16
      %v1229 = vpop.permute.xlu0 %1228
      %1232 = vrot.lane.b32.xlu0 %v1221, 24
      %v1233 = vpop.permute.xlu0 %1232
      %v1235 = vsel %vm689, %v1026, %v1225
      %v1236 = vsel %vm959, %v1235, %v1229
      %v1237 = vsel %vm961, %v1236, %v1233
      %v1238 = vpack.c.bf16 %v1237, %v962
      %v1240 = vperm.slane %v684, 0
      %v1246 = vunpack.c.l.b16 %v680
      %v1247 = vunpack.c.l.b16 %v681
      %v1248 = vunpack.c.l.b16 %v682
      %v1249 = vunpack.c.l.b16 %v683
      %v1250 = vpack.c.b16 %v1247, %v1246
      %v1251 = vpack.c.b16 %v1249, %v1248
      %v1255 = vsel %vm661, %v1238, 0
      %1257 = vmatpush.bf16.msra.mxu0 0
      %1258 = vmatpush.bf16.msra.mxu0 0
      %1259 = vmatpush.bf16.msra.mxu0 0
      %1260 = vmatpush.bf16.msra.mxu0 0
      %1261 = vmatpush.bf16.msra.mxu0 0
      %1262 = vmatpush.bf16.msra.mxu0 0
      %1263 = vmatpush.bf16.msra.mxu0 %v1251
      %1264 = vmatpush.bf16.msra.mxu0 %v1250
      %1265 = vmatmul.bf16.gmra.mxu0 %v1255
      %v1266 = vpop.f32.mrf.mxu0
      %v1267 = vadd.f32 %v1240, %v1266
      %v1268 = vpop.f32.mrf.mxu0
      %v1269 = vadd.f32 %v1240, %v1268
      %1270 = vdwg.mxu0
      %v1271 = vadd.f32 %v638, %v1267
      %v1272 = vadd.f32 %v639, %v1269
      %v1273 = vld [vmem:[%s601] sm:$0x1]
      %v1274 = vld [vmem:[%s604] sm:$0x1]
      %v1275 = vsel %vm661, %v1271, 0.0
      %1276 = vadd.xlane.f32.xlu0 %v1275
      %v1277 = vpop.xlane.xlu0 %1276
      %v1278 = vsel %vm661, %v1272, 0.0
      %1279 = vadd.xlane.f32.xlu0 %v1278
      %v1280 = vpop.xlane.xlu0 %1279
      %v1281 = vrcp.pop 32.0
      %v1282 = vmul.f32 32.0, %v1281
      %v1283 = vsub.f32 1.0, %v1282
      %v1284 = vmul.f32 %v1281, %v1283
      %v1285 = vadd.f32 %v1281, %v1284
      %vm1286 = vweird.f32 %v1281
      %v1287 = vsel %vm1286, %v1281, %v1285
      %v1288 = vmul.f32 %v1277, %v1287
      %v1289 = vmul.f32 %v1280, %v1287
      %v1290 = vsub.f32 %v1271, %v1288
      %v1291 = vsub.f32 %v1272, %v1289
      %v1292 = vmul.f32 %v1290, %v1290
      %v1293 = vmul.f32 %v1291, %v1291
      %v1294 = vsel %vm661, %v1292, 0.0
      %1295 = vadd.xlane.f32.xlu0 %v1294
      %v1296 = vpop.xlane.xlu0 %1295
      %v1297 = vsel %vm661, %v1293, 0.0
      %1298 = vadd.xlane.f32.xlu0 %v1297
      %v1299 = vpop.xlane.xlu0 %1298
      %v1300 = vmul.f32 %v1296, %v1287
      %v1301 = vmul.f32 %v1299, %v1287
      %v1302 = vadd.f32 %v1300, 1e-05
      %v1303 = vadd.f32 %v1301, 1e-05
      %v1304 = vrsqrt.pop %v1302
      %v1305 = vmul.f32 %v1304, %v1302
      %v1306 = vmul.f32 %v1305, %v1304
      %v1307 = vmul.f32 0.5, %v1306
      %v1308 = vsub.f32 1.5, %v1307
      %v1309 = vmul.f32 %v1304, %v1308
      %vm1310 = vweird.f32 %v1302
      %vm1311 = vweird.f32 %v1304
      %vm1312 = vmor %vm1310, %vm1311
      %v1313 = vsel %vm1312, %v1304, %v1309
      %v1314 = vrsqrt.pop %v1303
      %v1315 = vmul.f32 %v1314, %v1303
      %v1316 = vmul.f32 %v1315, %v1314
      %v1317 = vmul.f32 0.5, %v1316
      %v1318 = vsub.f32 1.5, %v1317
      %v1319 = vmul.f32 %v1314, %v1318
      %vm1320 = vweird.f32 %v1303
      %vm1321 = vweird.f32 %v1314
      %vm1322 = vmor %vm1320, %vm1321
      %v1323 = vsel %vm1322, %v1314, %v1319
      %v1324 = vmul.f32 %v1290, %v1313
      %v1325 = vmul.f32 %v1291, %v1323
      %v1327 = vperm.slane %v1273, 0
      %v1329 = vmul.f32 %v1324, %v1327
      %v1330 = vmul.f32 %v1325, %v1327
      %v1332 = vperm.slane %v1274, 0
      %v1334 = vadd.f32 %v1329, %v1332
      %v1335 = vadd.f32 %v1330, %v1332
      %v1336 = vld [vmem:[%s609] sm:$0xff]
      %v1337 = vld [vmem:[%s609 + $0x8] sm:$0xff]
      %v1338 = vld [vmem:[%s609 + $0x10] sm:$0xff]
      %v1339 = vld [vmem:[%s609 + $0x18] sm:$0xff]
      %v1340 = vld [vmem:[%s609 + $0x20] sm:$0xff]
      %v1341 = vld [vmem:[%s609 + $0x28] sm:$0xff]
      %v1342 = vld [vmem:[%s609 + $0x30] sm:$0xff]
      %v1343 = vld [vmem:[%s609 + $0x38] sm:$0xff]
      %v1344 = vld [vmem:[%s609 + $0x40] sm:$0xff]
      %v1345 = vld [vmem:[%s609 + $0x48] sm:$0xff]
      %v1346 = vld [vmem:[%s609 + $0x50] sm:$0xff]
      %v1347 = vld [vmem:[%s609 + $0x58] sm:$0xff]
      %v1348 = vld [vmem:[%s609 + $0x60] sm:$0xff]
      %v1349 = vld [vmem:[%s609 + $0x68] sm:$0xff]
      %v1350 = vld [vmem:[%s609 + $0x70] sm:$0xff]
      %v1351 = vld [vmem:[%s609 + $0x78] sm:$0xff]
      %v1352 = vld [vmem:[%s609 + $0x80] sm:$0xff]
      %v1353 = vld [vmem:[%s609 + $0x88] sm:$0xff]
      %v1354 = vld [vmem:[%s609 + $0x90] sm:$0xff]
      %v1355 = vld [vmem:[%s609 + $0x98] sm:$0xff]
      %v1356 = vld [vmem:[%s609 + $0xa0] sm:$0xff]
      %v1357 = vld [vmem:[%s609 + $0xa8] sm:$0xff]
      %v1358 = vld [vmem:[%s609 + $0xb0] sm:$0xff]
      %v1359 = vld [vmem:[%s609 + $0xb8] sm:$0xff]
      %v1360 = vld [vmem:[%s609 + $0xc0] sm:$0xff]
      %v1361 = vld [vmem:[%s609 + $0xc8] sm:$0xff]
      %v1362 = vld [vmem:[%s609 + $0xd0] sm:$0xff]
      %v1363 = vld [vmem:[%s609 + $0xd8] sm:$0xff]
      %v1364 = vld [vmem:[%s609 + $0xe0] sm:$0xff]
      %v1365 = vld [vmem:[%s609 + $0xe8] sm:$0xff]
      %v1366 = vld [vmem:[%s609 + $0xf0] sm:$0xff]
      %v1367 = vld [vmem:[%s609 + $0xf8] sm:$0xff]
      %v1368 = vld [vmem:[%s613] sm:$0xff]
      %v1369 = vld [vmem:[%s613 + $0x8] sm:$0xff]
      %v1370 = vld [vmem:[%s618] sm:$0xf]
      %v1371 = vld [vmem:[%s618 + $0x4] sm:$0xf]
      %v1372 = vld [vmem:[%s618 + $0x8] sm:$0xf]
      %v1373 = vld [vmem:[%s618 + $0xc] sm:$0xf]
      %v1374 = vld [vmem:[%s618 + $0x10] sm:$0xf]
      %v1375 = vld [vmem:[%s618 + $0x14] sm:$0xf]
      %v1376 = vld [vmem:[%s618 + $0x18] sm:$0xf]
      %v1377 = vld [vmem:[%s618 + $0x1c] sm:$0xf]
      %v1378 = vld [vmem:[%s618 + $0x20] sm:$0xf]
      %v1379 = vld [vmem:[%s618 + $0x24] sm:$0xf]
      %v1380 = vld [vmem:[%s618 + $0x28] sm:$0xf]
      %v1381 = vld [vmem:[%s618 + $0x2c] sm:$0xf]
      %v1382 = vld [vmem:[%s618 + $0x30] sm:$0xf]
      %v1383 = vld [vmem:[%s618 + $0x34] sm:$0xf]
      %v1384 = vld [vmem:[%s618 + $0x38] sm:$0xf]
      %v1385 = vld [vmem:[%s618 + $0x3c] sm:$0xf]
      %v1386 = vld [vmem:[%s618 + $0x40] sm:$0xf]
      %v1387 = vld [vmem:[%s618 + $0x44] sm:$0xf]
      %v1388 = vld [vmem:[%s618 + $0x48] sm:$0xf]
      %v1389 = vld [vmem:[%s618 + $0x4c] sm:$0xf]
      %v1390 = vld [vmem:[%s618 + $0x50] sm:$0xf]
      %v1391 = vld [vmem:[%s618 + $0x54] sm:$0xf]
      %v1392 = vld [vmem:[%s618 + $0x58] sm:$0xf]
      %v1393 = vld [vmem:[%s618 + $0x5c] sm:$0xf]
      %v1394 = vld [vmem:[%s618 + $0x60] sm:$0xf]
      %v1395 = vld [vmem:[%s618 + $0x64] sm:$0xf]
      %v1396 = vld [vmem:[%s618 + $0x68] sm:$0xf]
      %v1397 = vld [vmem:[%s618 + $0x6c] sm:$0xf]
      %v1398 = vld [vmem:[%s618 + $0x70] sm:$0xf]
      %v1399 = vld [vmem:[%s618 + $0x74] sm:$0xf]
      %v1400 = vld [vmem:[%s618 + $0x78] sm:$0xf]
      %v1401 = vld [vmem:[%s618 + $0x7c] sm:$0xf]
      %v1402 = vld [vmem:[%s618 + $0x80] sm:$0xf]
      %v1403 = vld [vmem:[%s618 + $0x84] sm:$0xf]
      %v1404 = vld [vmem:[%s618 + $0x88] sm:$0xf]
      %v1405 = vld [vmem:[%s618 + $0x8c] sm:$0xf]
      %v1406 = vld [vmem:[%s618 + $0x90] sm:$0xf]
      %v1407 = vld [vmem:[%s618 + $0x94] sm:$0xf]
      %v1408 = vld [vmem:[%s618 + $0x98] sm:$0xf]
      %v1409 = vld [vmem:[%s618 + $0x9c] sm:$0xf]
      %v1410 = vld [vmem:[%s618 + $0xa0] sm:$0xf]
      %v1411 = vld [vmem:[%s618 + $0xa4] sm:$0xf]
      %v1412 = vld [vmem:[%s618 + $0xa8] sm:$0xf]
      %v1413 = vld [vmem:[%s618 + $0xac] sm:$0xf]
      %v1414 = vld [vmem:[%s618 + $0xb0] sm:$0xf]
      %v1415 = vld [vmem:[%s618 + $0xb4] sm:$0xf]
      %v1416 = vld [vmem:[%s618 + $0xb8] sm:$0xf]
      %v1417 = vld [vmem:[%s618 + $0xbc] sm:$0xf]
      %v1418 = vld [vmem:[%s618 + $0xc0] sm:$0xf]
      %v1419 = vld [vmem:[%s618 + $0xc4] sm:$0xf]
      %v1420 = vld [vmem:[%s618 + $0xc8] sm:$0xf]
      %v1421 = vld [vmem:[%s618 + $0xcc] sm:$0xf]
      %v1422 = vld [vmem:[%s618 + $0xd0] sm:$0xf]
      %v1423 = vld [vmem:[%s618 + $0xd4] sm:$0xf]
      %v1424 = vld [vmem:[%s618 + $0xd8] sm:$0xf]
      %v1425 = vld [vmem:[%s618 + $0xdc] sm:$0xf]
      %v1426 = vld [vmem:[%s618 + $0xe0] sm:$0xf]
      %v1427 = vld [vmem:[%s618 + $0xe4] sm:$0xf]
      %v1428 = vld [vmem:[%s618 + $0xe8] sm:$0xf]
      %v1429 = vld [vmem:[%s618 + $0xec] sm:$0xf]
      %v1430 = vld [vmem:[%s618 + $0xf0] sm:$0xf]
      %v1431 = vld [vmem:[%s618 + $0xf4] sm:$0xf]
      %v1432 = vld [vmem:[%s618 + $0xf8] sm:$0xf]
      %v1433 = vld [vmem:[%s618 + $0xfc] sm:$0xf]
      %v1434 = vld [vmem:[%s618 + $0x100] sm:$0xf]
      %v1435 = vld [vmem:[%s618 + $0x104] sm:$0xf]
      %v1436 = vld [vmem:[%s618 + $0x108] sm:$0xf]
      %v1437 = vld [vmem:[%s618 + $0x10c] sm:$0xf]
      %v1438 = vld [vmem:[%s618 + $0x110] sm:$0xf]
      %v1439 = vld [vmem:[%s618 + $0x114] sm:$0xf]
      %v1440 = vld [vmem:[%s618 + $0x118] sm:$0xf]
      %v1441 = vld [vmem:[%s618 + $0x11c] sm:$0xf]
      %v1442 = vld [vmem:[%s618 + $0x120] sm:$0xf]
      %v1443 = vld [vmem:[%s618 + $0x124] sm:$0xf]
      %v1444 = vld [vmem:[%s618 + $0x128] sm:$0xf]
      %v1445 = vld [vmem:[%s618 + $0x12c] sm:$0xf]
      %v1446 = vld [vmem:[%s618 + $0x130] sm:$0xf]
      %v1447 = vld [vmem:[%s618 + $0x134] sm:$0xf]
      %v1448 = vld [vmem:[%s618 + $0x138] sm:$0xf]
      %v1449 = vld [vmem:[%s618 + $0x13c] sm:$0xf]
      %v1450 = vld [vmem:[%s618 + $0x140] sm:$0xf]
      %v1451 = vld [vmem:[%s618 + $0x144] sm:$0xf]
      %v1452 = vld [vmem:[%s618 + $0x148] sm:$0xf]
      %v1453 = vld [vmem:[%s618 + $0x14c] sm:$0xf]
      %v1454 = vld [vmem:[%s618 + $0x150] sm:$0xf]
      %v1455 = vld [vmem:[%s618 + $0x154] sm:$0xf]
      %v1456 = vld [vmem:[%s618 + $0x158] sm:$0xf]
      %v1457 = vld [vmem:[%s618 + $0x15c] sm:$0xf]
      %v1458 = vld [vmem:[%s618 + $0x160] sm:$0xf]
      %v1459 = vld [vmem:[%s618 + $0x164] sm:$0xf]
      %v1460 = vld [vmem:[%s618 + $0x168] sm:$0xf]
      %v1461 = vld [vmem:[%s618 + $0x16c] sm:$0xf]
      %v1462 = vld [vmem:[%s618 + $0x170] sm:$0xf]
      %v1463 = vld [vmem:[%s618 + $0x174] sm:$0xf]
      %v1464 = vld [vmem:[%s618 + $0x178] sm:$0xf]
      %v1465 = vld [vmem:[%s618 + $0x17c] sm:$0xf]
      %v1466 = vld [vmem:[%s618 + $0x180] sm:$0xf]
      %v1467 = vld [vmem:[%s618 + $0x184] sm:$0xf]
      %v1468 = vld [vmem:[%s618 + $0x188] sm:$0xf]
      %v1469 = vld [vmem:[%s618 + $0x18c] sm:$0xf]
      %v1470 = vld [vmem:[%s618 + $0x190] sm:$0xf]
      %v1471 = vld [vmem:[%s618 + $0x194] sm:$0xf]
      %v1472 = vld [vmem:[%s618 + $0x198] sm:$0xf]
      %v1473 = vld [vmem:[%s618 + $0x19c] sm:$0xf]
      %v1474 = vld [vmem:[%s618 + $0x1a0] sm:$0xf]
      %v1475 = vld [vmem:[%s618 + $0x1a4] sm:$0xf]
      %v1476 = vld [vmem:[%s618 + $0x1a8] sm:$0xf]
      %v1477 = vld [vmem:[%s618 + $0x1ac] sm:$0xf]
      %v1478 = vld [vmem:[%s618 + $0x1b0] sm:$0xf]
      %v1479 = vld [vmem:[%s618 + $0x1b4] sm:$0xf]
      %v1480 = vld [vmem:[%s618 + $0x1b8] sm:$0xf]
      %v1481 = vld [vmem:[%s618 + $0x1bc] sm:$0xf]
      %v1482 = vld [vmem:[%s618 + $0x1c0] sm:$0xf]
      %v1483 = vld [vmem:[%s618 + $0x1c4] sm:$0xf]
      %v1484 = vld [vmem:[%s618 + $0x1c8] sm:$0xf]
      %v1485 = vld [vmem:[%s618 + $0x1cc] sm:$0xf]
      %v1486 = vld [vmem:[%s618 + $0x1d0] sm:$0xf]
      %v1487 = vld [vmem:[%s618 + $0x1d4] sm:$0xf]
      %v1488 = vld [vmem:[%s618 + $0x1d8] sm:$0xf]
      %v1489 = vld [vmem:[%s618 + $0x1dc] sm:$0xf]
      %v1490 = vld [vmem:[%s618 + $0x1e0] sm:$0xf]
      %v1491 = vld [vmem:[%s618 + $0x1e4] sm:$0xf]
      %v1492 = vld [vmem:[%s618 + $0x1e8] sm:$0xf]
      %v1493 = vld [vmem:[%s618 + $0x1ec] sm:$0xf]
      %v1494 = vld [vmem:[%s618 + $0x1f0] sm:$0xf]
      %v1495 = vld [vmem:[%s618 + $0x1f4] sm:$0xf]
      %v1496 = vld [vmem:[%s618 + $0x1f8] sm:$0xf]
      %v1497 = vld [vmem:[%s618 + $0x1fc] sm:$0xf]
      %v1498 = vld [vmem:[%s618 + $0x200] sm:$0xf]
      %v1499 = vld [vmem:[%s618 + $0x204] sm:$0xf]
      %v1500 = vld [vmem:[%s618 + $0x208] sm:$0xf]
      %v1501 = vld [vmem:[%s618 + $0x20c] sm:$0xf]
      %v1502 = vld [vmem:[%s618 + $0x210] sm:$0xf]
      %v1503 = vld [vmem:[%s618 + $0x214] sm:$0xf]
      %v1504 = vld [vmem:[%s618 + $0x218] sm:$0xf]
      %v1505 = vld [vmem:[%s618 + $0x21c] sm:$0xf]
      %v1506 = vld [vmem:[%s618 + $0x220] sm:$0xf]
      %v1507 = vld [vmem:[%s618 + $0x224] sm:$0xf]
      %v1508 = vld [vmem:[%s618 + $0x228] sm:$0xf]
      %v1509 = vld [vmem:[%s618 + $0x22c] sm:$0xf]
      %v1510 = vld [vmem:[%s618 + $0x230] sm:$0xf]
      %v1511 = vld [vmem:[%s618 + $0x234] sm:$0xf]
      %v1512 = vld [vmem:[%s618 + $0x238] sm:$0xf]
      %v1513 = vld [vmem:[%s618 + $0x23c] sm:$0xf]
      %v1514 = vld [vmem:[%s618 + $0x240] sm:$0xf]
      %v1515 = vld [vmem:[%s618 + $0x244] sm:$0xf]
      %v1516 = vld [vmem:[%s618 + $0x248] sm:$0xf]
      %v1517 = vld [vmem:[%s618 + $0x24c] sm:$0xf]
      %v1518 = vld [vmem:[%s618 + $0x250] sm:$0xf]
      %v1519 = vld [vmem:[%s618 + $0x254] sm:$0xf]
      %v1520 = vld [vmem:[%s618 + $0x258] sm:$0xf]
      %v1521 = vld [vmem:[%s618 + $0x25c] sm:$0xf]
      %v1522 = vld [vmem:[%s618 + $0x260] sm:$0xf]
      %v1523 = vld [vmem:[%s618 + $0x264] sm:$0xf]
      %v1524 = vld [vmem:[%s618 + $0x268] sm:$0xf]
      %v1525 = vld [vmem:[%s618 + $0x26c] sm:$0xf]
      %v1526 = vld [vmem:[%s618 + $0x270] sm:$0xf]
      %v1527 = vld [vmem:[%s618 + $0x274] sm:$0xf]
      %v1528 = vld [vmem:[%s618 + $0x278] sm:$0xf]
      %v1529 = vld [vmem:[%s618 + $0x27c] sm:$0xf]
      %v1530 = vld [vmem:[%s618 + $0x280] sm:$0xf]
      %v1531 = vld [vmem:[%s618 + $0x284] sm:$0xf]
      %v1532 = vld [vmem:[%s618 + $0x288] sm:$0xf]
      %v1533 = vld [vmem:[%s618 + $0x28c] sm:$0xf]
      %v1534 = vld [vmem:[%s618 + $0x290] sm:$0xf]
      %v1535 = vld [vmem:[%s618 + $0x294] sm:$0xf]
      %v1536 = vld [vmem:[%s618 + $0x298] sm:$0xf]
      %v1537 = vld [vmem:[%s618 + $0x29c] sm:$0xf]
      %v1538 = vld [vmem:[%s618 + $0x2a0] sm:$0xf]
      %v1539 = vld [vmem:[%s618 + $0x2a4] sm:$0xf]
      %v1540 = vld [vmem:[%s618 + $0x2a8] sm:$0xf]
      %v1541 = vld [vmem:[%s618 + $0x2ac] sm:$0xf]
      %v1542 = vld [vmem:[%s618 + $0x2b0] sm:$0xf]
      %v1543 = vld [vmem:[%s618 + $0x2b4] sm:$0xf]
      %v1544 = vld [vmem:[%s618 + $0x2b8] sm:$0xf]
      %v1545 = vld [vmem:[%s618 + $0x2bc] sm:$0xf]
      %v1546 = vld [vmem:[%s618 + $0x2c0] sm:$0xf]
      %v1547 = vld [vmem:[%s618 + $0x2c4] sm:$0xf]
      %v1548 = vld [vmem:[%s618 + $0x2c8] sm:$0xf]
      %v1549 = vld [vmem:[%s618 + $0x2cc] sm:$0xf]
      %v1550 = vld [vmem:[%s618 + $0x2d0] sm:$0xf]
      %v1551 = vld [vmem:[%s618 + $0x2d4] sm:$0xf]
      %v1552 = vld [vmem:[%s618 + $0x2d8] sm:$0xf]
      %v1553 = vld [vmem:[%s618 + $0x2dc] sm:$0xf]
      %v1554 = vld [vmem:[%s618 + $0x2e0] sm:$0xf]
      %v1555 = vld [vmem:[%s618 + $0x2e4] sm:$0xf]
      %v1556 = vld [vmem:[%s618 + $0x2e8] sm:$0xf]
      %v1557 = vld [vmem:[%s618 + $0x2ec] sm:$0xf]
      %v1558 = vld [vmem:[%s618 + $0x2f0] sm:$0xf]
      %v1559 = vld [vmem:[%s618 + $0x2f4] sm:$0xf]
      %v1560 = vld [vmem:[%s618 + $0x2f8] sm:$0xf]
      %v1561 = vld [vmem:[%s618 + $0x2fc] sm:$0xf]
      %v1562 = vld [vmem:[%s618 + $0x300] sm:$0xf]
      %v1563 = vld [vmem:[%s618 + $0x304] sm:$0xf]
      %v1564 = vld [vmem:[%s618 + $0x308] sm:$0xf]
      %v1565 = vld [vmem:[%s618 + $0x30c] sm:$0xf]
      %v1566 = vld [vmem:[%s618 + $0x310] sm:$0xf]
      %v1567 = vld [vmem:[%s618 + $0x314] sm:$0xf]
      %v1568 = vld [vmem:[%s618 + $0x318] sm:$0xf]
      %v1569 = vld [vmem:[%s618 + $0x31c] sm:$0xf]
      %v1570 = vld [vmem:[%s618 + $0x320] sm:$0xf]
      %v1571 = vld [vmem:[%s618 + $0x324] sm:$0xf]
      %v1572 = vld [vmem:[%s618 + $0x328] sm:$0xf]
      %v1573 = vld [vmem:[%s618 + $0x32c] sm:$0xf]
      %v1574 = vld [vmem:[%s618 + $0x330] sm:$0xf]
      %v1575 = vld [vmem:[%s618 + $0x334] sm:$0xf]
      %v1576 = vld [vmem:[%s618 + $0x338] sm:$0xf]
      %v1577 = vld [vmem:[%s618 + $0x33c] sm:$0xf]
      %v1578 = vld [vmem:[%s618 + $0x340] sm:$0xf]
      %v1579 = vld [vmem:[%s618 + $0x344] sm:$0xf]
      %v1580 = vld [vmem:[%s618 + $0x348] sm:$0xf]
      %v1581 = vld [vmem:[%s618 + $0x34c] sm:$0xf]
      %v1582 = vld [vmem:[%s618 + $0x350] sm:$0xf]
      %v1583 = vld [vmem:[%s618 + $0x354] sm:$0xf]
      %v1584 = vld [vmem:[%s618 + $0x358] sm:$0xf]
      %v1585 = vld [vmem:[%s618 + $0x35c] sm:$0xf]
      %v1586 = vld [vmem:[%s618 + $0x360] sm:$0xf]
      %v1587 = vld [vmem:[%s618 + $0x364] sm:$0xf]
      %v1588 = vld [vmem:[%s618 + $0x368] sm:$0xf]
      %v1589 = vld [vmem:[%s618 + $0x36c] sm:$0xf]
      %v1590 = vld [vmem:[%s618 + $0x370] sm:$0xf]
      %v1591 = vld [vmem:[%s618 + $0x374] sm:$0xf]
      %v1592 = vld [vmem:[%s618 + $0x378] sm:$0xf]
      %v1593 = vld [vmem:[%s618 + $0x37c] sm:$0xf]
      %v1594 = vld [vmem:[%s618 + $0x380] sm:$0xf]
      %v1595 = vld [vmem:[%s618 + $0x384] sm:$0xf]
      %v1596 = vld [vmem:[%s618 + $0x388] sm:$0xf]
      %v1597 = vld [vmem:[%s618 + $0x38c] sm:$0xf]
      %v1598 = vld [vmem:[%s618 + $0x390] sm:$0xf]
      %v1599 = vld [vmem:[%s618 + $0x394] sm:$0xf]
      %v1600 = vld [vmem:[%s618 + $0x398] sm:$0xf]
      %v1601 = vld [vmem:[%s618 + $0x39c] sm:$0xf]
      %v1602 = vld [vmem:[%s618 + $0x3a0] sm:$0xf]
      %v1603 = vld [vmem:[%s618 + $0x3a4] sm:$0xf]
      %v1604 = vld [vmem:[%s618 + $0x3a8] sm:$0xf]
      %v1605 = vld [vmem:[%s618 + $0x3ac] sm:$0xf]
      %v1606 = vld [vmem:[%s618 + $0x3b0] sm:$0xf]
      %v1607 = vld [vmem:[%s618 + $0x3b4] sm:$0xf]
      %v1608 = vld [vmem:[%s618 + $0x3b8] sm:$0xf]
      %v1609 = vld [vmem:[%s618 + $0x3bc] sm:$0xf]
      %v1610 = vld [vmem:[%s618 + $0x3c0] sm:$0xf]
      %v1611 = vld [vmem:[%s618 + $0x3c4] sm:$0xf]
      %v1612 = vld [vmem:[%s618 + $0x3c8] sm:$0xf]
      %v1613 = vld [vmem:[%s618 + $0x3cc] sm:$0xf]
      %v1614 = vld [vmem:[%s618 + $0x3d0] sm:$0xf]
      %v1615 = vld [vmem:[%s618 + $0x3d4] sm:$0xf]
      %v1616 = vld [vmem:[%s618 + $0x3d8] sm:$0xf]
      %v1617 = vld [vmem:[%s618 + $0x3dc] sm:$0xf]
      %v1618 = vld [vmem:[%s618 + $0x3e0] sm:$0xf]
      %v1619 = vld [vmem:[%s618 + $0x3e4] sm:$0xf]
      %v1620 = vld [vmem:[%s618 + $0x3e8] sm:$0xf]
      %v1621 = vld [vmem:[%s618 + $0x3ec] sm:$0xf]
      %v1622 = vld [vmem:[%s618 + $0x3f0] sm:$0xf]
      %v1623 = vld [vmem:[%s618 + $0x3f4] sm:$0xf]
      %v1624 = vld [vmem:[%s618 + $0x3f8] sm:$0xf]
      %v1625 = vld [vmem:[%s618 + $0x3fc] sm:$0xf]
      %v1626 = vld [vmem:[%s621] sm:$0x1]
      %v1627 = vpack.c.bf16 %v1335, %v1334
      %v1630 = vperm.slane %v1368, 0
      %v1631 = vperm.slane %v1368, 1
      %v1632 = vperm.slane %v1368, 2
      %v1633 = vperm.slane %v1368, 3
      %v1634 = vperm.slane %v1368, 4
      %v1635 = vperm.slane %v1368, 5
      %v1636 = vperm.slane %v1368, 6
      %v1637 = vperm.slane %v1368, 7
      %v1638 = vperm.slane %v1369, 0
      %v1639 = vperm.slane %v1369, 1
      %v1640 = vperm.slane %v1369, 2
      %v1641 = vperm.slane %v1369, 3
      %v1642 = vperm.slane %v1369, 4
      %v1643 = vperm.slane %v1369, 5
      %v1644 = vperm.slane %v1369, 6
      %v1645 = vperm.slane %v1369, 7
      %v1694 = vunpack.c.l.b16 %v1336
      %v1695 = vunpack.c.h.b16 %v1336
      %v1696 = vunpack.c.l.b16 %v1337
      %v1697 = vunpack.c.h.b16 %v1337
      %v1698 = vunpack.c.l.b16 %v1338
      %v1699 = vunpack.c.h.b16 %v1338
      %v1700 = vunpack.c.l.b16 %v1339
      %v1701 = vunpack.c.h.b16 %v1339
      %v1702 = vunpack.c.l.b16 %v1340
      %v1703 = vunpack.c.h.b16 %v1340
      %v1704 = vunpack.c.l.b16 %v1341
      %v1705 = vunpack.c.h.b16 %v1341
      %v1706 = vunpack.c.l.b16 %v1342
      %v1707 = vunpack.c.h.b16 %v1342
      %v1708 = vunpack.c.l.b16 %v1343
      %v1709 = vunpack.c.h.b16 %v1343
      %v1710 = vunpack.c.l.b16 %v1344
      %v1711 = vunpack.c.h.b16 %v1344
      %v1712 = vunpack.c.l.b16 %v1345
      %v1713 = vunpack.c.h.b16 %v1345
      %v1714 = vunpack.c.l.b16 %v1346
      %v1715 = vunpack.c.h.b16 %v1346
      %v1716 = vunpack.c.l.b16 %v1347
      %v1717 = vunpack.c.h.b16 %v1347
      %v1718 = vunpack.c.l.b16 %v1348
      %v1719 = vunpack.c.h.b16 %v1348
      %v1720 = vunpack.c.l.b16 %v1349
      %v1721 = vunpack.c.h.b16 %v1349
      %v1722 = vunpack.c.l.b16 %v1350
      %v1723 = vunpack.c.h.b16 %v1350
      %v1724 = vunpack.c.l.b16 %v1351
      %v1725 = vunpack.c.h.b16 %v1351
      %v1726 = vunpack.c.l.b16 %v1352
      %v1727 = vunpack.c.h.b16 %v1352
      %v1728 = vunpack.c.l.b16 %v1353
      %v1729 = vunpack.c.h.b16 %v1353
      %v1730 = vunpack.c.l.b16 %v1354
      %v1731 = vunpack.c.h.b16 %v1354
      %v1732 = vunpack.c.l.b16 %v1355
      %v1733 = vunpack.c.h.b16 %v1355
      %v1734 = vunpack.c.l.b16 %v1356
      %v1735 = vunpack.c.h.b16 %v1356
      %v1736 = vunpack.c.l.b16 %v1357
      %v1737 = vunpack.c.h.b16 %v1357
      %v1738 = vunpack.c.l.b16 %v1358
      %v1739 = vunpack.c.h.b16 %v1358
      %v1740 = vunpack.c.l.b16 %v1359
      %v1741 = vunpack.c.h.b16 %v1359
      %v1742 = vunpack.c.l.b16 %v1360
      %v1743 = vunpack.c.h.b16 %v1360
      %v1744 = vunpack.c.l.b16 %v1361
      %v1745 = vunpack.c.h.b16 %v1361
      %v1746 = vunpack.c.l.b16 %v1362
      %v1747 = vunpack.c.h.b16 %v1362
      %v1748 = vunpack.c.l.b16 %v1363
      %v1749 = vunpack.c.h.b16 %v1363
      %v1750 = vunpack.c.l.b16 %v1364
      %v1751 = vunpack.c.h.b16 %v1364
      %v1752 = vunpack.c.l.b16 %v1365
      %v1753 = vunpack.c.h.b16 %v1365
      %v1754 = vunpack.c.l.b16 %v1366
      %v1755 = vunpack.c.h.b16 %v1366
      %v1756 = vunpack.c.l.b16 %v1367
      %v1757 = vunpack.c.h.b16 %v1367
      %v1758 = vpack.c.b16 %v1710, %v1694
      %v1759 = vpack.c.b16 %v1711, %v1695
      %v1760 = vpack.c.b16 %v1712, %v1696
      %v1761 = vpack.c.b16 %v1713, %v1697
      %v1762 = vpack.c.b16 %v1714, %v1698
      %v1763 = vpack.c.b16 %v1715, %v1699
      %v1764 = vpack.c.b16 %v1716, %v1700
      %v1765 = vpack.c.b16 %v1717, %v1701
      %v1766 = vpack.c.b16 %v1718, %v1702
      %v1767 = vpack.c.b16 %v1719, %v1703
      %v1768 = vpack.c.b16 %v1720, %v1704
      %v1769 = vpack.c.b16 %v1721, %v1705
      %v1770 = vpack.c.b16 %v1722, %v1706
      %v1771 = vpack.c.b16 %v1723, %v1707
      %v1772 = vpack.c.b16 %v1724, %v1708
      %v1773 = vpack.c.b16 %v1725, %v1709
      %v1774 = vpack.c.b16 %v1742, %v1726
      %v1775 = vpack.c.b16 %v1743, %v1727
      %v1776 = vpack.c.b16 %v1744, %v1728
      %v1777 = vpack.c.b16 %v1745, %v1729
      %v1778 = vpack.c.b16 %v1746, %v1730
      %v1779 = vpack.c.b16 %v1747, %v1731
      %v1780 = vpack.c.b16 %v1748, %v1732
      %v1781 = vpack.c.b16 %v1749, %v1733
      %v1782 = vpack.c.b16 %v1750, %v1734
      %v1783 = vpack.c.b16 %v1751, %v1735
      %v1784 = vpack.c.b16 %v1752, %v1736
      %v1785 = vpack.c.b16 %v1753, %v1737
      %v1786 = vpack.c.b16 %v1754, %v1738
      %v1787 = vpack.c.b16 %v1755, %v1739
      %v1788 = vpack.c.b16 %v1756, %v1740
      %v1789 = vpack.c.b16 %v1757, %v1741
      %v1823 = vsel %vm661, %v1627, 0
      %1825 = vmatpush.bf16.msra.mxu0 0
      %1826 = vmatpush.bf16.msra.mxu0 0
      %1827 = vmatpush.bf16.msra.mxu0 0
      %1828 = vmatpush.bf16.msra.mxu0 0
      %1829 = vmatpush.bf16.msra.mxu0 0
      %1830 = vmatpush.bf16.msra.mxu0 0
      %1831 = vmatpush.bf16.msra.mxu0 %v1774
      %1832 = vmatpush.bf16.msra.mxu0 %v1758
      %1833 = vmatmul.bf16.gmra.mxu0 %v1823
      %v1834 = vpop.f32.mrf.mxu0
      %v1835 = vadd.f32 %v1630, %v1834
      %v1836 = vpop.f32.mrf.mxu0
      %v1837 = vadd.f32 %v1630, %v1836
      %1838 = vdwg.mxu0
      %1839 = vmatpush.bf16.msra.mxu0 0
      %1840 = vmatpush.bf16.msra.mxu0 0
      %1841 = vmatpush.bf16.msra.mxu0 0
      %1842 = vmatpush.bf16.msra.mxu0 0
      %1843 = vmatpush.bf16.msra.mxu0 0
      %1844 = vmatpush.bf16.msra.mxu0 0
      %1845 = vmatpush.bf16.msra.mxu0 %v1775
      %1846 = vmatpush.bf16.msra.mxu0 %v1759
      %1847 = vmatmul.bf16.gmra.mxu0 %v1823
      %v1848 = vpop.f32.mrf.mxu0
      %v1849 = vadd.f32 %v1631, %v1848
      %v1850 = vpop.f32.mrf.mxu0
      %v1851 = vadd.f32 %v1631, %v1850
      %1852 = vdwg.mxu0
      %1853 = vmatpush.bf16.msra.mxu0 0
      %1854 = vmatpush.bf16.msra.mxu0 0
      %1855 = vmatpush.bf16.msra.mxu0 0
      %1856 = vmatpush.bf16.msra.mxu0 0
      %1857 = vmatpush.bf16.msra.mxu0 0
      %1858 = vmatpush.bf16.msra.mxu0 0
      %1859 = vmatpush.bf16.msra.mxu0 %v1776
      %1860 = vmatpush.bf16.msra.mxu0 %v1760
      %1861 = vmatmul.bf16.gmra.mxu0 %v1823
      %v1862 = vpop.f32.mrf.mxu0
      %v1863 = vadd.f32 %v1632, %v1862
      %v1864 = vpop.f32.mrf.mxu0
      %v1865 = vadd.f32 %v1632, %v1864
      %1866 = vdwg.mxu0
      %1867 = vmatpush.bf16.msra.mxu0 0
      %1868 = vmatpush.bf16.msra.mxu0 0
      %1869 = vmatpush.bf16.msra.mxu0 0
      %1870 = vmatpush.bf16.msra.mxu0 0
      %1871 = vmatpush.bf16.msra.mxu0 0
      %1872 = vmatpush.bf16.msra.mxu0 0
      %1873 = vmatpush.bf16.msra.mxu0 %v1777
      %1874 = vmatpush.bf16.msra.mxu0 %v1761
      %1875 = vmatmul.bf16.gmra.mxu0 %v1823
      %v1876 = vpop.f32.mrf.mxu0
      %v1877 = vadd.f32 %v1633, %v1876
      %v1878 = vpop.f32.mrf.mxu0
      %v1879 = vadd.f32 %v1633, %v1878
      %1880 = vdwg.mxu0
      %1881 = vmatpush.bf16.msra.mxu0 0
      %1882 = vmatpush.bf16.msra.mxu0 0
      %1883 = vmatpush.bf16.msra.mxu0 0
      %1884 = vmatpush.bf16.msra.mxu0 0
      %1885 = vmatpush.bf16.msra.mxu0 0
      %1886 = vmatpush.bf16.msra.mxu0 0
      %1887 = vmatpush.bf16.msra.mxu0 %v1778
      %1888 = vmatpush.bf16.msra.mxu0 %v1762
      %1889 = vmatmul.bf16.gmra.mxu0 %v1823
      %v1890 = vpop.f32.mrf.mxu0
      %v1891 = vadd.f32 %v1634, %v1890
      %v1892 = vpop.f32.mrf.mxu0
      %v1893 = vadd.f32 %v1634, %v1892
      %1894 = vdwg.mxu0
      %1895 = vmatpush.bf16.msra.mxu0 0
      %1896 = vmatpush.bf16.msra.mxu0 0
      %1897 = vmatpush.bf16.msra.mxu0 0
      %1898 = vmatpush.bf16.msra.mxu0 0
      %1899 = vmatpush.bf16.msra.mxu0 0
      %1900 = vmatpush.bf16.msra.mxu0 0
      %1901 = vmatpush.bf16.msra.mxu0 %v1779
      %1902 = vmatpush.bf16.msra.mxu0 %v1763
      %1903 = vmatmul.bf16.gmra.mxu0 %v1823
      %v1904 = vpop.f32.mrf.mxu0
      %v1905 = vadd.f32 %v1635, %v1904
      %v1906 = vpop.f32.mrf.mxu0
      %v1907 = vadd.f32 %v1635, %v1906
      %1908 = vdwg.mxu0
      %1909 = vmatpush.bf16.msra.mxu0 0
      %1910 = vmatpush.bf16.msra.mxu0 0
      %1911 = vmatpush.bf16.msra.mxu0 0
      %1912 = vmatpush.bf16.msra.mxu0 0
      %1913 = vmatpush.bf16.msra.mxu0 0
      %1914 = vmatpush.bf16.msra.mxu0 0
      %1915 = vmatpush.bf16.msra.mxu0 %v1780
      %1916 = vmatpush.bf16.msra.mxu0 %v1764
      %1917 = vmatmul.bf16.gmra.mxu0 %v1823
      %v1918 = vpop.f32.mrf.mxu0
      %v1919 = vadd.f32 %v1636, %v1918
      %v1920 = vpop.f32.mrf.mxu0
      %v1921 = vadd.f32 %v1636, %v1920
      %1922 = vdwg.mxu0
      %1923 = vmatpush.bf16.msra.mxu0 0
      %1924 = vmatpush.bf16.msra.mxu0 0
      %1925 = vmatpush.bf16.msra.mxu0 0
      %1926 = vmatpush.bf16.msra.mxu0 0
      %1927 = vmatpush.bf16.msra.mxu0 0
      %1928 = vmatpush.bf16.msra.mxu0 0
      %1929 = vmatpush.bf16.msra.mxu0 %v1781
      %1930 = vmatpush.bf16.msra.mxu0 %v1765
      %1931 = vmatmul.bf16.gmra.mxu0 %v1823
      %v1932 = vpop.f32.mrf.mxu0
      %v1933 = vadd.f32 %v1637, %v1932
      %v1934 = vpop.f32.mrf.mxu0
      %v1935 = vadd.f32 %v1637, %v1934
      %1936 = vdwg.mxu0
      %1937 = vmatpush.bf16.msra.mxu0 0
      %1938 = vmatpush.bf16.msra.mxu0 0
      %1939 = vmatpush.bf16.msra.mxu0 0
      %1940 = vmatpush.bf16.msra.mxu0 0
      %1941 = vmatpush.bf16.msra.mxu0 0
      %1942 = vmatpush.bf16.msra.mxu0 0
      %1943 = vmatpush.bf16.msra.mxu0 %v1782
      %1944 = vmatpush.bf16.msra.mxu0 %v1766
      %1945 = vmatmul.bf16.gmra.mxu0 %v1823
      %v1946 = vpop.f32.mrf.mxu0
      %v1947 = vadd.f32 %v1638, %v1946
      %v1948 = vpop.f32.mrf.mxu0
      %v1949 = vadd.f32 %v1638, %v1948
      %1950 = vdwg.mxu0
      %1951 = vmatpush.bf16.msra.mxu0 0
      %1952 = vmatpush.bf16.msra.mxu0 0
      %1953 = vmatpush.bf16.msra.mxu0 0
      %1954 = vmatpush.bf16.msra.mxu0 0
      %1955 = vmatpush.bf16.msra.mxu0 0
      %1956 = vmatpush.bf16.msra.mxu0 0
      %1957 = vmatpush.bf16.msra.mxu0 %v1783
      %1958 = vmatpush.bf16.msra.mxu0 %v1767
      %1959 = vmatmul.bf16.gmra.mxu0 %v1823
      %v1960 = vpop.f32.mrf.mxu0
      %v1961 = vadd.f32 %v1639, %v1960
      %v1962 = vpop.f32.mrf.mxu0
      %v1963 = vadd.f32 %v1639, %v1962
      %1964 = vdwg.mxu0
      %1965 = vmatpush.bf16.msra.mxu0 0
      %1966 = vmatpush.bf16.msra.mxu0 0
      %1967 = vmatpush.bf16.msra.mxu0 0
      %1968 = vmatpush.bf16.msra.mxu0 0
      %1969 = vmatpush.bf16.msra.mxu0 0
      %1970 = vmatpush.bf16.msra.mxu0 0
      %1971 = vmatpush.bf16.msra.mxu0 %v1784
      %1972 = vmatpush.bf16.msra.mxu0 %v1768
      %1973 = vmatmul.bf16.gmra.mxu0 %v1823
      %v1974 = vpop.f32.mrf.mxu0
      %v1975 = vadd.f32 %v1640, %v1974
      %v1976 = vpop.f32.mrf.mxu0
      %v1977 = vadd.f32 %v1640, %v1976
      %1978 = vdwg.mxu0
      %1979 = vmatpush.bf16.msra.mxu0 0
      %1980 = vmatpush.bf16.msra.mxu0 0
      %1981 = vmatpush.bf16.msra.mxu0 0
      %1982 = vmatpush.bf16.msra.mxu0 0
      %1983 = vmatpush.bf16.msra.mxu0 0
      %1984 = vmatpush.bf16.msra.mxu0 0
      %1985 = vmatpush.bf16.msra.mxu0 %v1785
      %1986 = vmatpush.bf16.msra.mxu0 %v1769
      %1987 = vmatmul.bf16.gmra.mxu0 %v1823
      %v1988 = vpop.f32.mrf.mxu0
      %v1989 = vadd.f32 %v1641, %v1988
      %v1990 = vpop.f32.mrf.mxu0
      %v1991 = vadd.f32 %v1641, %v1990
      %1992 = vdwg.mxu0
      %1993 = vmatpush.bf16.msra.mxu0 0
      %1994 = vmatpush.bf16.msra.mxu0 0
      %1995 = vmatpush.bf16.msra.mxu0 0
      %1996 = vmatpush.bf16.msra.mxu0 0
      %1997 = vmatpush.bf16.msra.mxu0 0
      %1998 = vmatpush.bf16.msra.mxu0 0
      %1999 = vmatpush.bf16.msra.mxu0 %v1786
      %2000 = vmatpush.bf16.msra.mxu0 %v1770
      %2001 = vmatmul.bf16.gmra.mxu0 %v1823
      %v2002 = vpop.f32.mrf.mxu0
      %v2003 = vadd.f32 %v1642, %v2002
      %v2004 = vpop.f32.mrf.mxu0
      %v2005 = vadd.f32 %v1642, %v2004
      %2006 = vdwg.mxu0
      %2007 = vmatpush.bf16.msra.mxu0 0
      %2008 = vmatpush.bf16.msra.mxu0 0
      %2009 = vmatpush.bf16.msra.mxu0 0
      %2010 = vmatpush.bf16.msra.mxu0 0
      %2011 = vmatpush.bf16.msra.mxu0 0
      %2012 = vmatpush.bf16.msra.mxu0 0
      %2013 = vmatpush.bf16.msra.mxu0 %v1787
      %2014 = vmatpush.bf16.msra.mxu0 %v1771
      %2015 = vmatmul.bf16.gmra.mxu0 %v1823
      %v2016 = vpop.f32.mrf.mxu0
      %v2017 = vadd.f32 %v1643, %v2016
      %v2018 = vpop.f32.mrf.mxu0
      %v2019 = vadd.f32 %v1643, %v2018
      %2020 = vdwg.mxu0
      %2021 = vmatpush.bf16.msra.mxu0 0
      %2022 = vmatpush.bf16.msra.mxu0 0
      %2023 = vmatpush.bf16.msra.mxu0 0
      %2024 = vmatpush.bf16.msra.mxu0 0
      %2025 = vmatpush.bf16.msra.mxu0 0
      %2026 = vmatpush.bf16.msra.mxu0 0
      %2027 = vmatpush.bf16.msra.mxu0 %v1788
      %2028 = vmatpush.bf16.msra.mxu0 %v1772
      %2029 = vmatmul.bf16.gmra.mxu0 %v1823
      %v2030 = vpop.f32.mrf.mxu0
      %v2031 = vadd.f32 %v1644, %v2030
      %v2032 = vpop.f32.mrf.mxu0
      %v2033 = vadd.f32 %v1644, %v2032
      %2034 = vdwg.mxu0
      %2035 = vmatpush.bf16.msra.mxu0 0
      %2036 = vmatpush.bf16.msra.mxu0 0
      %2037 = vmatpush.bf16.msra.mxu0 0
      %2038 = vmatpush.bf16.msra.mxu0 0
      %2039 = vmatpush.bf16.msra.mxu0 0
      %2040 = vmatpush.bf16.msra.mxu0 0
      %2041 = vmatpush.bf16.msra.mxu0 %v1789
      %2042 = vmatpush.bf16.msra.mxu0 %v1773
      %2043 = vmatmul.bf16.gmra.mxu0 %v1823
      %v2044 = vpop.f32.mrf.mxu0
      %v2045 = vadd.f32 %v1645, %v2044
      %v2046 = vpop.f32.mrf.mxu0
      %v2047 = vadd.f32 %v1645, %v2046
      %2048 = vdwg.mxu0
      %v2049 = vmax.f32 %v1835, 0.0
      %v2050 = vmax.f32 %v1849, 0.0
      %v2051 = vmax.f32 %v1863, 0.0
      %v2052 = vmax.f32 %v1877, 0.0
      %v2053 = vmax.f32 %v1891, 0.0
      %v2054 = vmax.f32 %v1905, 0.0
      %v2055 = vmax.f32 %v1919, 0.0
      %v2056 = vmax.f32 %v1933, 0.0
      %v2057 = vmax.f32 %v1947, 0.0
      %v2058 = vmax.f32 %v1961, 0.0
      %v2059 = vmax.f32 %v1975, 0.0
      %v2060 = vmax.f32 %v1989, 0.0
      %v2061 = vmax.f32 %v2003, 0.0
      %v2062 = vmax.f32 %v2017, 0.0
      %v2063 = vmax.f32 %v2031, 0.0
      %v2064 = vmax.f32 %v2045, 0.0
      %v2065 = vmax.f32 %v1837, 0.0
      %v2066 = vmax.f32 %v1851, 0.0
      %v2067 = vmax.f32 %v1865, 0.0
      %v2068 = vmax.f32 %v1879, 0.0
      %v2069 = vmax.f32 %v1893, 0.0
      %v2070 = vmax.f32 %v1907, 0.0
      %v2071 = vmax.f32 %v1921, 0.0
      %v2072 = vmax.f32 %v1935, 0.0
      %v2073 = vmax.f32 %v1949, 0.0
      %v2074 = vmax.f32 %v1963, 0.0
      %v2075 = vmax.f32 %v1977, 0.0
      %v2076 = vmax.f32 %v1991, 0.0
      %v2077 = vmax.f32 %v2005, 0.0
      %v2078 = vmax.f32 %v2019, 0.0
      %v2079 = vmax.f32 %v2033, 0.0
      %v2080 = vmax.f32 %v2047, 0.0
      %v2081 = vpack.c.bf16 %v2065, %v2049
      %v2082 = vpack.c.bf16 %v2066, %v2050
      %v2083 = vpack.c.bf16 %v2067, %v2051
      %v2084 = vpack.c.bf16 %v2068, %v2052
      %v2085 = vpack.c.bf16 %v2069, %v2053
      %v2086 = vpack.c.bf16 %v2070, %v2054
      %v2087 = vpack.c.bf16 %v2071, %v2055
      %v2088 = vpack.c.bf16 %v2072, %v2056
      %v2089 = vpack.c.bf16 %v2073, %v2057
      %v2090 = vpack.c.bf16 %v2074, %v2058
      %v2091 = vpack.c.bf16 %v2075, %v2059
      %v2092 = vpack.c.bf16 %v2076, %v2060
      %v2093 = vpack.c.bf16 %v2077, %v2061
      %v2094 = vpack.c.bf16 %v2078, %v2062
      %v2095 = vpack.c.bf16 %v2079, %v2063
      %v2096 = vpack.c.bf16 %v2080, %v2064
      %v2098 = vperm.slane %v1626, 0
      %v2356 = vunpack.c.l.b16 %v1370
      %v2357 = vunpack.c.l.b16 %v1371
      %v2358 = vunpack.c.l.b16 %v1372
      %v2359 = vunpack.c.l.b16 %v1373
      %v2360 = vunpack.c.l.b16 %v1374
      %v2361 = vunpack.c.l.b16 %v1375
      %v2362 = vunpack.c.l.b16 %v1376
      %v2363 = vunpack.c.l.b16 %v1377
      %v2364 = vunpack.c.l.b16 %v1378
      %v2365 = vunpack.c.l.b16 %v1379
      %v2366 = vunpack.c.l.b16 %v1380
      %v2367 = vunpack.c.l.b16 %v1381
      %v2368 = vunpack.c.l.b16 %v1382
      %v2369 = vunpack.c.l.b16 %v1383
      %v2370 = vunpack.c.l.b16 %v1384
      %v2371 = vunpack.c.l.b16 %v1385
      %v2372 = vunpack.c.l.b16 %v1386
      %v2373 = vunpack.c.l.b16 %v1387
      %v2374 = vunpack.c.l.b16 %v1388
      %v2375 = vunpack.c.l.b16 %v1389
      %v2376 = vunpack.c.l.b16 %v1390
      %v2377 = vunpack.c.l.b16 %v1391
      %v2378 = vunpack.c.l.b16 %v1392
      %v2379 = vunpack.c.l.b16 %v1393
      %v2380 = vunpack.c.l.b16 %v1394
      %v2381 = vunpack.c.l.b16 %v1395
      %v2382 = vunpack.c.l.b16 %v1396
      %v2383 = vunpack.c.l.b16 %v1397
      %v2384 = vunpack.c.l.b16 %v1398
      %v2385 = vunpack.c.l.b16 %v1399
      %v2386 = vunpack.c.l.b16 %v1400
      %v2387 = vunpack.c.l.b16 %v1401
      %v2388 = vunpack.c.l.b16 %v1402
      %v2389 = vunpack.c.l.b16 %v1403
      %v2390 = vunpack.c.l.b16 %v1404
      %v2391 = vunpack.c.l.b16 %v1405
      %v2392 = vunpack.c.l.b16 %v1406
      %v2393 = vunpack.c.l.b16 %v1407
      %v2394 = vunpack.c.l.b16 %v1408
      %v2395 = vunpack.c.l.b16 %v1409
      %v2396 = vunpack.c.l.b16 %v1410
      %v2397 = vunpack.c.l.b16 %v1411
      %v2398 = vunpack.c.l.b16 %v1412
      %v2399 = vunpack.c.l.b16 %v1413
      %v2400 = vunpack.c.l.b16 %v1414
      %v2401 = vunpack.c.l.b16 %v1415
      %v2402 = vunpack.c.l.b16 %v1416
      %v2403 = vunpack.c.l.b16 %v1417
      %v2404 = vunpack.c.l.b16 %v1418
      %v2405 = vunpack.c.l.b16 %v1419
      %v2406 = vunpack.c.l.b16 %v1420
      %v2407 = vunpack.c.l.b16 %v1421
      %v2408 = vunpack.c.l.b16 %v1422
      %v2409 = vunpack.c.l.b16 %v1423
      %v2410 = vunpack.c.l.b16 %v1424
      %v2411 = vunpack.c.l.b16 %v1425
      %v2412 = vunpack.c.l.b16 %v1426
      %v2413 = vunpack.c.l.b16 %v1427
      %v2414 = vunpack.c.l.b16 %v1428
      %v2415 = vunpack.c.l.b16 %v1429
      %v2416 = vunpack.c.l.b16 %v1430
      %v2417 = vunpack.c.l.b16 %v1431
      %v2418 = vunpack.c.l.b16 %v1432
      %v2419 = vunpack.c.l.b16 %v1433
      %v2420 = vunpack.c.l.b16 %v1434
      %v2421 = vunpack.c.l.b16 %v1435
      %v2422 = vunpack.c.l.b16 %v1436
      %v2423 = vunpack.c.l.b16 %v1437
      %v2424 = vunpack.c.l.b16 %v1438
      %v2425 = vunpack.c.l.b16 %v1439
      %v2426 = vunpack.c.l.b16 %v1440
      %v2427 = vunpack.c.l.b16 %v1441
      %v2428 = vunpack.c.l.b16 %v1442
      %v2429 = vunpack.c.l.b16 %v1443
      %v2430 = vunpack.c.l.b16 %v1444
      %v2431 = vunpack.c.l.b16 %v1445
      %v2432 = vunpack.c.l.b16 %v1446
      %v2433 = vunpack.c.l.b16 %v1447
      %v2434 = vunpack.c.l.b16 %v1448
      %v2435 = vunpack.c.l.b16 %v1449
      %v2436 = vunpack.c.l.b16 %v1450
      %v2437 = vunpack.c.l.b16 %v1451
      %v2438 = vunpack.c.l.b16 %v1452
      %v2439 = vunpack.c.l.b16 %v1453
      %v2440 = vunpack.c.l.b16 %v1454
      %v2441 = vunpack.c.l.b16 %v1455
      %v2442 = vunpack.c.l.b16 %v1456
      %v2443 = vunpack.c.l.b16 %v1457
      %v2444 = vunpack.c.l.b16 %v1458
      %v2445 = vunpack.c.l.b16 %v1459
      %v2446 = vunpack.c.l.b16 %v1460
      %v2447 = vunpack.c.l.b16 %v1461
      %v2448 = vunpack.c.l.b16 %v1462
      %v2449 = vunpack.c.l.b16 %v1463
      %v2450 = vunpack.c.l.b16 %v1464
      %v2451 = vunpack.c.l.b16 %v1465
      %v2452 = vunpack.c.l.b16 %v1466
      %v2453 = vunpack.c.l.b16 %v1467
      %v2454 = vunpack.c.l.b16 %v1468
      %v2455 = vunpack.c.l.b16 %v1469
      %v2456 = vunpack.c.l.b16 %v1470
      %v2457 = vunpack.c.l.b16 %v1471
      %v2458 = vunpack.c.l.b16 %v1472
      %v2459 = vunpack.c.l.b16 %v1473
      %v2460 = vunpack.c.l.b16 %v1474
      %v2461 = vunpack.c.l.b16 %v1475
      %v2462 = vunpack.c.l.b16 %v1476
      %v2463 = vunpack.c.l.b16 %v1477
      %v2464 = vunpack.c.l.b16 %v1478
      %v2465 = vunpack.c.l.b16 %v1479
      %v2466 = vunpack.c.l.b16 %v1480
      %v2467 = vunpack.c.l.b16 %v1481
      %v2468 = vunpack.c.l.b16 %v1482
      %v2469 = vunpack.c.l.b16 %v1483
      %v2470 = vunpack.c.l.b16 %v1484
      %v2471 = vunpack.c.l.b16 %v1485
      %v2472 = vunpack.c.l.b16 %v1486
      %v2473 = vunpack.c.l.b16 %v1487
      %v2474 = vunpack.c.l.b16 %v1488
      %v2475 = vunpack.c.l.b16 %v1489
      %v2476 = vunpack.c.l.b16 %v1490
      %v2477 = vunpack.c.l.b16 %v1491
      %v2478 = vunpack.c.l.b16 %v1492
      %v2479 = vunpack.c.l.b16 %v1493
      %v2480 = vunpack.c.l.b16 %v1494
      %v2481 = vunpack.c.l.b16 %v1495
      %v2482 = vunpack.c.l.b16 %v1496
      %v2483 = vunpack.c.l.b16 %v1497
      %v2484 = vunpack.c.l.b16 %v1498
      %v2485 = vunpack.c.l.b16 %v1499
      %v2486 = vunpack.c.l.b16 %v1500
      %v2487 = vunpack.c.l.b16 %v1501
      %v2488 = vunpack.c.l.b16 %v1502
      %v2489 = vunpack.c.l.b16 %v1503
      %v2490 = vunpack.c.l.b16 %v1504
      %v2491 = vunpack.c.l.b16 %v1505
      %v2492 = vunpack.c.l.b16 %v1506
      %v2493 = vunpack.c.l.b16 %v1507
      %v2494 = vunpack.c.l.b16 %v1508
      %v2495 = vunpack.c.l.b16 %v1509
      %v2496 = vunpack.c.l.b16 %v1510
      %v2497 = vunpack.c.l.b16 %v1511
      %v2498 = vunpack.c.l.b16 %v1512
      %v2499 = vunpack.c.l.b16 %v1513
      %v2500 = vunpack.c.l.b16 %v1514
      %v2501 = vunpack.c.l.b16 %v1515
      %v2502 = vunpack.c.l.b16 %v1516
      %v2503 = vunpack.c.l.b16 %v1517
      %v2504 = vunpack.c.l.b16 %v1518
      %v2505 = vunpack.c.l.b16 %v1519
      %v2506 = vunpack.c.l.b16 %v1520
      %v2507 = vunpack.c.l.b16 %v1521
      %v2508 = vunpack.c.l.b16 %v1522
      %v2509 = vunpack.c.l.b16 %v1523
      %v2510 = vunpack.c.l.b16 %v1524
      %v2511 = vunpack.c.l.b16 %v1525
      %v2512 = vunpack.c.l.b16 %v1526
      %v2513 = vunpack.c.l.b16 %v1527
      %v2514 = vunpack.c.l.b16 %v1528
      %v2515 = vunpack.c.l.b16 %v1529
      %v2516 = vunpack.c.l.b16 %v1530
      %v2517 = vunpack.c.l.b16 %v1531
      %v2518 = vunpack.c.l.b16 %v1532
      %v2519 = vunpack.c.l.b16 %v1533
      %v2520 = vunpack.c.l.b16 %v1534
      %v2521 = vunpack.c.l.b16 %v1535
      %v2522 = vunpack.c.l.b16 %v1536
      %v2523 = vunpack.c.l.b16 %v1537
      %v2524 = vunpack.c.l.b16 %v1538
      %v2525 = vunpack.c.l.b16 %v1539
      %v2526 = vunpack.c.l.b16 %v1540
      %v2527 = vunpack.c.l.b16 %v1541
      %v2528 = vunpack.c.l.b16 %v1542
      %v2529 = vunpack.c.l.b16 %v1543
      %v2530 = vunpack.c.l.b16 %v1544
      %v2531 = vunpack.c.l.b16 %v1545
      %v2532 = vunpack.c.l.b16 %v1546
      %v2533 = vunpack.c.l.b16 %v1547
      %v2534 = vunpack.c.l.b16 %v1548
      %v2535 = vunpack.c.l.b16 %v1549
      %v2536 = vunpack.c.l.b16 %v1550
      %v2537 = vunpack.c.l.b16 %v1551
      %v2538 = vunpack.c.l.b16 %v1552
      %v2539 = vunpack.c.l.b16 %v1553
      %v2540 = vunpack.c.l.b16 %v1554
      %v2541 = vunpack.c.l.b16 %v1555
      %v2542 = vunpack.c.l.b16 %v1556
      %v2543 = vunpack.c.l.b16 %v1557
      %v2544 = vunpack.c.l.b16 %v1558
      %v2545 = vunpack.c.l.b16 %v1559
      %v2546 = vunpack.c.l.b16 %v1560
      %v2547 = vunpack.c.l.b16 %v1561
      %v2548 = vunpack.c.l.b16 %v1562
      %v2549 = vunpack.c.l.b16 %v1563
      %v2550 = vunpack.c.l.b16 %v1564
      %v2551 = vunpack.c.l.b16 %v1565
      %v2552 = vunpack.c.l.b16 %v1566
      %v2553 = vunpack.c.l.b16 %v1567
      %v2554 = vunpack.c.l.b16 %v1568
      %v2555 = vunpack.c.l.b16 %v1569
      %v2556 = vunpack.c.l.b16 %v1570
      %v2557 = vunpack.c.l.b16 %v1571
      %v2558 = vunpack.c.l.b16 %v1572
      %v2559 = vunpack.c.l.b16 %v1573
      %v2560 = vunpack.c.l.b16 %v1574
      %v2561 = vunpack.c.l.b16 %v1575
      %v2562 = vunpack.c.l.b16 %v1576
      %v2563 = vunpack.c.l.b16 %v1577
      %v2564 = vunpack.c.l.b16 %v1578
      %v2565 = vunpack.c.l.b16 %v1579
      %v2566 = vunpack.c.l.b16 %v1580
      %v2567 = vunpack.c.l.b16 %v1581
      %v2568 = vunpack.c.l.b16 %v1582
      %v2569 = vunpack.c.l.b16 %v1583
      %v2570 = vunpack.c.l.b16 %v1584
      %v2571 = vunpack.c.l.b16 %v1585
      %v2572 = vunpack.c.l.b16 %v1586
      %v2573 = vunpack.c.l.b16 %v1587
      %v2574 = vunpack.c.l.b16 %v1588
      %v2575 = vunpack.c.l.b16 %v1589
      %v2576 = vunpack.c.l.b16 %v1590
      %v2577 = vunpack.c.l.b16 %v1591
      %v2578 = vunpack.c.l.b16 %v1592
      %v2579 = vunpack.c.l.b16 %v1593
      %v2580 = vunpack.c.l.b16 %v1594
      %v2581 = vunpack.c.l.b16 %v1595
      %v2582 = vunpack.c.l.b16 %v1596
      %v2583 = vunpack.c.l.b16 %v1597
      %v2584 = vunpack.c.l.b16 %v1598
      %v2585 = vunpack.c.l.b16 %v1599
      %v2586 = vunpack.c.l.b16 %v1600
      %v2587 = vunpack.c.l.b16 %v1601
      %v2588 = vunpack.c.l.b16 %v1602
      %v2589 = vunpack.c.l.b16 %v1603
      %v2590 = vunpack.c.l.b16 %v1604
      %v2591 = vunpack.c.l.b16 %v1605
      %v2592 = vunpack.c.l.b16 %v1606
      %v2593 = vunpack.c.l.b16 %v1607
      %v2594 = vunpack.c.l.b16 %v1608
      %v2595 = vunpack.c.l.b16 %v1609
      %v2596 = vunpack.c.l.b16 %v1610
      %v2597 = vunpack.c.l.b16 %v1611
      %v2598 = vunpack.c.l.b16 %v1612
      %v2599 = vunpack.c.l.b16 %v1613
      %v2600 = vunpack.c.l.b16 %v1614
      %v2601 = vunpack.c.l.b16 %v1615
      %v2602 = vunpack.c.l.b16 %v1616
      %v2603 = vunpack.c.l.b16 %v1617
      %v2604 = vunpack.c.l.b16 %v1618
      %v2605 = vunpack.c.l.b16 %v1619
      %v2606 = vunpack.c.l.b16 %v1620
      %v2607 = vunpack.c.l.b16 %v1621
      %v2608 = vunpack.c.l.b16 %v1622
      %v2609 = vunpack.c.l.b16 %v1623
      %v2610 = vunpack.c.l.b16 %v1624
      %v2611 = vunpack.c.l.b16 %v1625
      %v2612 = vpack.c.b16 %v2357, %v2356
      %v2613 = vpack.c.b16 %v2359, %v2358
      %v2614 = vpack.c.b16 %v2361, %v2360
      %v2615 = vpack.c.b16 %v2363, %v2362
      %v2616 = vpack.c.b16 %v2365, %v2364
      %v2617 = vpack.c.b16 %v2367, %v2366
      %v2618 = vpack.c.b16 %v2369, %v2368
      %v2619 = vpack.c.b16 %v2371, %v2370
      %v2620 = vpack.c.b16 %v2373, %v2372
      %v2621 = vpack.c.b16 %v2375, %v2374
      %v2622 = vpack.c.b16 %v2377, %v2376
      %v2623 = vpack.c.b16 %v2379, %v2378
      %v2624 = vpack.c.b16 %v2381, %v2380
      %v2625 = vpack.c.b16 %v2383, %v2382
      %v2626 = vpack.c.b16 %v2385, %v2384
      %v2627 = vpack.c.b16 %v2387, %v2386
      %v2628 = vpack.c.b16 %v2389, %v2388
      %v2629 = vpack.c.b16 %v2391, %v2390
      %v2630 = vpack.c.b16 %v2393, %v2392
      %v2631 = vpack.c.b16 %v2395, %v2394
      %v2632 = vpack.c.b16 %v2397, %v2396
      %v2633 = vpack.c.b16 %v2399, %v2398
      %v2634 = vpack.c.b16 %v2401, %v2400
      %v2635 = vpack.c.b16 %v2403, %v2402
      %v2636 = vpack.c.b16 %v2405, %v2404
      %v2637 = vpack.c.b16 %v2407, %v2406
      %v2638 = vpack.c.b16 %v2409, %v2408
      %v2639 = vpack.c.b16 %v2411, %v2410
      %v2640 = vpack.c.b16 %v2413, %v2412
      %v2641 = vpack.c.b16 %v2415, %v2414
      %v2642 = vpack.c.b16 %v2417, %v2416
      %v2643 = vpack.c.b16 %v2419, %v2418
      %v2644 = vpack.c.b16 %v2421, %v2420
      %v2645 = vpack.c.b16 %v2423, %v2422
      %v2646 = vpack.c.b16 %v2425, %v2424
      %v2647 = vpack.c.b16 %v2427, %v2426
      %v2648 = vpack.c.b16 %v2429, %v2428
      %v2649 = vpack.c.b16 %v2431, %v2430
      %v2650 = vpack.c.b16 %v2433, %v2432
      %v2651 = vpack.c.b16 %v2435, %v2434
      %v2652 = vpack.c.b16 %v2437, %v2436
      %v2653 = vpack.c.b16 %v2439, %v2438
      %v2654 = vpack.c.b16 %v2441, %v2440
      %v2655 = vpack.c.b16 %v2443, %v2442
      %v2656 = vpack.c.b16 %v2445, %v2444
      %v2657 = vpack.c.b16 %v2447, %v2446
      %v2658 = vpack.c.b16 %v2449, %v2448
      %v2659 = vpack.c.b16 %v2451, %v2450
      %v2660 = vpack.c.b16 %v2453, %v2452
      %v2661 = vpack.c.b16 %v2455, %v2454
      %v2662 = vpack.c.b16 %v2457, %v2456
      %v2663 = vpack.c.b16 %v2459, %v2458
      %v2664 = vpack.c.b16 %v2461, %v2460
      %v2665 = vpack.c.b16 %v2463, %v2462
      %v2666 = vpack.c.b16 %v2465, %v2464
      %v2667 = vpack.c.b16 %v2467, %v2466
      %v2668 = vpack.c.b16 %v2469, %v2468
      %v2669 = vpack.c.b16 %v2471, %v2470
      %v2670 = vpack.c.b16 %v2473, %v2472
      %v2671 = vpack.c.b16 %v2475, %v2474
      %v2672 = vpack.c.b16 %v2477, %v2476
      %v2673 = vpack.c.b16 %v2479, %v2478
      %v2674 = vpack.c.b16 %v2481, %v2480
      %v2675 = vpack.c.b16 %v2483, %v2482
      %v2676 = vpack.c.b16 %v2485, %v2484
      %v2677 = vpack.c.b16 %v2487, %v2486
      %v2678 = vpack.c.b16 %v2489, %v2488
      %v2679 = vpack.c.b16 %v2491, %v2490
      %v2680 = vpack.c.b16 %v2493, %v2492
      %v2681 = vpack.c.b16 %v2495, %v2494
      %v2682 = vpack.c.b16 %v2497, %v2496
      %v2683 = vpack.c.b16 %v2499, %v2498
      %v2684 = vpack.c.b16 %v2501, %v2500
      %v2685 = vpack.c.b16 %v2503, %v2502
      %v2686 = vpack.c.b16 %v2505, %v2504
      %v2687 = vpack.c.b16 %v2507, %v2506
      %v2688 = vpack.c.b16 %v2509, %v2508
      %v2689 = vpack.c.b16 %v2511, %v2510
      %v2690 = vpack.c.b16 %v2513, %v2512
      %v2691 = vpack.c.b16 %v2515, %v2514
      %v2692 = vpack.c.b16 %v2517, %v2516
      %v2693 = vpack.c.b16 %v2519, %v2518
      %v2694 = vpack.c.b16 %v2521, %v2520
      %v2695 = vpack.c.b16 %v2523, %v2522
      %v2696 = vpack.c.b16 %v2525, %v2524
      %v2697 = vpack.c.b16 %v2527, %v2526
      %v2698 = vpack.c.b16 %v2529, %v2528
      %v2699 = vpack.c.b16 %v2531, %v2530
      %v2700 = vpack.c.b16 %v2533, %v2532
      %v2701 = vpack.c.b16 %v2535, %v2534
      %v2702 = vpack.c.b16 %v2537, %v2536
      %v2703 = vpack.c.b16 %v2539, %v2538
      %v2704 = vpack.c.b16 %v2541, %v2540
      %v2705 = vpack.c.b16 %v2543, %v2542
      %v2706 = vpack.c.b16 %v2545, %v2544
      %v2707 = vpack.c.b16 %v2547, %v2546
      %v2708 = vpack.c.b16 %v2549, %v2548
      %v2709 = vpack.c.b16 %v2551, %v2550
      %v2710 = vpack.c.b16 %v2553, %v2552
      %v2711 = vpack.c.b16 %v2555, %v2554
      %v2712 = vpack.c.b16 %v2557, %v2556
      %v2713 = vpack.c.b16 %v2559, %v2558
      %v2714 = vpack.c.b16 %v2561, %v2560
      %v2715 = vpack.c.b16 %v2563, %v2562
      %v2716 = vpack.c.b16 %v2565, %v2564
      %v2717 = vpack.c.b16 %v2567, %v2566
      %v2718 = vpack.c.b16 %v2569, %v2568
      %v2719 = vpack.c.b16 %v2571, %v2570
      %v2720 = vpack.c.b16 %v2573, %v2572
      %v2721 = vpack.c.b16 %v2575, %v2574
      %v2722 = vpack.c.b16 %v2577, %v2576
      %v2723 = vpack.c.b16 %v2579, %v2578
      %v2724 = vpack.c.b16 %v2581, %v2580
      %v2725 = vpack.c.b16 %v2583, %v2582
      %v2726 = vpack.c.b16 %v2585, %v2584
      %v2727 = vpack.c.b16 %v2587, %v2586
      %v2728 = vpack.c.b16 %v2589, %v2588
      %v2729 = vpack.c.b16 %v2591, %v2590
      %v2730 = vpack.c.b16 %v2593, %v2592
      %v2731 = vpack.c.b16 %v2595, %v2594
      %v2732 = vpack.c.b16 %v2597, %v2596
      %v2733 = vpack.c.b16 %v2599, %v2598
      %v2734 = vpack.c.b16 %v2601, %v2600
      %v2735 = vpack.c.b16 %v2603, %v2602
      %v2736 = vpack.c.b16 %v2605, %v2604
      %v2737 = vpack.c.b16 %v2607, %v2606
      %v2738 = vpack.c.b16 %v2609, %v2608
      %v2739 = vpack.c.b16 %v2611, %v2610
      %2868 = vmatpush.bf16.msra.mxu0 %v2619
      %2869 = vmatpush.bf16.msra.mxu0 %v2618
      %2870 = vmatpush.bf16.msra.mxu0 %v2617
      %2871 = vmatpush.bf16.msra.mxu0 %v2616
      %2872 = vmatpush.bf16.msra.mxu0 %v2615
      %2873 = vmatpush.bf16.msra.mxu0 %v2614
      %2874 = vmatpush.bf16.msra.mxu0 %v2613
      %2875 = vmatpush.bf16.msra.mxu0 %v2612
      %2876 = vmatmul.bf16.gmra.mxu0 %v2081
      %v2877 = vpop.f32.mrf.mxu0
      %v2878 = vadd.f32 %v2098, %v2877
      %v2879 = vpop.f32.mrf.mxu0
      %v2880 = vadd.f32 %v2098, %v2879
      %2881 = vdwg.mxu0
      %2882 = vmatpush.bf16.msra.mxu0 %v2627
      %2883 = vmatpush.bf16.msra.mxu0 %v2626
      %2884 = vmatpush.bf16.msra.mxu0 %v2625
      %2885 = vmatpush.bf16.msra.mxu0 %v2624
      %2886 = vmatpush.bf16.msra.mxu0 %v2623
      %2887 = vmatpush.bf16.msra.mxu0 %v2622
      %2888 = vmatpush.bf16.msra.mxu0 %v2621
      %2889 = vmatpush.bf16.msra.mxu0 %v2620
      %2890 = vmatmul.bf16.gmra.mxu0 %v2082
      %v2891 = vpop.f32.mrf.mxu0
      %v2892 = vadd.f32 %v2878, %v2891
      %v2893 = vpop.f32.mrf.mxu0
      %v2894 = vadd.f32 %v2880, %v2893
      %2895 = vdwg.mxu0
      %2896 = vmatpush.bf16.msra.mxu0 %v2635
      %2897 = vmatpush.bf16.msra.mxu0 %v2634
      %2898 = vmatpush.bf16.msra.mxu0 %v2633
      %2899 = vmatpush.bf16.msra.mxu0 %v2632
      %2900 = vmatpush.bf16.msra.mxu0 %v2631
      %2901 = vmatpush.bf16.msra.mxu0 %v2630
      %2902 = vmatpush.bf16.msra.mxu0 %v2629
      %2903 = vmatpush.bf16.msra.mxu0 %v2628
      %2904 = vmatmul.bf16.gmra.mxu0 %v2083
      %v2905 = vpop.f32.mrf.mxu0
      %v2906 = vadd.f32 %v2892, %v2905
      %v2907 = vpop.f32.mrf.mxu0
      %v2908 = vadd.f32 %v2894, %v2907
      %2909 = vdwg.mxu0
      %2910 = vmatpush.bf16.msra.mxu0 %v2643
      %2911 = vmatpush.bf16.msra.mxu0 %v2642
      %2912 = vmatpush.bf16.msra.mxu0 %v2641
      %2913 = vmatpush.bf16.msra.mxu0 %v2640
      %2914 = vmatpush.bf16.msra.mxu0 %v2639
      %2915 = vmatpush.bf16.msra.mxu0 %v2638
      %2916 = vmatpush.bf16.msra.mxu0 %v2637
      %2917 = vmatpush.bf16.msra.mxu0 %v2636
      %2918 = vmatmul.bf16.gmra.mxu0 %v2084
      %v2919 = vpop.f32.mrf.mxu0
      %v2920 = vadd.f32 %v2906, %v2919
      %v2921 = vpop.f32.mrf.mxu0
      %v2922 = vadd.f32 %v2908, %v2921
      %2923 = vdwg.mxu0
      %2924 = vmatpush.bf16.msra.mxu0 %v2651
      %2925 = vmatpush.bf16.msra.mxu0 %v2650
      %2926 = vmatpush.bf16.msra.mxu0 %v2649
      %2927 = vmatpush.bf16.msra.mxu0 %v2648
      %2928 = vmatpush.bf16.msra.mxu0 %v2647
      %2929 = vmatpush.bf16.msra.mxu0 %v2646
      %2930 = vmatpush.bf16.msra.mxu0 %v2645
      %2931 = vmatpush.bf16.msra.mxu0 %v2644
      %2932 = vmatmul.bf16.gmra.mxu0 %v2085
      %v2933 = vpop.f32.mrf.mxu0
      %v2934 = vadd.f32 %v2920, %v2933
      %v2935 = vpop.f32.mrf.mxu0
      %v2936 = vadd.f32 %v2922, %v2935
      %2937 = vdwg.mxu0
      %2938 = vmatpush.bf16.msra.mxu0 %v2659
      %2939 = vmatpush.bf16.msra.mxu0 %v2658
      %2940 = vmatpush.bf16.msra.mxu0 %v2657
      %2941 = vmatpush.bf16.msra.mxu0 %v2656
      %2942 = vmatpush.bf16.msra.mxu0 %v2655
      %2943 = vmatpush.bf16.msra.mxu0 %v2654
      %2944 = vmatpush.bf16.msra.mxu0 %v2653
      %2945 = vmatpush.bf16.msra.mxu0 %v2652
      %2946 = vmatmul.bf16.gmra.mxu0 %v2086
      %v2947 = vpop.f32.mrf.mxu0
      %v2948 = vadd.f32 %v2934, %v2947
      %v2949 = vpop.f32.mrf.mxu0
      %v2950 = vadd.f32 %v2936, %v2949
      %2951 = vdwg.mxu0
      %2952 = vmatpush.bf16.msra.mxu0 %v2667
      %2953 = vmatpush.bf16.msra.mxu0 %v2666
      %2954 = vmatpush.bf16.msra.mxu0 %v2665
      %2955 = vmatpush.bf16.msra.mxu0 %v2664
      %2956 = vmatpush.bf16.msra.mxu0 %v2663
      %2957 = vmatpush.bf16.msra.mxu0 %v2662
      %2958 = vmatpush.bf16.msra.mxu0 %v2661
      %2959 = vmatpush.bf16.msra.mxu0 %v2660
      %2960 = vmatmul.bf16.gmra.mxu0 %v2087
      %v2961 = vpop.f32.mrf.mxu0
      %v2962 = vadd.f32 %v2948, %v2961
      %v2963 = vpop.f32.mrf.mxu0
      %v2964 = vadd.f32 %v2950, %v2963
      %2965 = vdwg.mxu0
      %2966 = vmatpush.bf16.msra.mxu0 %v2675
      %2967 = vmatpush.bf16.msra.mxu0 %v2674
      %2968 = vmatpush.bf16.msra.mxu0 %v2673
      %2969 = vmatpush.bf16.msra.mxu0 %v2672
      %2970 = vmatpush.bf16.msra.mxu0 %v2671
      %2971 = vmatpush.bf16.msra.mxu0 %v2670
      %2972 = vmatpush.bf16.msra.mxu0 %v2669
      %2973 = vmatpush.bf16.msra.mxu0 %v2668
      %2974 = vmatmul.bf16.gmra.mxu0 %v2088
      %v2975 = vpop.f32.mrf.mxu0
      %v2976 = vadd.f32 %v2962, %v2975
      %v2977 = vpop.f32.mrf.mxu0
      %v2978 = vadd.f32 %v2964, %v2977
      %2979 = vdwg.mxu0
      %2980 = vmatpush.bf16.msra.mxu0 %v2683
      %2981 = vmatpush.bf16.msra.mxu0 %v2682
      %2982 = vmatpush.bf16.msra.mxu0 %v2681
      %2983 = vmatpush.bf16.msra.mxu0 %v2680
      %2984 = vmatpush.bf16.msra.mxu0 %v2679
      %2985 = vmatpush.bf16.msra.mxu0 %v2678
      %2986 = vmatpush.bf16.msra.mxu0 %v2677
      %2987 = vmatpush.bf16.msra.mxu0 %v2676
      %2988 = vmatmul.bf16.gmra.mxu0 %v2089
      %v2989 = vpop.f32.mrf.mxu0
      %v2990 = vadd.f32 %v2976, %v2989
      %v2991 = vpop.f32.mrf.mxu0
      %v2992 = vadd.f32 %v2978, %v2991
      %2993 = vdwg.mxu0
      %2994 = vmatpush.bf16.msra.mxu0 %v2691
      %2995 = vmatpush.bf16.msra.mxu0 %v2690
      %2996 = vmatpush.bf16.msra.mxu0 %v2689
      %2997 = vmatpush.bf16.msra.mxu0 %v2688
      %2998 = vmatpush.bf16.msra.mxu0 %v2687
      %2999 = vmatpush.bf16.msra.mxu0 %v2686
      %3000 = vmatpush.bf16.msra.mxu0 %v2685
      %3001 = vmatpush.bf16.msra.mxu0 %v2684
      %3002 = vmatmul.bf16.gmra.mxu0 %v2090
      %v3003 = vpop.f32.mrf.mxu0
      %v3004 = vadd.f32 %v2990, %v3003
      %v3005 = vpop.f32.mrf.mxu0
      %v3006 = vadd.f32 %v2992, %v3005
      %3007 = vdwg.mxu0
      %3008 = vmatpush.bf16.msra.mxu0 %v2699
      %3009 = vmatpush.bf16.msra.mxu0 %v2698
      %3010 = vmatpush.bf16.msra.mxu0 %v2697
      %3011 = vmatpush.bf16.msra.mxu0 %v2696
      %3012 = vmatpush.bf16.msra.mxu0 %v2695
      %3013 = vmatpush.bf16.msra.mxu0 %v2694
      %3014 = vmatpush.bf16.msra.mxu0 %v2693
      %3015 = vmatpush.bf16.msra.mxu0 %v2692
      %3016 = vmatmul.bf16.gmra.mxu0 %v2091
      %v3017 = vpop.f32.mrf.mxu0
      %v3018 = vadd.f32 %v3004, %v3017
      %v3019 = vpop.f32.mrf.mxu0
      %v3020 = vadd.f32 %v3006, %v3019
      %3021 = vdwg.mxu0
      %3022 = vmatpush.bf16.msra.mxu0 %v2707
      %3023 = vmatpush.bf16.msra.mxu0 %v2706
      %3024 = vmatpush.bf16.msra.mxu0 %v2705
      %3025 = vmatpush.bf16.msra.mxu0 %v2704
      %3026 = vmatpush.bf16.msra.mxu0 %v2703
      %3027 = vmatpush.bf16.msra.mxu0 %v2702
      %3028 = vmatpush.bf16.msra.mxu0 %v2701
      %3029 = vmatpush.bf16.msra.mxu0 %v2700
      %3030 = vmatmul.bf16.gmra.mxu0 %v2092
      %v3031 = vpop.f32.mrf.mxu0
      %v3032 = vadd.f32 %v3018, %v3031
      %v3033 = vpop.f32.mrf.mxu0
      %v3034 = vadd.f32 %v3020, %v3033
      %3035 = vdwg.mxu0
      %3036 = vmatpush.bf16.msra.mxu0 %v2715
      %3037 = vmatpush.bf16.msra.mxu0 %v2714
      %3038 = vmatpush.bf16.msra.mxu0 %v2713
      %3039 = vmatpush.bf16.msra.mxu0 %v2712
      %3040 = vmatpush.bf16.msra.mxu0 %v2711
      %3041 = vmatpush.bf16.msra.mxu0 %v2710
      %3042 = vmatpush.bf16.msra.mxu0 %v2709
      %3043 = vmatpush.bf16.msra.mxu0 %v2708
      %3044 = vmatmul.bf16.gmra.mxu0 %v2093
      %v3045 = vpop.f32.mrf.mxu0
      %v3046 = vadd.f32 %v3032, %v3045
      %v3047 = vpop.f32.mrf.mxu0
      %v3048 = vadd.f32 %v3034, %v3047
      %3049 = vdwg.mxu0
      %3050 = vmatpush.bf16.msra.mxu0 %v2723
      %3051 = vmatpush.bf16.msra.mxu0 %v2722
      %3052 = vmatpush.bf16.msra.mxu0 %v2721
      %3053 = vmatpush.bf16.msra.mxu0 %v2720
      %3054 = vmatpush.bf16.msra.mxu0 %v2719
      %3055 = vmatpush.bf16.msra.mxu0 %v2718
      %3056 = vmatpush.bf16.msra.mxu0 %v2717
      %3057 = vmatpush.bf16.msra.mxu0 %v2716
      %3058 = vmatmul.bf16.gmra.mxu0 %v2094
      %v3059 = vpop.f32.mrf.mxu0
      %v3060 = vadd.f32 %v3046, %v3059
      %v3061 = vpop.f32.mrf.mxu0
      %v3062 = vadd.f32 %v3048, %v3061
      %3063 = vdwg.mxu0
      %3064 = vmatpush.bf16.msra.mxu0 %v2731
      %3065 = vmatpush.bf16.msra.mxu0 %v2730
      %3066 = vmatpush.bf16.msra.mxu0 %v2729
      %3067 = vmatpush.bf16.msra.mxu0 %v2728
      %3068 = vmatpush.bf16.msra.mxu0 %v2727
      %3069 = vmatpush.bf16.msra.mxu0 %v2726
      %3070 = vmatpush.bf16.msra.mxu0 %v2725
      %3071 = vmatpush.bf16.msra.mxu0 %v2724
      %3072 = vmatmul.bf16.gmra.mxu0 %v2095
      %v3073 = vpop.f32.mrf.mxu0
      %v3074 = vadd.f32 %v3060, %v3073
      %v3075 = vpop.f32.mrf.mxu0
      %v3076 = vadd.f32 %v3062, %v3075
      %3077 = vdwg.mxu0
      %3078 = vmatpush.bf16.msra.mxu0 %v2739
      %3079 = vmatpush.bf16.msra.mxu0 %v2738
      %3080 = vmatpush.bf16.msra.mxu0 %v2737
      %3081 = vmatpush.bf16.msra.mxu0 %v2736
      %3082 = vmatpush.bf16.msra.mxu0 %v2735
      %3083 = vmatpush.bf16.msra.mxu0 %v2734
      %3084 = vmatpush.bf16.msra.mxu0 %v2733
      %3085 = vmatpush.bf16.msra.mxu0 %v2732
      %3086 = vmatmul.bf16.gmra.mxu0 %v2096
      %v3087 = vpop.f32.mrf.mxu0
      %v3088 = vadd.f32 %v3074, %v3087
      %v3089 = vpop.f32.mrf.mxu0
      %v3090 = vadd.f32 %v3076, %v3089
      %3091 = vdwg.mxu0
      %v3092 = vadd.f32 %v1334, %v3088
      %v3093 = vadd.f32 %v1335, %v3090
      %v3094 = vld [vmem:[%s624] sm:$0x1]
      %v3095 = vld [vmem:[%s627] sm:$0x1]
      %v3096 = vsel %vm661, %v3092, 0.0
      %3097 = vadd.xlane.f32.xlu0 %v3096
      %v3098 = vpop.xlane.xlu0 %3097
      %v3099 = vsel %vm661, %v3093, 0.0
      %3100 = vadd.xlane.f32.xlu0 %v3099
      %v3101 = vpop.xlane.xlu0 %3100
      %v3102 = vmul.f32 %v3098, %v1287
      %v3103 = vmul.f32 %v3101, %v1287
      %v3104 = vsub.f32 %v3092, %v3102
      %v3105 = vsub.f32 %v3093, %v3103
      %v3106 = vmul.f32 %v3104, %v3104
      %v3107 = vmul.f32 %v3105, %v3105
      %v3108 = vsel %vm661, %v3106, 0.0
      %3109 = vadd.xlane.f32.xlu0 %v3108
      %v3110 = vpop.xlane.xlu0 %3109
      %v3111 = vsel %vm661, %v3107, 0.0
      %3112 = vadd.xlane.f32.xlu0 %v3111
      %v3113 = vpop.xlane.xlu0 %3112
      %v3114 = vmul.f32 %v3110, %v1287
      %v3115 = vmul.f32 %v3113, %v1287
      %v3116 = vadd.f32 %v3114, 1e-05
      %v3117 = vadd.f32 %v3115, 1e-05
      %v3118 = vrsqrt.pop %v3116
      %v3119 = vmul.f32 %v3118, %v3116
      %v3120 = vmul.f32 %v3119, %v3118
      %v3121 = vmul.f32 0.5, %v3120
      %v3122 = vsub.f32 1.5, %v3121
      %v3123 = vmul.f32 %v3118, %v3122
      %vm3124 = vweird.f32 %v3116
      %vm3125 = vweird.f32 %v3118
      %vm3126 = vmor %vm3124, %vm3125
      %v3127 = vsel %vm3126, %v3118, %v3123
      %v3128 = vrsqrt.pop %v3117
      %v3129 = vmul.f32 %v3128, %v3117
      %v3130 = vmul.f32 %v3129, %v3128
      %v3131 = vmul.f32 0.5, %v3130
      %v3132 = vsub.f32 1.5, %v3131
      %v3133 = vmul.f32 %v3128, %v3132
      %vm3134 = vweird.f32 %v3117
      %vm3135 = vweird.f32 %v3128
      %vm3136 = vmor %vm3134, %vm3135
      %v3137 = vsel %vm3136, %v3128, %v3133
      %v3138 = vmul.f32 %v3104, %v3127
      %v3139 = vmul.f32 %v3105, %v3137
      %v3141 = vperm.slane %v3094, 0
      %v3143 = vmul.f32 %v3138, %v3141
      %v3144 = vmul.f32 %v3139, %v3141
      %v3146 = vperm.slane %v3095, 0
      %v3148 = vadd.f32 %v3143, %v3146
      %v3149 = vadd.f32 %v3144, %v3146
      %3150 = vst.msk [vmem:[%s14] sm:$0xff] %vm661, %v3148
      %3151 = vst.msk [vmem:[%s14 + $0x8] sm:$0xff] %vm661, %v3149
      // Predicated region
      $region81: #{transformer_forward.2} parent=75 // pred_check
        %p3152 = pneg %p392
      $region82: #{transformer_forward.2} parent=75 // pred_check_branch
        %3154 = sbr.rel (%p3152) target = $region84
      $region83: #{transformer_forward.2} parent=75 // pred_region
        _
      $region84: #{transformer_forward.2} parent=75 // pred_fallthru
        _
      // Predicated region
      $region85: #{transformer_forward.2} parent=75 // pred_check
        %p3155 = pneg %p392
      $region86: #{transformer_forward.2} parent=75 // pred_check_branch
        %3157 = sbr.rel (%p3155) target = $region88
      $region87: #{transformer_forward.2} parent=75 // pred_region
        _
      $region88: #{transformer_forward.2} parent=75 // pred_fallthru
        _
    $region76: #{transformer_forward.2} parent=5 // pred_fallthru
      _
    %p3158 = scmp.le.s32.totalorder 2, %s20
    // Predicated region
    $region89: #{transformer_forward.2} parent=5 // pred_check
      %p3159 = pneg %p3158
    $region90: #{transformer_forward.2} parent=5 // pred_check_branch
      %3161 = sbr.rel (%p3159) target = $region92
    $region91: #{transformer_forward.2} parent=5 // pred_region
      %s3162 = ssub.s32 %s20, 2
    $region92: #{transformer_forward.2} parent=5 // pred_fallthru
      _
  $region6: #{transformer_forward.2} parent=0 // loop_footer
    %s24 = sadd.s32 1, %s20
  $region7: #{transformer_forward.2} parent=0 // loop_footer_branch
    %19 = sbr.rel target = $region3
  $region8: #{transformer_forward.2} parent=0 // loop_exit
    _

// kernel: transformer_forward.3
$region0: #{transformer_forward.3}
  #allocation0 [shape = 'u32[]', space=smem, size = 0x4, offset = 0x4, fixed_abs, tag = 'smem constant byte address 0x4 - core index']
  #allocation1 [shape = 'u32[72,128]{1,0:T(1,128)}', space=vmem, size = 0x9000, scoped, tag = 'internal scratch']
  #allocation2 [shape = 'f32[16,32]{1,0:T(8,128)}', space=vmem, size = 0x2000, scoped, tag = 'scratch operand']
  %s0 = inlined_call_operand.vmem [shape: f32[16,32], index: 0, kind: input, shape index: {}]
  %s1 = inlined_call_operand.vmem [shape: f32[16,32], index: 1, kind: input, shape index: {}]
  %s2 = inlined_call_operand.vmem [shape: f32[2,8,8], index: 2, kind: input, shape index: {}]
  %s3 = inlined_call_operand.vmem [shape: bf16[2,32,96], index: 3, kind: input, shape index: {}]
  %s4 = inlined_call_operand.vmem [shape: f32[2,1,96], index: 4, kind: input, shape index: {}]
  %s5 = inlined_call_operand.vmem [shape: bf16[2,32,32], index: 5, kind: input, shape index: {}]
  %s6 = inlined_call_operand.vmem [shape: f32[2,1,32], index: 6, kind: input, shape index: {}]
  %s7 = inlined_call_operand.vmem [shape: f32[2,1,32], index: 7, kind: input, shape index: {}]
  %s8 = inlined_call_operand.vmem [shape: f32[2,1,32], index: 8, kind: input, shape index: {}]
  %s9 = inlined_call_operand.vmem [shape: bf16[2,32,32], index: 9, kind: input, shape index: {}]
  %s10 = inlined_call_operand.vmem [shape: f32[2,1,32], index: 10, kind: input, shape index: {}]
  %s11 = inlined_call_operand.vmem [shape: bf16[2,32,64], index: 11, kind: input, shape index: {}]
  %s12 = inlined_call_operand.vmem [shape: f32[2,1,64], index: 12, kind: input, shape index: {}]
  %s13 = inlined_call_operand.vmem [shape: bf16[2,32,32], index: 13, kind: input, shape index: {}]
  %s14 = inlined_call_operand.vmem [shape: f32[2,1,32], index: 14, kind: input, shape index: {}]
  %s15 = inlined_call_operand.vmem [shape: f32[2,1,32], index: 15, kind: input, shape index: {}]
  %s16 = inlined_call_operand.vmem [shape: f32[2,1,32], index: 16, kind: input, shape index: {}]
  %s17 = inlined_call_operand.vmem [shape: bf16[2,32,2048], index: 17, kind: input, shape index: {}]
  %s18 = inlined_call_operand.vmem [shape: f32[2,1,2048], index: 18, kind: input, shape index: {}]
  %s19 = inlined_call_operand.vmem [shape: bf16[2,2048,32], index: 19, kind: input, shape index: {}]
  %s20 = inlined_call_operand.vmem [shape: f32[2,1,32], index: 20, kind: input, shape index: {}]
  %s21 = inlined_call_operand.vmem [shape: f32[2,1,32], index: 21, kind: input, shape index: {}]
  %s22 = inlined_call_operand.vmem [shape: f32[2,1,32], index: 22, kind: input, shape index: {}]
  %s23 = inlined_call_operand.vmem [shape: bf16[32,128], index: 23, kind: input, shape index: {}]
  %s24 = inlined_call_operand.vmem [shape: f32[1,128], index: 24, kind: input, shape index: {}]
  %s25 = inlined_call_operand.vmem [shape: f32[16,128], index: 25, kind: output, shape index: {}]
  %s26 = sld [smem:[#allocation0]]
  $region141: #{transformer_forward.3} parent=0
    _
  %s28 = ssub.s32 1, %s26
  %s29 = scalar_select 0, %s28, %s26
  loop: start=0, step=1, limit=4
  $region2: #{transformer_forward.3} parent=0 // loop_pre_header
    _
  $region3: #{transformer_forward.3} parent=0 // loop_header
    %s31 = sphi 0, %s35
    %p32 = scmp.ge.s32.totalorder %s31, 4
    %s39 = sphi 0, %s39
    %s41 = sphi 0, %s39
    %s42 = sphi 0, %s41
    %s56 = sphi 0, %s42
    %s60 = sphi 0, %s60
    %s62 = sphi 0, %s60
    %s63 = sphi 0, %s62
    %s77 = sphi 0, %s63
    %s81 = sphi 0, %s81
    %s83 = sphi 0, %s81
    %s84 = sphi 0, %s83
    %s98 = sphi 0, %s84
    %s104 = sphi 0, %s106
    %s107 = sphi 0, %s104
    %s108 = sphi 0, %s107
    %s124 = sphi 0, %s108
    %s130 = sphi 0, %s132
    %s133 = sphi 0, %s130
    %s134 = sphi 0, %s133
    %s150 = sphi 0, %s134
    %s156 = sphi 0, %s158
    %s159 = sphi 0, %s156
    %s160 = sphi 0, %s159
    %s176 = sphi 0, %s160
    %s182 = sphi 0, %s184
    %s185 = sphi 0, %s182
    %s186 = sphi 0, %s185
    %s202 = sphi 0, %s186
    %s208 = sphi 0, %s210
    %s211 = sphi 0, %s208
    %s212 = sphi 0, %s211
    %s228 = sphi 0, %s212
    %s234 = sphi 0, %s236
    %s237 = sphi 0, %s234
    %s238 = sphi 0, %s237
    %s254 = sphi 0, %s238
    %s260 = sphi 0, %s262
    %s263 = sphi 0, %s260
    %s264 = sphi 0, %s263
    %s280 = sphi 0, %s264
    %s286 = sphi 0, %s288
    %s289 = sphi 0, %s286
    %s290 = sphi 0, %s289
    %s306 = sphi 0, %s290
    %s312 = sphi 0, %s314
    %s315 = sphi 0, %s312
    %s316 = sphi 0, %s315
    %s332 = sphi 0, %s316
    %s338 = sphi 0, %s340
    %s341 = sphi 0, %s338
    %s342 = sphi 0, %s341
    %s358 = sphi 0, %s342
    %s364 = sphi 0, %s366
    %s367 = sphi 0, %s364
    %s368 = sphi 0, %s367
    %s384 = sphi 0, %s368
    %s390 = sphi 0, %s392
    %s393 = sphi 0, %s390
    %s394 = sphi 0, %s393
    %s410 = sphi 0, %s394
    %s416 = sphi 0, %s418
    %s419 = sphi 0, %s416
    %s420 = sphi 0, %s419
    %s436 = sphi 0, %s420
    %s442 = sphi 0, %s444
    %s445 = sphi 0, %s442
    %s446 = sphi 0, %s445
    %s462 = sphi 0, %s446
    %s468 = sphi 0, %s470
    %s471 = sphi 0, %s468
    %s472 = sphi 0, %s471
    %s488 = sphi 0, %s472
    %s494 = sphi 0, %s496
    %s497 = sphi 0, %s494
    %s498 = sphi 0, %s497
    %s514 = sphi 0, %s498
    %s520 = sphi 0, %s522
    %s523 = sphi 0, %s520
    %s524 = sphi 0, %s523
    %s540 = sphi 0, %s524
    %s546 = sphi 0, %s548
    %s549 = sphi 0, %s546
    %s550 = sphi 0, %s549
    %s566 = sphi 0, %s550
    %s572 = sphi 0, %s574
    %s575 = sphi 0, %s572
    %s576 = sphi 0, %s575
    %s592 = sphi 0, %s576
    %s598 = sphi 0, %s600
    %s601 = sphi 0, %s598
    %s602 = sphi 0, %s601
    %s618 = sphi 0, %s602
    %s622 = sphi 0, %s622
    %s624 = sphi 0, %s622
    %s625 = sphi 0, %s624
    %s639 = sphi 0, %s625
    %s643 = sphi 0, %s643
    %s645 = sphi 0, %s643
    %s646 = sphi 0, %s645
    %s660 = sphi 0, %s646
    %s664 = sphi 0, %s664
    %s666 = sphi 0, %s664
    %s667 = sphi 0, %s666
    %s681 = sphi 0, %s667
  $region4: #{transformer_forward.3} parent=0 // loop_header_branch
    %34 = sbr.rel (%p32) target = $region8
  $region5: #{transformer_forward.3} parent=0 // loop_body
    %s36 = ssub.s32 %s31, 1
    %s37 = ssub.s32 %s31, 2
    %s38 = sadd.s32 %s31, 1
    %s40 = sadd.s32 %s39, 1
    %p43 = scmp.eq.s32.totalorder %s31, 1
    %p44 = scmp.ne.s32.totalorder %s39, %s41
    %p45 = scmp.eq.s32.totalorder %s31, 0
    %p46 = por %p44, %p45
    %p47 = scmp.ne.s32.totalorder %s39, %s41
    %p48 = scmp.eq.s32.totalorder %s36, 1
    %p49 = por %p47, %p48
    %p50 = scmp.ne.s32.totalorder %s41, %s42
    %p51 = scmp.eq.s32.totalorder %s36, 0
    %p52 = por %p50, %p51
    %p53 = scmp.ne.s32.totalorder %s41, %s42
    %p54 = scmp.eq.s32.totalorder %s37, 1
    %p55 = por %p53, %p54
    %p57 = scmp.ne.s32.totalorder %s42, %s56
    %p58 = scmp.eq.s32.totalorder %s37, 0
    %p59 = por %p57, %p58
    %s61 = sadd.s32 %s60, 1
    %p64 = scmp.eq.s32.totalorder %s31, 1
    %p65 = scmp.ne.s32.totalorder %s60, %s62
    %p66 = scmp.eq.s32.totalorder %s31, 0
    %p67 = por %p65, %p66
    %p68 = scmp.ne.s32.totalorder %s60, %s62
    %p69 = scmp.eq.s32.totalorder %s36, 1
    %p70 = por %p68, %p69
    %p71 = scmp.ne.s32.totalorder %s62, %s63
    %p72 = scmp.eq.s32.totalorder %s36, 0
    %p73 = por %p71, %p72
    %p74 = scmp.ne.s32.totalorder %s62, %s63
    %p75 = scmp.eq.s32.totalorder %s37, 1
    %p76 = por %p74, %p75
    %p78 = scmp.ne.s32.totalorder %s63, %s77
    %p79 = scmp.eq.s32.totalorder %s37, 0
    %p80 = por %p78, %p79
    %s82 = sadd.s32 %s81, 1
    %p85 = scmp.eq.s32.totalorder %s31, 1
    %p86 = scmp.ne.s32.totalorder %s81, %s83
    %p87 = scmp.eq.s32.totalorder %s31, 0
    %p88 = por %p86, %p87
    %p89 = scmp.ne.s32.totalorder %s81, %s83
    %p90 = scmp.eq.s32.totalorder %s36, 1
    %p91 = por %p89, %p90
    %p92 = scmp.ne.s32.totalorder %s83, %s84
    %p93 = scmp.eq.s32.totalorder %s36, 0
    %p94 = por %p92, %p93
    %p95 = scmp.ne.s32.totalorder %s83, %s84
    %p96 = scmp.eq.s32.totalorder %s37, 1
    %p97 = por %p95, %p96
    %p99 = scmp.ne.s32.totalorder %s84, %s98
    %p100 = scmp.eq.s32.totalorder %s37, 0
    %p101 = por %p99, %p100
    %s102 = ssub.s32 %s31, %s38
    %p103 = scmp.eq.s32.totalorder %s102, 0
    %s105 = sadd.s32 %s104, 1
    %s106 = scalar_select %p103, %s104, %s105
    %p109 = pneg %p103
    %p110 = scmp.eq.s32.totalorder %s31, 1
    %p111 = por %p109, %p110
    %p112 = scmp.ne.s32.totalorder %s104, %s107
    %p113 = scmp.eq.s32.totalorder %s31, 0
    %p114 = por %p112, %p113
    %p115 = scmp.ne.s32.totalorder %s104, %s107
    %p116 = scmp.eq.s32.totalorder %s36, 1
    %p117 = por %p115, %p116
    %p118 = scmp.ne.s32.totalorder %s107, %s108
    %p119 = scmp.eq.s32.totalorder %s36, 0
    %p120 = por %p118, %p119
    %p121 = scmp.ne.s32.totalorder %s107, %s108
    %p122 = scmp.eq.s32.totalorder %s37, 1
    %p123 = por %p121, %p122
    %p125 = scmp.ne.s32.totalorder %s108, %s124
    %p126 = scmp.eq.s32.totalorder %s37, 0
    %p127 = por %p125, %p126
    %s128 = ssub.s32 %s31, %s38
    %p129 = scmp.eq.s32.totalorder %s128, 0
    %s131 = sadd.s32 %s130, 1
    %s132 = scalar_select %p129, %s130, %s131
    %p135 = pneg %p129
    %p136 = scmp.eq.s32.totalorder %s31, 1
    %p137 = por %p135, %p136
    %p138 = scmp.ne.s32.totalorder %s130, %s133
    %p139 = scmp.eq.s32.totalorder %s31, 0
    %p140 = por %p138, %p139
    %p141 = scmp.ne.s32.totalorder %s130, %s133
    %p142 = scmp.eq.s32.totalorder %s36, 1
    %p143 = por %p141, %p142
    %p144 = scmp.ne.s32.totalorder %s133, %s134
    %p145 = scmp.eq.s32.totalorder %s36, 0
    %p146 = por %p144, %p145
    %p147 = scmp.ne.s32.totalorder %s133, %s134
    %p148 = scmp.eq.s32.totalorder %s37, 1
    %p149 = por %p147, %p148
    %p151 = scmp.ne.s32.totalorder %s134, %s150
    %p152 = scmp.eq.s32.totalorder %s37, 0
    %p153 = por %p151, %p152
    %s154 = ssub.s32 %s31, %s38
    %p155 = scmp.eq.s32.totalorder %s154, 0
    %s157 = sadd.s32 %s156, 1
    %s158 = scalar_select %p155, %s156, %s157
    %p161 = pneg %p155
    %p162 = scmp.eq.s32.totalorder %s31, 1
    %p163 = por %p161, %p162
    %p164 = scmp.ne.s32.totalorder %s156, %s159
    %p165 = scmp.eq.s32.totalorder %s31, 0
    %p166 = por %p164, %p165
    %p167 = scmp.ne.s32.totalorder %s156, %s159
    %p168 = scmp.eq.s32.totalorder %s36, 1
    %p169 = por %p167, %p168
    %p170 = scmp.ne.s32.totalorder %s159, %s160
    %p171 = scmp.eq.s32.totalorder %s36, 0
    %p172 = por %p170, %p171
    %p173 = scmp.ne.s32.totalorder %s159, %s160
    %p174 = scmp.eq.s32.totalorder %s37, 1
    %p175 = por %p173, %p174
    %p177 = scmp.ne.s32.totalorder %s160, %s176
    %p178 = scmp.eq.s32.totalorder %s37, 0
    %p179 = por %p177, %p178
    %s180 = ssub.s32 %s31, %s38
    %p181 = scmp.eq.s32.totalorder %s180, 0
    %s183 = sadd.s32 %s182, 1
    %s184 = scalar_select %p181, %s182, %s183
    %p187 = pneg %p181
    %p188 = scmp.eq.s32.totalorder %s31, 1
    %p189 = por %p187, %p188
    %p190 = scmp.ne.s32.totalorder %s182, %s185
    %p191 = scmp.eq.s32.totalorder %s31, 0
    %p192 = por %p190, %p191
    %p193 = scmp.ne.s32.totalorder %s182, %s185
    %p194 = scmp.eq.s32.totalorder %s36, 1
    %p195 = por %p193, %p194
    %p196 = scmp.ne.s32.totalorder %s185, %s186
    %p197 = scmp.eq.s32.totalorder %s36, 0
    %p198 = por %p196, %p197
    %p199 = scmp.ne.s32.totalorder %s185, %s186
    %p200 = scmp.eq.s32.totalorder %s37, 1
    %p201 = por %p199, %p200
    %p203 = scmp.ne.s32.totalorder %s186, %s202
    %p204 = scmp.eq.s32.totalorder %s37, 0
    %p205 = por %p203, %p204
    %s206 = ssub.s32 %s31, %s38
    %p207 = scmp.eq.s32.totalorder %s206, 0
    %s209 = sadd.s32 %s208, 1
    %s210 = scalar_select %p207, %s208, %s209
    %p213 = pneg %p207
    %p214 = scmp.eq.s32.totalorder %s31, 1
    %p215 = por %p213, %p214
    %p216 = scmp.ne.s32.totalorder %s208, %s211
    %p217 = scmp.eq.s32.totalorder %s31, 0
    %p218 = por %p216, %p217
    %p219 = scmp.ne.s32.totalorder %s208, %s211
    %p220 = scmp.eq.s32.totalorder %s36, 1
    %p221 = por %p219, %p220
    %p222 = scmp.ne.s32.totalorder %s211, %s212
    %p223 = scmp.eq.s32.totalorder %s36, 0
    %p224 = por %p222, %p223
    %p225 = scmp.ne.s32.totalorder %s211, %s212
    %p226 = scmp.eq.s32.totalorder %s37, 1
    %p227 = por %p225, %p226
    %p229 = scmp.ne.s32.totalorder %s212, %s228
    %p230 = scmp.eq.s32.totalorder %s37, 0
    %p231 = por %p229, %p230
    %s232 = ssub.s32 %s31, %s38
    %p233 = scmp.eq.s32.totalorder %s232, 0
    %s235 = sadd.s32 %s234, 1
    %s236 = scalar_select %p233, %s234, %s235
    %p239 = pneg %p233
    %p240 = scmp.eq.s32.totalorder %s31, 1
    %p241 = por %p239, %p240
    %p242 = scmp.ne.s32.totalorder %s234, %s237
    %p243 = scmp.eq.s32.totalorder %s31, 0
    %p244 = por %p242, %p243
    %p245 = scmp.ne.s32.totalorder %s234, %s237
    %p246 = scmp.eq.s32.totalorder %s36, 1
    %p247 = por %p245, %p246
    %p248 = scmp.ne.s32.totalorder %s237, %s238
    %p249 = scmp.eq.s32.totalorder %s36, 0
    %p250 = por %p248, %p249
    %p251 = scmp.ne.s32.totalorder %s237, %s238
    %p252 = scmp.eq.s32.totalorder %s37, 1
    %p253 = por %p251, %p252
    %p255 = scmp.ne.s32.totalorder %s238, %s254
    %p256 = scmp.eq.s32.totalorder %s37, 0
    %p257 = por %p255, %p256
    %s258 = ssub.s32 %s31, %s38
    %p259 = scmp.eq.s32.totalorder %s258, 0
    %s261 = sadd.s32 %s260, 1
    %s262 = scalar_select %p259, %s260, %s261
    %p265 = pneg %p259
    %p266 = scmp.eq.s32.totalorder %s31, 1
    %p267 = por %p265, %p266
    %p268 = scmp.ne.s32.totalorder %s260, %s263
    %p269 = scmp.eq.s32.totalorder %s31, 0
    %p270 = por %p268, %p269
    %p271 = scmp.ne.s32.totalorder %s260, %s263
    %p272 = scmp.eq.s32.totalorder %s36, 1
    %p273 = por %p271, %p272
    %p274 = scmp.ne.s32.totalorder %s263, %s264
    %p275 = scmp.eq.s32.totalorder %s36, 0
    %p276 = por %p274, %p275
    %p277 = scmp.ne.s32.totalorder %s263, %s264
    %p278 = scmp.eq.s32.totalorder %s37, 1
    %p279 = por %p277, %p278
    %p281 = scmp.ne.s32.totalorder %s264, %s280
    %p282 = scmp.eq.s32.totalorder %s37, 0
    %p283 = por %p281, %p282
    %s284 = ssub.s32 %s31, %s38
    %p285 = scmp.eq.s32.totalorder %s284, 0
    %s287 = sadd.s32 %s286, 1
    %s288 = scalar_select %p285, %s286, %s287
    %p291 = pneg %p285
    %p292 = scmp.eq.s32.totalorder %s31, 1
    %p293 = por %p291, %p292
    %p294 = scmp.ne.s32.totalorder %s286, %s289
    %p295 = scmp.eq.s32.totalorder %s31, 0
    %p296 = por %p294, %p295
    %p297 = scmp.ne.s32.totalorder %s286, %s289
    %p298 = scmp.eq.s32.totalorder %s36, 1
    %p299 = por %p297, %p298
    %p300 = scmp.ne.s32.totalorder %s289, %s290
    %p301 = scmp.eq.s32.totalorder %s36, 0
    %p302 = por %p300, %p301
    %p303 = scmp.ne.s32.totalorder %s289, %s290
    %p304 = scmp.eq.s32.totalorder %s37, 1
    %p305 = por %p303, %p304
    %p307 = scmp.ne.s32.totalorder %s290, %s306
    %p308 = scmp.eq.s32.totalorder %s37, 0
    %p309 = por %p307, %p308
    %s310 = ssub.s32 %s31, %s38
    %p311 = scmp.eq.s32.totalorder %s310, 0
    %s313 = sadd.s32 %s312, 1
    %s314 = scalar_select %p311, %s312, %s313
    %p317 = pneg %p311
    %p318 = scmp.eq.s32.totalorder %s31, 1
    %p319 = por %p317, %p318
    %p320 = scmp.ne.s32.totalorder %s312, %s315
    %p321 = scmp.eq.s32.totalorder %s31, 0
    %p322 = por %p320, %p321
    %p323 = scmp.ne.s32.totalorder %s312, %s315
    %p324 = scmp.eq.s32.totalorder %s36, 1
    %p325 = por %p323, %p324
    %p326 = scmp.ne.s32.totalorder %s315, %s316
    %p327 = scmp.eq.s32.totalorder %s36, 0
    %p328 = por %p326, %p327
    %p329 = scmp.ne.s32.totalorder %s315, %s316
    %p330 = scmp.eq.s32.totalorder %s37, 1
    %p331 = por %p329, %p330
    %p333 = scmp.ne.s32.totalorder %s316, %s332
    %p334 = scmp.eq.s32.totalorder %s37, 0
    %p335 = por %p333, %p334
    %s336 = ssub.s32 %s31, %s38
    %p337 = scmp.eq.s32.totalorder %s336, 0
    %s339 = sadd.s32 %s338, 1
    %s340 = scalar_select %p337, %s338, %s339
    %p343 = pneg %p337
    %p344 = scmp.eq.s32.totalorder %s31, 1
    %p345 = por %p343, %p344
    %p346 = scmp.ne.s32.totalorder %s338, %s341
    %p347 = scmp.eq.s32.totalorder %s31, 0
    %p348 = por %p346, %p347
    %p349 = scmp.ne.s32.totalorder %s338, %s341
    %p350 = scmp.eq.s32.totalorder %s36, 1
    %p351 = por %p349, %p350
    %p352 = scmp.ne.s32.totalorder %s341, %s342
    %p353 = scmp.eq.s32.totalorder %s36, 0
    %p354 = por %p352, %p353
    %p355 = scmp.ne.s32.totalorder %s341, %s342
    %p356 = scmp.eq.s32.totalorder %s37, 1
    %p357 = por %p355, %p356
    %p359 = scmp.ne.s32.totalorder %s342, %s358
    %p360 = scmp.eq.s32.totalorder %s37, 0
    %p361 = por %p359, %p360
    %s362 = ssub.s32 %s31, %s38
    %p363 = scmp.eq.s32.totalorder %s362, 0
    %s365 = sadd.s32 %s364, 1
    %s366 = scalar_select %p363, %s364, %s365
    %p369 = pneg %p363
    %p370 = scmp.eq.s32.totalorder %s31, 1
    %p371 = por %p369, %p370
    %p372 = scmp.ne.s32.totalorder %s364, %s367
    %p373 = scmp.eq.s32.totalorder %s31, 0
    %p374 = por %p372, %p373
    %p375 = scmp.ne.s32.totalorder %s364, %s367
    %p376 = scmp.eq.s32.totalorder %s36, 1
    %p377 = por %p375, %p376
    %p378 = scmp.ne.s32.totalorder %s367, %s368
    %p379 = scmp.eq.s32.totalorder %s36, 0
    %p380 = por %p378, %p379
    %p381 = scmp.ne.s32.totalorder %s367, %s368
    %p382 = scmp.eq.s32.totalorder %s37, 1
    %p383 = por %p381, %p382
    %p385 = scmp.ne.s32.totalorder %s368, %s384
    %p386 = scmp.eq.s32.totalorder %s37, 0
    %p387 = por %p385, %p386
    %s388 = ssub.s32 %s31, %s38
    %p389 = scmp.eq.s32.totalorder %s388, 0
    %s391 = sadd.s32 %s390, 1
    %s392 = scalar_select %p389, %s390, %s391
    %p395 = pneg %p389
    %p396 = scmp.eq.s32.totalorder %s31, 1
    %p397 = por %p395, %p396
    %p398 = scmp.ne.s32.totalorder %s390, %s393
    %p399 = scmp.eq.s32.totalorder %s31, 0
    %p400 = por %p398, %p399
    %p401 = scmp.ne.s32.totalorder %s390, %s393
    %p402 = scmp.eq.s32.totalorder %s36, 1
    %p403 = por %p401, %p402
    %p404 = scmp.ne.s32.totalorder %s393, %s394
    %p405 = scmp.eq.s32.totalorder %s36, 0
    %p406 = por %p404, %p405
    %p407 = scmp.ne.s32.totalorder %s393, %s394
    %p408 = scmp.eq.s32.totalorder %s37, 1
    %p409 = por %p407, %p408
    %p411 = scmp.ne.s32.totalorder %s394, %s410
    %p412 = scmp.eq.s32.totalorder %s37, 0
    %p413 = por %p411, %p412
    %s414 = ssub.s32 %s31, %s38
    %p415 = scmp.eq.s32.totalorder %s414, 0
    %s417 = sadd.s32 %s416, 1
    %s418 = scalar_select %p415, %s416, %s417
    %p421 = pneg %p415
    %p422 = scmp.eq.s32.totalorder %s31, 1
    %p423 = por %p421, %p422
    %p424 = scmp.ne.s32.totalorder %s416, %s419
    %p425 = scmp.eq.s32.totalorder %s31, 0
    %p426 = por %p424, %p425
    %p427 = scmp.ne.s32.totalorder %s416, %s419
    %p428 = scmp.eq.s32.totalorder %s36, 1
    %p429 = por %p427, %p428
    %p430 = scmp.ne.s32.totalorder %s419, %s420
    %p431 = scmp.eq.s32.totalorder %s36, 0
    %p432 = por %p430, %p431
    %p433 = scmp.ne.s32.totalorder %s419, %s420
    %p434 = scmp.eq.s32.totalorder %s37, 1
    %p435 = por %p433, %p434
    %p437 = scmp.ne.s32.totalorder %s420, %s436
    %p438 = scmp.eq.s32.totalorder %s37, 0
    %p439 = por %p437, %p438
    %s440 = ssub.s32 %s31, %s38
    %p441 = scmp.eq.s32.totalorder %s440, 0
    %s443 = sadd.s32 %s442, 1
    %s444 = scalar_select %p441, %s442, %s443
    %p447 = pneg %p441
    %p448 = scmp.eq.s32.totalorder %s31, 1
    %p449 = por %p447, %p448
    %p450 = scmp.ne.s32.totalorder %s442, %s445
    %p451 = scmp.eq.s32.totalorder %s31, 0
    %p452 = por %p450, %p451
    %p453 = scmp.ne.s32.totalorder %s442, %s445
    %p454 = scmp.eq.s32.totalorder %s36, 1
    %p455 = por %p453, %p454
    %p456 = scmp.ne.s32.totalorder %s445, %s446
    %p457 = scmp.eq.s32.totalorder %s36, 0
    %p458 = por %p456, %p457
    %p459 = scmp.ne.s32.totalorder %s445, %s446
    %p460 = scmp.eq.s32.totalorder %s37, 1
    %p461 = por %p459, %p460
    %p463 = scmp.ne.s32.totalorder %s446, %s462
    %p464 = scmp.eq.s32.totalorder %s37, 0
    %p465 = por %p463, %p464
    %s466 = ssub.s32 %s31, %s38
    %p467 = scmp.eq.s32.totalorder %s466, 0
    %s469 = sadd.s32 %s468, 1
    %s470 = scalar_select %p467, %s468, %s469
    %p473 = pneg %p467
    %p474 = scmp.eq.s32.totalorder %s31, 1
    %p475 = por %p473, %p474
    %p476 = scmp.ne.s32.totalorder %s468, %s471
    %p477 = scmp.eq.s32.totalorder %s31, 0
    %p478 = por %p476, %p477
    %p479 = scmp.ne.s32.totalorder %s468, %s471
    %p480 = scmp.eq.s32.totalorder %s36, 1
    %p481 = por %p479, %p480
    %p482 = scmp.ne.s32.totalorder %s471, %s472
    %p483 = scmp.eq.s32.totalorder %s36, 0
    %p484 = por %p482, %p483
    %p485 = scmp.ne.s32.totalorder %s471, %s472
    %p486 = scmp.eq.s32.totalorder %s37, 1
    %p487 = por %p485, %p486
    %p489 = scmp.ne.s32.totalorder %s472, %s488
    %p490 = scmp.eq.s32.totalorder %s37, 0
    %p491 = por %p489, %p490
    %s492 = ssub.s32 %s31, %s38
    %p493 = scmp.eq.s32.totalorder %s492, 0
    %s495 = sadd.s32 %s494, 1
    %s496 = scalar_select %p493, %s494, %s495
    %p499 = pneg %p493
    %p500 = scmp.eq.s32.totalorder %s31, 1
    %p501 = por %p499, %p500
    %p502 = scmp.ne.s32.totalorder %s494, %s497
    %p503 = scmp.eq.s32.totalorder %s31, 0
    %p504 = por %p502, %p503
    %p505 = scmp.ne.s32.totalorder %s494, %s497
    %p506 = scmp.eq.s32.totalorder %s36, 1
    %p507 = por %p505, %p506
    %p508 = scmp.ne.s32.totalorder %s497, %s498
    %p509 = scmp.eq.s32.totalorder %s36, 0
    %p510 = por %p508, %p509
    %p511 = scmp.ne.s32.totalorder %s497, %s498
    %p512 = scmp.eq.s32.totalorder %s37, 1
    %p513 = por %p511, %p512
    %p515 = scmp.ne.s32.totalorder %s498, %s514
    %p516 = scmp.eq.s32.totalorder %s37, 0
    %p517 = por %p515, %p516
    %s518 = ssub.s32 %s31, %s38
    %p519 = scmp.eq.s32.totalorder %s518, 0
    %s521 = sadd.s32 %s520, 1
    %s522 = scalar_select %p519, %s520, %s521
    %p525 = pneg %p519
    %p526 = scmp.eq.s32.totalorder %s31, 1
    %p527 = por %p525, %p526
    %p528 = scmp.ne.s32.totalorder %s520, %s523
    %p529 = scmp.eq.s32.totalorder %s31, 0
    %p530 = por %p528, %p529
    %p531 = scmp.ne.s32.totalorder %s520, %s523
    %p532 = scmp.eq.s32.totalorder %s36, 1
    %p533 = por %p531, %p532
    %p534 = scmp.ne.s32.totalorder %s523, %s524
    %p535 = scmp.eq.s32.totalorder %s36, 0
    %p536 = por %p534, %p535
    %p537 = scmp.ne.s32.totalorder %s523, %s524
    %p538 = scmp.eq.s32.totalorder %s37, 1
    %p539 = por %p537, %p538
    %p541 = scmp.ne.s32.totalorder %s524, %s540
    %p542 = scmp.eq.s32.totalorder %s37, 0
    %p543 = por %p541, %p542
    %s544 = ssub.s32 %s31, %s38
    %p545 = scmp.eq.s32.totalorder %s544, 0
    %s547 = sadd.s32 %s546, 1
    %s548 = scalar_select %p545, %s546, %s547
    %p551 = pneg %p545
    %p552 = scmp.eq.s32.totalorder %s31, 1
    %p553 = por %p551, %p552
    %p554 = scmp.ne.s32.totalorder %s546, %s549
    %p555 = scmp.eq.s32.totalorder %s31, 0
    %p556 = por %p554, %p555
    %p557 = scmp.ne.s32.totalorder %s546, %s549
    %p558 = scmp.eq.s32.totalorder %s36, 1
    %p559 = por %p557, %p558
    %p560 = scmp.ne.s32.totalorder %s549, %s550
    %p561 = scmp.eq.s32.totalorder %s36, 0
    %p562 = por %p560, %p561
    %p563 = scmp.ne.s32.totalorder %s549, %s550
    %p564 = scmp.eq.s32.totalorder %s37, 1
    %p565 = por %p563, %p564
    %p567 = scmp.ne.s32.totalorder %s550, %s566
    %p568 = scmp.eq.s32.totalorder %s37, 0
    %p569 = por %p567, %p568
    %s570 = ssub.s32 %s31, %s38
    %p571 = scmp.eq.s32.totalorder %s570, 0
    %s573 = sadd.s32 %s572, 1
    %s574 = scalar_select %p571, %s572, %s573
    %p577 = pneg %p571
    %p578 = scmp.eq.s32.totalorder %s31, 1
    %p579 = por %p577, %p578
    %p580 = scmp.ne.s32.totalorder %s572, %s575
    %p581 = scmp.eq.s32.totalorder %s31, 0
    %p582 = por %p580, %p581
    %p583 = scmp.ne.s32.totalorder %s572, %s575
    %p584 = scmp.eq.s32.totalorder %s36, 1
    %p585 = por %p583, %p584
    %p586 = scmp.ne.s32.totalorder %s575, %s576
    %p587 = scmp.eq.s32.totalorder %s36, 0
    %p588 = por %p586, %p587
    %p589 = scmp.ne.s32.totalorder %s575, %s576
    %p590 = scmp.eq.s32.totalorder %s37, 1
    %p591 = por %p589, %p590
    %p593 = scmp.ne.s32.totalorder %s576, %s592
    %p594 = scmp.eq.s32.totalorder %s37, 0
    %p595 = por %p593, %p594
    %s596 = ssub.s32 %s31, %s38
    %p597 = scmp.eq.s32.totalorder %s596, 0
    %s599 = sadd.s32 %s598, 1
    %s600 = scalar_select %p597, %s598, %s599
    %p603 = pneg %p597
    %p604 = scmp.eq.s32.totalorder %s31, 1
    %p605 = por %p603, %p604
    %p606 = scmp.ne.s32.totalorder %s598, %s601
    %p607 = scmp.eq.s32.totalorder %s31, 0
    %p608 = por %p606, %p607
    %p609 = scmp.ne.s32.totalorder %s598, %s601
    %p610 = scmp.eq.s32.totalorder %s36, 1
    %p611 = por %p609, %p610
    %p612 = scmp.ne.s32.totalorder %s601, %s602
    %p613 = scmp.eq.s32.totalorder %s36, 0
    %p614 = por %p612, %p613
    %p615 = scmp.ne.s32.totalorder %s601, %s602
    %p616 = scmp.eq.s32.totalorder %s37, 1
    %p617 = por %p615, %p616
    %p619 = scmp.ne.s32.totalorder %s602, %s618
    %p620 = scmp.eq.s32.totalorder %s37, 0
    %p621 = por %p619, %p620
    %s623 = sadd.s32 %s622, 1
    %p626 = scmp.eq.s32.totalorder %s31, 1
    %p627 = scmp.ne.s32.totalorder %s622, %s624
    %p628 = scmp.eq.s32.totalorder %s31, 0
    %p629 = por %p627, %p628
    %p630 = scmp.ne.s32.totalorder %s622, %s624
    %p631 = scmp.eq.s32.totalorder %s36, 1
    %p632 = por %p630, %p631
    %p633 = scmp.ne.s32.totalorder %s624, %s625
    %p634 = scmp.eq.s32.totalorder %s36, 0
    %p635 = por %p633, %p634
    %p636 = scmp.ne.s32.totalorder %s624, %s625
    %p637 = scmp.eq.s32.totalorder %s37, 1
    %p638 = por %p636, %p637
    %p640 = scmp.ne.s32.totalorder %s625, %s639
    %p641 = scmp.eq.s32.totalorder %s37, 0
    %p642 = por %p640, %p641
    %s644 = sadd.s32 %s643, 1
    %p647 = scmp.eq.s32.totalorder %s31, 1
    %p648 = scmp.ne.s32.totalorder %s643, %s645
    %p649 = scmp.eq.s32.totalorder %s31, 0
    %p650 = por %p648, %p649
    %p651 = scmp.ne.s32.totalorder %s643, %s645
    %p652 = scmp.eq.s32.totalorder %s36, 1
    %p653 = por %p651, %p652
    %p654 = scmp.ne.s32.totalorder %s645, %s646
    %p655 = scmp.eq.s32.totalorder %s36, 0
    %p656 = por %p654, %p655
    %p657 = scmp.ne.s32.totalorder %s645, %s646
    %p658 = scmp.eq.s32.totalorder %s37, 1
    %p659 = por %p657, %p658
    %p661 = scmp.ne.s32.totalorder %s646, %s660
    %p662 = scmp.eq.s32.totalorder %s37, 0
    %p663 = por %p661, %p662
    %s665 = sadd.s32 %s664, 1
    %p668 = scmp.eq.s32.totalorder %s31, 1
    %p669 = scmp.ne.s32.totalorder %s664, %s666
    %p670 = scmp.eq.s32.totalorder %s31, 0
    %p671 = por %p669, %p670
    %p672 = scmp.ne.s32.totalorder %s664, %s666
    %p673 = scmp.eq.s32.totalorder %s36, 1
    %p674 = por %p672, %p673
    %p675 = scmp.ne.s32.totalorder %s666, %s667
    %p676 = scmp.eq.s32.totalorder %s36, 0
    %p677 = por %p675, %p676
    %p678 = scmp.ne.s32.totalorder %s666, %s667
    %p679 = scmp.eq.s32.totalorder %s37, 1
    %p680 = por %p678, %p679
    %p682 = scmp.ne.s32.totalorder %s667, %s681
    %p683 = scmp.eq.s32.totalorder %s37, 0
    %p684 = por %p682, %p683
    %p685 = scmp.le.s32.totalorder 1, %s31
    %p686 = scmp.lt.s32.totalorder %s31, 3
    %p687 = pnand %p685, %p686
    %p688 = pneg %p687
    // Predicated region
    $region9: #{transformer_forward.3} parent=5 // pred_check
      _
    $region10: #{transformer_forward.3} parent=5 // pred_check_branch
      %690 = sbr.rel (%p687) target = $region12
    $region11: #{transformer_forward.3} parent=5 // pred_region
      %s691 = ssub.s32 %s31, 1
      // Predicated region
      $region13: #{transformer_forward.3} parent=11 // pred_check
        %p692 = pneg %p52
      $region14: #{transformer_forward.3} parent=11 // pred_check_branch
        %694 = sbr.rel (%p692) target = $region16
      $region15: #{transformer_forward.3} parent=11 // pred_region
        _
      $region16: #{transformer_forward.3} parent=11 // pred_fallthru
        _
      // Predicated region
      $region17: #{transformer_forward.3} parent=11 // pred_check
        %p695 = pneg %p73
      $region18: #{transformer_forward.3} parent=11 // pred_check_branch
        %697 = sbr.rel (%p695) target = $region20
      $region19: #{transformer_forward.3} parent=11 // pred_region
        _
      $region20: #{transformer_forward.3} parent=11 // pred_fallthru
        _
      // Predicated region
      $region21: #{transformer_forward.3} parent=11 // pred_check
        %p698 = pneg %p94
      $region22: #{transformer_forward.3} parent=11 // pred_check_branch
        %700 = sbr.rel (%p698) target = $region24
      $region23: #{transformer_forward.3} parent=11 // pred_region
        _
      $region24: #{transformer_forward.3} parent=11 // pred_fallthru
        _
      // Predicated region
      $region25: #{transformer_forward.3} parent=11 // pred_check
        %p701 = pneg %p635
      $region26: #{transformer_forward.3} parent=11 // pred_check_branch
        %703 = sbr.rel (%p701) target = $region28
      $region27: #{transformer_forward.3} parent=11 // pred_region
        _
      $region28: #{transformer_forward.3} parent=11 // pred_fallthru
        _
      // Predicated region
      $region29: #{transformer_forward.3} parent=11 // pred_check
        %p704 = pneg %p656
      $region30: #{transformer_forward.3} parent=11 // pred_check_branch
        %706 = sbr.rel (%p704) target = $region32
      $region31: #{transformer_forward.3} parent=11 // pred_region
        _
      $region32: #{transformer_forward.3} parent=11 // pred_fallthru
        _
    $region12: #{transformer_forward.3} parent=5 // pred_fallthru
      _
    %p707 = scmp.lt.s32.totalorder %s31, 2
    // Predicated region
    $region33: #{transformer_forward.3} parent=5 // pred_check
      %p708 = pneg %p707
    $region34: #{transformer_forward.3} parent=5 // pred_check_branch
      %710 = sbr.rel (%p708) target = $region36
    $region35: #{transformer_forward.3} parent=5 // pred_region
      // Predicated region
      $region37: #{transformer_forward.3} parent=35 // pred_check
        %p711 = pneg %p114
      $region38: #{transformer_forward.3} parent=35 // pred_check_branch
        %713 = sbr.rel (%p711) target = $region40
      $region39: #{transformer_forward.3} parent=35 // pred_region
        %p714 = scmp.lt.s32.totalorder %s31, 1
        %s715 = scalar_select %p714, %s31, 1
        %s716 = smul.addr %s715, 4
        %s717 = smul.addr %s716, 4
        %s718 = scalar_lea.vmem %s3, %s717
      $region40: #{transformer_forward.3} parent=35 // pred_fallthru
        _
      // Predicated region
      $region41: #{transformer_forward.3} parent=35 // pred_check
        %p719 = pneg %p140
      $region42: #{transformer_forward.3} parent=35 // pred_check_branch
        %721 = sbr.rel (%p719) target = $region44
      $region43: #{transformer_forward.3} parent=35 // pred_region
        %p722 = scmp.lt.s32.totalorder %s31, 1
        %s723 = scalar_select %p722, %s31, 1
        %s724 = scalar_lea.vmem %s4, %s723
      $region44: #{transformer_forward.3} parent=35 // pred_fallthru
        _
      // Predicated region
      $region45: #{transformer_forward.3} parent=35 // pred_check
        %p725 = pneg %p166
      $region46: #{transformer_forward.3} parent=35 // pred_check_branch
        %727 = sbr.rel (%p725) target = $region48
      $region47: #{transformer_forward.3} parent=35 // pred_region
        %p728 = scmp.lt.s32.totalorder %s31, 1
        %s729 = scalar_select %p728, %s31, 1
        %s730 = smul.addr %s729, 4
        %s731 = smul.addr %s730, 4
        %s732 = scalar_lea.vmem %s5, %s731
      $region48: #{transformer_forward.3} parent=35 // pred_fallthru
        _
      // Predicated region
      $region49: #{transformer_forward.3} parent=35 // pred_check
        %p733 = pneg %p192
      $region50: #{transformer_forward.3} parent=35 // pred_check_branch
        %735 = sbr.rel (%p733) target = $region52
      $region51: #{transformer_forward.3} parent=35 // pred_region
        %p736 = scmp.lt.s32.totalorder %s31, 1
        %s737 = scalar_select %p736, %s31, 1
        %s738 = scalar_lea.vmem %s6, %s737
      $region52: #{transformer_forward.3} parent=35 // pred_fallthru
        _
      // Predicated region
      $region53: #{transformer_forward.3} parent=35 // pred_check
        %p739 = pneg %p218
      $region54: #{transformer_forward.3} parent=35 // pred_check_branch
        %741 = sbr.rel (%p739) target = $region56
      $region55: #{transformer_forward.3} parent=35 // pred_region
        %p742 = scmp.lt.s32.totalorder %s31, 1
        %s743 = scalar_select %p742, %s31, 1
        %s744 = scalar_lea.vmem %s7, %s743
      $region56: #{transformer_forward.3} parent=35 // pred_fallthru
        _
      // Predicated region
      $region57: #{transformer_forward.3} parent=35 // pred_check
        %p745 = pneg %p244
      $region58: #{transformer_forward.3} parent=35 // pred_check_branch
        %747 = sbr.rel (%p745) target = $region60
      $region59: #{transformer_forward.3} parent=35 // pred_region
        %p748 = scmp.lt.s32.totalorder %s31, 1
        %s749 = scalar_select %p748, %s31, 1
        %s750 = scalar_lea.vmem %s8, %s749
      $region60: #{transformer_forward.3} parent=35 // pred_fallthru
        _
      // Predicated region
      $region61: #{transformer_forward.3} parent=35 // pred_check
        %p751 = pneg %p270
      $region62: #{transformer_forward.3} parent=35 // pred_check_branch
        %753 = sbr.rel (%p751) target = $region64
      $region63: #{transformer_forward.3} parent=35 // pred_region
        %p754 = scmp.lt.s32.totalorder %s31, 1
        %s755 = scalar_select %p754, %s31, 1
        %s756 = smul.addr %s755, 4
        %s757 = smul.addr %s756, 4
        %s758 = scalar_lea.vmem %s9, %s757
      $region64: #{transformer_forward.3} parent=35 // pred_fallthru
        _
      // Predicated region
      $region65: #{transformer_forward.3} parent=35 // pred_check
        %p759 = pneg %p296
      $region66: #{transformer_forward.3} parent=35 // pred_check_branch
        %761 = sbr.rel (%p759) target = $region68
      $region67: #{transformer_forward.3} parent=35 // pred_region
        %p762 = scmp.lt.s32.totalorder %s31, 1
        %s763 = scalar_select %p762, %s31, 1
        %s764 = scalar_lea.vmem %s10, %s763
      $region68: #{transformer_forward.3} parent=35 // pred_fallthru
        _
      // Predicated region
      $region69: #{transformer_forward.3} parent=35 // pred_check
        %p765 = pneg %p322
      $region70: #{transformer_forward.3} parent=35 // pred_check_branch
        %767 = sbr.rel (%p765) target = $region72
      $region71: #{transformer_forward.3} parent=35 // pred_region
        %p768 = scmp.lt.s32.totalorder %s31, 1
        %s769 = scalar_select %p768, %s31, 1
        %s770 = smul.addr %s769, 4
        %s771 = smul.addr %s770, 4
        %s772 = scalar_lea.vmem %s11, %s771
      $region72: #{transformer_forward.3} parent=35 // pred_fallthru
        _
      // Predicated region
      $region73: #{transformer_forward.3} parent=35 // pred_check
        %p773 = pneg %p348
      $region74: #{transformer_forward.3} parent=35 // pred_check_branch
        %775 = sbr.rel (%p773) target = $region76
      $region75: #{transformer_forward.3} parent=35 // pred_region
        %p776 = scmp.lt.s32.totalorder %s31, 1
        %s777 = scalar_select %p776, %s31, 1
        %s778 = scalar_lea.vmem %s12, %s777
      $region76: #{transformer_forward.3} parent=35 // pred_fallthru
        _
      // Predicated region
      $region77: #{transformer_forward.3} parent=35 // pred_check
        %p779 = pneg %p374
      $region78: #{transformer_forward.3} parent=35 // pred_check_branch
        %781 = sbr.rel (%p779) target = $region80
      $region79: #{transformer_forward.3} parent=35 // pred_region
        %p782 = scmp.lt.s32.totalorder %s31, 1
        %s783 = scalar_select %p782, %s31, 1
        %s784 = smul.addr %s783, 4
        %s785 = smul.addr %s784, 4
        %s786 = scalar_lea.vmem %s13, %s785
      $region80: #{transformer_forward.3} parent=35 // pred_fallthru
        _
      // Predicated region
      $region81: #{transformer_forward.3} parent=35 // pred_check
        %p787 = pneg %p400
      $region82: #{transformer_forward.3} parent=35 // pred_check_branch
        %789 = sbr.rel (%p787) target = $region84
      $region83: #{transformer_forward.3} parent=35 // pred_region
        %p790 = scmp.lt.s32.totalorder %s31, 1
        %s791 = scalar_select %p790, %s31, 1
        %s792 = scalar_lea.vmem %s14, %s791
      $region84: #{transformer_forward.3} parent=35 // pred_fallthru
        _
      // Predicated region
      $region85: #{transformer_forward.3} parent=35 // pred_check
        %p793 = pneg %p426
      $region86: #{transformer_forward.3} parent=35 // pred_check_branch
        %795 = sbr.rel (%p793) target = $region88
      $region87: #{transformer_forward.3} parent=35 // pred_region
        %p796 = scmp.lt.s32.totalorder %s31, 1
        %s797 = scalar_select %p796, %s31, 1
        %s798 = scalar_lea.vmem %s15, %s797
      $region88: #{transformer_forward.3} parent=35 // pred_fallthru
        _
      // Predicated region
      $region89: #{transformer_forward.3} parent=35 // pred_check
        %p799 = pneg %p452
      $region90: #{transformer_forward.3} parent=35 // pred_check_branch
        %801 = sbr.rel (%p799) target = $region92
      $region91: #{transformer_forward.3} parent=35 // pred_region
        %p802 = scmp.lt.s32.totalorder %s31, 1
        %s803 = scalar_select %p802, %s31, 1
        %s804 = scalar_lea.vmem %s16, %s803
      $region92: #{transformer_forward.3} parent=35 // pred_fallthru
        _
      // Predicated region
      $region93: #{transformer_forward.3} parent=35 // pred_check
        %p805 = pneg %p478
      $region94: #{transformer_forward.3} parent=35 // pred_check_branch
        %807 = sbr.rel (%p805) target = $region96
      $region95: #{transformer_forward.3} parent=35 // pred_region
        %p808 = scmp.lt.s32.totalorder %s31, 1
        %s809 = scalar_select %p808, %s31, 1
        %s810 = smul.addr %s809, 64
        %s811 = smul.addr %s810, 4
        %s812 = scalar_lea.vmem %s17, %s811
      $region96: #{transformer_forward.3} parent=35 // pred_fallthru
        _
      // Predicated region
      $region97: #{transformer_forward.3} parent=35 // pred_check
        %p813 = pneg %p504
      $region98: #{transformer_forward.3} parent=35 // pred_check_branch
        %815 = sbr.rel (%p813) target = $region100
      $region99: #{transformer_forward.3} parent=35 // pred_region
        %p816 = scmp.lt.s32.totalorder %s31, 1
        %s817 = scalar_select %p816, %s31, 1
        %s818 = smul.addr %s817, 16
        %s819 = scalar_lea.vmem %s18, %s818
      $region100: #{transformer_forward.3} parent=35 // pred_fallthru
        _
      // Predicated region
      $region101: #{transformer_forward.3} parent=35 // pred_check
        %p820 = pneg %p530
      $region102: #{transformer_forward.3} parent=35 // pred_check_branch
        %822 = sbr.rel (%p820) target = $region104
      $region103: #{transformer_forward.3} parent=35 // pred_region
        %p823 = scmp.lt.s32.totalorder %s31, 1
        %s824 = scalar_select %p823, %s31, 1
        %s825 = smul.addr %s824, 256
        %s826 = smul.addr %s825, 4
        %s827 = scalar_lea.vmem %s19, %s826
      $region104: #{transformer_forward.3} parent=35 // pred_fallthru
        _
      // Predicated region
      $region105: #{transformer_forward.3} parent=35 // pred_check
        %p828 = pneg %p556
      $region106: #{transformer_forward.3} parent=35 // pred_check_branch
        %830 = sbr.rel (%p828) target = $region108
      $region107: #{transformer_forward.3} parent=35 // pred_region
        %p831 = scmp.lt.s32.totalorder %s31, 1
        %s832 = scalar_select %p831, %s31, 1
        %s833 = scalar_lea.vmem %s20, %s832
      $region108: #{transformer_forward.3} parent=35 // pred_fallthru
        _
      // Predicated region
      $region109: #{transformer_forward.3} parent=35 // pred_check
        %p834 = pneg %p582
      $region110: #{transformer_forward.3} parent=35 // pred_check_branch
        %836 = sbr.rel (%p834) target = $region112
      $region111: #{transformer_forward.3} parent=35 // pred_region
        %p837 = scmp.lt.s32.totalorder %s31, 1
        %s838 = scalar_select %p837, %s31, 1
        %s839 = scalar_lea.vmem %s21, %s838
      $region112: #{transformer_forward.3} parent=35 // pred_fallthru
        _
      // Predicated region
      $region113: #{transformer_forward.3} parent=35 // pred_check
        %p840 = pneg %p608
      $region114: #{transformer_forward.3} parent=35 // pred_check_branch
        %842 = sbr.rel (%p840) target = $region116
      $region115: #{transformer_forward.3} parent=35 // pred_region
        %p843 = scmp.lt.s32.totalorder %s31, 1
        %s844 = scalar_select %p843, %s31, 1
        %s845 = scalar_lea.vmem %s22, %s844
      $region116: #{transformer_forward.3} parent=35 // pred_fallthru
        _
    $region36: #{transformer_forward.3} parent=5 // pred_fallthru
      _
    %p846 = scmp.le.s32.totalorder 1, %s31
    %p847 = scmp.lt.s32.totalorder %s31, 3
    %p848 = pnand %p846, %p847
    %p849 = pneg %p848
    // Predicated region
    $region117: #{transformer_forward.3} parent=5 // pred_check
      _
    $region118: #{transformer_forward.3} parent=5 // pred_check_branch
      %851 = sbr.rel (%p848) target = $region120
    $region119: #{transformer_forward.3} parent=5 // pred_region
      %s852 = ssub.s32 %s31, 1
      %p853 = pneg %p52
      %p854 = pneg %p49
      %p855 = pneg %p73
      %p856 = pneg %p70
      %p857 = pneg %p94
      %p858 = pneg %p91
      %p859 = scmp.lt.s32.totalorder %s36, 1
      %s860 = scalar_select %p859, %s36, 1
      %s861 = smul.addr %s860, 4
      %s862 = smul.addr %s861, 4
      %s863 = scalar_lea.vmem %s3, %s862
      %p864 = pneg %p120
      %p865 = pneg %p117
      %p866 = scmp.lt.s32.totalorder %s36, 1
      %s867 = scalar_select %p866, %s36, 1
      %s868 = scalar_lea.vmem %s4, %s867
      %p869 = pneg %p146
      %p870 = pneg %p143
      %p871 = scmp.lt.s32.totalorder %s36, 1
      %s872 = scalar_select %p871, %s36, 1
      %s873 = smul.addr %s872, 4
      %s874 = smul.addr %s873, 4
      %s875 = scalar_lea.vmem %s5, %s874
      %p876 = pneg %p172
      %p877 = pneg %p169
      %p878 = scmp.lt.s32.totalorder %s36, 1
      %s879 = scalar_select %p878, %s36, 1
      %s880 = scalar_lea.vmem %s6, %s879
      %p881 = pneg %p198
      %p882 = pneg %p195
      %p883 = scmp.lt.s32.totalorder %s36, 1
      %s884 = scalar_select %p883, %s36, 1
      %s885 = scalar_lea.vmem %s7, %s884
      %p886 = pneg %p224
      %p887 = pneg %p221
      %p888 = scmp.lt.s32.totalorder %s36, 1
      %s889 = scalar_select %p888, %s36, 1
      %s890 = scalar_lea.vmem %s8, %s889
      %p891 = pneg %p250
      %p892 = pneg %p247
      %p893 = scmp.lt.s32.totalorder %s36, 1
      %s894 = scalar_select %p893, %s36, 1
      %s895 = smul.addr %s894, 4
      %s896 = smul.addr %s895, 4
      %s897 = scalar_lea.vmem %s9, %s896
      %p898 = pneg %p276
      %p899 = pneg %p273
      %p900 = scmp.lt.s32.totalorder %s36, 1
      %s901 = scalar_select %p900, %s36, 1
      %s902 = scalar_lea.vmem %s10, %s901
      %p903 = pneg %p302
      %p904 = pneg %p299
      %p905 = scmp.lt.s32.totalorder %s36, 1
      %s906 = scalar_select %p905, %s36, 1
      %s907 = smul.addr %s906, 4
      %s908 = smul.addr %s907, 4
      %s909 = scalar_lea.vmem %s11, %s908
      %p910 = pneg %p328
      %p911 = pneg %p325
      %p912 = scmp.lt.s32.totalorder %s36, 1
      %s913 = scalar_select %p912, %s36, 1
      %s914 = scalar_lea.vmem %s12, %s913
      %p915 = pneg %p354
      %p916 = pneg %p351
      %p917 = scmp.lt.s32.totalorder %s36, 1
      %s918 = scalar_select %p917, %s36, 1
      %s919 = smul.addr %s918, 4
      %s920 = smul.addr %s919, 4
      %s921 = scalar_lea.vmem %s13, %s920
      %p922 = pneg %p380
      %p923 = pneg %p377
      %p924 = scmp.lt.s32.totalorder %s36, 1
      %s925 = scalar_select %p924, %s36, 1
      %s926 = scalar_lea.vmem %s14, %s925
      %p927 = pneg %p406
      %p928 = pneg %p403
      %p929 = scmp.lt.s32.totalorder %s36, 1
      %s930 = scalar_select %p929, %s36, 1
      %s931 = scalar_lea.vmem %s15, %s930
      %p932 = pneg %p432
      %p933 = pneg %p429
      %p934 = scmp.lt.s32.totalorder %s36, 1
      %s935 = scalar_select %p934, %s36, 1
      %s936 = scalar_lea.vmem %s16, %s935
      %p937 = pneg %p458
      %p938 = pneg %p455
      %p939 = scmp.lt.s32.totalorder %s36, 1
      %s940 = scalar_select %p939, %s36, 1
      %s941 = smul.addr %s940, 64
      %s942 = smul.addr %s941, 4
      %s943 = scalar_lea.vmem %s17, %s942
      %p944 = pneg %p484
      %p945 = pneg %p481
      %p946 = scmp.lt.s32.totalorder %s36, 1
      %s947 = scalar_select %p946, %s36, 1
      %s948 = smul.addr %s947, 16
      %s949 = scalar_lea.vmem %s18, %s948
      %p950 = pneg %p510
      %p951 = pneg %p507
      %p952 = scmp.lt.s32.totalorder %s36, 1
      %s953 = scalar_select %p952, %s36, 1
      %s954 = smul.addr %s953, 256
      %s955 = smul.addr %s954, 4
      %s956 = scalar_lea.vmem %s19, %s955
      %p957 = pneg %p536
      %p958 = pneg %p533
      %p959 = scmp.lt.s32.totalorder %s36, 1
      %s960 = scalar_select %p959, %s36, 1
      %s961 = scalar_lea.vmem %s20, %s960
      %p962 = pneg %p562
      %p963 = pneg %p559
      %p964 = scmp.lt.s32.totalorder %s36, 1
      %s965 = scalar_select %p964, %s36, 1
      %s966 = scalar_lea.vmem %s21, %s965
      %p967 = pneg %p588
      %p968 = pneg %p585
      %p969 = scmp.lt.s32.totalorder %s36, 1
      %s970 = scalar_select %p969, %s36, 1
      %s971 = scalar_lea.vmem %s22, %s970
      %p972 = pneg %p614
      %p973 = pneg %p611
      %p974 = pneg %p635
      %p975 = pneg %p632
      %p976 = pneg %p656
      %p977 = pneg %p653
      %p978 = pneg %p677
      %p979 = pneg %p674
      %p980 = scmp.lt.s32.totalorder %s36, 1
      %s981 = scalar_select %p980, %s36, 1
      %s982 = smul.addr %s981, 4
      %s983 = smul.addr %s982, 4
      %s984 = scalar_lea.vmem %s3, %s983
      %p985 = scmp.lt.s32.totalorder %s36, 1
      %s986 = scalar_select %p985, %s36, 1
      %s987 = scalar_lea.vmem %s4, %s986
      %p988 = scmp.lt.s32.totalorder %s36, 1
      %s989 = scalar_select %p988, %s36, 1
      %s990 = smul.addr %s989, 4
      %s991 = smul.addr %s990, 4
      %s992 = scalar_lea.vmem %s5, %s991
      %p993 = scmp.lt.s32.totalorder %s36, 1
      %s994 = scalar_select %p993, %s36, 1
      %s995 = scalar_lea.vmem %s6, %s994
      %p996 = scmp.lt.s32.totalorder %s36, 1
      %s997 = scalar_select %p996, %s36, 1
      %s998 = scalar_lea.vmem %s7, %s997
      %p999 = scmp.lt.s32.totalorder %s36, 1
      %s1000 = scalar_select %p999, %s36, 1
      %s1001 = scalar_lea.vmem %s8, %s1000
      %p1002 = scmp.lt.s32.totalorder %s36, 1
      %s1003 = scalar_select %p1002, %s36, 1
      %s1004 = smul.addr %s1003, 4
      %s1005 = smul.addr %s1004, 4
      %s1006 = scalar_lea.vmem %s9, %s1005
      %p1007 = scmp.lt.s32.totalorder %s36, 1
      %s1008 = scalar_select %p1007, %s36, 1
      %s1009 = scalar_lea.vmem %s10, %s1008
      %p1010 = scmp.lt.s32.totalorder %s36, 1
      %s1011 = scalar_select %p1010, %s36, 1
      %s1012 = smul.addr %s1011, 4
      %s1013 = smul.addr %s1012, 4
      %s1014 = scalar_lea.vmem %s11, %s1013
      %p1015 = scmp.lt.s32.totalorder %s36, 1
      %s1016 = scalar_select %p1015, %s36, 1
      %s1017 = scalar_lea.vmem %s12, %s1016
      %p1018 = scmp.lt.s32.totalorder %s36, 1
      %s1019 = scalar_select %p1018, %s36, 1
      %s1020 = smul.addr %s1019, 4
      %s1021 = smul.addr %s1020, 4
      %s1022 = scalar_lea.vmem %s13, %s1021
      %p1023 = scmp.lt.s32.totalorder %s36, 1
      %s1024 = scalar_select %p1023, %s36, 1
      %s1025 = scalar_lea.vmem %s14, %s1024
      %p1026 = scmp.lt.s32.totalorder %s36, 1
      %s1027 = scalar_select %p1026, %s36, 1
      %s1028 = scalar_lea.vmem %s15, %s1027
      %p1029 = scmp.lt.s32.totalorder %s36, 1
      %s1030 = scalar_select %p1029, %s36, 1
      %s1031 = scalar_lea.vmem %s16, %s1030
      %p1032 = scmp.lt.s32.totalorder %s36, 1
      %s1033 = scalar_select %p1032, %s36, 1
      %s1034 = smul.addr %s1033, 64
      %s1035 = smul.addr %s1034, 4
      %s1036 = scalar_lea.vmem %s17, %s1035
      %p1037 = scmp.lt.s32.totalorder %s36, 1
      %s1038 = scalar_select %p1037, %s36, 1
      %s1039 = smul.addr %s1038, 16
      %s1040 = scalar_lea.vmem %s18, %s1039
      %p1041 = scmp.lt.s32.totalorder %s36, 1
      %s1042 = scalar_select %p1041, %s36, 1
      %s1043 = smul.addr %s1042, 256
      %s1044 = smul.addr %s1043, 4
      %s1045 = scalar_lea.vmem %s19, %s1044
      %p1046 = scmp.lt.s32.totalorder %s36, 1
      %s1047 = scalar_select %p1046, %s36, 1
      %s1048 = scalar_lea.vmem %s20, %s1047
      %p1049 = scmp.lt.s32.totalorder %s36, 1
      %s1050 = scalar_select %p1049, %s36, 1
      %s1051 = scalar_lea.vmem %s21, %s1050
      %p1052 = scmp.lt.s32.totalorder %s36, 1
      %s1053 = scalar_select %p1052, %s36, 1
      %s1054 = scalar_lea.vmem %s22, %s1053
      %p1056 = scmp.eq.s32.totalorder %s36, 0
      // Predicated region
      $region121: #{transformer_forward.3} parent=119 // pred_check
        %p1057 = pneg %p1056
      $region122: #{transformer_forward.3} parent=119 // pred_check_branch
        %1059 = sbr.rel (%p1057) target = $region124
      $region123: #{transformer_forward.3} parent=119 // pred_region
        %v1060 = vld [vmem:[%s0] sm:$0xff]
        %v1061 = vld [vmem:[%s0 + $0x8] sm:$0xff]
        %vm1062 = vcmask 261120
        %1063 = vst.msk [vmem:[#allocation2] sm:$0xff] %vm1062, %v1060
        %1064 = vst.msk [vmem:[#allocation2 + $0x8] sm:$0xff] %vm1062, %v1061
      $region124: #{transformer_forward.3} parent=119 // pred_fallthru
        _
      %v1065 = vld [vmem:[#allocation2] sm:$0xff]
      %v1066 = vld [vmem:[#allocation2 + $0x8] sm:$0xff]
      %v1067 = vld [vmem:[%s1] sm:$0xff]
      %v1068 = vld [vmem:[%s1 + $0x8] sm:$0xff]
      %v1069 = vld [vmem:[%s2] sm:$0xff]
      %v1070 = vld [vmem:[%s2 + $0x8] sm:$0xff]
      %v1071 = vpack.c.bf16 %v1066, %v1065
      %v1072 = vld [vmem:[%s984] sm:$0xf]
      %v1073 = vld [vmem:[%s984 + $0x4] sm:$0xf]
      %v1074 = vld [vmem:[%s984 + $0x8] sm:$0xf]
      %v1075 = vld [vmem:[%s984 + $0xc] sm:$0xf]
      %v1076 = vld [vmem:[%s987] sm:$0x1]
      %v1078 = vperm.slane %v1076, 0
      %v1084 = vunpack.c.l.b16 %v1072
      %v1085 = vunpack.c.l.b16 %v1073
      %v1086 = vunpack.c.l.b16 %v1074
      %v1087 = vunpack.c.l.b16 %v1075
      %v1088 = vpack.c.b16 %v1085, %v1084
      %v1089 = vpack.c.b16 %v1087, %v1086
      %vm1092 = vcmask 261120
      %v1094 = vsel %vm1092, %v1071, 0
      %1096 = vmatpush.bf16.msra.mxu0 0
      %1097 = vmatpush.bf16.msra.mxu0 0
      %1098 = vmatpush.bf16.msra.mxu0 0
      %1099 = vmatpush.bf16.msra.mxu0 0
      %1100 = vmatpush.bf16.msra.mxu0 0
      %1101 = vmatpush.bf16.msra.mxu0 0
      %1102 = vmatpush.bf16.msra.mxu0 %v1089
      %1103 = vmatpush.bf16.msra.mxu0 %v1088
      %1104 = vmatmul.bf16.gmra.mxu0 %v1094
      %v1105 = vpop.f32.mrf.mxu0
      %v1106 = vadd.f32 %v1078, %v1105
      %v1107 = vpop.f32.mrf.mxu0
      %v1108 = vadd.f32 %v1078, %v1107
      %1109 = vdwg.mxu0
      %v1110 = vld [vmem:[%s992] sm:$0xf]
      %v1111 = vld [vmem:[%s992 + $0x4] sm:$0xf]
      %v1112 = vld [vmem:[%s992 + $0x8] sm:$0xf]
      %v1113 = vld [vmem:[%s992 + $0xc] sm:$0xf]
      %v1114 = vld [vmem:[%s995] sm:$0x1]
      %1116 = vrot.lane.b32.xlu0 %v1106, 96
      %v1117 = vpop.permute.xlu0 %1116
      %vm1118 = vcmask 64512
      %v1119 = vsel %vm1118, %v1106, 0
      %v1121 = vsel %vm1118, %v1117, 0
      %1123 = vmatpush.xpose.msra.mxu0 0.0
      %1124 = vmatpush.xpose.msra.mxu0 0.0
      %1125 = vmatpush.xpose.msra.mxu0 0.0
      %1126 = vmatpush.xpose.msra.mxu0 0.0
      %1127 = vmatpush.xpose.msra.mxu0 0.0
      %1128 = vmatpush.xpose.msra.mxu0 0.0
      %1129 = vmatpush.xpose.msra.mxu0 0.0
      %1130 = vmatpush.xpose.msra.mxu0 0.0
      %1131 = vmatpush.xpose.msra.mxu0 0.0
      %1132 = vmatpush.xpose.msra.mxu0 0.0
      %1133 = vmatpush.xpose.msra.mxu0 0.0
      %1134 = vmatpush.xpose.msra.mxu0 0.0
      %1135 = vmatpush.xpose.msra.mxu0 0.0
      %1136 = vmatpush.xpose.msra.mxu0 0.0
      %1137 = vmatpush.xpose.msra.mxu0 0.0
      %1138 = vmatpush.xpose.msra.mxu0 %v1121
      %1139 = vmatmul.f32.gmra.mxu0 %v1119
      %v1140 = vpop.f32.mrf.mxu0
      %v1141 = vadd.f32 %v1069, %v1140
      %1142 = vdwg.mxu0
      %v1143 = vsel %vm1118, %v1141, -inf
      %1144 = vmax.xlane.f32.xlu0 %v1143
      %v1145 = vpop.xlane.xlu0 %1144
      %v1146 = vsub.f32 %v1141, %v1145
      %v1147 = vmul.f32 %v1146, 1.442695
      %v1148 = vpow.pop %v1147
      %v1149 = vsel %vm1118, %v1148, 0.0
      %1150 = vadd.xlane.f32.xlu0 %v1149
      %v1151 = vpop.xlane.xlu0 %1150
      %v1152 = vrcp.pop %v1151
      %v1153 = vmul.f32 %v1148, %v1152
      %1154 = vrot.lane.b32.xlu0 %v1106, 64
      %v1155 = vpop.permute.xlu0 %1154
      %v1158 = vsel %vm1118, %v1153, 0
      %1160 = vmatpush.msra.mxu0 0.0
      %1161 = vmatpush.msra.mxu0 0.0
      %1162 = vmatpush.msra.mxu0 0.0
      %1163 = vmatpush.msra.mxu0 0.0
      %1164 = vmatpush.msra.mxu0 0.0
      %1165 = vmatpush.msra.mxu0 0.0
      %1166 = vmatpush.msra.mxu0 0.0
      %1167 = vmatpush.msra.mxu0 0.0
      %1168 = vmatpush.msra.mxu0 0.0
      %1169 = vmatpush.msra.mxu0 0.0
      %1170 = vmatpush.msra.mxu0 0.0
      %1171 = vmatpush.msra.mxu0 0.0
      %1172 = vmatpush.msra.mxu0 0.0
      %1173 = vmatpush.msra.mxu0 0.0
      %1174 = vmatpush.msra.mxu0 0.0
      %1175 = vmatpush.msra.mxu0 %v1155
      %1176 = vmatmul.f32.gmra.mxu0 %v1158
      %v1177 = vpop.f32.mrf.mxu0
      %v1178 = vadd.f32 0.0, %v1177
      %1179 = vdwg.mxu0
      %1180 = vrot.lane.b32.xlu0 %v1106, 120
      %v1181 = vpop.permute.xlu0 %1180
      %1182 = vrot.lane.b32.xlu0 %v1106, 88
      %v1183 = vpop.permute.xlu0 %1182
      %v1184 = vsel %vm1118, %v1181, 0
      %v1186 = vsel %vm1118, %v1183, 0
      %1188 = vmatpush.xpose.msra.mxu0 0.0
      %1189 = vmatpush.xpose.msra.mxu0 0.0
      %1190 = vmatpush.xpose.msra.mxu0 0.0
      %1191 = vmatpush.xpose.msra.mxu0 0.0
      %1192 = vmatpush.xpose.msra.mxu0 0.0
      %1193 = vmatpush.xpose.msra.mxu0 0.0
      %1194 = vmatpush.xpose.msra.mxu0 0.0
      %1195 = vmatpush.xpose.msra.mxu0 0.0
      %1196 = vmatpush.xpose.msra.mxu0 0.0
      %1197 = vmatpush.xpose.msra.mxu0 0.0
      %1198 = vmatpush.xpose.msra.mxu0 0.0
      %1199 = vmatpush.xpose.msra.mxu0 0.0
      %1200 = vmatpush.xpose.msra.mxu0 0.0
      %1201 = vmatpush.xpose.msra.mxu0 0.0
      %1202 = vmatpush.xpose.msra.mxu0 0.0
      %1203 = vmatpush.xpose.msra.mxu0 %v1186
      %1204 = vmatmul.f32.gmra.mxu0 %v1184
      %v1205 = vpop.f32.mrf.mxu0
      %v1206 = vadd.f32 %v1069, %v1205
      %1207 = vdwg.mxu0
      %v1208 = vsel %vm1118, %v1206, -inf
      %1209 = vmax.xlane.f32.xlu0 %v1208
      %v1210 = vpop.xlane.xlu0 %1209
      %v1211 = vsub.f32 %v1206, %v1210
      %v1212 = vmul.f32 %v1211, 1.442695
      %v1213 = vpow.pop %v1212
      %v1214 = vsel %vm1118, %v1213, 0.0
      %1215 = vadd.xlane.f32.xlu0 %v1214
      %v1216 = vpop.xlane.xlu0 %1215
      %v1217 = vrcp.pop %v1216
      %v1218 = vmul.f32 %v1213, %v1217
      %1219 = vrot.lane.b32.xlu0 %v1106, 56
      %v1220 = vpop.permute.xlu0 %1219
      %v1223 = vsel %vm1118, %v1218, 0
      %1225 = vmatpush.msra.mxu0 0.0
      %1226 = vmatpush.msra.mxu0 0.0
      %1227 = vmatpush.msra.mxu0 0.0
      %1228 = vmatpush.msra.mxu0 0.0
      %1229 = vmatpush.msra.mxu0 0.0
      %1230 = vmatpush.msra.mxu0 0.0
      %1231 = vmatpush.msra.mxu0 0.0
      %1232 = vmatpush.msra.mxu0 0.0
      %1233 = vmatpush.msra.mxu0 0.0
      %1234 = vmatpush.msra.mxu0 0.0
      %1235 = vmatpush.msra.mxu0 0.0
      %1236 = vmatpush.msra.mxu0 0.0
      %1237 = vmatpush.msra.mxu0 0.0
      %1238 = vmatpush.msra.mxu0 0.0
      %1239 = vmatpush.msra.mxu0 0.0
      %1240 = vmatpush.msra.mxu0 %v1220
      %1241 = vmatmul.f32.gmra.mxu0 %v1223
      %v1242 = vpop.f32.mrf.mxu0
      %v1243 = vadd.f32 0.0, %v1242
      %1244 = vdwg.mxu0
      %1245 = vrot.lane.b32.xlu0 %v1106, 112
      %v1246 = vpop.permute.xlu0 %1245
      %1247 = vrot.lane.b32.xlu0 %v1106, 80
      %v1248 = vpop.permute.xlu0 %1247
      %v1249 = vsel %vm1118, %v1246, 0
      %v1251 = vsel %vm1118, %v1248, 0
      %1253 = vmatpush.xpose.msra.mxu0 0.0
      %1254 = vmatpush.xpose.msra.mxu0 0.0
      %1255 = vmatpush.xpose.msra.mxu0 0.0
      %1256 = vmatpush.xpose.msra.mxu0 0.0
      %1257 = vmatpush.xpose.msra.mxu0 0.0
      %1258 = vmatpush.xpose.msra.mxu0 0.0
      %1259 = vmatpush.xpose.msra.mxu0 0.0
      %1260 = vmatpush.xpose.msra.mxu0 0.0
      %1261 = vmatpush.xpose.msra.mxu0 0.0
      %1262 = vmatpush.xpose.msra.mxu0 0.0
      %1263 = vmatpush.xpose.msra.mxu0 0.0
      %1264 = vmatpush.xpose.msra.mxu0 0.0
      %1265 = vmatpush.xpose.msra.mxu0 0.0
      %1266 = vmatpush.xpose.msra.mxu0 0.0
      %1267 = vmatpush.xpose.msra.mxu0 0.0
      %1268 = vmatpush.xpose.msra.mxu0 %v1251
      %1269 = vmatmul.f32.gmra.mxu0 %v1249
      %v1270 = vpop.f32.mrf.mxu0
      %v1271 = vadd.f32 %v1069, %v1270
      %1272 = vdwg.mxu0
      %v1273 = vsel %vm1118, %v1271, -inf
      %1274 = vmax.xlane.f32.xlu0 %v1273
      %v1275 = vpop.xlane.xlu0 %1274
      %v1276 = vsub.f32 %v1271, %v1275
      %v1277 = vmul.f32 %v1276, 1.442695
      %v1278 = vpow.pop %v1277
      %v1279 = vsel %vm1118, %v1278, 0.0
      %1280 = vadd.xlane.f32.xlu0 %v1279
      %v1281 = vpop.xlane.xlu0 %1280
      %v1282 = vrcp.pop %v1281
      %v1283 = vmul.f32 %v1278, %v1282
      %1284 = vrot.lane.b32.xlu0 %v1106, 48
      %v1285 = vpop.permute.xlu0 %1284
      %v1288 = vsel %vm1118, %v1283, 0
      %1290 = vmatpush.msra.mxu0 0.0
      %1291 = vmatpush.msra.mxu0 0.0
      %1292 = vmatpush.msra.mxu0 0.0
      %1293 = vmatpush.msra.mxu0 0.0
      %1294 = vmatpush.msra.mxu0 0.0
      %1295 = vmatpush.msra.mxu0 0.0
      %1296 = vmatpush.msra.mxu0 0.0
      %1297 = vmatpush.msra.mxu0 0.0
      %1298 = vmatpush.msra.mxu0 0.0
      %1299 = vmatpush.msra.mxu0 0.0
      %1300 = vmatpush.msra.mxu0 0.0
      %1301 = vmatpush.msra.mxu0 0.0
      %1302 = vmatpush.msra.mxu0 0.0
      %1303 = vmatpush.msra.mxu0 0.0
      %1304 = vmatpush.msra.mxu0 0.0
      %1305 = vmatpush.msra.mxu0 %v1285
      %1306 = vmatmul.f32.gmra.mxu0 %v1288
      %v1307 = vpop.f32.mrf.mxu0
      %v1308 = vadd.f32 0.0, %v1307
      %1309 = vdwg.mxu0
      %1310 = vrot.lane.b32.xlu0 %v1106, 104
      %v1311 = vpop.permute.xlu0 %1310
      %1312 = vrot.lane.b32.xlu0 %v1106, 72
      %v1313 = vpop.permute.xlu0 %1312
      %v1314 = vsel %vm1118, %v1311, 0
      %v1316 = vsel %vm1118, %v1313, 0
      %1318 = vmatpush.xpose.msra.mxu0 0.0
      %1319 = vmatpush.xpose.msra.mxu0 0.0
      %1320 = vmatpush.xpose.msra.mxu0 0.0
      %1321 = vmatpush.xpose.msra.mxu0 0.0
      %1322 = vmatpush.xpose.msra.mxu0 0.0
      %1323 = vmatpush.xpose.msra.mxu0 0.0
      %1324 = vmatpush.xpose.msra.mxu0 0.0
      %1325 = vmatpush.xpose.msra.mxu0 0.0
      %1326 = vmatpush.xpose.msra.mxu0 0.0
      %1327 = vmatpush.xpose.msra.mxu0 0.0
      %1328 = vmatpush.xpose.msra.mxu0 0.0
      %1329 = vmatpush.xpose.msra.mxu0 0.0
      %1330 = vmatpush.xpose.msra.mxu0 0.0
      %1331 = vmatpush.xpose.msra.mxu0 0.0
      %1332 = vmatpush.xpose.msra.mxu0 0.0
      %1333 = vmatpush.xpose.msra.mxu0 %v1316
      %1334 = vmatmul.f32.gmra.mxu0 %v1314
      %v1335 = vpop.f32.mrf.mxu0
      %v1336 = vadd.f32 %v1069, %v1335
      %1337 = vdwg.mxu0
      %v1338 = vsel %vm1118, %v1336, -inf
      %1339 = vmax.xlane.f32.xlu0 %v1338
      %v1340 = vpop.xlane.xlu0 %1339
      %v1341 = vsub.f32 %v1336, %v1340
      %v1342 = vmul.f32 %v1341, 1.442695
      %v1343 = vpow.pop %v1342
      %v1344 = vsel %vm1118, %v1343, 0.0
      %1345 = vadd.xlane.f32.xlu0 %v1344
      %v1346 = vpop.xlane.xlu0 %1345
      %v1347 = vrcp.pop %v1346
      %v1348 = vmul.f32 %v1343, %v1347
      %1349 = vrot.lane.b32.xlu0 %v1106, 40
      %v1350 = vpop.permute.xlu0 %1349
      %v1353 = vsel %vm1118, %v1348, 0
      %1355 = vmatpush.msra.mxu0 0.0
      %1356 = vmatpush.msra.mxu0 0.0
      %1357 = vmatpush.msra.mxu0 0.0
      %1358 = vmatpush.msra.mxu0 0.0
      %1359 = vmatpush.msra.mxu0 0.0
      %1360 = vmatpush.msra.mxu0 0.0
      %1361 = vmatpush.msra.mxu0 0.0
      %1362 = vmatpush.msra.mxu0 0.0
      %1363 = vmatpush.msra.mxu0 0.0
      %1364 = vmatpush.msra.mxu0 0.0
      %1365 = vmatpush.msra.mxu0 0.0
      %1366 = vmatpush.msra.mxu0 0.0
      %1367 = vmatpush.msra.mxu0 0.0
      %1368 = vmatpush.msra.mxu0 0.0
      %1369 = vmatpush.msra.mxu0 0.0
      %1370 = vmatpush.msra.mxu0 %v1350
      %1371 = vmatmul.f32.gmra.mxu0 %v1353
      %v1372 = vpop.f32.mrf.mxu0
      %v1373 = vadd.f32 0.0, %v1372
      %1374 = vdwg.mxu0
      %1376 = vrot.lane.b32.xlu0 %v1243, 8
      %v1377 = vpop.permute.xlu0 %1376
      %1380 = vrot.lane.b32.xlu0 %v1308, 16
      %v1381 = vpop.permute.xlu0 %1380
      %1384 = vrot.lane.b32.xlu0 %v1373, 24
      %v1385 = vpop.permute.xlu0 %1384
      %v1387 = vsel %vm1118, %v1178, %v1377
      %vm1388 = vcmask 130048
      %v1389 = vsel %vm1388, %v1387, %v1381
      %vm1390 = vcmask 195584
      %v1391 = vsel %vm1390, %v1389, %v1385
      %1393 = vrot.lane.b32.xlu0 %v1108, 96
      %v1394 = vpop.permute.xlu0 %1393
      %v1395 = vsel %vm1118, %v1108, 0
      %v1397 = vsel %vm1118, %v1394, 0
      %1399 = vmatpush.xpose.msra.mxu0 0.0
      %1400 = vmatpush.xpose.msra.mxu0 0.0
      %1401 = vmatpush.xpose.msra.mxu0 0.0
      %1402 = vmatpush.xpose.msra.mxu0 0.0
      %1403 = vmatpush.xpose.msra.mxu0 0.0
      %1404 = vmatpush.xpose.msra.mxu0 0.0
      %1405 = vmatpush.xpose.msra.mxu0 0.0
      %1406 = vmatpush.xpose.msra.mxu0 0.0
      %1407 = vmatpush.xpose.msra.mxu0 0.0
      %1408 = vmatpush.xpose.msra.mxu0 0.0
      %1409 = vmatpush.xpose.msra.mxu0 0.0
      %1410 = vmatpush.xpose.msra.mxu0 0.0
      %1411 = vmatpush.xpose.msra.mxu0 0.0
      %1412 = vmatpush.xpose.msra.mxu0 0.0
      %1413 = vmatpush.xpose.msra.mxu0 0.0
      %1414 = vmatpush.xpose.msra.mxu0 %v1397
      %1415 = vmatmul.f32.gmra.mxu0 %v1395
      %v1416 = vpop.f32.mrf.mxu0
      %v1417 = vadd.f32 %v1070, %v1416
      %1418 = vdwg.mxu0
      %v1419 = vsel %vm1118, %v1417, -inf
      %1420 = vmax.xlane.f32.xlu0 %v1419
      %v1421 = vpop.xlane.xlu0 %1420
      %v1422 = vsub.f32 %v1417, %v1421
      %v1423 = vmul.f32 %v1422, 1.442695
      %v1424 = vpow.pop %v1423
      %v1425 = vsel %vm1118, %v1424, 0.0
      %1426 = vadd.xlane.f32.xlu0 %v1425
      %v1427 = vpop.xlane.xlu0 %1426
      %v1428 = vrcp.pop %v1427
      %v1429 = vmul.f32 %v1424, %v1428
      %1430 = vrot.lane.b32.xlu0 %v1108, 64
      %v1431 = vpop.permute.xlu0 %1430
      %v1434 = vsel %vm1118, %v1429, 0
      %1436 = vmatpush.msra.mxu0 0.0
      %1437 = vmatpush.msra.mxu0 0.0
      %1438 = vmatpush.msra.mxu0 0.0
      %1439 = vmatpush.msra.mxu0 0.0
      %1440 = vmatpush.msra.mxu0 0.0
      %1441 = vmatpush.msra.mxu0 0.0
      %1442 = vmatpush.msra.mxu0 0.0
      %1443 = vmatpush.msra.mxu0 0.0
      %1444 = vmatpush.msra.mxu0 0.0
      %1445 = vmatpush.msra.mxu0 0.0
      %1446 = vmatpush.msra.mxu0 0.0
      %1447 = vmatpush.msra.mxu0 0.0
      %1448 = vmatpush.msra.mxu0 0.0
      %1449 = vmatpush.msra.mxu0 0.0
      %1450 = vmatpush.msra.mxu0 0.0
      %1451 = vmatpush.msra.mxu0 %v1431
      %1452 = vmatmul.f32.gmra.mxu0 %v1434
      %v1453 = vpop.f32.mrf.mxu0
      %v1454 = vadd.f32 0.0, %v1453
      %1455 = vdwg.mxu0
      %1456 = vrot.lane.b32.xlu0 %v1108, 120
      %v1457 = vpop.permute.xlu0 %1456
      %1458 = vrot.lane.b32.xlu0 %v1108, 88
      %v1459 = vpop.permute.xlu0 %1458
      %v1460 = vsel %vm1118, %v1457, 0
      %v1462 = vsel %vm1118, %v1459, 0
      %1464 = vmatpush.xpose.msra.mxu0 0.0
      %1465 = vmatpush.xpose.msra.mxu0 0.0
      %1466 = vmatpush.xpose.msra.mxu0 0.0
      %1467 = vmatpush.xpose.msra.mxu0 0.0
      %1468 = vmatpush.xpose.msra.mxu0 0.0
      %1469 = vmatpush.xpose.msra.mxu0 0.0
      %1470 = vmatpush.xpose.msra.mxu0 0.0
      %1471 = vmatpush.xpose.msra.mxu0 0.0
      %1472 = vmatpush.xpose.msra.mxu0 0.0
      %1473 = vmatpush.xpose.msra.mxu0 0.0
      %1474 = vmatpush.xpose.msra.mxu0 0.0
      %1475 = vmatpush.xpose.msra.mxu0 0.0
      %1476 = vmatpush.xpose.msra.mxu0 0.0
      %1477 = vmatpush.xpose.msra.mxu0 0.0
      %1478 = vmatpush.xpose.msra.mxu0 0.0
      %1479 = vmatpush.xpose.msra.mxu0 %v1462
      %1480 = vmatmul.f32.gmra.mxu0 %v1460
      %v1481 = vpop.f32.mrf.mxu0
      %v1482 = vadd.f32 %v1070, %v1481
      %1483 = vdwg.mxu0
      %v1484 = vsel %vm1118, %v1482, -inf
      %1485 = vmax.xlane.f32.xlu0 %v1484
      %v1486 = vpop.xlane.xlu0 %1485
      %v1487 = vsub.f32 %v1482, %v1486
      %v1488 = vmul.f32 %v1487, 1.442695
      %v1489 = vpow.pop %v1488
      %v1490 = vsel %vm1118, %v1489, 0.0
      %1491 = vadd.xlane.f32.xlu0 %v1490
      %v1492 = vpop.xlane.xlu0 %1491
      %v1493 = vrcp.pop %v1492
      %v1494 = vmul.f32 %v1489, %v1493
      %1495 = vrot.lane.b32.xlu0 %v1108, 56
      %v1496 = vpop.permute.xlu0 %1495
      %v1499 = vsel %vm1118, %v1494, 0
      %1501 = vmatpush.msra.mxu0 0.0
      %1502 = vmatpush.msra.mxu0 0.0
      %1503 = vmatpush.msra.mxu0 0.0
      %1504 = vmatpush.msra.mxu0 0.0
      %1505 = vmatpush.msra.mxu0 0.0
      %1506 = vmatpush.msra.mxu0 0.0
      %1507 = vmatpush.msra.mxu0 0.0
      %1508 = vmatpush.msra.mxu0 0.0
      %1509 = vmatpush.msra.mxu0 0.0
      %1510 = vmatpush.msra.mxu0 0.0
      %1511 = vmatpush.msra.mxu0 0.0
      %1512 = vmatpush.msra.mxu0 0.0
      %1513 = vmatpush.msra.mxu0 0.0
      %1514 = vmatpush.msra.mxu0 0.0
      %1515 = vmatpush.msra.mxu0 0.0
      %1516 = vmatpush.msra.mxu0 %v1496
      %1517 = vmatmul.f32.gmra.mxu0 %v1499
      %v1518 = vpop.f32.mrf.mxu0
      %v1519 = vadd.f32 0.0, %v1518
      %1520 = vdwg.mxu0
      %1521 = vrot.lane.b32.xlu0 %v1108, 112
      %v1522 = vpop.permute.xlu0 %1521
      %1523 = vrot.lane.b32.xlu0 %v1108, 80
      %v1524 = vpop.permute.xlu0 %1523
      %v1525 = vsel %vm1118, %v1522, 0
      %v1527 = vsel %vm1118, %v1524, 0
      %1529 = vmatpush.xpose.msra.mxu0 0.0
      %1530 = vmatpush.xpose.msra.mxu0 0.0
      %1531 = vmatpush.xpose.msra.mxu0 0.0
      %1532 = vmatpush.xpose.msra.mxu0 0.0
      %1533 = vmatpush.xpose.msra.mxu0 0.0
      %1534 = vmatpush.xpose.msra.mxu0 0.0
      %1535 = vmatpush.xpose.msra.mxu0 0.0
      %1536 = vmatpush.xpose.msra.mxu0 0.0
      %1537 = vmatpush.xpose.msra.mxu0 0.0
      %1538 = vmatpush.xpose.msra.mxu0 0.0
      %1539 = vmatpush.xpose.msra.mxu0 0.0
      %1540 = vmatpush.xpose.msra.mxu0 0.0
      %1541 = vmatpush.xpose.msra.mxu0 0.0
      %1542 = vmatpush.xpose.msra.mxu0 0.0
      %1543 = vmatpush.xpose.msra.mxu0 0.0
      %1544 = vmatpush.xpose.msra.mxu0 %v1527
      %1545 = vmatmul.f32.gmra.mxu0 %v1525
      %v1546 = vpop.f32.mrf.mxu0
      %v1547 = vadd.f32 %v1070, %v1546
      %1548 = vdwg.mxu0
      %v1549 = vsel %vm1118, %v1547, -inf
      %1550 = vmax.xlane.f32.xlu0 %v1549
      %v1551 = vpop.xlane.xlu0 %1550
      %v1552 = vsub.f32 %v1547, %v1551
      %v1553 = vmul.f32 %v1552, 1.442695
      %v1554 = vpow.pop %v1553
      %v1555 = vsel %vm1118, %v1554, 0.0
      %1556 = vadd.xlane.f32.xlu0 %v1555
      %v1557 = vpop.xlane.xlu0 %1556
      %v1558 = vrcp.pop %v1557
      %v1559 = vmul.f32 %v1554, %v1558
      %1560 = vrot.lane.b32.xlu0 %v1108, 48
      %v1561 = vpop.permute.xlu0 %1560
      %v1564 = vsel %vm1118, %v1559, 0
      %1566 = vmatpush.msra.mxu0 0.0
      %1567 = vmatpush.msra.mxu0 0.0
      %1568 = vmatpush.msra.mxu0 0.0
      %1569 = vmatpush.msra.mxu0 0.0
      %1570 = vmatpush.msra.mxu0 0.0
      %1571 = vmatpush.msra.mxu0 0.0
      %1572 = vmatpush.msra.mxu0 0.0
      %1573 = vmatpush.msra.mxu0 0.0
      %1574 = vmatpush.msra.mxu0 0.0
      %1575 = vmatpush.msra.mxu0 0.0
      %1576 = vmatpush.msra.mxu0 0.0
      %1577 = vmatpush.msra.mxu0 0.0
      %1578 = vmatpush.msra.mxu0 0.0
      %1579 = vmatpush.msra.mxu0 0.0
      %1580 = vmatpush.msra.mxu0 0.0
      %1581 = vmatpush.msra.mxu0 %v1561
      %1582 = vmatmul.f32.gmra.mxu0 %v1564
      %v1583 = vpop.f32.mrf.mxu0
      %v1584 = vadd.f32 0.0, %v1583
      %1585 = vdwg.mxu0
      %1586 = vrot.lane.b32.xlu0 %v1108, 104
      %v1587 = vpop.permute.xlu0 %1586
      %1588 = vrot.lane.b32.xlu0 %v1108, 72
      %v1589 = vpop.permute.xlu0 %1588
      %v1590 = vsel %vm1118, %v1587, 0
      %v1592 = vsel %vm1118, %v1589, 0
      %1594 = vmatpush.xpose.msra.mxu0 0.0
      %1595 = vmatpush.xpose.msra.mxu0 0.0
      %1596 = vmatpush.xpose.msra.mxu0 0.0
      %1597 = vmatpush.xpose.msra.mxu0 0.0
      %1598 = vmatpush.xpose.msra.mxu0 0.0
      %1599 = vmatpush.xpose.msra.mxu0 0.0
      %1600 = vmatpush.xpose.msra.mxu0 0.0
      %1601 = vmatpush.xpose.msra.mxu0 0.0
      %1602 = vmatpush.xpose.msra.mxu0 0.0
      %1603 = vmatpush.xpose.msra.mxu0 0.0
      %1604 = vmatpush.xpose.msra.mxu0 0.0
      %1605 = vmatpush.xpose.msra.mxu0 0.0
      %1606 = vmatpush.xpose.msra.mxu0 0.0
      %1607 = vmatpush.xpose.msra.mxu0 0.0
      %1608 = vmatpush.xpose.msra.mxu0 0.0
      %1609 = vmatpush.xpose.msra.mxu0 %v1592
      %1610 = vmatmul.f32.gmra.mxu0 %v1590
      %v1611 = vpop.f32.mrf.mxu0
      %v1612 = vadd.f32 %v1070, %v1611
      %1613 = vdwg.mxu0
      %v1614 = vsel %vm1118, %v1612, -inf
      %1615 = vmax.xlane.f32.xlu0 %v1614
      %v1616 = vpop.xlane.xlu0 %1615
      %v1617 = vsub.f32 %v1612, %v1616
      %v1618 = vmul.f32 %v1617, 1.442695
      %v1619 = vpow.pop %v1618
      %v1620 = vsel %vm1118, %v1619, 0.0
      %1621 = vadd.xlane.f32.xlu0 %v1620
      %v1622 = vpop.xlane.xlu0 %1621
      %v1623 = vrcp.pop %v1622
      %v1624 = vmul.f32 %v1619, %v1623
      %1625 = vrot.lane.b32.xlu0 %v1108, 40
      %v1626 = vpop.permute.xlu0 %1625
      %v1629 = vsel %vm1118, %v1624, 0
      %1631 = vmatpush.msra.mxu0 0.0
      %1632 = vmatpush.msra.mxu0 0.0
      %1633 = vmatpush.msra.mxu0 0.0
      %1634 = vmatpush.msra.mxu0 0.0
      %1635 = vmatpush.msra.mxu0 0.0
      %1636 = vmatpush.msra.mxu0 0.0
      %1637 = vmatpush.msra.mxu0 0.0
      %1638 = vmatpush.msra.mxu0 0.0
      %1639 = vmatpush.msra.mxu0 0.0
      %1640 = vmatpush.msra.mxu0 0.0
      %1641 = vmatpush.msra.mxu0 0.0
      %1642 = vmatpush.msra.mxu0 0.0
      %1643 = vmatpush.msra.mxu0 0.0
      %1644 = vmatpush.msra.mxu0 0.0
      %1645 = vmatpush.msra.mxu0 0.0
      %1646 = vmatpush.msra.mxu0 %v1626
      %1647 = vmatmul.f32.gmra.mxu0 %v1629
      %v1648 = vpop.f32.mrf.mxu0
      %v1649 = vadd.f32 0.0, %v1648
      %1650 = vdwg.mxu0
      %1652 = vrot.lane.b32.xlu0 %v1519, 8
      %v1653 = vpop.permute.xlu0 %1652
      %1656 = vrot.lane.b32.xlu0 %v1584, 16
      %v1657 = vpop.permute.xlu0 %1656
      %1660 = vrot.lane.b32.xlu0 %v1649, 24
      %v1661 = vpop.permute.xlu0 %1660
      %v1663 = vsel %vm1118, %v1454, %v1653
      %v1664 = vsel %vm1388, %v1663, %v1657
      %v1665 = vsel %vm1390, %v1664, %v1661
      %v1666 = vpack.c.bf16 %v1665, %v1391
      %v1668 = vperm.slane %v1114, 0
      %v1674 = vunpack.c.l.b16 %v1110
      %v1675 = vunpack.c.l.b16 %v1111
      %v1676 = vunpack.c.l.b16 %v1112
      %v1677 = vunpack.c.l.b16 %v1113
      %v1678 = vpack.c.b16 %v1675, %v1674
      %v1679 = vpack.c.b16 %v1677, %v1676
      %v1683 = vsel %vm1092, %v1666, 0
      %1685 = vmatpush.bf16.msra.mxu0 0
      %1686 = vmatpush.bf16.msra.mxu0 0
      %1687 = vmatpush.bf16.msra.mxu0 0
      %1688 = vmatpush.bf16.msra.mxu0 0
      %1689 = vmatpush.bf16.msra.mxu0 0
      %1690 = vmatpush.bf16.msra.mxu0 0
      %1691 = vmatpush.bf16.msra.mxu0 %v1679
      %1692 = vmatpush.bf16.msra.mxu0 %v1678
      %1693 = vmatmul.bf16.gmra.mxu0 %v1683
      %v1694 = vpop.f32.mrf.mxu0
      %v1695 = vadd.f32 %v1668, %v1694
      %v1696 = vpop.f32.mrf.mxu0
      %v1697 = vadd.f32 %v1668, %v1696
      %1698 = vdwg.mxu0
      %v1699 = vadd.f32 %v1065, %v1695
      %v1700 = vadd.f32 %v1066, %v1697
      %v1701 = vld [vmem:[%s998] sm:$0x1]
      %v1702 = vld [vmem:[%s1001] sm:$0x1]
      %v1703 = vsel %vm1092, %v1699, 0.0
      %1704 = vadd.xlane.f32.xlu0 %v1703
      %v1705 = vpop.xlane.xlu0 %1704
      %v1706 = vsel %vm1092, %v1700, 0.0
      %1707 = vadd.xlane.f32.xlu0 %v1706
      %v1708 = vpop.xlane.xlu0 %1707
      %v1709 = vrcp.pop 32.0
      %v1710 = vmul.f32 32.0, %v1709
      %v1711 = vsub.f32 1.0, %v1710
      %v1712 = vmul.f32 %v1709, %v1711
      %v1713 = vadd.f32 %v1709, %v1712
      %vm1714 = vweird.f32 %v1709
      %v1715 = vsel %vm1714, %v1709, %v1713
      %v1716 = vmul.f32 %v1705, %v1715
      %v1717 = vmul.f32 %v1708, %v1715
      %v1718 = vsub.f32 %v1699, %v1716
      %v1719 = vsub.f32 %v1700, %v1717
      %v1720 = vmul.f32 %v1718, %v1718
      %v1721 = vmul.f32 %v1719, %v1719
      %v1722 = vsel %vm1092, %v1720, 0.0
      %1723 = vadd.xlane.f32.xlu0 %v1722
      %v1724 = vpop.xlane.xlu0 %1723
      %v1725 = vsel %vm1092, %v1721, 0.0
      %1726 = vadd.xlane.f32.xlu0 %v1725
      %v1727 = vpop.xlane.xlu0 %1726
      %v1728 = vmul.f32 %v1724, %v1715
      %v1729 = vmul.f32 %v1727, %v1715
      %v1730 = vadd.f32 %v1728, 1e-05
      %v1731 = vadd.f32 %v1729, 1e-05
      %v1732 = vrsqrt.pop %v1730
      %v1733 = vmul.f32 %v1732, %v1730
      %v1734 = vmul.f32 %v1733, %v1732
      %v1735 = vmul.f32 0.5, %v1734
      %v1736 = vsub.f32 1.5, %v1735
      %v1737 = vmul.f32 %v1732, %v1736
      %vm1738 = vweird.f32 %v1730
      %vm1739 = vweird.f32 %v1732
      %vm1740 = vmor %vm1738, %vm1739
      %v1741 = vsel %vm1740, %v1732, %v1737
      %v1742 = vrsqrt.pop %v1731
      %v1743 = vmul.f32 %v1742, %v1731
      %v1744 = vmul.f32 %v1743, %v1742
      %v1745 = vmul.f32 0.5, %v1744
      %v1746 = vsub.f32 1.5, %v1745
      %v1747 = vmul.f32 %v1742, %v1746
      %vm1748 = vweird.f32 %v1731
      %vm1749 = vweird.f32 %v1742
      %vm1750 = vmor %vm1748, %vm1749
      %v1751 = vsel %vm1750, %v1742, %v1747
      %v1752 = vmul.f32 %v1718, %v1741
      %v1753 = vmul.f32 %v1719, %v1751
      %v1755 = vperm.slane %v1701, 0
      %v1757 = vmul.f32 %v1752, %v1755
      %v1758 = vmul.f32 %v1753, %v1755
      %v1760 = vperm.slane %v1702, 0
      %v1762 = vadd.f32 %v1757, %v1760
      %v1763 = vadd.f32 %v1758, %v1760
      %v1764 = vpack.c.bf16 %v1763, %v1762
      %v1765 = vld [vmem:[%s1006] sm:$0xf]
      %v1766 = vld [vmem:[%s1006 + $0x4] sm:$0xf]
      %v1767 = vld [vmem:[%s1006 + $0x8] sm:$0xf]
      %v1768 = vld [vmem:[%s1006 + $0xc] sm:$0xf]
      %v1769 = vld [vmem:[%s1009] sm:$0x1]
      %v1771 = vperm.slane %v1769, 0
      %v1777 = vunpack.c.l.b16 %v1765
      %v1778 = vunpack.c.l.b16 %v1766
      %v1779 = vunpack.c.l.b16 %v1767
      %v1780 = vunpack.c.l.b16 %v1768
      %v1781 = vpack.c.b16 %v1778, %v1777
      %v1782 = vpack.c.b16 %v1780, %v1779
      %v1786 = vsel %vm1092, %v1764, 0
      %1788 = vmatpush.bf16.msra.mxu0 0
      %1789 = vmatpush.bf16.msra.mxu0 0
      %1790 = vmatpush.bf16.msra.mxu0 0
      %1791 = vmatpush.bf16.msra.mxu0 0
      %1792 = vmatpush.bf16.msra.mxu0 0
      %1793 = vmatpush.bf16.msra.mxu0 0
      %1794 = vmatpush.bf16.msra.mxu0 %v1782
      %1795 = vmatpush.bf16.msra.mxu0 %v1781
      %1796 = vmatmul.bf16.gmra.mxu0 %v1786
      %v1797 = vpop.f32.mrf.mxu0
      %v1798 = vadd.f32 %v1771, %v1797
      %v1799 = vpop.f32.mrf.mxu0
      %v1800 = vadd.f32 %v1771, %v1799
      %1801 = vdwg.mxu0
      %v1802 = vpack.c.bf16 %v1068, %v1067
      %v1803 = vld [vmem:[%s1014] sm:$0xf]
      %v1804 = vld [vmem:[%s1014 + $0x4] sm:$0xf]
      %v1805 = vld [vmem:[%s1014 + $0x8] sm:$0xf]
      %v1806 = vld [vmem:[%s1014 + $0xc] sm:$0xf]
      %v1807 = vld [vmem:[%s1017] sm:$0x1]
      %v1809 = vperm.slane %v1807, 0
      %v1815 = vunpack.c.l.b16 %v1803
      %v1816 = vunpack.c.l.b16 %v1804
      %v1817 = vunpack.c.l.b16 %v1805
      %v1818 = vunpack.c.l.b16 %v1806
      %v1819 = vpack.c.b16 %v1816, %v1815
      %v1820 = vpack.c.b16 %v1818, %v1817
      %v1824 = vsel %vm1092, %v1802, 0
      %1826 = vmatpush.bf16.msra.mxu0 0
      %1827 = vmatpush.bf16.msra.mxu0 0
      %1828 = vmatpush.bf16.msra.mxu0 0
      %1829 = vmatpush.bf16.msra.mxu0 0
      %1830 = vmatpush.bf16.msra.mxu0 0
      %1831 = vmatpush.bf16.msra.mxu0 0
      %1832 = vmatpush.bf16.msra.mxu0 %v1820
      %1833 = vmatpush.bf16.msra.mxu0 %v1819
      %1834 = vmatmul.bf16.gmra.mxu0 %v1824
      %v1835 = vpop.f32.mrf.mxu0
      %v1836 = vadd.f32 %v1809, %v1835
      %v1837 = vpop.f32.mrf.mxu0
      %v1838 = vadd.f32 %v1809, %v1837
      %1839 = vdwg.mxu0
      %v1840 = vld [vmem:[%s1022] sm:$0xf]
      %v1841 = vld [vmem:[%s1022 + $0x4] sm:$0xf]
      %v1842 = vld [vmem:[%s1022 + $0x8] sm:$0xf]
      %v1843 = vld [vmem:[%s1022 + $0xc] sm:$0xf]
      %v1844 = vld [vmem:[%s1025] sm:$0x1]
      %v1846 = vsel %vm1118, %v1798, 0
      %v1849 = vsel %vm1118, %v1836, 0
      %1851 = vmatpush.xpose.msra.mxu0 0.0
      %1852 = vmatpush.xpose.msra.mxu0 0.0
      %1853 = vmatpush.xpose.msra.mxu0 0.0
      %1854 = vmatpush.xpose.msra.mxu0 0.0
      %1855 = vmatpush.xpose.msra.mxu0 0.0
      %1856 = vmatpush.xpose.msra.mxu0 0.0
      %1857 = vmatpush.xpose.msra.mxu0 0.0
      %1858 = vmatpush.xpose.msra.mxu0 0.0
      %1859 = vmatpush.xpose.msra.mxu0 0.0
      %1860 = vmatpush.xpose.msra.mxu0 0.0
      %1861 = vmatpush.xpose.msra.mxu0 0.0
      %1862 = vmatpush.xpose.msra.mxu0 0.0
      %1863 = vmatpush.xpose.msra.mxu0 0.0
      %1864 = vmatpush.xpose.msra.mxu0 0.0
      %1865 = vmatpush.xpose.msra.mxu0 0.0
      %1866 = vmatpush.xpose.msra.mxu0 %v1849
      %1867 = vmatmul.f32.gmra.mxu0 %v1846
      %v1868 = vpop.f32.mrf.mxu0
      %v1869 = vadd.f32 0.0, %v1868
      %1870 = vdwg.mxu0
      %v1871 = vsel %vm1118, %v1869, -inf
      %1872 = vmax.xlane.f32.xlu0 %v1871
      %v1873 = vpop.xlane.xlu0 %1872
      %v1874 = vsub.f32 %v1869, %v1873
      %v1875 = vmul.f32 %v1874, 1.442695
      %v1876 = vpow.pop %v1875
      %v1877 = vsel %vm1118, %v1876, 0.0
      %1878 = vadd.xlane.f32.xlu0 %v1877
      %v1879 = vpop.xlane.xlu0 %1878
      %v1880 = vrcp.pop %v1879
      %v1881 = vmul.f32 %v1876, %v1880
      %1882 = vrot.lane.b32.xlu0 %v1836, 96
      %v1883 = vpop.permute.xlu0 %1882
      %v1886 = vsel %vm1118, %v1881, 0
      %1888 = vmatpush.msra.mxu0 0.0
      %1889 = vmatpush.msra.mxu0 0.0
      %1890 = vmatpush.msra.mxu0 0.0
      %1891 = vmatpush.msra.mxu0 0.0
      %1892 = vmatpush.msra.mxu0 0.0
      %1893 = vmatpush.msra.mxu0 0.0
      %1894 = vmatpush.msra.mxu0 0.0
      %1895 = vmatpush.msra.mxu0 0.0
      %1896 = vmatpush.msra.mxu0 0.0
      %1897 = vmatpush.msra.mxu0 0.0
      %1898 = vmatpush.msra.mxu0 0.0
      %1899 = vmatpush.msra.mxu0 0.0
      %1900 = vmatpush.msra.mxu0 0.0
      %1901 = vmatpush.msra.mxu0 0.0
      %1902 = vmatpush.msra.mxu0 0.0
      %1903 = vmatpush.msra.mxu0 %v1883
      %1904 = vmatmul.f32.gmra.mxu0 %v1886
      %v1905 = vpop.f32.mrf.mxu0
      %v1906 = vadd.f32 0.0, %v1905
      %1907 = vdwg.mxu0
      %1908 = vrot.lane.b32.xlu0 %v1798, 120
      %v1909 = vpop.permute.xlu0 %1908
      %1910 = vrot.lane.b32.xlu0 %v1836, 120
      %v1911 = vpop.permute.xlu0 %1910
      %v1912 = vsel %vm1118, %v1909, 0
      %v1914 = vsel %vm1118, %v1911, 0
      %1916 = vmatpush.xpose.msra.mxu0 0.0
      %1917 = vmatpush.xpose.msra.mxu0 0.0
      %1918 = vmatpush.xpose.msra.mxu0 0.0
      %1919 = vmatpush.xpose.msra.mxu0 0.0
      %1920 = vmatpush.xpose.msra.mxu0 0.0
      %1921 = vmatpush.xpose.msra.mxu0 0.0
      %1922 = vmatpush.xpose.msra.mxu0 0.0
      %1923 = vmatpush.xpose.msra.mxu0 0.0
      %1924 = vmatpush.xpose.msra.mxu0 0.0
      %1925 = vmatpush.xpose.msra.mxu0 0.0
      %1926 = vmatpush.xpose.msra.mxu0 0.0
      %1927 = vmatpush.xpose.msra.mxu0 0.0
      %1928 = vmatpush.xpose.msra.mxu0 0.0
      %1929 = vmatpush.xpose.msra.mxu0 0.0
      %1930 = vmatpush.xpose.msra.mxu0 0.0
      %1931 = vmatpush.xpose.msra.mxu0 %v1914
      %1932 = vmatmul.f32.gmra.mxu0 %v1912
      %v1933 = vpop.f32.mrf.mxu0
      %v1934 = vadd.f32 0.0, %v1933
      %1935 = vdwg.mxu0
      %v1936 = vsel %vm1118, %v1934, -inf
      %1937 = vmax.xlane.f32.xlu0 %v1936
      %v1938 = vpop.xlane.xlu0 %1937
      %v1939 = vsub.f32 %v1934, %v1938
      %v1940 = vmul.f32 %v1939, 1.442695
      %v1941 = vpow.pop %v1940
      %v1942 = vsel %vm1118, %v1941, 0.0
      %1943 = vadd.xlane.f32.xlu0 %v1942
      %v1944 = vpop.xlane.xlu0 %1943
      %v1945 = vrcp.pop %v1944
      %v1946 = vmul.f32 %v1941, %v1945
      %1947 = vrot.lane.b32.xlu0 %v1836, 88
      %v1948 = vpop.permute.xlu0 %1947
      %v1951 = vsel %vm1118, %v1946, 0
      %1953 = vmatpush.msra.mxu0 0.0
      %1954 = vmatpush.msra.mxu0 0.0
      %1955 = vmatpush.msra.mxu0 0.0
      %1956 = vmatpush.msra.mxu0 0.0
      %1957 = vmatpush.msra.mxu0 0.0
      %1958 = vmatpush.msra.mxu0 0.0
      %1959 = vmatpush.msra.mxu0 0.0
      %1960 = vmatpush.msra.mxu0 0.0
      %1961 = vmatpush.msra.mxu0 0.0
      %1962 = vmatpush.msra.mxu0 0.0
      %1963 = vmatpush.msra.mxu0 0.0
      %1964 = vmatpush.msra.mxu0 0.0
      %1965 = vmatpush.msra.mxu0 0.0
      %1966 = vmatpush.msra.mxu0 0.0
      %1967 = vmatpush.msra.mxu0 0.0
      %1968 = vmatpush.msra.mxu0 %v1948
      %1969 = vmatmul.f32.gmra.mxu0 %v1951
      %v1970 = vpop.f32.mrf.mxu0
      %v1971 = vadd.f32 0.0, %v1970
      %1972 = vdwg.mxu0
      %1973 = vrot.lane.b32.xlu0 %v1798, 112
      %v1974 = vpop.permute.xlu0 %1973
      %1975 = vrot.lane.b32.xlu0 %v1836, 112
      %v1976 = vpop.permute.xlu0 %1975
      %v1977 = vsel %vm1118, %v1974, 0
      %v1979 = vsel %vm1118, %v1976, 0
      %1981 = vmatpush.xpose.msra.mxu0 0.0
      %1982 = vmatpush.xpose.msra.mxu0 0.0
      %1983 = vmatpush.xpose.msra.mxu0 0.0
      %1984 = vmatpush.xpose.msra.mxu0 0.0
      %1985 = vmatpush.xpose.msra.mxu0 0.0
      %1986 = vmatpush.xpose.msra.mxu0 0.0
      %1987 = vmatpush.xpose.msra.mxu0 0.0
      %1988 = vmatpush.xpose.msra.mxu0 0.0
      %1989 = vmatpush.xpose.msra.mxu0 0.0
      %1990 = vmatpush.xpose.msra.mxu0 0.0
      %1991 = vmatpush.xpose.msra.mxu0 0.0
      %1992 = vmatpush.xpose.msra.mxu0 0.0
      %1993 = vmatpush.xpose.msra.mxu0 0.0
      %1994 = vmatpush.xpose.msra.mxu0 0.0
      %1995 = vmatpush.xpose.msra.mxu0 0.0
      %1996 = vmatpush.xpose.msra.mxu0 %v1979
      %1997 = vmatmul.f32.gmra.mxu0 %v1977
      %v1998 = vpop.f32.mrf.mxu0
      %v1999 = vadd.f32 0.0, %v1998
      %2000 = vdwg.mxu0
      %v2001 = vsel %vm1118, %v1999, -inf
      %2002 = vmax.xlane.f32.xlu0 %v2001
      %v2003 = vpop.xlane.xlu0 %2002
      %v2004 = vsub.f32 %v1999, %v2003
      %v2005 = vmul.f32 %v2004, 1.442695
      %v2006 = vpow.pop %v2005
      %v2007 = vsel %vm1118, %v2006, 0.0
      %2008 = vadd.xlane.f32.xlu0 %v2007
      %v2009 = vpop.xlane.xlu0 %2008
      %v2010 = vrcp.pop %v2009
      %v2011 = vmul.f32 %v2006, %v2010
      %2012 = vrot.lane.b32.xlu0 %v1836, 80
      %v2013 = vpop.permute.xlu0 %2012
      %v2016 = vsel %vm1118, %v2011, 0
      %2018 = vmatpush.msra.mxu0 0.0
      %2019 = vmatpush.msra.mxu0 0.0
      %2020 = vmatpush.msra.mxu0 0.0
      %2021 = vmatpush.msra.mxu0 0.0
      %2022 = vmatpush.msra.mxu0 0.0
      %2023 = vmatpush.msra.mxu0 0.0
      %2024 = vmatpush.msra.mxu0 0.0
      %2025 = vmatpush.msra.mxu0 0.0
      %2026 = vmatpush.msra.mxu0 0.0
      %2027 = vmatpush.msra.mxu0 0.0
      %2028 = vmatpush.msra.mxu0 0.0
      %2029 = vmatpush.msra.mxu0 0.0
      %2030 = vmatpush.msra.mxu0 0.0
      %2031 = vmatpush.msra.mxu0 0.0
      %2032 = vmatpush.msra.mxu0 0.0
      %2033 = vmatpush.msra.mxu0 %v2013
      %2034 = vmatmul.f32.gmra.mxu0 %v2016
      %v2035 = vpop.f32.mrf.mxu0
      %v2036 = vadd.f32 0.0, %v2035
      %2037 = vdwg.mxu0
      %2038 = vrot.lane.b32.xlu0 %v1798, 104
      %v2039 = vpop.permute.xlu0 %2038
      %2040 = vrot.lane.b32.xlu0 %v1836, 104
      %v2041 = vpop.permute.xlu0 %2040
      %v2042 = vsel %vm1118, %v2039, 0
      %v2044 = vsel %vm1118, %v2041, 0
      %2046 = vmatpush.xpose.msra.mxu0 0.0
      %2047 = vmatpush.xpose.msra.mxu0 0.0
      %2048 = vmatpush.xpose.msra.mxu0 0.0
      %2049 = vmatpush.xpose.msra.mxu0 0.0
      %2050 = vmatpush.xpose.msra.mxu0 0.0
      %2051 = vmatpush.xpose.msra.mxu0 0.0
      %2052 = vmatpush.xpose.msra.mxu0 0.0
      %2053 = vmatpush.xpose.msra.mxu0 0.0
      %2054 = vmatpush.xpose.msra.mxu0 0.0
      %2055 = vmatpush.xpose.msra.mxu0 0.0
      %2056 = vmatpush.xpose.msra.mxu0 0.0
      %2057 = vmatpush.xpose.msra.mxu0 0.0
      %2058 = vmatpush.xpose.msra.mxu0 0.0
      %2059 = vmatpush.xpose.msra.mxu0 0.0
      %2060 = vmatpush.xpose.msra.mxu0 0.0
      %2061 = vmatpush.xpose.msra.mxu0 %v2044
      %2062 = vmatmul.f32.gmra.mxu0 %v2042
      %v2063 = vpop.f32.mrf.mxu0
      %v2064 = vadd.f32 0.0, %v2063
      %2065 = vdwg.mxu0
      %v2066 = vsel %vm1118, %v2064, -inf
      %2067 = vmax.xlane.f32.xlu0 %v2066
      %v2068 = vpop.xlane.xlu0 %2067
      %v2069 = vsub.f32 %v2064, %v2068
      %v2070 = vmul.f32 %v2069, 1.442695
      %v2071 = vpow.pop %v2070
      %v2072 = vsel %vm1118, %v2071, 0.0
      %2073 = vadd.xlane.f32.xlu0 %v2072
      %v2074 = vpop.xlane.xlu0 %2073
      %v2075 = vrcp.pop %v2074
      %v2076 = vmul.f32 %v2071, %v2075
      %2077 = vrot.lane.b32.xlu0 %v1836, 72
      %v2078 = vpop.permute.xlu0 %2077
      %v2081 = vsel %vm1118, %v2076, 0
      %2083 = vmatpush.msra.mxu0 0.0
      %2084 = vmatpush.msra.mxu0 0.0
      %2085 = vmatpush.msra.mxu0 0.0
      %2086 = vmatpush.msra.mxu0 0.0
      %2087 = vmatpush.msra.mxu0 0.0
      %2088 = vmatpush.msra.mxu0 0.0
      %2089 = vmatpush.msra.mxu0 0.0
      %2090 = vmatpush.msra.mxu0 0.0
      %2091 = vmatpush.msra.mxu0 0.0
      %2092 = vmatpush.msra.mxu0 0.0
      %2093 = vmatpush.msra.mxu0 0.0
      %2094 = vmatpush.msra.mxu0 0.0
      %2095 = vmatpush.msra.mxu0 0.0
      %2096 = vmatpush.msra.mxu0 0.0
      %2097 = vmatpush.msra.mxu0 0.0
      %2098 = vmatpush.msra.mxu0 %v2078
      %2099 = vmatmul.f32.gmra.mxu0 %v2081
      %v2100 = vpop.f32.mrf.mxu0
      %v2101 = vadd.f32 0.0, %v2100
      %2102 = vdwg.mxu0
      %2104 = vrot.lane.b32.xlu0 %v1971, 8
      %v2105 = vpop.permute.xlu0 %2104
      %2108 = vrot.lane.b32.xlu0 %v2036, 16
      %v2109 = vpop.permute.xlu0 %2108
      %2112 = vrot.lane.b32.xlu0 %v2101, 24
      %v2113 = vpop.permute.xlu0 %2112
      %v2115 = vsel %vm1118, %v1906, %v2105
      %v2116 = vsel %vm1388, %v2115, %v2109
      %v2117 = vsel %vm1390, %v2116, %v2113
      %v2119 = vsel %vm1118, %v1800, 0
      %v2122 = vsel %vm1118, %v1838, 0
      %2124 = vmatpush.xpose.msra.mxu0 0.0
      %2125 = vmatpush.xpose.msra.mxu0 0.0
      %2126 = vmatpush.xpose.msra.mxu0 0.0
      %2127 = vmatpush.xpose.msra.mxu0 0.0
      %2128 = vmatpush.xpose.msra.mxu0 0.0
      %2129 = vmatpush.xpose.msra.mxu0 0.0
      %2130 = vmatpush.xpose.msra.mxu0 0.0
      %2131 = vmatpush.xpose.msra.mxu0 0.0
      %2132 = vmatpush.xpose.msra.mxu0 0.0
      %2133 = vmatpush.xpose.msra.mxu0 0.0
      %2134 = vmatpush.xpose.msra.mxu0 0.0
      %2135 = vmatpush.xpose.msra.mxu0 0.0
      %2136 = vmatpush.xpose.msra.mxu0 0.0
      %2137 = vmatpush.xpose.msra.mxu0 0.0
      %2138 = vmatpush.xpose.msra.mxu0 0.0
      %2139 = vmatpush.xpose.msra.mxu0 %v2122
      %2140 = vmatmul.f32.gmra.mxu0 %v2119
      %v2141 = vpop.f32.mrf.mxu0
      %v2142 = vadd.f32 0.0, %v2141
      %2143 = vdwg.mxu0
      %v2144 = vsel %vm1118, %v2142, -inf
      %2145 = vmax.xlane.f32.xlu0 %v2144
      %v2146 = vpop.xlane.xlu0 %2145
      %v2147 = vsub.f32 %v2142, %v2146
      %v2148 = vmul.f32 %v2147, 1.442695
      %v2149 = vpow.pop %v2148
      %v2150 = vsel %vm1118, %v2149, 0.0
      %2151 = vadd.xlane.f32.xlu0 %v2150
      %v2152 = vpop.xlane.xlu0 %2151
      %v2153 = vrcp.pop %v2152
      %v2154 = vmul.f32 %v2149, %v2153
      %2155 = vrot.lane.b32.xlu0 %v1838, 96
      %v2156 = vpop.permute.xlu0 %2155
      %v2159 = vsel %vm1118, %v2154, 0
      %2161 = vmatpush.msra.mxu0 0.0
      %2162 = vmatpush.msra.mxu0 0.0
      %2163 = vmatpush.msra.mxu0 0.0
      %2164 = vmatpush.msra.mxu0 0.0
      %2165 = vmatpush.msra.mxu0 0.0
      %2166 = vmatpush.msra.mxu0 0.0
      %2167 = vmatpush.msra.mxu0 0.0
      %2168 = vmatpush.msra.mxu0 0.0
      %2169 = vmatpush.msra.mxu0 0.0
      %2170 = vmatpush.msra.mxu0 0.0
      %2171 = vmatpush.msra.mxu0 0.0
      %2172 = vmatpush.msra.mxu0 0.0
      %2173 = vmatpush.msra.mxu0 0.0
      %2174 = vmatpush.msra.mxu0 0.0
      %2175 = vmatpush.msra.mxu0 0.0
      %2176 = vmatpush.msra.mxu0 %v2156
      %2177 = vmatmul.f32.gmra.mxu0 %v2159
      %v2178 = vpop.f32.mrf.mxu0
      %v2179 = vadd.f32 0.0, %v2178
      %2180 = vdwg.mxu0
      %2181 = vrot.lane.b32.xlu0 %v1800, 120
      %v2182 = vpop.permute.xlu0 %2181
      %2183 = vrot.lane.b32.xlu0 %v1838, 120
      %v2184 = vpop.permute.xlu0 %2183
      %v2185 = vsel %vm1118, %v2182, 0
      %v2187 = vsel %vm1118, %v2184, 0
      %2189 = vmatpush.xpose.msra.mxu0 0.0
      %2190 = vmatpush.xpose.msra.mxu0 0.0
      %2191 = vmatpush.xpose.msra.mxu0 0.0
      %2192 = vmatpush.xpose.msra.mxu0 0.0
      %2193 = vmatpush.xpose.msra.mxu0 0.0
      %2194 = vmatpush.xpose.msra.mxu0 0.0
      %2195 = vmatpush.xpose.msra.mxu0 0.0
      %2196 = vmatpush.xpose.msra.mxu0 0.0
      %2197 = vmatpush.xpose.msra.mxu0 0.0
      %2198 = vmatpush.xpose.msra.mxu0 0.0
      %2199 = vmatpush.xpose.msra.mxu0 0.0
      %2200 = vmatpush.xpose.msra.mxu0 0.0
      %2201 = vmatpush.xpose.msra.mxu0 0.0
      %2202 = vmatpush.xpose.msra.mxu0 0.0
      %2203 = vmatpush.xpose.msra.mxu0 0.0
      %2204 = vmatpush.xpose.msra.mxu0 %v2187
      %2205 = vmatmul.f32.gmra.mxu0 %v2185
      %v2206 = vpop.f32.mrf.mxu0
      %v2207 = vadd.f32 0.0, %v2206
      %2208 = vdwg.mxu0
      %v2209 = vsel %vm1118, %v2207, -inf
      %2210 = vmax.xlane.f32.xlu0 %v2209
      %v2211 = vpop.xlane.xlu0 %2210
      %v2212 = vsub.f32 %v2207, %v2211
      %v2213 = vmul.f32 %v2212, 1.442695
      %v2214 = vpow.pop %v2213
      %v2215 = vsel %vm1118, %v2214, 0.0
      %2216 = vadd.xlane.f32.xlu0 %v2215
      %v2217 = vpop.xlane.xlu0 %2216
      %v2218 = vrcp.pop %v2217
      %v2219 = vmul.f32 %v2214, %v2218
      %2220 = vrot.lane.b32.xlu0 %v1838, 88
      %v2221 = vpop.permute.xlu0 %2220
      %v2224 = vsel %vm1118, %v2219, 0
      %2226 = vmatpush.msra.mxu0 0.0
      %2227 = vmatpush.msra.mxu0 0.0
      %2228 = vmatpush.msra.mxu0 0.0
      %2229 = vmatpush.msra.mxu0 0.0
      %2230 = vmatpush.msra.mxu0 0.0
      %2231 = vmatpush.msra.mxu0 0.0
      %2232 = vmatpush.msra.mxu0 0.0
      %2233 = vmatpush.msra.mxu0 0.0
      %2234 = vmatpush.msra.mxu0 0.0
      %2235 = vmatpush.msra.mxu0 0.0
      %2236 = vmatpush.msra.mxu0 0.0
      %2237 = vmatpush.msra.mxu0 0.0
      %2238 = vmatpush.msra.mxu0 0.0
      %2239 = vmatpush.msra.mxu0 0.0
      %2240 = vmatpush.msra.mxu0 0.0
      %2241 = vmatpush.msra.mxu0 %v2221
      %2242 = vmatmul.f32.gmra.mxu0 %v2224
      %v2243 = vpop.f32.mrf.mxu0
      %v2244 = vadd.f32 0.0, %v2243
      %2245 = vdwg.mxu0
      %2246 = vrot.lane.b32.xlu0 %v1800, 112
      %v2247 = vpop.permute.xlu0 %2246
      %2248 = vrot.lane.b32.xlu0 %v1838, 112
      %v2249 = vpop.permute.xlu0 %2248
      %v2250 = vsel %vm1118, %v2247, 0
      %v2252 = vsel %vm1118, %v2249, 0
      %2254 = vmatpush.xpose.msra.mxu0 0.0
      %2255 = vmatpush.xpose.msra.mxu0 0.0
      %2256 = vmatpush.xpose.msra.mxu0 0.0
      %2257 = vmatpush.xpose.msra.mxu0 0.0
      %2258 = vmatpush.xpose.msra.mxu0 0.0
      %2259 = vmatpush.xpose.msra.mxu0 0.0
      %2260 = vmatpush.xpose.msra.mxu0 0.0
      %2261 = vmatpush.xpose.msra.mxu0 0.0
      %2262 = vmatpush.xpose.msra.mxu0 0.0
      %2263 = vmatpush.xpose.msra.mxu0 0.0
      %2264 = vmatpush.xpose.msra.mxu0 0.0
      %2265 = vmatpush.xpose.msra.mxu0 0.0
      %2266 = vmatpush.xpose.msra.mxu0 0.0
      %2267 = vmatpush.xpose.msra.mxu0 0.0
      %2268 = vmatpush.xpose.msra.mxu0 0.0
      %2269 = vmatpush.xpose.msra.mxu0 %v2252
      %2270 = vmatmul.f32.gmra.mxu0 %v2250
      %v2271 = vpop.f32.mrf.mxu0
      %v2272 = vadd.f32 0.0, %v2271
      %2273 = vdwg.mxu0
      %v2274 = vsel %vm1118, %v2272, -inf
      %2275 = vmax.xlane.f32.xlu0 %v2274
      %v2276 = vpop.xlane.xlu0 %2275
      %v2277 = vsub.f32 %v2272, %v2276
      %v2278 = vmul.f32 %v2277, 1.442695
      %v2279 = vpow.pop %v2278
      %v2280 = vsel %vm1118, %v2279, 0.0
      %2281 = vadd.xlane.f32.xlu0 %v2280
      %v2282 = vpop.xlane.xlu0 %2281
      %v2283 = vrcp.pop %v2282
      %v2284 = vmul.f32 %v2279, %v2283
      %2285 = vrot.lane.b32.xlu0 %v1838, 80
      %v2286 = vpop.permute.xlu0 %2285
      %v2289 = vsel %vm1118, %v2284, 0
      %2291 = vmatpush.msra.mxu0 0.0
      %2292 = vmatpush.msra.mxu0 0.0
      %2293 = vmatpush.msra.mxu0 0.0
      %2294 = vmatpush.msra.mxu0 0.0
      %2295 = vmatpush.msra.mxu0 0.0
      %2296 = vmatpush.msra.mxu0 0.0
      %2297 = vmatpush.msra.mxu0 0.0
      %2298 = vmatpush.msra.mxu0 0.0
      %2299 = vmatpush.msra.mxu0 0.0
      %2300 = vmatpush.msra.mxu0 0.0
      %2301 = vmatpush.msra.mxu0 0.0
      %2302 = vmatpush.msra.mxu0 0.0
      %2303 = vmatpush.msra.mxu0 0.0
      %2304 = vmatpush.msra.mxu0 0.0
      %2305 = vmatpush.msra.mxu0 0.0
      %2306 = vmatpush.msra.mxu0 %v2286
      %2307 = vmatmul.f32.gmra.mxu0 %v2289
      %v2308 = vpop.f32.mrf.mxu0
      %v2309 = vadd.f32 0.0, %v2308
      %2310 = vdwg.mxu0
      %2311 = vrot.lane.b32.xlu0 %v1800, 104
      %v2312 = vpop.permute.xlu0 %2311
      %2313 = vrot.lane.b32.xlu0 %v1838, 104
      %v2314 = vpop.permute.xlu0 %2313
      %v2315 = vsel %vm1118, %v2312, 0
      %v2317 = vsel %vm1118, %v2314, 0
      %2319 = vmatpush.xpose.msra.mxu0 0.0
      %2320 = vmatpush.xpose.msra.mxu0 0.0
      %2321 = vmatpush.xpose.msra.mxu0 0.0
      %2322 = vmatpush.xpose.msra.mxu0 0.0
      %2323 = vmatpush.xpose.msra.mxu0 0.0
      %2324 = vmatpush.xpose.msra.mxu0 0.0
      %2325 = vmatpush.xpose.msra.mxu0 0.0
      %2326 = vmatpush.xpose.msra.mxu0 0.0
      %2327 = vmatpush.xpose.msra.mxu0 0.0
      %2328 = vmatpush.xpose.msra.mxu0 0.0
      %2329 = vmatpush.xpose.msra.mxu0 0.0
      %2330 = vmatpush.xpose.msra.mxu0 0.0
      %2331 = vmatpush.xpose.msra.mxu0 0.0
      %2332 = vmatpush.xpose.msra.mxu0 0.0
      %2333 = vmatpush.xpose.msra.mxu0 0.0
      %2334 = vmatpush.xpose.msra.mxu0 %v2317
      %2335 = vmatmul.f32.gmra.mxu0 %v2315
      %v2336 = vpop.f32.mrf.mxu0
      %v2337 = vadd.f32 0.0, %v2336
      %2338 = vdwg.mxu0
      %v2339 = vsel %vm1118, %v2337, -inf
      %2340 = vmax.xlane.f32.xlu0 %v2339
      %v2341 = vpop.xlane.xlu0 %2340
      %v2342 = vsub.f32 %v2337, %v2341
      %v2343 = vmul.f32 %v2342, 1.442695
      %v2344 = vpow.pop %v2343
      %v2345 = vsel %vm1118, %v2344, 0.0
      %2346 = vadd.xlane.f32.xlu0 %v2345
      %v2347 = vpop.xlane.xlu0 %2346
      %v2348 = vrcp.pop %v2347
      %v2349 = vmul.f32 %v2344, %v2348
      %2350 = vrot.lane.b32.xlu0 %v1838, 72
      %v2351 = vpop.permute.xlu0 %2350
      %v2354 = vsel %vm1118, %v2349, 0
      %2356 = vmatpush.msra.mxu0 0.0
      %2357 = vmatpush.msra.mxu0 0.0
      %2358 = vmatpush.msra.mxu0 0.0
      %2359 = vmatpush.msra.mxu0 0.0
      %2360 = vmatpush.msra.mxu0 0.0
      %2361 = vmatpush.msra.mxu0 0.0
      %2362 = vmatpush.msra.mxu0 0.0
      %2363 = vmatpush.msra.mxu0 0.0
      %2364 = vmatpush.msra.mxu0 0.0
      %2365 = vmatpush.msra.mxu0 0.0
      %2366 = vmatpush.msra.mxu0 0.0
      %2367 = vmatpush.msra.mxu0 0.0
      %2368 = vmatpush.msra.mxu0 0.0
      %2369 = vmatpush.msra.mxu0 0.0
      %2370 = vmatpush.msra.mxu0 0.0
      %2371 = vmatpush.msra.mxu0 %v2351
      %2372 = vmatmul.f32.gmra.mxu0 %v2354
      %v2373 = vpop.f32.mrf.mxu0
      %v2374 = vadd.f32 0.0, %v2373
      %2375 = vdwg.mxu0
      %2377 = vrot.lane.b32.xlu0 %v2244, 8
      %v2378 = vpop.permute.xlu0 %2377
      %2381 = vrot.lane.b32.xlu0 %v2309, 16
      %v2382 = vpop.permute.xlu0 %2381
      %2385 = vrot.lane.b32.xlu0 %v2374, 24
      %v2386 = vpop.permute.xlu0 %2385
      %v2388 = vsel %vm1118, %v2179, %v2378
      %v2389 = vsel %vm1388, %v2388, %v2382
      %v2390 = vsel %vm1390, %v2389, %v2386
      %v2391 = vpack.c.bf16 %v2390, %v2117
      %v2393 = vperm.slane %v1844, 0
      %v2399 = vunpack.c.l.b16 %v1840
      %v2400 = vunpack.c.l.b16 %v1841
      %v2401 = vunpack.c.l.b16 %v1842
      %v2402 = vunpack.c.l.b16 %v1843
      %v2403 = vpack.c.b16 %v2400, %v2399
      %v2404 = vpack.c.b16 %v2402, %v2401
      %v2408 = vsel %vm1092, %v2391, 0
      %2410 = vmatpush.bf16.msra.mxu0 0
      %2411 = vmatpush.bf16.msra.mxu0 0
      %2412 = vmatpush.bf16.msra.mxu0 0
      %2413 = vmatpush.bf16.msra.mxu0 0
      %2414 = vmatpush.bf16.msra.mxu0 0
      %2415 = vmatpush.bf16.msra.mxu0 0
      %2416 = vmatpush.bf16.msra.mxu0 %v2404
      %2417 = vmatpush.bf16.msra.mxu0 %v2403
      %2418 = vmatmul.bf16.gmra.mxu0 %v2408
      %v2419 = vpop.f32.mrf.mxu0
      %v2420 = vadd.f32 %v2393, %v2419
      %v2421 = vpop.f32.mrf.mxu0
      %v2422 = vadd.f32 %v2393, %v2421
      %2423 = vdwg.mxu0
      %v2424 = vadd.f32 %v1762, %v2420
      %v2425 = vadd.f32 %v1763, %v2422
      %v2426 = vld [vmem:[%s1028] sm:$0x1]
      %v2427 = vld [vmem:[%s1031] sm:$0x1]
      %v2428 = vsel %vm1092, %v2424, 0.0
      %2429 = vadd.xlane.f32.xlu0 %v2428
      %v2430 = vpop.xlane.xlu0 %2429
      %v2431 = vsel %vm1092, %v2425, 0.0
      %2432 = vadd.xlane.f32.xlu0 %v2431
      %v2433 = vpop.xlane.xlu0 %2432
      %v2434 = vmul.f32 %v2430, %v1715
      %v2435 = vmul.f32 %v2433, %v1715
      %v2436 = vsub.f32 %v2424, %v2434
      %v2437 = vsub.f32 %v2425, %v2435
      %v2438 = vmul.f32 %v2436, %v2436
      %v2439 = vmul.f32 %v2437, %v2437
      %v2440 = vsel %vm1092, %v2438, 0.0
      %2441 = vadd.xlane.f32.xlu0 %v2440
      %v2442 = vpop.xlane.xlu0 %2441
      %v2443 = vsel %vm1092, %v2439, 0.0
      %2444 = vadd.xlane.f32.xlu0 %v2443
      %v2445 = vpop.xlane.xlu0 %2444
      %v2446 = vmul.f32 %v2442, %v1715
      %v2447 = vmul.f32 %v2445, %v1715
      %v2448 = vadd.f32 %v2446, 1e-05
      %v2449 = vadd.f32 %v2447, 1e-05
      %v2450 = vrsqrt.pop %v2448
      %v2451 = vmul.f32 %v2450, %v2448
      %v2452 = vmul.f32 %v2451, %v2450
      %v2453 = vmul.f32 0.5, %v2452
      %v2454 = vsub.f32 1.5, %v2453
      %v2455 = vmul.f32 %v2450, %v2454
      %vm2456 = vweird.f32 %v2448
      %vm2457 = vweird.f32 %v2450
      %vm2458 = vmor %vm2456, %vm2457
      %v2459 = vsel %vm2458, %v2450, %v2455
      %v2460 = vrsqrt.pop %v2449
      %v2461 = vmul.f32 %v2460, %v2449
      %v2462 = vmul.f32 %v2461, %v2460
      %v2463 = vmul.f32 0.5, %v2462
      %v2464 = vsub.f32 1.5, %v2463
      %v2465 = vmul.f32 %v2460, %v2464
      %vm2466 = vweird.f32 %v2449
      %vm2467 = vweird.f32 %v2460
      %vm2468 = vmor %vm2466, %vm2467
      %v2469 = vsel %vm2468, %v2460, %v2465
      %v2470 = vmul.f32 %v2436, %v2459
      %v2471 = vmul.f32 %v2437, %v2469
      %v2473 = vperm.slane %v2426, 0
      %v2475 = vmul.f32 %v2470, %v2473
      %v2476 = vmul.f32 %v2471, %v2473
      %v2478 = vperm.slane %v2427, 0
      %v2480 = vadd.f32 %v2475, %v2478
      %v2481 = vadd.f32 %v2476, %v2478
      %v2482 = vld [vmem:[%s1036] sm:$0xff]
      %v2483 = vld [vmem:[%s1036 + $0x8] sm:$0xff]
      %v2484 = vld [vmem:[%s1036 + $0x10] sm:$0xff]
      %v2485 = vld [vmem:[%s1036 + $0x18] sm:$0xff]
      %v2486 = vld [vmem:[%s1036 + $0x20] sm:$0xff]
      %v2487 = vld [vmem:[%s1036 + $0x28] sm:$0xff]
      %v2488 = vld [vmem:[%s1036 + $0x30] sm:$0xff]
      %v2489 = vld [vmem:[%s1036 + $0x38] sm:$0xff]
      %v2490 = vld [vmem:[%s1036 + $0x40] sm:$0xff]
      %v2491 = vld [vmem:[%s1036 + $0x48] sm:$0xff]
      %v2492 = vld [vmem:[%s1036 + $0x50] sm:$0xff]
      %v2493 = vld [vmem:[%s1036 + $0x58] sm:$0xff]
      %v2494 = vld [vmem:[%s1036 + $0x60] sm:$0xff]
      %v2495 = vld [vmem:[%s1036 + $0x68] sm:$0xff]
      %v2496 = vld [vmem:[%s1036 + $0x70] sm:$0xff]
      %v2497 = vld [vmem:[%s1036 + $0x78] sm:$0xff]
      %v2498 = vld [vmem:[%s1036 + $0x80] sm:$0xff]
      %v2499 = vld [vmem:[%s1036 + $0x88] sm:$0xff]
      %v2500 = vld [vmem:[%s1036 + $0x90] sm:$0xff]
      %v2501 = vld [vmem:[%s1036 + $0x98] sm:$0xff]
      %v2502 = vld [vmem:[%s1036 + $0xa0] sm:$0xff]
      %v2503 = vld [vmem:[%s1036 + $0xa8] sm:$0xff]
      %v2504 = vld [vmem:[%s1036 + $0xb0] sm:$0xff]
      %v2505 = vld [vmem:[%s1036 + $0xb8] sm:$0xff]
      %v2506 = vld [vmem:[%s1036 + $0xc0] sm:$0xff]
      %v2507 = vld [vmem:[%s1036 + $0xc8] sm:$0xff]
      %v2508 = vld [vmem:[%s1036 + $0xd0] sm:$0xff]
      %v2509 = vld [vmem:[%s1036 + $0xd8] sm:$0xff]
      %v2510 = vld [vmem:[%s1036 + $0xe0] sm:$0xff]
      %v2511 = vld [vmem:[%s1036 + $0xe8] sm:$0xff]
      %v2512 = vld [vmem:[%s1036 + $0xf0] sm:$0xff]
      %v2513 = vld [vmem:[%s1036 + $0xf8] sm:$0xff]
      %v2514 = vld [vmem:[%s1040] sm:$0xff]
      %v2515 = vld [vmem:[%s1040 + $0x8] sm:$0xff]
      %v2516 = vld [vmem:[%s1045] sm:$0xf]
      %v2517 = vld [vmem:[%s1045 + $0x4] sm:$0xf]
      %v2518 = vld [vmem:[%s1045 + $0x8] sm:$0xf]
      %v2519 = vld [vmem:[%s1045 + $0xc] sm:$0xf]
      %v2520 = vld [vmem:[%s1045 + $0x10] sm:$0xf]
      %v2521 = vld [vmem:[%s1045 + $0x14] sm:$0xf]
      %v2522 = vld [vmem:[%s1045 + $0x18] sm:$0xf]
      %v2523 = vld [vmem:[%s1045 + $0x1c] sm:$0xf]
      %v2524 = vld [vmem:[%s1045 + $0x20] sm:$0xf]
      %v2525 = vld [vmem:[%s1045 + $0x24] sm:$0xf]
      %v2526 = vld [vmem:[%s1045 + $0x28] sm:$0xf]
      %v2527 = vld [vmem:[%s1045 + $0x2c] sm:$0xf]
      %v2528 = vld [vmem:[%s1045 + $0x30] sm:$0xf]
      %v2529 = vld [vmem:[%s1045 + $0x34] sm:$0xf]
      %v2530 = vld [vmem:[%s1045 + $0x38] sm:$0xf]
      %v2531 = vld [vmem:[%s1045 + $0x3c] sm:$0xf]
      %v2532 = vld [vmem:[%s1045 + $0x40] sm:$0xf]
      %v2533 = vld [vmem:[%s1045 + $0x44] sm:$0xf]
      %v2534 = vld [vmem:[%s1045 + $0x48] sm:$0xf]
      %v2535 = vld [vmem:[%s1045 + $0x4c] sm:$0xf]
      %v2536 = vld [vmem:[%s1045 + $0x50] sm:$0xf]
      %v2537 = vld [vmem:[%s1045 + $0x54] sm:$0xf]
      %v2538 = vld [vmem:[%s1045 + $0x58] sm:$0xf]
      %v2539 = vld [vmem:[%s1045 + $0x5c] sm:$0xf]
      %v2540 = vld [vmem:[%s1045 + $0x60] sm:$0xf]
      %v2541 = vld [vmem:[%s1045 + $0x64] sm:$0xf]
      %v2542 = vld [vmem:[%s1045 + $0x68] sm:$0xf]
      %v2543 = vld [vmem:[%s1045 + $0x6c] sm:$0xf]
      %v2544 = vld [vmem:[%s1045 + $0x70] sm:$0xf]
      %v2545 = vld [vmem:[%s1045 + $0x74] sm:$0xf]
      %v2546 = vld [vmem:[%s1045 + $0x78] sm:$0xf]
      %v2547 = vld [vmem:[%s1045 + $0x7c] sm:$0xf]
      %v2548 = vld [vmem:[%s1045 + $0x80] sm:$0xf]
      %v2549 = vld [vmem:[%s1045 + $0x84] sm:$0xf]
      %v2550 = vld [vmem:[%s1045 + $0x88] sm:$0xf]
      %v2551 = vld [vmem:[%s1045 + $0x8c] sm:$0xf]
      %v2552 = vld [vmem:[%s1045 + $0x90] sm:$0xf]
      %v2553 = vld [vmem:[%s1045 + $0x94] sm:$0xf]
      %v2554 = vld [vmem:[%s1045 + $0x98] sm:$0xf]
      %v2555 = vld [vmem:[%s1045 + $0x9c] sm:$0xf]
      %v2556 = vld [vmem:[%s1045 + $0xa0] sm:$0xf]
      %v2557 = vld [vmem:[%s1045 + $0xa4] sm:$0xf]
      %v2558 = vld [vmem:[%s1045 + $0xa8] sm:$0xf]
      %v2559 = vld [vmem:[%s1045 + $0xac] sm:$0xf]
      %v2560 = vld [vmem:[%s1045 + $0xb0] sm:$0xf]
      %v2561 = vld [vmem:[%s1045 + $0xb4] sm:$0xf]
      %v2562 = vld [vmem:[%s1045 + $0xb8] sm:$0xf]
      %v2563 = vld [vmem:[%s1045 + $0xbc] sm:$0xf]
      %v2564 = vld [vmem:[%s1045 + $0xc0] sm:$0xf]
      %v2565 = vld [vmem:[%s1045 + $0xc4] sm:$0xf]
      %v2566 = vld [vmem:[%s1045 + $0xc8] sm:$0xf]
      %v2567 = vld [vmem:[%s1045 + $0xcc] sm:$0xf]
      %v2568 = vld [vmem:[%s1045 + $0xd0] sm:$0xf]
      %v2569 = vld [vmem:[%s1045 + $0xd4] sm:$0xf]
      %v2570 = vld [vmem:[%s1045 + $0xd8] sm:$0xf]
      %v2571 = vld [vmem:[%s1045 + $0xdc] sm:$0xf]
      %v2572 = vld [vmem:[%s1045 + $0xe0] sm:$0xf]
      %v2573 = vld [vmem:[%s1045 + $0xe4] sm:$0xf]
      %v2574 = vld [vmem:[%s1045 + $0xe8] sm:$0xf]
      %v2575 = vld [vmem:[%s1045 + $0xec] sm:$0xf]
      %v2576 = vld [vmem:[%s1045 + $0xf0] sm:$0xf]
      %v2577 = vld [vmem:[%s1045 + $0xf4] sm:$0xf]
      %v2578 = vld [vmem:[%s1045 + $0xf8] sm:$0xf]
      %v2579 = vld [vmem:[%s1045 + $0xfc] sm:$0xf]
      %v2580 = vld [vmem:[%s1045 + $0x100] sm:$0xf]
      %v2581 = vld [vmem:[%s1045 + $0x104] sm:$0xf]
      %v2582 = vld [vmem:[%s1045 + $0x108] sm:$0xf]
      %v2583 = vld [vmem:[%s1045 + $0x10c] sm:$0xf]
      %v2584 = vld [vmem:[%s1045 + $0x110] sm:$0xf]
      %v2585 = vld [vmem:[%s1045 + $0x114] sm:$0xf]
      %v2586 = vld [vmem:[%s1045 + $0x118] sm:$0xf]
      %v2587 = vld [vmem:[%s1045 + $0x11c] sm:$0xf]
      %v2588 = vld [vmem:[%s1045 + $0x120] sm:$0xf]
      %v2589 = vld [vmem:[%s1045 + $0x124] sm:$0xf]
      %v2590 = vld [vmem:[%s1045 + $0x128] sm:$0xf]
      %v2591 = vld [vmem:[%s1045 + $0x12c] sm:$0xf]
      %v2592 = vld [vmem:[%s1045 + $0x130] sm:$0xf]
      %v2593 = vld [vmem:[%s1045 + $0x134] sm:$0xf]
      %v2594 = vld [vmem:[%s1045 + $0x138] sm:$0xf]
      %v2595 = vld [vmem:[%s1045 + $0x13c] sm:$0xf]
      %v2596 = vld [vmem:[%s1045 + $0x140] sm:$0xf]
      %v2597 = vld [vmem:[%s1045 + $0x144] sm:$0xf]
      %v2598 = vld [vmem:[%s1045 + $0x148] sm:$0xf]
      %v2599 = vld [vmem:[%s1045 + $0x14c] sm:$0xf]
      %v2600 = vld [vmem:[%s1045 + $0x150] sm:$0xf]
      %v2601 = vld [vmem:[%s1045 + $0x154] sm:$0xf]
      %v2602 = vld [vmem:[%s1045 + $0x158] sm:$0xf]
      %v2603 = vld [vmem:[%s1045 + $0x15c] sm:$0xf]
      %v2604 = vld [vmem:[%s1045 + $0x160] sm:$0xf]
      %v2605 = vld [vmem:[%s1045 + $0x164] sm:$0xf]
      %v2606 = vld [vmem:[%s1045 + $0x168] sm:$0xf]
      %v2607 = vld [vmem:[%s1045 + $0x16c] sm:$0xf]
      %v2608 = vld [vmem:[%s1045 + $0x170] sm:$0xf]
      %v2609 = vld [vmem:[%s1045 + $0x174] sm:$0xf]
      %v2610 = vld [vmem:[%s1045 + $0x178] sm:$0xf]
      %v2611 = vld [vmem:[%s1045 + $0x17c] sm:$0xf]
      %v2612 = vld [vmem:[%s1045 + $0x180] sm:$0xf]
      %v2613 = vld [vmem:[%s1045 + $0x184] sm:$0xf]
      %v2614 = vld [vmem:[%s1045 + $0x188] sm:$0xf]
      %v2615 = vld [vmem:[%s1045 + $0x18c] sm:$0xf]
      %v2616 = vld [vmem:[%s1045 + $0x190] sm:$0xf]
      %v2617 = vld [vmem:[%s1045 + $0x194] sm:$0xf]
      %v2618 = vld [vmem:[%s1045 + $0x198] sm:$0xf]
      %v2619 = vld [vmem:[%s1045 + $0x19c] sm:$0xf]
      %v2620 = vld [vmem:[%s1045 + $0x1a0] sm:$0xf]
      %v2621 = vld [vmem:[%s1045 + $0x1a4] sm:$0xf]
      %v2622 = vld [vmem:[%s1045 + $0x1a8] sm:$0xf]
      %v2623 = vld [vmem:[%s1045 + $0x1ac] sm:$0xf]
      %v2624 = vld [vmem:[%s1045 + $0x1b0] sm:$0xf]
      %v2625 = vld [vmem:[%s1045 + $0x1b4] sm:$0xf]
      %v2626 = vld [vmem:[%s1045 + $0x1b8] sm:$0xf]
      %v2627 = vld [vmem:[%s1045 + $0x1bc] sm:$0xf]
      %v2628 = vld [vmem:[%s1045 + $0x1c0] sm:$0xf]
      %v2629 = vld [vmem:[%s1045 + $0x1c4] sm:$0xf]
      %v2630 = vld [vmem:[%s1045 + $0x1c8] sm:$0xf]
      %v2631 = vld [vmem:[%s1045 + $0x1cc] sm:$0xf]
      %v2632 = vld [vmem:[%s1045 + $0x1d0] sm:$0xf]
      %v2633 = vld [vmem:[%s1045 + $0x1d4] sm:$0xf]
      %v2634 = vld [vmem:[%s1045 + $0x1d8] sm:$0xf]
      %v2635 = vld [vmem:[%s1045 + $0x1dc] sm:$0xf]
      %v2636 = vld [vmem:[%s1045 + $0x1e0] sm:$0xf]
      %v2637 = vld [vmem:[%s1045 + $0x1e4] sm:$0xf]
      %v2638 = vld [vmem:[%s1045 + $0x1e8] sm:$0xf]
      %v2639 = vld [vmem:[%s1045 + $0x1ec] sm:$0xf]
      %v2640 = vld [vmem:[%s1045 + $0x1f0] sm:$0xf]
      %v2641 = vld [vmem:[%s1045 + $0x1f4] sm:$0xf]
      %v2642 = vld [vmem:[%s1045 + $0x1f8] sm:$0xf]
      %v2643 = vld [vmem:[%s1045 + $0x1fc] sm:$0xf]
      %v2644 = vld [vmem:[%s1045 + $0x200] sm:$0xf]
      %v2645 = vld [vmem:[%s1045 + $0x204] sm:$0xf]
      %v2646 = vld [vmem:[%s1045 + $0x208] sm:$0xf]
      %v2647 = vld [vmem:[%s1045 + $0x20c] sm:$0xf]
      %v2648 = vld [vmem:[%s1045 + $0x210] sm:$0xf]
      %v2649 = vld [vmem:[%s1045 + $0x214] sm:$0xf]
      %v2650 = vld [vmem:[%s1045 + $0x218] sm:$0xf]
      %v2651 = vld [vmem:[%s1045 + $0x21c] sm:$0xf]
      %v2652 = vld [vmem:[%s1045 + $0x220] sm:$0xf]
      %v2653 = vld [vmem:[%s1045 + $0x224] sm:$0xf]
      %v2654 = vld [vmem:[%s1045 + $0x228] sm:$0xf]
      %v2655 = vld [vmem:[%s1045 + $0x22c] sm:$0xf]
      %v2656 = vld [vmem:[%s1045 + $0x230] sm:$0xf]
      %v2657 = vld [vmem:[%s1045 + $0x234] sm:$0xf]
      %v2658 = vld [vmem:[%s1045 + $0x238] sm:$0xf]
      %v2659 = vld [vmem:[%s1045 + $0x23c] sm:$0xf]
      %v2660 = vld [vmem:[%s1045 + $0x240] sm:$0xf]
      %v2661 = vld [vmem:[%s1045 + $0x244] sm:$0xf]
      %v2662 = vld [vmem:[%s1045 + $0x248] sm:$0xf]
      %v2663 = vld [vmem:[%s1045 + $0x24c] sm:$0xf]
      %v2664 = vld [vmem:[%s1045 + $0x250] sm:$0xf]
      %v2665 = vld [vmem:[%s1045 + $0x254] sm:$0xf]
      %v2666 = vld [vmem:[%s1045 + $0x258] sm:$0xf]
      %v2667 = vld [vmem:[%s1045 + $0x25c] sm:$0xf]
      %v2668 = vld [vmem:[%s1045 + $0x260] sm:$0xf]
      %v2669 = vld [vmem:[%s1045 + $0x264] sm:$0xf]
      %v2670 = vld [vmem:[%s1045 + $0x268] sm:$0xf]
      %v2671 = vld [vmem:[%s1045 + $0x26c] sm:$0xf]
      %v2672 = vld [vmem:[%s1045 + $0x270] sm:$0xf]
      %v2673 = vld [vmem:[%s1045 + $0x274] sm:$0xf]
      %v2674 = vld [vmem:[%s1045 + $0x278] sm:$0xf]
      %v2675 = vld [vmem:[%s1045 + $0x27c] sm:$0xf]
      %v2676 = vld [vmem:[%s1045 + $0x280] sm:$0xf]
      %v2677 = vld [vmem:[%s1045 + $0x284] sm:$0xf]
      %v2678 = vld [vmem:[%s1045 + $0x288] sm:$0xf]
      %v2679 = vld [vmem:[%s1045 + $0x28c] sm:$0xf]
      %v2680 = vld [vmem:[%s1045 + $0x290] sm:$0xf]
      %v2681 = vld [vmem:[%s1045 + $0x294] sm:$0xf]
      %v2682 = vld [vmem:[%s1045 + $0x298] sm:$0xf]
      %v2683 = vld [vmem:[%s1045 + $0x29c] sm:$0xf]
      %v2684 = vld [vmem:[%s1045 + $0x2a0] sm:$0xf]
      %v2685 = vld [vmem:[%s1045 + $0x2a4] sm:$0xf]
      %v2686 = vld [vmem:[%s1045 + $0x2a8] sm:$0xf]
      %v2687 = vld [vmem:[%s1045 + $0x2ac] sm:$0xf]
      %v2688 = vld [vmem:[%s1045 + $0x2b0] sm:$0xf]
      %v2689 = vld [vmem:[%s1045 + $0x2b4] sm:$0xf]
      %v2690 = vld [vmem:[%s1045 + $0x2b8] sm:$0xf]
      %v2691 = vld [vmem:[%s1045 + $0x2bc] sm:$0xf]
      %v2692 = vld [vmem:[%s1045 + $0x2c0] sm:$0xf]
      %v2693 = vld [vmem:[%s1045 + $0x2c4] sm:$0xf]
      %v2694 = vld [vmem:[%s1045 + $0x2c8] sm:$0xf]
      %v2695 = vld [vmem:[%s1045 + $0x2cc] sm:$0xf]
      %v2696 = vld [vmem:[%s1045 + $0x2d0] sm:$0xf]
      %v2697 = vld [vmem:[%s1045 + $0x2d4] sm:$0xf]
      %v2698 = vld [vmem:[%s1045 + $0x2d8] sm:$0xf]
      %v2699 = vld [vmem:[%s1045 + $0x2dc] sm:$0xf]
      %v2700 = vld [vmem:[%s1045 + $0x2e0] sm:$0xf]
      %v2701 = vld [vmem:[%s1045 + $0x2e4] sm:$0xf]
      %v2702 = vld [vmem:[%s1045 + $0x2e8] sm:$0xf]
      %v2703 = vld [vmem:[%s1045 + $0x2ec] sm:$0xf]
      %v2704 = vld [vmem:[%s1045 + $0x2f0] sm:$0xf]
      %v2705 = vld [vmem:[%s1045 + $0x2f4] sm:$0xf]
      %v2706 = vld [vmem:[%s1045 + $0x2f8] sm:$0xf]
      %v2707 = vld [vmem:[%s1045 + $0x2fc] sm:$0xf]
      %v2708 = vld [vmem:[%s1045 + $0x300] sm:$0xf]
      %v2709 = vld [vmem:[%s1045 + $0x304] sm:$0xf]
      %v2710 = vld [vmem:[%s1045 + $0x308] sm:$0xf]
      %v2711 = vld [vmem:[%s1045 + $0x30c] sm:$0xf]
      %v2712 = vld [vmem:[%s1045 + $0x310] sm:$0xf]
      %v2713 = vld [vmem:[%s1045 + $0x314] sm:$0xf]
      %v2714 = vld [vmem:[%s1045 + $0x318] sm:$0xf]
      %v2715 = vld [vmem:[%s1045 + $0x31c] sm:$0xf]
      %v2716 = vld [vmem:[%s1045 + $0x320] sm:$0xf]
      %v2717 = vld [vmem:[%s1045 + $0x324] sm:$0xf]
      %v2718 = vld [vmem:[%s1045 + $0x328] sm:$0xf]
      %v2719 = vld [vmem:[%s1045 + $0x32c] sm:$0xf]
      %v2720 = vld [vmem:[%s1045 + $0x330] sm:$0xf]
      %v2721 = vld [vmem:[%s1045 + $0x334] sm:$0xf]
      %v2722 = vld [vmem:[%s1045 + $0x338] sm:$0xf]
      %v2723 = vld [vmem:[%s1045 + $0x33c] sm:$0xf]
      %v2724 = vld [vmem:[%s1045 + $0x340] sm:$0xf]
      %v2725 = vld [vmem:[%s1045 + $0x344] sm:$0xf]
      %v2726 = vld [vmem:[%s1045 + $0x348] sm:$0xf]
      %v2727 = vld [vmem:[%s1045 + $0x34c] sm:$0xf]
      %v2728 = vld [vmem:[%s1045 + $0x350] sm:$0xf]
      %v2729 = vld [vmem:[%s1045 + $0x354] sm:$0xf]
      %v2730 = vld [vmem:[%s1045 + $0x358] sm:$0xf]
      %v2731 = vld [vmem:[%s1045 + $0x35c] sm:$0xf]
      %v2732 = vld [vmem:[%s1045 + $0x360] sm:$0xf]
      %v2733 = vld [vmem:[%s1045 + $0x364] sm:$0xf]
      %v2734 = vld [vmem:[%s1045 + $0x368] sm:$0xf]
      %v2735 = vld [vmem:[%s1045 + $0x36c] sm:$0xf]
      %v2736 = vld [vmem:[%s1045 + $0x370] sm:$0xf]
      %v2737 = vld [vmem:[%s1045 + $0x374] sm:$0xf]
      %v2738 = vld [vmem:[%s1045 + $0x378] sm:$0xf]
      %v2739 = vld [vmem:[%s1045 + $0x37c] sm:$0xf]
      %v2740 = vld [vmem:[%s1045 + $0x380] sm:$0xf]
      %v2741 = vld [vmem:[%s1045 + $0x384] sm:$0xf]
      %v2742 = vld [vmem:[%s1045 + $0x388] sm:$0xf]
      %v2743 = vld [vmem:[%s1045 + $0x38c] sm:$0xf]
      %v2744 = vld [vmem:[%s1045 + $0x390] sm:$0xf]
      %v2745 = vld [vmem:[%s1045 + $0x394] sm:$0xf]
      %v2746 = vld [vmem:[%s1045 + $0x398] sm:$0xf]
      %v2747 = vld [vmem:[%s1045 + $0x39c] sm:$0xf]
      %v2748 = vld [vmem:[%s1045 + $0x3a0] sm:$0xf]
      %v2749 = vld [vmem:[%s1045 + $0x3a4] sm:$0xf]
      %v2750 = vld [vmem:[%s1045 + $0x3a8] sm:$0xf]
      %v2751 = vld [vmem:[%s1045 + $0x3ac] sm:$0xf]
      %v2752 = vld [vmem:[%s1045 + $0x3b0] sm:$0xf]
      %v2753 = vld [vmem:[%s1045 + $0x3b4] sm:$0xf]
      %v2754 = vld [vmem:[%s1045 + $0x3b8] sm:$0xf]
      %v2755 = vld [vmem:[%s1045 + $0x3bc] sm:$0xf]
      %v2756 = vld [vmem:[%s1045 + $0x3c0] sm:$0xf]
      %v2757 = vld [vmem:[%s1045 + $0x3c4] sm:$0xf]
      %v2758 = vld [vmem:[%s1045 + $0x3c8] sm:$0xf]
      %v2759 = vld [vmem:[%s1045 + $0x3cc] sm:$0xf]
      %v2760 = vld [vmem:[%s1045 + $0x3d0] sm:$0xf]
      %v2761 = vld [vmem:[%s1045 + $0x3d4] sm:$0xf]
      %v2762 = vld [vmem:[%s1045 + $0x3d8] sm:$0xf]
      %v2763 = vld [vmem:[%s1045 + $0x3dc] sm:$0xf]
      %v2764 = vld [vmem:[%s1045 + $0x3e0] sm:$0xf]
      %v2765 = vld [vmem:[%s1045 + $0x3e4] sm:$0xf]
      %v2766 = vld [vmem:[%s1045 + $0x3e8] sm:$0xf]
      %v2767 = vld [vmem:[%s1045 + $0x3ec] sm:$0xf]
      %v2768 = vld [vmem:[%s1045 + $0x3f0] sm:$0xf]
      %v2769 = vld [vmem:[%s1045 + $0x3f4] sm:$0xf]
      %v2770 = vld [vmem:[%s1045 + $0x3f8] sm:$0xf]
      %v2771 = vld [vmem:[%s1045 + $0x3fc] sm:$0xf]
      %v2772 = vld [vmem:[%s1048] sm:$0x1]
      %v2773 = vpack.c.bf16 %v2481, %v2480
      %v2776 = vperm.slane %v2514, 0
      %v2777 = vperm.slane %v2514, 1
      %v2778 = vperm.slane %v2514, 2
      %v2779 = vperm.slane %v2514, 3
      %v2780 = vperm.slane %v2514, 4
      %v2781 = vperm.slane %v2514, 5
      %v2782 = vperm.slane %v2514, 6
      %v2783 = vperm.slane %v2514, 7
      %v2784 = vperm.slane %v2515, 0
      %v2785 = vperm.slane %v2515, 1
      %v2786 = vperm.slane %v2515, 2
      %v2787 = vperm.slane %v2515, 3
      %v2788 = vperm.slane %v2515, 4
      %v2789 = vperm.slane %v2515, 5
      %v2790 = vperm.slane %v2515, 6
      %v2791 = vperm.slane %v2515, 7
      %v2840 = vunpack.c.l.b16 %v2482
      %v2841 = vunpack.c.h.b16 %v2482
      %v2842 = vunpack.c.l.b16 %v2483
      %v2843 = vunpack.c.h.b16 %v2483
      %v2844 = vunpack.c.l.b16 %v2484
      %v2845 = vunpack.c.h.b16 %v2484
      %v2846 = vunpack.c.l.b16 %v2485
      %v2847 = vunpack.c.h.b16 %v2485
      %v2848 = vunpack.c.l.b16 %v2486
      %v2849 = vunpack.c.h.b16 %v2486
      %v2850 = vunpack.c.l.b16 %v2487
      %v2851 = vunpack.c.h.b16 %v2487
      %v2852 = vunpack.c.l.b16 %v2488
      %v2853 = vunpack.c.h.b16 %v2488
      %v2854 = vunpack.c.l.b16 %v2489
      %v2855 = vunpack.c.h.b16 %v2489
      %v2856 = vunpack.c.l.b16 %v2490
      %v2857 = vunpack.c.h.b16 %v2490
      %v2858 = vunpack.c.l.b16 %v2491
      %v2859 = vunpack.c.h.b16 %v2491
      %v2860 = vunpack.c.l.b16 %v2492
      %v2861 = vunpack.c.h.b16 %v2492
      %v2862 = vunpack.c.l.b16 %v2493
      %v2863 = vunpack.c.h.b16 %v2493
      %v2864 = vunpack.c.l.b16 %v2494
      %v2865 = vunpack.c.h.b16 %v2494
      %v2866 = vunpack.c.l.b16 %v2495
      %v2867 = vunpack.c.h.b16 %v2495
      %v2868 = vunpack.c.l.b16 %v2496
      %v2869 = vunpack.c.h.b16 %v2496
      %v2870 = vunpack.c.l.b16 %v2497
      %v2871 = vunpack.c.h.b16 %v2497
      %v2872 = vunpack.c.l.b16 %v2498
      %v2873 = vunpack.c.h.b16 %v2498
      %v2874 = vunpack.c.l.b16 %v2499
      %v2875 = vunpack.c.h.b16 %v2499
      %v2876 = vunpack.c.l.b16 %v2500
      %v2877 = vunpack.c.h.b16 %v2500
      %v2878 = vunpack.c.l.b16 %v2501
      %v2879 = vunpack.c.h.b16 %v2501
      %v2880 = vunpack.c.l.b16 %v2502
      %v2881 = vunpack.c.h.b16 %v2502
      %v2882 = vunpack.c.l.b16 %v2503
      %v2883 = vunpack.c.h.b16 %v2503
      %v2884 = vunpack.c.l.b16 %v2504
      %v2885 = vunpack.c.h.b16 %v2504
      %v2886 = vunpack.c.l.b16 %v2505
      %v2887 = vunpack.c.h.b16 %v2505
      %v2888 = vunpack.c.l.b16 %v2506
      %v2889 = vunpack.c.h.b16 %v2506
      %v2890 = vunpack.c.l.b16 %v2507
      %v2891 = vunpack.c.h.b16 %v2507
      %v2892 = vunpack.c.l.b16 %v2508
      %v2893 = vunpack.c.h.b16 %v2508
      %v2894 = vunpack.c.l.b16 %v2509
      %v2895 = vunpack.c.h.b16 %v2509
      %v2896 = vunpack.c.l.b16 %v2510
      %v2897 = vunpack.c.h.b16 %v2510
      %v2898 = vunpack.c.l.b16 %v2511
      %v2899 = vunpack.c.h.b16 %v2511
      %v2900 = vunpack.c.l.b16 %v2512
      %v2901 = vunpack.c.h.b16 %v2512
      %v2902 = vunpack.c.l.b16 %v2513
      %v2903 = vunpack.c.h.b16 %v2513
      %v2904 = vpack.c.b16 %v2856, %v2840
      %v2905 = vpack.c.b16 %v2857, %v2841
      %v2906 = vpack.c.b16 %v2858, %v2842
      %v2907 = vpack.c.b16 %v2859, %v2843
      %v2908 = vpack.c.b16 %v2860, %v2844
      %v2909 = vpack.c.b16 %v2861, %v2845
      %v2910 = vpack.c.b16 %v2862, %v2846
      %v2911 = vpack.c.b16 %v2863, %v2847
      %v2912 = vpack.c.b16 %v2864, %v2848
      %v2913 = vpack.c.b16 %v2865, %v2849
      %v2914 = vpack.c.b16 %v2866, %v2850
      %v2915 = vpack.c.b16 %v2867, %v2851
      %v2916 = vpack.c.b16 %v2868, %v2852
      %v2917 = vpack.c.b16 %v2869, %v2853
      %v2918 = vpack.c.b16 %v2870, %v2854
      %v2919 = vpack.c.b16 %v2871, %v2855
      %v2920 = vpack.c.b16 %v2888, %v2872
      %v2921 = vpack.c.b16 %v2889, %v2873
      %v2922 = vpack.c.b16 %v2890, %v2874
      %v2923 = vpack.c.b16 %v2891, %v2875
      %v2924 = vpack.c.b16 %v2892, %v2876
      %v2925 = vpack.c.b16 %v2893, %v2877
      %v2926 = vpack.c.b16 %v2894, %v2878
      %v2927 = vpack.c.b16 %v2895, %v2879
      %v2928 = vpack.c.b16 %v2896, %v2880
      %v2929 = vpack.c.b16 %v2897, %v2881
      %v2930 = vpack.c.b16 %v2898, %v2882
      %v2931 = vpack.c.b16 %v2899, %v2883
      %v2932 = vpack.c.b16 %v2900, %v2884
      %v2933 = vpack.c.b16 %v2901, %v2885
      %v2934 = vpack.c.b16 %v2902, %v2886
      %v2935 = vpack.c.b16 %v2903, %v2887
      %v2969 = vsel %vm1092, %v2773, 0
      %2971 = vmatpush.bf16.msra.mxu0 0
      %2972 = vmatpush.bf16.msra.mxu0 0
      %2973 = vmatpush.bf16.msra.mxu0 0
      %2974 = vmatpush.bf16.msra.mxu0 0
      %2975 = vmatpush.bf16.msra.mxu0 0
      %2976 = vmatpush.bf16.msra.mxu0 0
      %2977 = vmatpush.bf16.msra.mxu0 %v2920
      %2978 = vmatpush.bf16.msra.mxu0 %v2904
      %2979 = vmatmul.bf16.gmra.mxu0 %v2969
      %v2980 = vpop.f32.mrf.mxu0
      %v2981 = vadd.f32 %v2776, %v2980
      %v2982 = vpop.f32.mrf.mxu0
      %v2983 = vadd.f32 %v2776, %v2982
      %2984 = vdwg.mxu0
      %2985 = vmatpush.bf16.msra.mxu0 0
      %2986 = vmatpush.bf16.msra.mxu0 0
      %2987 = vmatpush.bf16.msra.mxu0 0
      %2988 = vmatpush.bf16.msra.mxu0 0
      %2989 = vmatpush.bf16.msra.mxu0 0
      %2990 = vmatpush.bf16.msra.mxu0 0
      %2991 = vmatpush.bf16.msra.mxu0 %v2921
      %2992 = vmatpush.bf16.msra.mxu0 %v2905
      %2993 = vmatmul.bf16.gmra.mxu0 %v2969
      %v2994 = vpop.f32.mrf.mxu0
      %v2995 = vadd.f32 %v2777, %v2994
      %v2996 = vpop.f32.mrf.mxu0
      %v2997 = vadd.f32 %v2777, %v2996
      %2998 = vdwg.mxu0
      %2999 = vmatpush.bf16.msra.mxu0 0
      %3000 = vmatpush.bf16.msra.mxu0 0
      %3001 = vmatpush.bf16.msra.mxu0 0
      %3002 = vmatpush.bf16.msra.mxu0 0
      %3003 = vmatpush.bf16.msra.mxu0 0
      %3004 = vmatpush.bf16.msra.mxu0 0
      %3005 = vmatpush.bf16.msra.mxu0 %v2922
      %3006 = vmatpush.bf16.msra.mxu0 %v2906
      %3007 = vmatmul.bf16.gmra.mxu0 %v2969
      %v3008 = vpop.f32.mrf.mxu0
      %v3009 = vadd.f32 %v2778, %v3008
      %v3010 = vpop.f32.mrf.mxu0
      %v3011 = vadd.f32 %v2778, %v3010
      %3012 = vdwg.mxu0
      %3013 = vmatpush.bf16.msra.mxu0 0
      %3014 = vmatpush.bf16.msra.mxu0 0
      %3015 = vmatpush.bf16.msra.mxu0 0
      %3016 = vmatpush.bf16.msra.mxu0 0
      %3017 = vmatpush.bf16.msra.mxu0 0
      %3018 = vmatpush.bf16.msra.mxu0 0
      %3019 = vmatpush.bf16.msra.mxu0 %v2923
      %3020 = vmatpush.bf16.msra.mxu0 %v2907
      %3021 = vmatmul.bf16.gmra.mxu0 %v2969
      %v3022 = vpop.f32.mrf.mxu0
      %v3023 = vadd.f32 %v2779, %v3022
      %v3024 = vpop.f32.mrf.mxu0
      %v3025 = vadd.f32 %v2779, %v3024
      %3026 = vdwg.mxu0
      %3027 = vmatpush.bf16.msra.mxu0 0
      %3028 = vmatpush.bf16.msra.mxu0 0
      %3029 = vmatpush.bf16.msra.mxu0 0
      %3030 = vmatpush.bf16.msra.mxu0 0
      %3031 = vmatpush.bf16.msra.mxu0 0
      %3032 = vmatpush.bf16.msra.mxu0 0
      %3033 = vmatpush.bf16.msra.mxu0 %v2924
      %3034 = vmatpush.bf16.msra.mxu0 %v2908
      %3035 = vmatmul.bf16.gmra.mxu0 %v2969
      %v3036 = vpop.f32.mrf.mxu0
      %v3037 = vadd.f32 %v2780, %v3036
      %v3038 = vpop.f32.mrf.mxu0
      %v3039 = vadd.f32 %v2780, %v3038
      %3040 = vdwg.mxu0
      %3041 = vmatpush.bf16.msra.mxu0 0
      %3042 = vmatpush.bf16.msra.mxu0 0
      %3043 = vmatpush.bf16.msra.mxu0 0
      %3044 = vmatpush.bf16.msra.mxu0 0
      %3045 = vmatpush.bf16.msra.mxu0 0
      %3046 = vmatpush.bf16.msra.mxu0 0
      %3047 = vmatpush.bf16.msra.mxu0 %v2925
      %3048 = vmatpush.bf16.msra.mxu0 %v2909
      %3049 = vmatmul.bf16.gmra.mxu0 %v2969
      %v3050 = vpop.f32.mrf.mxu0
      %v3051 = vadd.f32 %v2781, %v3050
      %v3052 = vpop.f32.mrf.mxu0
      %v3053 = vadd.f32 %v2781, %v3052
      %3054 = vdwg.mxu0
      %3055 = vmatpush.bf16.msra.mxu0 0
      %3056 = vmatpush.bf16.msra.mxu0 0
      %3057 = vmatpush.bf16.msra.mxu0 0
      %3058 = vmatpush.bf16.msra.mxu0 0
      %3059 = vmatpush.bf16.msra.mxu0 0
      %3060 = vmatpush.bf16.msra.mxu0 0
      %3061 = vmatpush.bf16.msra.mxu0 %v2926
      %3062 = vmatpush.bf16.msra.mxu0 %v2910
      %3063 = vmatmul.bf16.gmra.mxu0 %v2969
      %v3064 = vpop.f32.mrf.mxu0
      %v3065 = vadd.f32 %v2782, %v3064
      %v3066 = vpop.f32.mrf.mxu0
      %v3067 = vadd.f32 %v2782, %v3066
      %3068 = vdwg.mxu0
      %3069 = vmatpush.bf16.msra.mxu0 0
      %3070 = vmatpush.bf16.msra.mxu0 0
      %3071 = vmatpush.bf16.msra.mxu0 0
      %3072 = vmatpush.bf16.msra.mxu0 0
      %3073 = vmatpush.bf16.msra.mxu0 0
      %3074 = vmatpush.bf16.msra.mxu0 0
      %3075 = vmatpush.bf16.msra.mxu0 %v2927
      %3076 = vmatpush.bf16.msra.mxu0 %v2911
      %3077 = vmatmul.bf16.gmra.mxu0 %v2969
      %v3078 = vpop.f32.mrf.mxu0
      %v3079 = vadd.f32 %v2783, %v3078
      %v3080 = vpop.f32.mrf.mxu0
      %v3081 = vadd.f32 %v2783, %v3080
      %3082 = vdwg.mxu0
      %3083 = vmatpush.bf16.msra.mxu0 0
      %3084 = vmatpush.bf16.msra.mxu0 0
      %3085 = vmatpush.bf16.msra.mxu0 0
      %3086 = vmatpush.bf16.msra.mxu0 0
      %3087 = vmatpush.bf16.msra.mxu0 0
      %3088 = vmatpush.bf16.msra.mxu0 0
      %3089 = vmatpush.bf16.msra.mxu0 %v2928
      %3090 = vmatpush.bf16.msra.mxu0 %v2912
      %3091 = vmatmul.bf16.gmra.mxu0 %v2969
      %v3092 = vpop.f32.mrf.mxu0
      %v3093 = vadd.f32 %v2784, %v3092
      %v3094 = vpop.f32.mrf.mxu0
      %v3095 = vadd.f32 %v2784, %v3094
      %3096 = vdwg.mxu0
      %3097 = vmatpush.bf16.msra.mxu0 0
      %3098 = vmatpush.bf16.msra.mxu0 0
      %3099 = vmatpush.bf16.msra.mxu0 0
      %3100 = vmatpush.bf16.msra.mxu0 0
      %3101 = vmatpush.bf16.msra.mxu0 0
      %3102 = vmatpush.bf16.msra.mxu0 0
      %3103 = vmatpush.bf16.msra.mxu0 %v2929
      %3104 = vmatpush.bf16.msra.mxu0 %v2913
      %3105 = vmatmul.bf16.gmra.mxu0 %v2969
      %v3106 = vpop.f32.mrf.mxu0
      %v3107 = vadd.f32 %v2785, %v3106
      %v3108 = vpop.f32.mrf.mxu0
      %v3109 = vadd.f32 %v2785, %v3108
      %3110 = vdwg.mxu0
      %3111 = vmatpush.bf16.msra.mxu0 0
      %3112 = vmatpush.bf16.msra.mxu0 0
      %3113 = vmatpush.bf16.msra.mxu0 0
      %3114 = vmatpush.bf16.msra.mxu0 0
      %3115 = vmatpush.bf16.msra.mxu0 0
      %3116 = vmatpush.bf16.msra.mxu0 0
      %3117 = vmatpush.bf16.msra.mxu0 %v2930
      %3118 = vmatpush.bf16.msra.mxu0 %v2914
      %3119 = vmatmul.bf16.gmra.mxu0 %v2969
      %v3120 = vpop.f32.mrf.mxu0
      %v3121 = vadd.f32 %v2786, %v3120
      %v3122 = vpop.f32.mrf.mxu0
      %v3123 = vadd.f32 %v2786, %v3122
      %3124 = vdwg.mxu0
      %3125 = vmatpush.bf16.msra.mxu0 0
      %3126 = vmatpush.bf16.msra.mxu0 0
      %3127 = vmatpush.bf16.msra.mxu0 0
      %3128 = vmatpush.bf16.msra.mxu0 0
      %3129 = vmatpush.bf16.msra.mxu0 0
      %3130 = vmatpush.bf16.msra.mxu0 0
      %3131 = vmatpush.bf16.msra.mxu0 %v2931
      %3132 = vmatpush.bf16.msra.mxu0 %v2915
      %3133 = vmatmul.bf16.gmra.mxu0 %v2969
      %v3134 = vpop.f32.mrf.mxu0
      %v3135 = vadd.f32 %v2787, %v3134
      %v3136 = vpop.f32.mrf.mxu0
      %v3137 = vadd.f32 %v2787, %v3136
      %3138 = vdwg.mxu0
      %3139 = vmatpush.bf16.msra.mxu0 0
      %3140 = vmatpush.bf16.msra.mxu0 0
      %3141 = vmatpush.bf16.msra.mxu0 0
      %3142 = vmatpush.bf16.msra.mxu0 0
      %3143 = vmatpush.bf16.msra.mxu0 0
      %3144 = vmatpush.bf16.msra.mxu0 0
      %3145 = vmatpush.bf16.msra.mxu0 %v2932
      %3146 = vmatpush.bf16.msra.mxu0 %v2916
      %3147 = vmatmul.bf16.gmra.mxu0 %v2969
      %v3148 = vpop.f32.mrf.mxu0
      %v3149 = vadd.f32 %v2788, %v3148
      %v3150 = vpop.f32.mrf.mxu0
      %v3151 = vadd.f32 %v2788, %v3150
      %3152 = vdwg.mxu0
      %3153 = vmatpush.bf16.msra.mxu0 0
      %3154 = vmatpush.bf16.msra.mxu0 0
      %3155 = vmatpush.bf16.msra.mxu0 0
      %3156 = vmatpush.bf16.msra.mxu0 0
      %3157 = vmatpush.bf16.msra.mxu0 0
      %3158 = vmatpush.bf16.msra.mxu0 0
      %3159 = vmatpush.bf16.msra.mxu0 %v2933
      %3160 = vmatpush.bf16.msra.mxu0 %v2917
      %3161 = vmatmul.bf16.gmra.mxu0 %v2969
      %v3162 = vpop.f32.mrf.mxu0
      %v3163 = vadd.f32 %v2789, %v3162
      %v3164 = vpop.f32.mrf.mxu0
      %v3165 = vadd.f32 %v2789, %v3164
      %3166 = vdwg.mxu0
      %3167 = vmatpush.bf16.msra.mxu0 0
      %3168 = vmatpush.bf16.msra.mxu0 0
      %3169 = vmatpush.bf16.msra.mxu0 0
      %3170 = vmatpush.bf16.msra.mxu0 0
      %3171 = vmatpush.bf16.msra.mxu0 0
      %3172 = vmatpush.bf16.msra.mxu0 0
      %3173 = vmatpush.bf16.msra.mxu0 %v2934
      %3174 = vmatpush.bf16.msra.mxu0 %v2918
      %3175 = vmatmul.bf16.gmra.mxu0 %v2969
      %v3176 = vpop.f32.mrf.mxu0
      %v3177 = vadd.f32 %v2790, %v3176
      %v3178 = vpop.f32.mrf.mxu0
      %v3179 = vadd.f32 %v2790, %v3178
      %3180 = vdwg.mxu0
      %3181 = vmatpush.bf16.msra.mxu0 0
      %3182 = vmatpush.bf16.msra.mxu0 0
      %3183 = vmatpush.bf16.msra.mxu0 0
      %3184 = vmatpush.bf16.msra.mxu0 0
      %3185 = vmatpush.bf16.msra.mxu0 0
      %3186 = vmatpush.bf16.msra.mxu0 0
      %3187 = vmatpush.bf16.msra.mxu0 %v2935
      %3188 = vmatpush.bf16.msra.mxu0 %v2919
      %3189 = vmatmul.bf16.gmra.mxu0 %v2969
      %v3190 = vpop.f32.mrf.mxu0
      %v3191 = vadd.f32 %v2791, %v3190
      %v3192 = vpop.f32.mrf.mxu0
      %v3193 = vadd.f32 %v2791, %v3192
      %3194 = vdwg.mxu0
      %v3195 = vmax.f32 %v2981, 0.0
      %v3196 = vmax.f32 %v2995, 0.0
      %v3197 = vmax.f32 %v3009, 0.0
      %v3198 = vmax.f32 %v3023, 0.0
      %v3199 = vmax.f32 %v3037, 0.0
      %v3200 = vmax.f32 %v3051, 0.0
      %v3201 = vmax.f32 %v3065, 0.0
      %v3202 = vmax.f32 %v3079, 0.0
      %v3203 = vmax.f32 %v3093, 0.0
      %v3204 = vmax.f32 %v3107, 0.0
      %v3205 = vmax.f32 %v3121, 0.0
      %v3206 = vmax.f32 %v3135, 0.0
      %v3207 = vmax.f32 %v3149, 0.0
      %v3208 = vmax.f32 %v3163, 0.0
      %v3209 = vmax.f32 %v3177, 0.0
      %v3210 = vmax.f32 %v3191, 0.0
      %v3211 = vmax.f32 %v2983, 0.0
      %v3212 = vmax.f32 %v2997, 0.0
      %v3213 = vmax.f32 %v3011, 0.0
      %v3214 = vmax.f32 %v3025, 0.0
      %v3215 = vmax.f32 %v3039, 0.0
      %v3216 = vmax.f32 %v3053, 0.0
      %v3217 = vmax.f32 %v3067, 0.0
      %v3218 = vmax.f32 %v3081, 0.0
      %v3219 = vmax.f32 %v3095, 0.0
      %v3220 = vmax.f32 %v3109, 0.0
      %v3221 = vmax.f32 %v3123, 0.0
      %v3222 = vmax.f32 %v3137, 0.0
      %v3223 = vmax.f32 %v3151, 0.0
      %v3224 = vmax.f32 %v3165, 0.0
      %v3225 = vmax.f32 %v3179, 0.0
      %v3226 = vmax.f32 %v3193, 0.0
      %v3227 = vpack.c.bf16 %v3211, %v3195
      %v3228 = vpack.c.bf16 %v3212, %v3196
      %v3229 = vpack.c.bf16 %v3213, %v3197
      %v3230 = vpack.c.bf16 %v3214, %v3198
      %v3231 = vpack.c.bf16 %v3215, %v3199
      %v3232 = vpack.c.bf16 %v3216, %v3200
      %v3233 = vpack.c.bf16 %v3217, %v3201
      %v3234 = vpack.c.bf16 %v3218, %v3202
      %v3235 = vpack.c.bf16 %v3219, %v3203
      %v3236 = vpack.c.bf16 %v3220, %v3204
      %v3237 = vpack.c.bf16 %v3221, %v3205
      %v3238 = vpack.c.bf16 %v3222, %v3206
      %v3239 = vpack.c.bf16 %v3223, %v3207
      %v3240 = vpack.c.bf16 %v3224, %v3208
      %v3241 = vpack.c.bf16 %v3225, %v3209
      %v3242 = vpack.c.bf16 %v3226, %v3210
      %v3244 = vperm.slane %v2772, 0
      %v3502 = vunpack.c.l.b16 %v2516
      %v3503 = vunpack.c.l.b16 %v2517
      %v3504 = vunpack.c.l.b16 %v2518
      %v3505 = vunpack.c.l.b16 %v2519
      %v3506 = vunpack.c.l.b16 %v2520
      %v3507 = vunpack.c.l.b16 %v2521
      %v3508 = vunpack.c.l.b16 %v2522
      %v3509 = vunpack.c.l.b16 %v2523
      %v3510 = vunpack.c.l.b16 %v2524
      %v3511 = vunpack.c.l.b16 %v2525
      %v3512 = vunpack.c.l.b16 %v2526
      %v3513 = vunpack.c.l.b16 %v2527
      %v3514 = vunpack.c.l.b16 %v2528
      %v3515 = vunpack.c.l.b16 %v2529
      %v3516 = vunpack.c.l.b16 %v2530
      %v3517 = vunpack.c.l.b16 %v2531
      %v3518 = vunpack.c.l.b16 %v2532
      %v3519 = vunpack.c.l.b16 %v2533
      %v3520 = vunpack.c.l.b16 %v2534
      %v3521 = vunpack.c.l.b16 %v2535
      %v3522 = vunpack.c.l.b16 %v2536
      %v3523 = vunpack.c.l.b16 %v2537
      %v3524 = vunpack.c.l.b16 %v2538
      %v3525 = vunpack.c.l.b16 %v2539
      %v3526 = vunpack.c.l.b16 %v2540
      %v3527 = vunpack.c.l.b16 %v2541
      %v3528 = vunpack.c.l.b16 %v2542
      %v3529 = vunpack.c.l.b16 %v2543
      %v3530 = vunpack.c.l.b16 %v2544
      %v3531 = vunpack.c.l.b16 %v2545
      %v3532 = vunpack.c.l.b16 %v2546
      %v3533 = vunpack.c.l.b16 %v2547
      %v3534 = vunpack.c.l.b16 %v2548
      %v3535 = vunpack.c.l.b16 %v2549
      %v3536 = vunpack.c.l.b16 %v2550
      %v3537 = vunpack.c.l.b16 %v2551
      %v3538 = vunpack.c.l.b16 %v2552
      %v3539 = vunpack.c.l.b16 %v2553
      %v3540 = vunpack.c.l.b16 %v2554
      %v3541 = vunpack.c.l.b16 %v2555
      %v3542 = vunpack.c.l.b16 %v2556
      %v3543 = vunpack.c.l.b16 %v2557
      %v3544 = vunpack.c.l.b16 %v2558
      %v3545 = vunpack.c.l.b16 %v2559
      %v3546 = vunpack.c.l.b16 %v2560
      %v3547 = vunpack.c.l.b16 %v2561
      %v3548 = vunpack.c.l.b16 %v2562
      %v3549 = vunpack.c.l.b16 %v2563
      %v3550 = vunpack.c.l.b16 %v2564
      %v3551 = vunpack.c.l.b16 %v2565
      %v3552 = vunpack.c.l.b16 %v2566
      %v3553 = vunpack.c.l.b16 %v2567
      %v3554 = vunpack.c.l.b16 %v2568
      %v3555 = vunpack.c.l.b16 %v2569
      %v3556 = vunpack.c.l.b16 %v2570
      %v3557 = vunpack.c.l.b16 %v2571
      %v3558 = vunpack.c.l.b16 %v2572
      %v3559 = vunpack.c.l.b16 %v2573
      %v3560 = vunpack.c.l.b16 %v2574
      %v3561 = vunpack.c.l.b16 %v2575
      %v3562 = vunpack.c.l.b16 %v2576
      %v3563 = vunpack.c.l.b16 %v2577
      %v3564 = vunpack.c.l.b16 %v2578
      %v3565 = vunpack.c.l.b16 %v2579
      %v3566 = vunpack.c.l.b16 %v2580
      %v3567 = vunpack.c.l.b16 %v2581
      %v3568 = vunpack.c.l.b16 %v2582
      %v3569 = vunpack.c.l.b16 %v2583
      %v3570 = vunpack.c.l.b16 %v2584
      %v3571 = vunpack.c.l.b16 %v2585
      %v3572 = vunpack.c.l.b16 %v2586
      %v3573 = vunpack.c.l.b16 %v2587
      %v3574 = vunpack.c.l.b16 %v2588
      %v3575 = vunpack.c.l.b16 %v2589
      %v3576 = vunpack.c.l.b16 %v2590
      %v3577 = vunpack.c.l.b16 %v2591
      %v3578 = vunpack.c.l.b16 %v2592
      %v3579 = vunpack.c.l.b16 %v2593
      %v3580 = vunpack.c.l.b16 %v2594
      %v3581 = vunpack.c.l.b16 %v2595
      %v3582 = vunpack.c.l.b16 %v2596
      %v3583 = vunpack.c.l.b16 %v2597
      %v3584 = vunpack.c.l.b16 %v2598
      %v3585 = vunpack.c.l.b16 %v2599
      %v3586 = vunpack.c.l.b16 %v2600
      %v3587 = vunpack.c.l.b16 %v2601
      %v3588 = vunpack.c.l.b16 %v2602
      %v3589 = vunpack.c.l.b16 %v2603
      %v3590 = vunpack.c.l.b16 %v2604
      %v3591 = vunpack.c.l.b16 %v2605
      %v3592 = vunpack.c.l.b16 %v2606
      %v3593 = vunpack.c.l.b16 %v2607
      %v3594 = vunpack.c.l.b16 %v2608
      %v3595 = vunpack.c.l.b16 %v2609
      %v3596 = vunpack.c.l.b16 %v2610
      %v3597 = vunpack.c.l.b16 %v2611
      %v3598 = vunpack.c.l.b16 %v2612
      %v3599 = vunpack.c.l.b16 %v2613
      %v3600 = vunpack.c.l.b16 %v2614
      %v3601 = vunpack.c.l.b16 %v2615
      %v3602 = vunpack.c.l.b16 %v2616
      %v3603 = vunpack.c.l.b16 %v2617
      %v3604 = vunpack.c.l.b16 %v2618
      %v3605 = vunpack.c.l.b16 %v2619
      %v3606 = vunpack.c.l.b16 %v2620
      %v3607 = vunpack.c.l.b16 %v2621
      %v3608 = vunpack.c.l.b16 %v2622
      %v3609 = vunpack.c.l.b16 %v2623
      %v3610 = vunpack.c.l.b16 %v2624
      %v3611 = vunpack.c.l.b16 %v2625
      %v3612 = vunpack.c.l.b16 %v2626
      %v3613 = vunpack.c.l.b16 %v2627
      %v3614 = vunpack.c.l.b16 %v2628
      %v3615 = vunpack.c.l.b16 %v2629
      %v3616 = vunpack.c.l.b16 %v2630
      %v3617 = vunpack.c.l.b16 %v2631
      %v3618 = vunpack.c.l.b16 %v2632
      %v3619 = vunpack.c.l.b16 %v2633
      %v3620 = vunpack.c.l.b16 %v2634
      %v3621 = vunpack.c.l.b16 %v2635
      %v3622 = vunpack.c.l.b16 %v2636
      %v3623 = vunpack.c.l.b16 %v2637
      %v3624 = vunpack.c.l.b16 %v2638
      %v3625 = vunpack.c.l.b16 %v2639
      %v3626 = vunpack.c.l.b16 %v2640
      %v3627 = vunpack.c.l.b16 %v2641
      %v3628 = vunpack.c.l.b16 %v2642
      %v3629 = vunpack.c.l.b16 %v2643
      %v3630 = vunpack.c.l.b16 %v2644
      %v3631 = vunpack.c.l.b16 %v2645
      %v3632 = vunpack.c.l.b16 %v2646
      %v3633 = vunpack.c.l.b16 %v2647
      %v3634 = vunpack.c.l.b16 %v2648
      %v3635 = vunpack.c.l.b16 %v2649
      %v3636 = vunpack.c.l.b16 %v2650
      %v3637 = vunpack.c.l.b16 %v2651
      %v3638 = vunpack.c.l.b16 %v2652
      %v3639 = vunpack.c.l.b16 %v2653
      %v3640 = vunpack.c.l.b16 %v2654
      %v3641 = vunpack.c.l.b16 %v2655
      %v3642 = vunpack.c.l.b16 %v2656
      %v3643 = vunpack.c.l.b16 %v2657
      %v3644 = vunpack.c.l.b16 %v2658
      %v3645 = vunpack.c.l.b16 %v2659
      %v3646 = vunpack.c.l.b16 %v2660
      %v3647 = vunpack.c.l.b16 %v2661
      %v3648 = vunpack.c.l.b16 %v2662
      %v3649 = vunpack.c.l.b16 %v2663
      %v3650 = vunpack.c.l.b16 %v2664
      %v3651 = vunpack.c.l.b16 %v2665
      %v3652 = vunpack.c.l.b16 %v2666
      %v3653 = vunpack.c.l.b16 %v2667
      %v3654 = vunpack.c.l.b16 %v2668
      %v3655 = vunpack.c.l.b16 %v2669
      %v3656 = vunpack.c.l.b16 %v2670
      %v3657 = vunpack.c.l.b16 %v2671
      %v3658 = vunpack.c.l.b16 %v2672
      %v3659 = vunpack.c.l.b16 %v2673
      %v3660 = vunpack.c.l.b16 %v2674
      %v3661 = vunpack.c.l.b16 %v2675
      %v3662 = vunpack.c.l.b16 %v2676
      %v3663 = vunpack.c.l.b16 %v2677
      %v3664 = vunpack.c.l.b16 %v2678
      %v3665 = vunpack.c.l.b16 %v2679
      %v3666 = vunpack.c.l.b16 %v2680
      %v3667 = vunpack.c.l.b16 %v2681
      %v3668 = vunpack.c.l.b16 %v2682
      %v3669 = vunpack.c.l.b16 %v2683
      %v3670 = vunpack.c.l.b16 %v2684
      %v3671 = vunpack.c.l.b16 %v2685
      %v3672 = vunpack.c.l.b16 %v2686
      %v3673 = vunpack.c.l.b16 %v2687
      %v3674 = vunpack.c.l.b16 %v2688
      %v3675 = vunpack.c.l.b16 %v2689
      %v3676 = vunpack.c.l.b16 %v2690
      %v3677 = vunpack.c.l.b16 %v2691
      %v3678 = vunpack.c.l.b16 %v2692
      %v3679 = vunpack.c.l.b16 %v2693
      %v3680 = vunpack.c.l.b16 %v2694
      %v3681 = vunpack.c.l.b16 %v2695
      %v3682 = vunpack.c.l.b16 %v2696
      %v3683 = vunpack.c.l.b16 %v2697
      %v3684 = vunpack.c.l.b16 %v2698
      %v3685 = vunpack.c.l.b16 %v2699
      %v3686 = vunpack.c.l.b16 %v2700
      %v3687 = vunpack.c.l.b16 %v2701
      %v3688 = vunpack.c.l.b16 %v2702
      %v3689 = vunpack.c.l.b16 %v2703
      %v3690 = vunpack.c.l.b16 %v2704
      %v3691 = vunpack.c.l.b16 %v2705
      %v3692 = vunpack.c.l.b16 %v2706
      %v3693 = vunpack.c.l.b16 %v2707
      %v3694 = vunpack.c.l.b16 %v2708
      %v3695 = vunpack.c.l.b16 %v2709
      %v3696 = vunpack.c.l.b16 %v2710
      %v3697 = vunpack.c.l.b16 %v2711
      %v3698 = vunpack.c.l.b16 %v2712
      %v3699 = vunpack.c.l.b16 %v2713
      %v3700 = vunpack.c.l.b16 %v2714
      %v3701 = vunpack.c.l.b16 %v2715
      %v3702 = vunpack.c.l.b16 %v2716
      %v3703 = vunpack.c.l.b16 %v2717
      %v3704 = vunpack.c.l.b16 %v2718
      %v3705 = vunpack.c.l.b16 %v2719
      %v3706 = vunpack.c.l.b16 %v2720
      %v3707 = vunpack.c.l.b16 %v2721
      %v3708 = vunpack.c.l.b16 %v2722
      %v3709 = vunpack.c.l.b16 %v2723
      %v3710 = vunpack.c.l.b16 %v2724
      %v3711 = vunpack.c.l.b16 %v2725
      %v3712 = vunpack.c.l.b16 %v2726
      %v3713 = vunpack.c.l.b16 %v2727
      %v3714 = vunpack.c.l.b16 %v2728
      %v3715 = vunpack.c.l.b16 %v2729
      %v3716 = vunpack.c.l.b16 %v2730
      %v3717 = vunpack.c.l.b16 %v2731
      %v3718 = vunpack.c.l.b16 %v2732
      %v3719 = vunpack.c.l.b16 %v2733
      %v3720 = vunpack.c.l.b16 %v2734
      %v3721 = vunpack.c.l.b16 %v2735
      %v3722 = vunpack.c.l.b16 %v2736
      %v3723 = vunpack.c.l.b16 %v2737
      %v3724 = vunpack.c.l.b16 %v2738
      %v3725 = vunpack.c.l.b16 %v2739
      %v3726 = vunpack.c.l.b16 %v2740
      %v3727 = vunpack.c.l.b16 %v2741
      %v3728 = vunpack.c.l.b16 %v2742
      %v3729 = vunpack.c.l.b16 %v2743
      %v3730 = vunpack.c.l.b16 %v2744
      %v3731 = vunpack.c.l.b16 %v2745
      %v3732 = vunpack.c.l.b16 %v2746
      %v3733 = vunpack.c.l.b16 %v2747
      %v3734 = vunpack.c.l.b16 %v2748
      %v3735 = vunpack.c.l.b16 %v2749
      %v3736 = vunpack.c.l.b16 %v2750
      %v3737 = vunpack.c.l.b16 %v2751
      %v3738 = vunpack.c.l.b16 %v2752
      %v3739 = vunpack.c.l.b16 %v2753
      %v3740 = vunpack.c.l.b16 %v2754
      %v3741 = vunpack.c.l.b16 %v2755
      %v3742 = vunpack.c.l.b16 %v2756
      %v3743 = vunpack.c.l.b16 %v2757
      %v3744 = vunpack.c.l.b16 %v2758
      %v3745 = vunpack.c.l.b16 %v2759
      %v3746 = vunpack.c.l.b16 %v2760
      %v3747 = vunpack.c.l.b16 %v2761
      %v3748 = vunpack.c.l.b16 %v2762
      %v3749 = vunpack.c.l.b16 %v2763
      %v3750 = vunpack.c.l.b16 %v2764
      %v3751 = vunpack.c.l.b16 %v2765
      %v3752 = vunpack.c.l.b16 %v2766
      %v3753 = vunpack.c.l.b16 %v2767
      %v3754 = vunpack.c.l.b16 %v2768
      %v3755 = vunpack.c.l.b16 %v2769
      %v3756 = vunpack.c.l.b16 %v2770
      %v3757 = vunpack.c.l.b16 %v2771
      %v3758 = vpack.c.b16 %v3503, %v3502
      %v3759 = vpack.c.b16 %v3505, %v3504
      %v3760 = vpack.c.b16 %v3507, %v3506
      %v3761 = vpack.c.b16 %v3509, %v3508
      %v3762 = vpack.c.b16 %v3511, %v3510
      %v3763 = vpack.c.b16 %v3513, %v3512
      %v3764 = vpack.c.b16 %v3515, %v3514
      %v3765 = vpack.c.b16 %v3517, %v3516
      %v3766 = vpack.c.b16 %v3519, %v3518
      %v3767 = vpack.c.b16 %v3521, %v3520
      %v3768 = vpack.c.b16 %v3523, %v3522
      %v3769 = vpack.c.b16 %v3525, %v3524
      %v3770 = vpack.c.b16 %v3527, %v3526
      %v3771 = vpack.c.b16 %v3529, %v3528
      %v3772 = vpack.c.b16 %v3531, %v3530
      %v3773 = vpack.c.b16 %v3533, %v3532
      %v3774 = vpack.c.b16 %v3535, %v3534
      %v3775 = vpack.c.b16 %v3537, %v3536
      %v3776 = vpack.c.b16 %v3539, %v3538
      %v3777 = vpack.c.b16 %v3541, %v3540
      %v3778 = vpack.c.b16 %v3543, %v3542
      %v3779 = vpack.c.b16 %v3545, %v3544
      %v3780 = vpack.c.b16 %v3547, %v3546
      %v3781 = vpack.c.b16 %v3549, %v3548
      %v3782 = vpack.c.b16 %v3551, %v3550
      %v3783 = vpack.c.b16 %v3553, %v3552
      %v3784 = vpack.c.b16 %v3555, %v3554
      %v3785 = vpack.c.b16 %v3557, %v3556
      %v3786 = vpack.c.b16 %v3559, %v3558
      %v3787 = vpack.c.b16 %v3561, %v3560
      %v3788 = vpack.c.b16 %v3563, %v3562
      %v3789 = vpack.c.b16 %v3565, %v3564
      %v3790 = vpack.c.b16 %v3567, %v3566
      %v3791 = vpack.c.b16 %v3569, %v3568
      %v3792 = vpack.c.b16 %v3571, %v3570
      %v3793 = vpack.c.b16 %v3573, %v3572
      %v3794 = vpack.c.b16 %v3575, %v3574
      %v3795 = vpack.c.b16 %v3577, %v3576
      %v3796 = vpack.c.b16 %v3579, %v3578
      %v3797 = vpack.c.b16 %v3581, %v3580
      %v3798 = vpack.c.b16 %v3583, %v3582
      %v3799 = vpack.c.b16 %v3585, %v3584
      %v3800 = vpack.c.b16 %v3587, %v3586
      %v3801 = vpack.c.b16 %v3589, %v3588
      %v3802 = vpack.c.b16 %v3591, %v3590
      %v3803 = vpack.c.b16 %v3593, %v3592
      %v3804 = vpack.c.b16 %v3595, %v3594
      %v3805 = vpack.c.b16 %v3597, %v3596
      %v3806 = vpack.c.b16 %v3599, %v3598
      %v3807 = vpack.c.b16 %v3601, %v3600
      %v3808 = vpack.c.b16 %v3603, %v3602
      %v3809 = vpack.c.b16 %v3605, %v3604
      %v3810 = vpack.c.b16 %v3607, %v3606
      %v3811 = vpack.c.b16 %v3609, %v3608
      %v3812 = vpack.c.b16 %v3611, %v3610
      %v3813 = vpack.c.b16 %v3613, %v3612
      %v3814 = vpack.c.b16 %v3615, %v3614
      %v3815 = vpack.c.b16 %v3617, %v3616
      %v3816 = vpack.c.b16 %v3619, %v3618
      %v3817 = vpack.c.b16 %v3621, %v3620
      %v3818 = vpack.c.b16 %v3623, %v3622
      %v3819 = vpack.c.b16 %v3625, %v3624
      %v3820 = vpack.c.b16 %v3627, %v3626
      %v3821 = vpack.c.b16 %v3629, %v3628
      %v3822 = vpack.c.b16 %v3631, %v3630
      %v3823 = vpack.c.b16 %v3633, %v3632
      %v3824 = vpack.c.b16 %v3635, %v3634
      %v3825 = vpack.c.b16 %v3637, %v3636
      %v3826 = vpack.c.b16 %v3639, %v3638
      %v3827 = vpack.c.b16 %v3641, %v3640
      %v3828 = vpack.c.b16 %v3643, %v3642
      %v3829 = vpack.c.b16 %v3645, %v3644
      %v3830 = vpack.c.b16 %v3647, %v3646
      %v3831 = vpack.c.b16 %v3649, %v3648
      %v3832 = vpack.c.b16 %v3651, %v3650
      %v3833 = vpack.c.b16 %v3653, %v3652
      %v3834 = vpack.c.b16 %v3655, %v3654
      %v3835 = vpack.c.b16 %v3657, %v3656
      %v3836 = vpack.c.b16 %v3659, %v3658
      %v3837 = vpack.c.b16 %v3661, %v3660
      %v3838 = vpack.c.b16 %v3663, %v3662
      %v3839 = vpack.c.b16 %v3665, %v3664
      %v3840 = vpack.c.b16 %v3667, %v3666
      %v3841 = vpack.c.b16 %v3669, %v3668
      %v3842 = vpack.c.b16 %v3671, %v3670
      %v3843 = vpack.c.b16 %v3673, %v3672
      %v3844 = vpack.c.b16 %v3675, %v3674
      %v3845 = vpack.c.b16 %v3677, %v3676
      %v3846 = vpack.c.b16 %v3679, %v3678
      %v3847 = vpack.c.b16 %v3681, %v3680
      %v3848 = vpack.c.b16 %v3683, %v3682
      %v3849 = vpack.c.b16 %v3685, %v3684
      %v3850 = vpack.c.b16 %v3687, %v3686
      %v3851 = vpack.c.b16 %v3689, %v3688
      %v3852 = vpack.c.b16 %v3691, %v3690
      %v3853 = vpack.c.b16 %v3693, %v3692
      %v3854 = vpack.c.b16 %v3695, %v3694
      %v3855 = vpack.c.b16 %v3697, %v3696
      %v3856 = vpack.c.b16 %v3699, %v3698
      %v3857 = vpack.c.b16 %v3701, %v3700
      %v3858 = vpack.c.b16 %v3703, %v3702
      %v3859 = vpack.c.b16 %v3705, %v3704
      %v3860 = vpack.c.b16 %v3707, %v3706
      %v3861 = vpack.c.b16 %v3709, %v3708
      %v3862 = vpack.c.b16 %v3711, %v3710
      %v3863 = vpack.c.b16 %v3713, %v3712
      %v3864 = vpack.c.b16 %v3715, %v3714
      %v3865 = vpack.c.b16 %v3717, %v3716
      %v3866 = vpack.c.b16 %v3719, %v3718
      %v3867 = vpack.c.b16 %v3721, %v3720
      %v3868 = vpack.c.b16 %v3723, %v3722
      %v3869 = vpack.c.b16 %v3725, %v3724
      %v3870 = vpack.c.b16 %v3727, %v3726
      %v3871 = vpack.c.b16 %v3729, %v3728
      %v3872 = vpack.c.b16 %v3731, %v3730
      %v3873 = vpack.c.b16 %v3733, %v3732
      %v3874 = vpack.c.b16 %v3735, %v3734
      %v3875 = vpack.c.b16 %v3737, %v3736
      %v3876 = vpack.c.b16 %v3739, %v3738
      %v3877 = vpack.c.b16 %v3741, %v3740
      %v3878 = vpack.c.b16 %v3743, %v3742
      %v3879 = vpack.c.b16 %v3745, %v3744
      %v3880 = vpack.c.b16 %v3747, %v3746
      %v3881 = vpack.c.b16 %v3749, %v3748
      %v3882 = vpack.c.b16 %v3751, %v3750
      %v3883 = vpack.c.b16 %v3753, %v3752
      %v3884 = vpack.c.b16 %v3755, %v3754
      %v3885 = vpack.c.b16 %v3757, %v3756
      %4014 = vmatpush.bf16.msra.mxu0 %v3765
      %4015 = vmatpush.bf16.msra.mxu0 %v3764
      %4016 = vmatpush.bf16.msra.mxu0 %v3763
      %4017 = vmatpush.bf16.msra.mxu0 %v3762
      %4018 = vmatpush.bf16.msra.mxu0 %v3761
      %4019 = vmatpush.bf16.msra.mxu0 %v3760
      %4020 = vmatpush.bf16.msra.mxu0 %v3759
      %4021 = vmatpush.bf16.msra.mxu0 %v3758
      %4022 = vmatmul.bf16.gmra.mxu0 %v3227
      %v4023 = vpop.f32.mrf.mxu0
      %v4024 = vadd.f32 %v3244, %v4023
      %v4025 = vpop.f32.mrf.mxu0
      %v4026 = vadd.f32 %v3244, %v4025
      %4027 = vdwg.mxu0
      %4028 = vmatpush.bf16.msra.mxu0 %v3773
      %4029 = vmatpush.bf16.msra.mxu0 %v3772
      %4030 = vmatpush.bf16.msra.mxu0 %v3771
      %4031 = vmatpush.bf16.msra.mxu0 %v3770
      %4032 = vmatpush.bf16.msra.mxu0 %v3769
      %4033 = vmatpush.bf16.msra.mxu0 %v3768
      %4034 = vmatpush.bf16.msra.mxu0 %v3767
      %4035 = vmatpush.bf16.msra.mxu0 %v3766
      %4036 = vmatmul.bf16.gmra.mxu0 %v3228
      %v4037 = vpop.f32.mrf.mxu0
      %v4038 = vadd.f32 %v4024, %v4037
      %v4039 = vpop.f32.mrf.mxu0
      %v4040 = vadd.f32 %v4026, %v4039
      %4041 = vdwg.mxu0
      %4042 = vmatpush.bf16.msra.mxu0 %v3781
      %4043 = vmatpush.bf16.msra.mxu0 %v3780
      %4044 = vmatpush.bf16.msra.mxu0 %v3779
      %4045 = vmatpush.bf16.msra.mxu0 %v3778
      %4046 = vmatpush.bf16.msra.mxu0 %v3777
      %4047 = vmatpush.bf16.msra.mxu0 %v3776
      %4048 = vmatpush.bf16.msra.mxu0 %v3775
      %4049 = vmatpush.bf16.msra.mxu0 %v3774
      %4050 = vmatmul.bf16.gmra.mxu0 %v3229
      %v4051 = vpop.f32.mrf.mxu0
      %v4052 = vadd.f32 %v4038, %v4051
      %v4053 = vpop.f32.mrf.mxu0
      %v4054 = vadd.f32 %v4040, %v4053
      %4055 = vdwg.mxu0
      %4056 = vmatpush.bf16.msra.mxu0 %v3789
      %4057 = vmatpush.bf16.msra.mxu0 %v3788
      %4058 = vmatpush.bf16.msra.mxu0 %v3787
      %4059 = vmatpush.bf16.msra.mxu0 %v3786
      %4060 = vmatpush.bf16.msra.mxu0 %v3785
      %4061 = vmatpush.bf16.msra.mxu0 %v3784
      %4062 = vmatpush.bf16.msra.mxu0 %v3783
      %4063 = vmatpush.bf16.msra.mxu0 %v3782
      %4064 = vmatmul.bf16.gmra.mxu0 %v3230
      %v4065 = vpop.f32.mrf.mxu0
      %v4066 = vadd.f32 %v4052, %v4065
      %v4067 = vpop.f32.mrf.mxu0
      %v4068 = vadd.f32 %v4054, %v4067
      %4069 = vdwg.mxu0
      %4070 = vmatpush.bf16.msra.mxu0 %v3797
      %4071 = vmatpush.bf16.msra.mxu0 %v3796
      %4072 = vmatpush.bf16.msra.mxu0 %v3795
      %4073 = vmatpush.bf16.msra.mxu0 %v3794
      %4074 = vmatpush.bf16.msra.mxu0 %v3793
      %4075 = vmatpush.bf16.msra.mxu0 %v3792
      %4076 = vmatpush.bf16.msra.mxu0 %v3791
      %4077 = vmatpush.bf16.msra.mxu0 %v3790
      %4078 = vmatmul.bf16.gmra.mxu0 %v3231
      %v4079 = vpop.f32.mrf.mxu0
      %v4080 = vadd.f32 %v4066, %v4079
      %v4081 = vpop.f32.mrf.mxu0
      %v4082 = vadd.f32 %v4068, %v4081
      %4083 = vdwg.mxu0
      %4084 = vmatpush.bf16.msra.mxu0 %v3805
      %4085 = vmatpush.bf16.msra.mxu0 %v3804
      %4086 = vmatpush.bf16.msra.mxu0 %v3803
      %4087 = vmatpush.bf16.msra.mxu0 %v3802
      %4088 = vmatpush.bf16.msra.mxu0 %v3801
      %4089 = vmatpush.bf16.msra.mxu0 %v3800
      %4090 = vmatpush.bf16.msra.mxu0 %v3799
      %4091 = vmatpush.bf16.msra.mxu0 %v3798
      %4092 = vmatmul.bf16.gmra.mxu0 %v3232
      %v4093 = vpop.f32.mrf.mxu0
      %v4094 = vadd.f32 %v4080, %v4093
      %v4095 = vpop.f32.mrf.mxu0
      %v4096 = vadd.f32 %v4082, %v4095
      %4097 = vdwg.mxu0
      %4098 = vmatpush.bf16.msra.mxu0 %v3813
      %4099 = vmatpush.bf16.msra.mxu0 %v3812
      %4100 = vmatpush.bf16.msra.mxu0 %v3811
      %4101 = vmatpush.bf16.msra.mxu0 %v3810
      %4102 = vmatpush.bf16.msra.mxu0 %v3809
      %4103 = vmatpush.bf16.msra.mxu0 %v3808
      %4104 = vmatpush.bf16.msra.mxu0 %v3807
      %4105 = vmatpush.bf16.msra.mxu0 %v3806
      %4106 = vmatmul.bf16.gmra.mxu0 %v3233
      %v4107 = vpop.f32.mrf.mxu0
      %v4108 = vadd.f32 %v4094, %v4107
      %v4109 = vpop.f32.mrf.mxu0
      %v4110 = vadd.f32 %v4096, %v4109
      %4111 = vdwg.mxu0
      %4112 = vmatpush.bf16.msra.mxu0 %v3821
      %4113 = vmatpush.bf16.msra.mxu0 %v3820
      %4114 = vmatpush.bf16.msra.mxu0 %v3819
      %4115 = vmatpush.bf16.msra.mxu0 %v3818
      %4116 = vmatpush.bf16.msra.mxu0 %v3817
      %4117 = vmatpush.bf16.msra.mxu0 %v3816
      %4118 = vmatpush.bf16.msra.mxu0 %v3815
      %4119 = vmatpush.bf16.msra.mxu0 %v3814
      %4120 = vmatmul.bf16.gmra.mxu0 %v3234
      %v4121 = vpop.f32.mrf.mxu0
      %v4122 = vadd.f32 %v4108, %v4121
      %v4123 = vpop.f32.mrf.mxu0
      %v4124 = vadd.f32 %v4110, %v4123
      %4125 = vdwg.mxu0
      %4126 = vmatpush.bf16.msra.mxu0 %v3829
      %4127 = vmatpush.bf16.msra.mxu0 %v3828
      %4128 = vmatpush.bf16.msra.mxu0 %v3827
      %4129 = vmatpush.bf16.msra.mxu0 %v3826
      %4130 = vmatpush.bf16.msra.mxu0 %v3825
      %4131 = vmatpush.bf16.msra.mxu0 %v3824
      %4132 = vmatpush.bf16.msra.mxu0 %v3823
      %4133 = vmatpush.bf16.msra.mxu0 %v3822
      %4134 = vmatmul.bf16.gmra.mxu0 %v3235
      %v4135 = vpop.f32.mrf.mxu0
      %v4136 = vadd.f32 %v4122, %v4135
      %v4137 = vpop.f32.mrf.mxu0
      %v4138 = vadd.f32 %v4124, %v4137
      %4139 = vdwg.mxu0
      %4140 = vmatpush.bf16.msra.mxu0 %v3837
      %4141 = vmatpush.bf16.msra.mxu0 %v3836
      %4142 = vmatpush.bf16.msra.mxu0 %v3835
      %4143 = vmatpush.bf16.msra.mxu0 %v3834
      %4144 = vmatpush.bf16.msra.mxu0 %v3833
      %4145 = vmatpush.bf16.msra.mxu0 %v3832
      %4146 = vmatpush.bf16.msra.mxu0 %v3831
      %4147 = vmatpush.bf16.msra.mxu0 %v3830
      %4148 = vmatmul.bf16.gmra.mxu0 %v3236
      %v4149 = vpop.f32.mrf.mxu0
      %v4150 = vadd.f32 %v4136, %v4149
      %v4151 = vpop.f32.mrf.mxu0
      %v4152 = vadd.f32 %v4138, %v4151
      %4153 = vdwg.mxu0
      %4154 = vmatpush.bf16.msra.mxu0 %v3845
      %4155 = vmatpush.bf16.msra.mxu0 %v3844
      %4156 = vmatpush.bf16.msra.mxu0 %v3843
      %4157 = vmatpush.bf16.msra.mxu0 %v3842
      %4158 = vmatpush.bf16.msra.mxu0 %v3841
      %4159 = vmatpush.bf16.msra.mxu0 %v3840
      %4160 = vmatpush.bf16.msra.mxu0 %v3839
      %4161 = vmatpush.bf16.msra.mxu0 %v3838
      %4162 = vmatmul.bf16.gmra.mxu0 %v3237
      %v4163 = vpop.f32.mrf.mxu0
      %v4164 = vadd.f32 %v4150, %v4163
      %v4165 = vpop.f32.mrf.mxu0
      %v4166 = vadd.f32 %v4152, %v4165
      %4167 = vdwg.mxu0
      %4168 = vmatpush.bf16.msra.mxu0 %v3853
      %4169 = vmatpush.bf16.msra.mxu0 %v3852
      %4170 = vmatpush.bf16.msra.mxu0 %v3851
      %4171 = vmatpush.bf16.msra.mxu0 %v3850
      %4172 = vmatpush.bf16.msra.mxu0 %v3849
      %4173 = vmatpush.bf16.msra.mxu0 %v3848
      %4174 = vmatpush.bf16.msra.mxu0 %v3847
      %4175 = vmatpush.bf16.msra.mxu0 %v3846
      %4176 = vmatmul.bf16.gmra.mxu0 %v3238
      %v4177 = vpop.f32.mrf.mxu0
      %v4178 = vadd.f32 %v4164, %v4177
      %v4179 = vpop.f32.mrf.mxu0
      %v4180 = vadd.f32 %v4166, %v4179
      %4181 = vdwg.mxu0
      %4182 = vmatpush.bf16.msra.mxu0 %v3861
      %4183 = vmatpush.bf16.msra.mxu0 %v3860
      %4184 = vmatpush.bf16.msra.mxu0 %v3859
      %4185 = vmatpush.bf16.msra.mxu0 %v3858
      %4186 = vmatpush.bf16.msra.mxu0 %v3857
      %4187 = vmatpush.bf16.msra.mxu0 %v3856
      %4188 = vmatpush.bf16.msra.mxu0 %v3855
      %4189 = vmatpush.bf16.msra.mxu0 %v3854
      %4190 = vmatmul.bf16.gmra.mxu0 %v3239
      %v4191 = vpop.f32.mrf.mxu0
      %v4192 = vadd.f32 %v4178, %v4191
      %v4193 = vpop.f32.mrf.mxu0
      %v4194 = vadd.f32 %v4180, %v4193
      %4195 = vdwg.mxu0
      %4196 = vmatpush.bf16.msra.mxu0 %v3869
      %4197 = vmatpush.bf16.msra.mxu0 %v3868
      %4198 = vmatpush.bf16.msra.mxu0 %v3867
      %4199 = vmatpush.bf16.msra.mxu0 %v3866
      %4200 = vmatpush.bf16.msra.mxu0 %v3865
      %4201 = vmatpush.bf16.msra.mxu0 %v3864
      %4202 = vmatpush.bf16.msra.mxu0 %v3863
      %4203 = vmatpush.bf16.msra.mxu0 %v3862
      %4204 = vmatmul.bf16.gmra.mxu0 %v3240
      %v4205 = vpop.f32.mrf.mxu0
      %v4206 = vadd.f32 %v4192, %v4205
      %v4207 = vpop.f32.mrf.mxu0
      %v4208 = vadd.f32 %v4194, %v4207
      %4209 = vdwg.mxu0
      %4210 = vmatpush.bf16.msra.mxu0 %v3877
      %4211 = vmatpush.bf16.msra.mxu0 %v3876
      %4212 = vmatpush.bf16.msra.mxu0 %v3875
      %4213 = vmatpush.bf16.msra.mxu0 %v3874
      %4214 = vmatpush.bf16.msra.mxu0 %v3873
      %4215 = vmatpush.bf16.msra.mxu0 %v3872
      %4216 = vmatpush.bf16.msra.mxu0 %v3871
      %4217 = vmatpush.bf16.msra.mxu0 %v3870
      %4218 = vmatmul.bf16.gmra.mxu0 %v3241
      %v4219 = vpop.f32.mrf.mxu0
      %v4220 = vadd.f32 %v4206, %v4219
      %v4221 = vpop.f32.mrf.mxu0
      %v4222 = vadd.f32 %v4208, %v4221
      %4223 = vdwg.mxu0
      %4224 = vmatpush.bf16.msra.mxu0 %v3885
      %4225 = vmatpush.bf16.msra.mxu0 %v3884
      %4226 = vmatpush.bf16.msra.mxu0 %v3883
      %4227 = vmatpush.bf16.msra.mxu0 %v3882
      %4228 = vmatpush.bf16.msra.mxu0 %v3881
      %4229 = vmatpush.bf16.msra.mxu0 %v3880
      %4230 = vmatpush.bf16.msra.mxu0 %v3879
      %4231 = vmatpush.bf16.msra.mxu0 %v3878
      %4232 = vmatmul.bf16.gmra.mxu0 %v3242
      %v4233 = vpop.f32.mrf.mxu0
      %v4234 = vadd.f32 %v4220, %v4233
      %v4235 = vpop.f32.mrf.mxu0
      %v4236 = vadd.f32 %v4222, %v4235
      %4237 = vdwg.mxu0
      %v4238 = vadd.f32 %v2480, %v4234
      %v4239 = vadd.f32 %v2481, %v4236
      %v4240 = vld [vmem:[%s1051] sm:$0x1]
      %v4241 = vld [vmem:[%s1054] sm:$0x1]
      %v4242 = vsel %vm1092, %v4238, 0.0
      %4243 = vadd.xlane.f32.xlu0 %v4242
      %v4244 = vpop.xlane.xlu0 %4243
      %v4245 = vsel %vm1092, %v4239, 0.0
      %4246 = vadd.xlane.f32.xlu0 %v4245
      %v4247 = vpop.xlane.xlu0 %4246
      %v4248 = vmul.f32 %v4244, %v1715
      %v4249 = vmul.f32 %v4247, %v1715
      %v4250 = vsub.f32 %v4238, %v4248
      %v4251 = vsub.f32 %v4239, %v4249
      %v4252 = vmul.f32 %v4250, %v4250
      %v4253 = vmul.f32 %v4251, %v4251
      %v4254 = vsel %vm1092, %v4252, 0.0
      %4255 = vadd.xlane.f32.xlu0 %v4254
      %v4256 = vpop.xlane.xlu0 %4255
      %v4257 = vsel %vm1092, %v4253, 0.0
      %4258 = vadd.xlane.f32.xlu0 %v4257
      %v4259 = vpop.xlane.xlu0 %4258
      %v4260 = vmul.f32 %v4256, %v1715
      %v4261 = vmul.f32 %v4259, %v1715
      %v4262 = vadd.f32 %v4260, 1e-05
      %v4263 = vadd.f32 %v4261, 1e-05
      %v4264 = vrsqrt.pop %v4262
      %v4265 = vmul.f32 %v4264, %v4262
      %v4266 = vmul.f32 %v4265, %v4264
      %v4267 = vmul.f32 0.5, %v4266
      %v4268 = vsub.f32 1.5, %v4267
      %v4269 = vmul.f32 %v4264, %v4268
      %vm4270 = vweird.f32 %v4262
      %vm4271 = vweird.f32 %v4264
      %vm4272 = vmor %vm4270, %vm4271
      %v4273 = vsel %vm4272, %v4264, %v4269
      %v4274 = vrsqrt.pop %v4263
      %v4275 = vmul.f32 %v4274, %v4263
      %v4276 = vmul.f32 %v4275, %v4274
      %v4277 = vmul.f32 0.5, %v4276
      %v4278 = vsub.f32 1.5, %v4277
      %v4279 = vmul.f32 %v4274, %v4278
      %vm4280 = vweird.f32 %v4263
      %vm4281 = vweird.f32 %v4274
      %vm4282 = vmor %vm4280, %vm4281
      %v4283 = vsel %vm4282, %v4274, %v4279
      %v4284 = vmul.f32 %v4250, %v4273
      %v4285 = vmul.f32 %v4251, %v4283
      %v4287 = vperm.slane %v4240, 0
      %v4289 = vmul.f32 %v4284, %v4287
      %v4290 = vmul.f32 %v4285, %v4287
      %v4292 = vperm.slane %v4241, 0
      %v4294 = vadd.f32 %v4289, %v4292
      %v4295 = vadd.f32 %v4290, %v4292
      %4296 = vst.msk [vmem:[#allocation2] sm:$0xff] %vm1092, %v4294
      %4297 = vst.msk [vmem:[#allocation2 + $0x8] sm:$0xff] %vm1092, %v4295
      %p4298 = scmp.eq.s32.totalorder %s36, 1
      // Predicated region
      $region125: #{transformer_forward.3} parent=119 // pred_check
        %p4299 = pneg %p4298
      $region126: #{transformer_forward.3} parent=119 // pred_check_branch
        %4301 = sbr.rel (%p4299) target = $region128
      $region127: #{transformer_forward.3} parent=119 // pred_region
        %v4302 = vpack.c.bf16 %v4295, %v4294
        %v4303 = vld [vmem:[%s23] sm:$0xf]
        %v4304 = vld [vmem:[%s23 + $0x4] sm:$0xf]
        %v4305 = vld [vmem:[%s23 + $0x8] sm:$0xf]
        %v4306 = vld [vmem:[%s23 + $0xc] sm:$0xf]
        %v4307 = vld [vmem:[%s24] sm:$0x1]
        %v4309 = vperm.slane %v4307, 0
        %v4315 = vunpack.c.l.b16 %v4303
        %v4316 = vunpack.c.l.b16 %v4304
        %v4317 = vunpack.c.l.b16 %v4305
        %v4318 = vunpack.c.l.b16 %v4306
        %v4319 = vpack.c.b16 %v4316, %v4315
        %v4320 = vpack.c.b16 %v4318, %v4317
        %v4324 = vsel %vm1092, %v4302, 0
        %4326 = vmatpush.bf16.msra.mxu0 0
        %4327 = vmatpush.bf16.msra.mxu0 0
        %4328 = vmatpush.bf16.msra.mxu0 0
        %4329 = vmatpush.bf16.msra.mxu0 0
        %4330 = vmatpush.bf16.msra.mxu0 0
        %4331 = vmatpush.bf16.msra.mxu0 0
        %4332 = vmatpush.bf16.msra.mxu0 %v4320
        %4333 = vmatpush.bf16.msra.mxu0 %v4319
        %4334 = vmatmul.bf16.gmra.mxu0 %v4324
        %v4335 = vpop.f32.mrf.mxu0
        %v4336 = vadd.f32 %v4309, %v4335
        %v4337 = vpop.f32.mrf.mxu0
        %v4338 = vadd.f32 %v4309, %v4337
        %4339 = vdwg.mxu0
        %4340 = vst [vmem:[%s25] sm:$0xff] %v4336
        %4341 = vst [vmem:[%s25 + $0x8] sm:$0xff] %v4338
      $region128: #{transformer_forward.3} parent=119 // pred_fallthru
        _
      // Predicated region
      $region129: #{transformer_forward.3} parent=119 // pred_check
        %p4342 = pneg %p674
      $region130: #{transformer_forward.3} parent=119 // pred_check_branch
        %4344 = sbr.rel (%p4342) target = $region132
      $region131: #{transformer_forward.3} parent=119 // pred_region
        _
      $region132: #{transformer_forward.3} parent=119 // pred_fallthru
        _
      // Predicated region
      $region133: #{transformer_forward.3} parent=119 // pred_check
        %p4345 = pneg %p674
      $region134: #{transformer_forward.3} parent=119 // pred_check_branch
        %4347 = sbr.rel (%p4345) target = $region136
      $region135: #{transformer_forward.3} parent=119 // pred_region
        _
      $region136: #{transformer_forward.3} parent=119 // pred_fallthru
        _
    $region120: #{transformer_forward.3} parent=5 // pred_fallthru
      _
    %p4348 = scmp.le.s32.totalorder 2, %s31
    // Predicated region
    $region137: #{transformer_forward.3} parent=5 // pred_check
      %p4349 = pneg %p4348
    $region138: #{transformer_forward.3} parent=5 // pred_check_branch
      %4351 = sbr.rel (%p4349) target = $region140
    $region139: #{transformer_forward.3} parent=5 // pred_region
      %s4352 = ssub.s32 %s31, 2
    $region140: #{transformer_forward.3} parent=5 // pred_fallthru
      _
  $region6: #{transformer_forward.3} parent=0 // loop_footer
    %s35 = sadd.s32 1, %s31
  $region7: #{transformer_forward.3} parent=0 // loop_footer_branch
    %30 = sbr.rel target = $region3
  $region8: #{transformer_forward.3} parent=0 // loop_exit
    _

</llo_original>
